<compile_context>
chip_gen: v5e
topology: v5e:2x2
jax: 0.10.0
libtpu: 0.0.40
codegen_flags: <defaults>
</compile_context>

<pallas_src>
import functools
import math

import jax
import jax.numpy as jnp
from jax import lax
from jax.experimental import pallas as pl
from jax.experimental.pallas import tpu as pltpu

_BN_EPS = 1e-5          # PyTorch BatchNorm2d default
_EPS = 1e-7             # clamp epsilon used by RI_features
_HALF_PI = math.pi / 2.0


# ---------------------------------------------------------------------------
# In-kernel helpers (only ops with guaranteed Mosaic lowerings).
# ---------------------------------------------------------------------------
def _safe_unit(vx, vy, vz):
    """Normalize a 3-vector stored as component planes; 0-length -> 0.

    NOTE: the un-selected branch evaluates 0 * rsqrt(0) = NaN, which is benign
    under select semantics (jnp.where picks the finite branch).  Do not "fix"
    this into a division - it mirrors the reference's `unit[unit != unit] = 0`.
    """
    len_sq = vx * vx + vy * vy + vz * vz
    inv = lax.rsqrt(len_sq)
    ok = len_sq > 0.0
    zero = jnp.zeros_like(vx)
    return (jnp.where(ok, vx * inv, zero),
            jnp.where(ok, vy * inv, zero),
            jnp.where(ok, vz * inv, zero),
            len_sq)


def _sign(x):
    one = jnp.ones_like(x)
    return jnp.where(x > 0.0, one, jnp.where(x < 0.0, -one, jnp.zeros_like(x)))


def _acos(x):
    """acos(x), x in (-1, 1): Cephes asinf polynomial + identities (|err|~1e-7)."""
    a = jnp.abs(x)
    big = a > 0.5
    z = jnp.where(big, 0.5 * (1.0 - a), a * a)
    t = jnp.where(big, jnp.sqrt(0.5 * (1.0 - a)), a)
    p = ((((4.2163199048e-2 * z + 2.4181311049e-2) * z + 4.5470025998e-2) * z
          + 7.4953002686e-2) * z + 1.6666752422e-1)
    asin_t = t + t * z * p
    asin_a = jnp.where(big, _HALF_PI - 2.0 * asin_t, asin_t)
    asin_x = jnp.where(x < 0.0, -asin_a, asin_a)
    return _HALF_PI - asin_x


# ---------------------------------------------------------------------------
# The fused kernel: order_index + sort + RI features + MLP + max-pool over K.
# ---------------------------------------------------------------------------
def ri_encoder_kernel(xyz_ref, nrm_ref, cnorm_ref, *rest, num_layers):
    """One (batch, S-tile) block of the full RI_encoder forward.

    Layout: every working plane is (K, tS) - neighbours on sublanes, the S-tile
    on lanes - so all VPU/EUP work is lane-dense and the store is one dense
    (C_last, tS) block.
    """
    *wb_refs, out_ref = rest

    g = xyz_ref[0].astype(jnp.float32)       # (3, K, tS)  local neighbour coords
    n = nrm_ref[0].astype(jnp.float32)       # (3, K, tS)  neighbour normals
    cn = cnorm_ref[0].astype(jnp.float32)    # (3, tS)     centre normals

    gx, gy, gz = g[0], g[1], g[2]            # (K, tS) planes (major-dim slices)
    nx, ny, nz = n[0], n[1], n[2]
    mx, my, mz = cn[0:1, :], cn[1:2, :], cn[2:3, :]   # (1, tS)

    K, tS = gx.shape

    # ---------------- order_index: signed projected-angle sort keys ----------
    dist = gx * mx + gy * my + gz * mz
    px, py, pz = gx - dist * mx, gy - dist * my, gz - dist * mz
    ux, uy, uz, plen_sq = _safe_unit(px, py, pz)

    k_iota = lax.broadcasted_iota(jnp.int32, (K, tS), 0)
    kfl = k_iota.astype(jnp.float32)
    max_len = jnp.max(plen_sq, axis=0, keepdims=True)
    # First maximal index (torch.argmax tie-break) via min-of-masked-iota.
    sel = jnp.min(jnp.where(plen_sq == max_len, kfl, float(K)),
                  axis=0, keepdims=True)
    one_hot = (kfl == sel).astype(jnp.float32)
    vrx = jnp.sum(ux * one_hot, axis=0, keepdims=True)
    vry = jnp.sum(uy * one_hot, axis=0, keepdims=True)
    vrz = jnp.sum(uz * one_hot, axis=0, keepdims=True)

    dots = ux * vrx + uy * vry + uz * vrz                 # cos(angle)
    cxp = uy * vrz - uz * vry                             # (u x v_ref)
    cyp = uz * vrx - ux * vrz
    czp = ux * vry - uy * vrx
    sgn = _sign(cxp * mx + cyp * my + czp * mz)
    sgn = jnp.where(k_iota == 0, 1.0, sgn)                # first neighbour -> +1
    dots = sgn * dots - (1.0 - sgn)                       # (K, tS) sort keys

    # ---------------- in-kernel descending sort over K (K == 16) -------------
    # rank[k] = position of neighbour k in a stable descending sort of `dots`
    # (ties broken by original index, matching a stable argsort).
    rank = jnp.zeros((K, tS), jnp.int32)
    for j in range(K):
        dj = dots[j:j + 1, :]
        ahead = (dj > dots) | ((dj == dots) & (j < k_iota))
        rank = rank + ahead.astype(jnp.int32)

    # The ordering is only ever consumed through torch.roll(sorted, 1, K), i.e.
    # through each token's *cyclic predecessor in sorted order*.  Because the
    # MLP is pointwise over (s,k) tokens and the max-pool over K is order
    # invariant, we never materialise the sorted tensors: we gather each
    # neighbour's predecessor values with one-hot sums (this also folds the
    # torch.roll away - no pltpu.roll / slice+concat copies needed at all).
    pred_rank = jnp.where(rank == 0, K - 1, rank - 1)
    prev_sel = [(pred_rank == rank[j:j + 1, :]).astype(jnp.float32)
                for j in range(K)]

    def gather_prev(x):
        acc = prev_sel[0] * x[0:1, :]
        for j in range(1, K):
            acc = acc + prev_sel[j] * x[j:j + 1, :]
        return acc

    d_prev = gather_prev(dots)
    lx_prev, ly_prev, lz_prev = gather_prev(gx), gather_prev(gy), gather_prev(gz)
    nx_prev, ny_prev, nz_prev = gather_prev(nx), gather_prev(ny), gather_prev(nz)

    # ---------------- 8 rotation-invariant feature planes, (K, tS) -----------
    lux, luy, luz, llen_sq = _safe_unit(gx, gy, gz)
    length = jnp.sqrt(llen_sq)                                       # feat 0

    # dots_sorted - roll(dots_sorted,1); the top-ranked token's slot becomes
    # -3 - dots_sorted[-1] (== -3 - its cyclic predecessor value).
    proj_inner = jnp.where(rank == 0, -3.0 - d_prev, dots - d_prev)  # feat 1

    angle_0 = lux * mx + luy * my + luz * mz                         # feat 2
    angle_1 = lux * nx + luy * ny + luz * nz                         # feat 3
    ang_norm = _acos(jnp.clip(nx * mx + ny * my + nz * mz,
                              -1.0 + _EPS, 1.0 - _EPS))
    # Intended +/-1 sign select (reference writes -1 into a bool tensor).
    d0 = jnp.where(angle_0 < angle_1, 1.0, -1.0)
    ang_norm = d0 * ang_norm                                         # feat 4

    ivx, ivy, ivz = gx - lx_prev, gy - ly_prev, gz - lz_prev
    iux, iuy, iuz, _ = _safe_unit(ivx, ivy, ivz)
    in_ang0 = iux * nx + iuy * ny + iuz * nz                         # feat 5
    in_ang1 = iux * nx_prev + iuy * ny_prev + iuz * nz_prev          # feat 6
    in_ang2 = _acos(jnp.clip(nx * nx_prev + ny * ny_prev + nz * nz_prev,
                             -1.0 + _EPS, 1.0 - _EPS))
    d1 = jnp.where(in_ang0 < in_ang1, 1.0, -1.0)
    in_ang2 = d1 * in_ang2                                           # feat 7

    feats = (length, proj_inner, angle_0, angle_1, ang_norm,
             in_ang0, in_ang1, in_ang2)

    # ---------------- fused Conv1x1(+folded BN)+ReLU stack + max over K ------
    # Channels on sublanes, S-tile on lanes: the per-neighbour (8, tS) operand
    # is 8 sublane rows stacked on sublanes - no transpose/interleave before
    # the first matmul.  Weights are bf16 (C_out, C_in); matmuls accumulate in
    # f32 on the MXU; bias-add + ReLU stay f32; activations re-enter as bf16.
    ws = [wb_refs[2 * li][...] for li in range(num_layers)]
    bs = [wb_refs[2 * li + 1][...] for li in range(num_layers)]

    pooled = None
    for k in range(K):
        h = jnp.concatenate([f[k:k + 1, :] for f in feats], axis=0)   # (8, tS)
        for w, b in zip(ws, bs):
            acc = jnp.dot(w, h.astype(w.dtype),
                          preferred_element_type=jnp.float32)
            h = jnp.maximum(acc + b, 0.0)                             # (C_out, tS)
        pooled = h if pooled is None else jnp.maximum(pooled, h)

    out_ref[0] = pooled.astype(out_ref.dtype)                         # (C_last, tS)


# ---------------------------------------------------------------------------
# pallas_call wrapper.
# ---------------------------------------------------------------------------
def _pick_ts(s, target=256):
    """Largest legal S tile: a multiple of 128 dividing S (lane dense), else S."""
    if s <= target:
        return s
    for t in range(target, 127, -1):
        if s % t == 0 and t % 128 == 0:
            return t
    return s        # one full-S block (always a legal lane dim)


def _fused_ri_encoder(xyz_soa, nrm_soa, cnorm_soa, weights, biases, *, ts=None):
    B, _, K, S = xyz_soa.shape
    ts = ts or _pick_ts(S)
    if S % ts != 0:
        raise ValueError(f"S={S} must be divisible by the S tile ts={ts} "
                         "(tail rows would be silently dropped otherwise)")
    num_layers = len(weights)
    c_last = weights[-1].shape[0]

    wb_args, wb_specs = [], []
    for w, b in zip(weights, biases):
        wb_args += [w, b]
        wb_specs += [pl.BlockSpec(w.shape, lambda bi, si: (0, 0)),
                     pl.BlockSpec(b.shape, lambda bi, si: (0, 0))]

    kernel = functools.partial(ri_encoder_kernel, num_layers=num_layers)
    # Grid (B, S/ts): both axes parallel so v7x's two TensorCores get >= 2 steps
    # (B >= 2 already guarantees it even when the S axis is one block).
    return pl.pallas_call(
        kernel,
        out_shape=jax.ShapeDtypeStruct((B, c_last, S), jnp.float32),
        grid=(B, S // ts),
        in_specs=[
            pl.BlockSpec((1, 3, K, ts), lambda bi, si: (bi, 0, 0, si)),
            pl.BlockSpec((1, 3, K, ts), lambda bi, si: (bi, 0, 0, si)),
            pl.BlockSpec((1, 3, ts), lambda bi, si: (bi, 0, si)),
        ] + wb_specs,
        out_specs=pl.BlockSpec((1, c_last, ts), lambda bi, si: (bi, 0, si)),
        compiler_params=pltpu.CompilerParams(
            dimension_semantics=("parallel", "parallel"),
            # ~few MiB actually used per step; 48 MiB leaves double-buffer
            # headroom everywhere and stays under v7x's 64 MiB physical VMEM.
            vmem_limit_bytes=48 * 1024 * 1024),
    )(xyz_soa, nrm_soa, cnorm_soa, *wb_args)


def ri_encoder_forward(xyz, centers, center_norms, idx, pts, norm_ori, params,
                       *, ts=None):
    """RI_encoder.forward (eval mode).  Returns (B, S, encoder_channel[-1]).

    Everything runs inside one fused Pallas kernel except two pieces of glue:
      * norm_ori[idx] is gathered once (unordered) in XLA;
      * the final (B, C, S) -> (B, S, C) permute mirrors the module's own
        `.permute(0, 2, 1)` and touches only the smallest tensor.
    pts[idx_ordered] is never gathered: `xyz` is the already-centred
    neighbourhood, so it equals pts[idx_ordered] - centers up to the in-kernel
    re-ordering along K.
    """
    B, S, K, _ = xyz.shape
    del centers, pts   # only needed if `xyz` were not already centred

    # TODO(synk): data-dependent batched gather over the full cloud has no clean
    # Pallas TPU equivalent; it stays in XLA (done once, before ordering).
    bidx = jnp.arange(B)[:, None, None]
    grouped_norm = norm_ori[bidx, idx]                      # (B, S, K, 3)

    # SoA, lane-dense layout for the kernel: components on a major axis,
    # neighbours (K) on sublanes, sampled centres (S) on lanes.
    xyz_soa = jnp.transpose(xyz, (0, 3, 2, 1))              # (B, 3, K, S)
    nrm_soa = jnp.transpose(grouped_norm, (0, 3, 2, 1))     # (B, 3, K, S)
    cn_soa = jnp.transpose(center_norms, (0, 2, 1))         # (B, 3, S)

    out_cs = _fused_ri_encoder(xyz_soa, nrm_soa, cn_soa,
                               params["weights"], params["biases"], ts=ts)
    return jnp.transpose(out_cs, (0, 2, 1))                 # (B, S, C_last)


# ---------------------------------------------------------------------------
# Deterministic synthetic parameters: Conv2d(1x1) + eval-mode BatchNorm2d folded
# into a single affine per layer.  Channel plan: 8 -> 64 -> 128 -> encoder_channel.
# Weights are (C_out, C_in) bf16 MXU operands; biases are (C_out, 1) f32 columns.
# ---------------------------------------------------------------------------
def init_params(key, encoder_channel):
    channels = [8, 64, 128] + list(encoder_channel)
    weights, biases = [], []
    for li in range(len(channels) - 1):
        cin, cout = channels[li], channels[li + 1]
        key, kw, kb, kg, kbe, km, kv = jax.random.split(key, 7)
        bound = 1.0 / math.sqrt(cin)
        conv_w = jax.random.uniform(kw, (cout, cin), jnp.float32, -bound, bound)
        conv_b = jax.random.uniform(kb, (cout,), jnp.float32, -bound, bound)
        gamma = jax.random.uniform(kg, (cout,), jnp.float32, 0.5, 1.5)
        beta = 0.1 * jax.random.normal(kbe, (cout,), jnp.float32)
        mean = 0.1 * jax.random.normal(km, (cout,), jnp.float32)
        var = jax.random.uniform(kv, (cout,), jnp.float32, 0.5, 1.5)
        scale = gamma * jax.lax.rsqrt(var + _BN_EPS)
        w_f = conv_w * scale[:, None]                 # BN scale folded into conv
        b_f = (conv_b - mean) * scale + beta          # BN shift folded into bias
        weights.append(w_f.astype(jnp.bfloat16))      # bf16 on every layer (MXU)
        biases.append(b_f.reshape(cout, 1).astype(jnp.float32))
    return dict(weights=weights, biases=biases)


if __name__ == "__main__":
    # Small shapes consistent with the module: B=2 clouds of N=64 points,
    # S=8 sampled centres, K=16 neighbours each, encoder_channel=(128, 256).
    B, N, S, K = 2, 64, 8, 16
    encoder_channel = (128, 256)

    key = jax.random.PRNGKey(0)
    kp, kn, kc, ki, kparam = jax.random.split(key, 5)
    pts = jax.random.normal(kp, (B, N, 3), jnp.float32)
    norm_ori = jax.random.normal(kn, (B, N, 3), jnp.float32)
    norm_ori = norm_ori / jnp.linalg.norm(norm_ori, axis=-1, keepdims=True)
    center_ids = jax.random.permutation(kc, N)[:S]
    centers = pts[:, center_ids, :]                     # (B, S, 3)
    center_norms = norm_ori[:, center_ids, :]           # (B, S, 3)
    idx = jax.random.randint(ki, (B, S, K), 0, N)       # neighbour indices
    bidx = jnp.arange(B)[:, None, None]
    xyz = pts[bidx, idx] - centers[:, :, None, :]       # centred neighbourhoods

    params = init_params(kparam, encoder_channel)
    fwd = jax.jit(ri_encoder_forward)
    out = fwd(xyz, centers, center_norms, idx, pts, norm_ori, params)
    out = jax.block_until_ready(out)
    assert out.shape == (B, S, encoder_channel[-1]), out.shape
    assert bool(jnp.all(jnp.isfinite(out)))
    print("KERNEL_OK")
</pallas_src>

<mosaic_0001>
module attributes {stable_mosaic.version = 11 : i64} {
  func.func @ri_encoder_kernel(%arg0: i32, %arg1: i32, %arg2: memref<1x3x16x8xf32, #tpu.memory_space<vmem>>, %arg3: memref<1x3x16x8xf32, #tpu.memory_space<vmem>>, %arg4: memref<1x3x8xf32, #tpu.memory_space<vmem>>, %arg5: memref<64x8xbf16, #tpu.memory_space<vmem>>, %arg6: memref<64x1xf32, #tpu.memory_space<vmem>>, %arg7: memref<128x64xbf16, #tpu.memory_space<vmem>>, %arg8: memref<128x1xf32, #tpu.memory_space<vmem>>, %arg9: memref<128x128xbf16, #tpu.memory_space<vmem>>, %arg10: memref<128x1xf32, #tpu.memory_space<vmem>>, %arg11: memref<256x128xbf16, #tpu.memory_space<vmem>>, %arg12: memref<256x1xf32, #tpu.memory_space<vmem>>, %arg13: memref<1x256x8xf32, #tpu.memory_space<vmem>>) attributes {dimension_semantics = [#tpu.dimension_semantics<parallel>, #tpu.dimension_semantics<parallel>], iteration_bounds = array<i64: 2, 1>, scalar_prefetch = 0 : i64, scratch_operands = 0 : i64, tpu.core_type = #tpu.core_type<tc>, window_params = [{transform_indices = @transform_0, window_bounds = array<i64: 1, 3, 16, 8>}, {transform_indices = @transform_1, window_bounds = array<i64: 1, 3, 16, 8>}, {transform_indices = @transform_2, window_bounds = array<i64: 1, 3, 8>}, {pipeline_mode = #tpu.pipeline_mode<synchronous>, transform_indices = @transform_3, window_bounds = array<i64: 64, 8>}, {pipeline_mode = #tpu.pipeline_mode<synchronous>, transform_indices = @transform_4, window_bounds = array<i64: 64, 1>}, {pipeline_mode = #tpu.pipeline_mode<synchronous>, transform_indices = @transform_5, window_bounds = array<i64: 128, 64>}, {pipeline_mode = #tpu.pipeline_mode<synchronous>, transform_indices = @transform_6, window_bounds = array<i64: 128, 1>}, {pipeline_mode = #tpu.pipeline_mode<synchronous>, transform_indices = @transform_7, window_bounds = array<i64: 128, 128>}, {pipeline_mode = #tpu.pipeline_mode<synchronous>, transform_indices = @transform_8, window_bounds = array<i64: 128, 1>}, {pipeline_mode = #tpu.pipeline_mode<synchronous>, transform_indices = @transform_9, window_bounds = array<i64: 256, 128>}, {pipeline_mode = #tpu.pipeline_mode<synchronous>, transform_indices = @transform_10, window_bounds = array<i64: 256, 1>}, {transform_indices = @transform_11, window_bounds = array<i64: 1, 256, 8>}]} {
    %c0 = arith.constant 0 : index
    %c0_0 = arith.constant 0 : index
    %c0_1 = arith.constant 0 : index
    %c0_2 = arith.constant 0 : index
    %0 = vector.load %arg2[%c0, %c0_0, %c0_1, %c0_2] : memref<1x3x16x8xf32, #tpu.memory_space<vmem>>, vector<1x3x16x8xf32>
    %1 = vector.shape_cast %0 : vector<1x3x16x8xf32> to vector<3x16x8xf32>
    %c0_3 = arith.constant 0 : index
    %c0_4 = arith.constant 0 : index
    %c0_5 = arith.constant 0 : index
    %c0_6 = arith.constant 0 : index
    %2 = vector.load %arg3[%c0_3, %c0_4, %c0_5, %c0_6] : memref<1x3x16x8xf32, #tpu.memory_space<vmem>>, vector<1x3x16x8xf32>
    %3 = vector.shape_cast %2 : vector<1x3x16x8xf32> to vector<3x16x8xf32>
    %c0_7 = arith.constant 0 : index
    %c0_8 = arith.constant 0 : index
    %c0_9 = arith.constant 0 : index
    %4 = vector.load %arg4[%c0_7, %c0_8, %c0_9] : memref<1x3x8xf32, #tpu.memory_space<vmem>>, vector<1x3x8xf32>
    %5 = vector.shape_cast %4 : vector<1x3x8xf32> to vector<3x8xf32>
    %6 = vector.extract_strided_slice %1 {offsets = [0, 0, 0], sizes = [1, 16, 8], strides = [1, 1, 1]} : vector<3x16x8xf32> to vector<1x16x8xf32>
    %7 = vector.shape_cast %6 : vector<1x16x8xf32> to vector<16x8xf32>
    %8 = vector.extract_strided_slice %1 {offsets = [1, 0, 0], sizes = [1, 16, 8], strides = [1, 1, 1]} : vector<3x16x8xf32> to vector<1x16x8xf32>
    %9 = vector.shape_cast %8 : vector<1x16x8xf32> to vector<16x8xf32>
    %10 = vector.extract_strided_slice %1 {offsets = [2, 0, 0], sizes = [1, 16, 8], strides = [1, 1, 1]} : vector<3x16x8xf32> to vector<1x16x8xf32>
    %11 = vector.shape_cast %10 : vector<1x16x8xf32> to vector<16x8xf32>
    %12 = vector.extract_strided_slice %3 {offsets = [0, 0, 0], sizes = [1, 16, 8], strides = [1, 1, 1]} : vector<3x16x8xf32> to vector<1x16x8xf32>
    %13 = vector.shape_cast %12 : vector<1x16x8xf32> to vector<16x8xf32>
    %14 = vector.extract_strided_slice %3 {offsets = [1, 0, 0], sizes = [1, 16, 8], strides = [1, 1, 1]} : vector<3x16x8xf32> to vector<1x16x8xf32>
    %15 = vector.shape_cast %14 : vector<1x16x8xf32> to vector<16x8xf32>
    %16 = vector.extract_strided_slice %3 {offsets = [2, 0, 0], sizes = [1, 16, 8], strides = [1, 1, 1]} : vector<3x16x8xf32> to vector<1x16x8xf32>
    %17 = vector.shape_cast %16 : vector<1x16x8xf32> to vector<16x8xf32>
    %18 = vector.extract_strided_slice %5 {offsets = [0, 0], sizes = [1, 8], strides = [1, 1]} : vector<3x8xf32> to vector<1x8xf32>
    %19 = vector.extract_strided_slice %5 {offsets = [1, 0], sizes = [1, 8], strides = [1, 1]} : vector<3x8xf32> to vector<1x8xf32>
    %20 = vector.extract_strided_slice %5 {offsets = [2, 0], sizes = [1, 8], strides = [1, 1]} : vector<3x8xf32> to vector<1x8xf32>
    %21 = vector.broadcast %18 : vector<1x8xf32> to vector<16x8xf32>
    %22 = arith.mulf %7, %21 : vector<16x8xf32>
    %23 = vector.broadcast %19 : vector<1x8xf32> to vector<16x8xf32>
    %24 = arith.mulf %9, %23 : vector<16x8xf32>
    %25 = arith.addf %22, %24 : vector<16x8xf32>
    %26 = vector.broadcast %20 : vector<1x8xf32> to vector<16x8xf32>
    %27 = arith.mulf %11, %26 : vector<16x8xf32>
    %28 = arith.addf %25, %27 : vector<16x8xf32>
    %29 = vector.broadcast %18 : vector<1x8xf32> to vector<16x8xf32>
    %30 = arith.mulf %28, %29 : vector<16x8xf32>
    %31 = arith.subf %7, %30 : vector<16x8xf32>
    %32 = vector.broadcast %19 : vector<1x8xf32> to vector<16x8xf32>
    %33 = arith.mulf %28, %32 : vector<16x8xf32>
    %34 = arith.subf %9, %33 : vector<16x8xf32>
    %35 = vector.broadcast %20 : vector<1x8xf32> to vector<16x8xf32>
    %36 = arith.mulf %28, %35 : vector<16x8xf32>
    %37 = arith.subf %11, %36 : vector<16x8xf32>
    %38 = arith.mulf %31, %31 : vector<16x8xf32>
    %39 = arith.mulf %34, %34 : vector<16x8xf32>
    %40 = arith.addf %38, %39 : vector<16x8xf32>
    %41 = arith.mulf %37, %37 : vector<16x8xf32>
    %42 = arith.addf %40, %41 : vector<16x8xf32>
    %43 = math.rsqrt %42 : vector<16x8xf32>
    %cst = arith.constant 0.000000e+00 : f32
    %44 = vector.broadcast %cst : f32 to vector<16x8xf32>
    %45 = arith.cmpf ogt, %42, %44 : vector<16x8xf32>
    %cst_10 = arith.constant 0.000000e+00 : f32
    %46 = vector.broadcast %cst_10 : f32 to vector<16x8xf32>
    %47 = arith.mulf %31, %43 : vector<16x8xf32>
    %48 = arith.select %45, %47, %46 : vector<16x8xi1>, vector<16x8xf32>
    %49 = arith.mulf %34, %43 : vector<16x8xf32>
    %50 = arith.select %45, %49, %46 : vector<16x8xi1>, vector<16x8xf32>
    %51 = arith.mulf %37, %43 : vector<16x8xf32>
    %52 = arith.select %45, %51, %46 : vector<16x8xi1>, vector<16x8xf32>
    %53 = tpu.iota {dimensions = array<i32: 0>} : vector<16x8xi32>
    %54 = arith.sitofp %53 : vector<16x8xi32> to vector<16x8xf32>
    %cst_11 = arith.constant dense<0xFF800000> : vector<8xf32>
    %55 = vector.multi_reduction <maximumf>, %42, %cst_11 [0] : vector<16x8xf32> to vector<8xf32>
    %56 = vector.shape_cast %55 : vector<8xf32> to vector<1x8xf32>
    %57 = vector.broadcast %56 : vector<1x8xf32> to vector<16x8xf32>
    %58 = arith.cmpf oeq, %42, %57 : vector<16x8xf32>
    %cst_12 = arith.constant 1.600000e+01 : f32
    %59 = vector.broadcast %cst_12 : f32 to vector<16x8xf32>
    %60 = arith.select %58, %54, %59 : vector<16x8xi1>, vector<16x8xf32>
    %cst_13 = arith.constant dense<0x7F800000> : vector<8xf32>
    %61 = vector.multi_reduction <minimumf>, %60, %cst_13 [0] : vector<16x8xf32> to vector<8xf32>
    %62 = vector.shape_cast %61 : vector<8xf32> to vector<1x8xf32>
    %63 = vector.broadcast %62 : vector<1x8xf32> to vector<16x8xf32>
    %64 = arith.cmpf oeq, %54, %63 : vector<16x8xf32>
    %65 = arith.extui %64 : vector<16x8xi1> to vector<16x8xi32>
    %66 = arith.sitofp %65 : vector<16x8xi32> to vector<16x8xf32>
    %67 = arith.mulf %48, %66 : vector<16x8xf32>
    %cst_14 = arith.constant dense<0.000000e+00> : vector<8xf32>
    %68 = vector.multi_reduction <add>, %67, %cst_14 [0] : vector<16x8xf32> to vector<8xf32>
    %69 = vector.shape_cast %68 : vector<8xf32> to vector<1x8xf32>
    %70 = arith.mulf %50, %66 : vector<16x8xf32>
    %cst_15 = arith.constant dense<0.000000e+00> : vector<8xf32>
    %71 = vector.multi_reduction <add>, %70, %cst_15 [0] : vector<16x8xf32> to vector<8xf32>
    %72 = vector.shape_cast %71 : vector<8xf32> to vector<1x8xf32>
    %73 = arith.mulf %52, %66 : vector<16x8xf32>
    %cst_16 = arith.constant dense<0.000000e+00> : vector<8xf32>
    %74 = vector.multi_reduction <add>, %73, %cst_16 [0] : vector<16x8xf32> to vector<8xf32>
    %75 = vector.shape_cast %74 : vector<8xf32> to vector<1x8xf32>
    %76 = vector.broadcast %69 : vector<1x8xf32> to vector<16x8xf32>
    %77 = arith.mulf %48, %76 : vector<16x8xf32>
    %78 = vector.broadcast %72 : vector<1x8xf32> to vector<16x8xf32>
    %79 = arith.mulf %50, %78 : vector<16x8xf32>
    %80 = arith.addf %77, %79 : vector<16x8xf32>
    %81 = vector.broadcast %75 : vector<1x8xf32> to vector<16x8xf32>
    %82 = arith.mulf %52, %81 : vector<16x8xf32>
    %83 = arith.addf %80, %82 : vector<16x8xf32>
    %84 = vector.broadcast %75 : vector<1x8xf32> to vector<16x8xf32>
    %85 = arith.mulf %50, %84 : vector<16x8xf32>
    %86 = vector.broadcast %72 : vector<1x8xf32> to vector<16x8xf32>
    %87 = arith.mulf %52, %86 : vector<16x8xf32>
    %88 = arith.subf %85, %87 : vector<16x8xf32>
    %89 = vector.broadcast %69 : vector<1x8xf32> to vector<16x8xf32>
    %90 = arith.mulf %52, %89 : vector<16x8xf32>
    %91 = vector.broadcast %75 : vector<1x8xf32> to vector<16x8xf32>
    %92 = arith.mulf %48, %91 : vector<16x8xf32>
    %93 = arith.subf %90, %92 : vector<16x8xf32>
    %94 = vector.broadcast %72 : vector<1x8xf32> to vector<16x8xf32>
    %95 = arith.mulf %48, %94 : vector<16x8xf32>
    %96 = vector.broadcast %69 : vector<1x8xf32> to vector<16x8xf32>
    %97 = arith.mulf %50, %96 : vector<16x8xf32>
    %98 = arith.subf %95, %97 : vector<16x8xf32>
    %99 = vector.broadcast %18 : vector<1x8xf32> to vector<16x8xf32>
    %100 = arith.mulf %88, %99 : vector<16x8xf32>
    %101 = vector.broadcast %19 : vector<1x8xf32> to vector<16x8xf32>
    %102 = arith.mulf %93, %101 : vector<16x8xf32>
    %103 = arith.addf %100, %102 : vector<16x8xf32>
    %104 = vector.broadcast %20 : vector<1x8xf32> to vector<16x8xf32>
    %105 = arith.mulf %98, %104 : vector<16x8xf32>
    %106 = arith.addf %103, %105 : vector<16x8xf32>
    %cst_17 = arith.constant 1.000000e+00 : f32
    %107 = vector.broadcast %cst_17 : f32 to vector<16x8xf32>
    %cst_18 = arith.constant 0.000000e+00 : f32
    %108 = vector.broadcast %cst_18 : f32 to vector<16x8xf32>
    %109 = arith.cmpf ogt, %106, %108 : vector<16x8xf32>
    %cst_19 = arith.constant 0.000000e+00 : f32
    %110 = vector.broadcast %cst_19 : f32 to vector<16x8xf32>
    %111 = arith.cmpf olt, %106, %110 : vector<16x8xf32>
    %cst_20 = arith.constant 0.000000e+00 : f32
    %112 = vector.broadcast %cst_20 : f32 to vector<16x8xf32>
    %113 = arith.subf %112, %107 : vector<16x8xf32>
    %cst_21 = arith.constant 0.000000e+00 : f32
    %114 = vector.broadcast %cst_21 : f32 to vector<16x8xf32>
    %115 = arith.select %111, %113, %114 : vector<16x8xi1>, vector<16x8xf32>
    %116 = arith.select %109, %107, %115 : vector<16x8xi1>, vector<16x8xf32>
    %c0_i32 = arith.constant 0 : i32
    %117 = vector.broadcast %c0_i32 : i32 to vector<16x8xi32>
    %118 = arith.cmpi eq, %53, %117 : vector<16x8xi32>
    %cst_22 = arith.constant 1.000000e+00 : f32
    %119 = vector.broadcast %cst_22 : f32 to vector<16x8xf32>
    %120 = arith.select %118, %119, %116 : vector<16x8xi1>, vector<16x8xf32>
    %121 = arith.mulf %120, %83 : vector<16x8xf32>
    %cst_23 = arith.constant 1.000000e+00 : f32
    %122 = vector.broadcast %cst_23 : f32 to vector<16x8xf32>
    %123 = arith.subf %122, %120 : vector<16x8xf32>
    %124 = arith.subf %121, %123 : vector<16x8xf32>
    %c0_i32_24 = arith.constant 0 : i32
    %125 = vector.broadcast %c0_i32_24 : i32 to vector<16x8xi32>
    %126 = vector.extract_strided_slice %124 {offsets = [0, 0], sizes = [1, 8], strides = [1, 1]} : vector<16x8xf32> to vector<1x8xf32>
    %127 = vector.broadcast %126 : vector<1x8xf32> to vector<16x8xf32>
    %128 = arith.cmpf ogt, %127, %124 : vector<16x8xf32>
    %129 = vector.broadcast %126 : vector<1x8xf32> to vector<16x8xf32>
    %130 = arith.cmpf oeq, %129, %124 : vector<16x8xf32>
    %c0_i32_25 = arith.constant 0 : i32
    %131 = vector.broadcast %c0_i32_25 : i32 to vector<16x8xi32>
    %132 = arith.cmpi sgt, %53, %131 : vector<16x8xi32>
    %133 = arith.andi %130, %132 : vector<16x8xi1>
    %134 = arith.ori %128, %133 : vector<16x8xi1>
    %135 = arith.extui %134 : vector<16x8xi1> to vector<16x8xi32>
    %136 = arith.addi %125, %135 : vector<16x8xi32>
    %137 = vector.extract_strided_slice %124 {offsets = [1, 0], sizes = [1, 8], strides = [1, 1]} : vector<16x8xf32> to vector<1x8xf32>
    %138 = vector.broadcast %137 : vector<1x8xf32> to vector<16x8xf32>
    %139 = arith.cmpf ogt, %138, %124 : vector<16x8xf32>
    %140 = vector.broadcast %137 : vector<1x8xf32> to vector<16x8xf32>
    %141 = arith.cmpf oeq, %140, %124 : vector<16x8xf32>
    %c1_i32 = arith.constant 1 : i32
    %142 = vector.broadcast %c1_i32 : i32 to vector<16x8xi32>
    %143 = arith.cmpi sgt, %53, %142 : vector<16x8xi32>
    %144 = arith.andi %141, %143 : vector<16x8xi1>
    %145 = arith.ori %139, %144 : vector<16x8xi1>
    %146 = arith.extui %145 : vector<16x8xi1> to vector<16x8xi32>
    %147 = arith.addi %136, %146 : vector<16x8xi32>
    %148 = vector.extract_strided_slice %124 {offsets = [2, 0], sizes = [1, 8], strides = [1, 1]} : vector<16x8xf32> to vector<1x8xf32>
    %149 = vector.broadcast %148 : vector<1x8xf32> to vector<16x8xf32>
    %150 = arith.cmpf ogt, %149, %124 : vector<16x8xf32>
    %151 = vector.broadcast %148 : vector<1x8xf32> to vector<16x8xf32>
    %152 = arith.cmpf oeq, %151, %124 : vector<16x8xf32>
    %c2_i32 = arith.constant 2 : i32
    %153 = vector.broadcast %c2_i32 : i32 to vector<16x8xi32>
    %154 = arith.cmpi sgt, %53, %153 : vector<16x8xi32>
    %155 = arith.andi %152, %154 : vector<16x8xi1>
    %156 = arith.ori %150, %155 : vector<16x8xi1>
    %157 = arith.extui %156 : vector<16x8xi1> to vector<16x8xi32>
    %158 = arith.addi %147, %157 : vector<16x8xi32>
    %159 = vector.extract_strided_slice %124 {offsets = [3, 0], sizes = [1, 8], strides = [1, 1]} : vector<16x8xf32> to vector<1x8xf32>
    %160 = vector.broadcast %159 : vector<1x8xf32> to vector<16x8xf32>
    %161 = arith.cmpf ogt, %160, %124 : vector<16x8xf32>
    %162 = vector.broadcast %159 : vector<1x8xf32> to vector<16x8xf32>
    %163 = arith.cmpf oeq, %162, %124 : vector<16x8xf32>
    %c3_i32 = arith.constant 3 : i32
    %164 = vector.broadcast %c3_i32 : i32 to vector<16x8xi32>
    %165 = arith.cmpi sgt, %53, %164 : vector<16x8xi32>
    %166 = arith.andi %163, %165 : vector<16x8xi1>
    %167 = arith.ori %161, %166 : vector<16x8xi1>
    %168 = arith.extui %167 : vector<16x8xi1> to vector<16x8xi32>
    %169 = arith.addi %158, %168 : vector<16x8xi32>
    %170 = vector.extract_strided_slice %124 {offsets = [4, 0], sizes = [1, 8], strides = [1, 1]} : vector<16x8xf32> to vector<1x8xf32>
    %171 = vector.broadcast %170 : vector<1x8xf32> to vector<16x8xf32>
    %172 = arith.cmpf ogt, %171, %124 : vector<16x8xf32>
    %173 = vector.broadcast %170 : vector<1x8xf32> to vector<16x8xf32>
    %174 = arith.cmpf oeq, %173, %124 : vector<16x8xf32>
    %c4_i32 = arith.constant 4 : i32
    %175 = vector.broadcast %c4_i32 : i32 to vector<16x8xi32>
    %176 = arith.cmpi sgt, %53, %175 : vector<16x8xi32>
    %177 = arith.andi %174, %176 : vector<16x8xi1>
    %178 = arith.ori %172, %177 : vector<16x8xi1>
    %179 = arith.extui %178 : vector<16x8xi1> to vector<16x8xi32>
    %180 = arith.addi %169, %179 : vector<16x8xi32>
    %181 = vector.extract_strided_slice %124 {offsets = [5, 0], sizes = [1, 8], strides = [1, 1]} : vector<16x8xf32> to vector<1x8xf32>
    %182 = vector.broadcast %181 : vector<1x8xf32> to vector<16x8xf32>
    %183 = arith.cmpf ogt, %182, %124 : vector<16x8xf32>
    %184 = vector.broadcast %181 : vector<1x8xf32> to vector<16x8xf32>
    %185 = arith.cmpf oeq, %184, %124 : vector<16x8xf32>
    %c5_i32 = arith.constant 5 : i32
    %186 = vector.broadcast %c5_i32 : i32 to vector<16x8xi32>
    %187 = arith.cmpi sgt, %53, %186 : vector<16x8xi32>
    %188 = arith.andi %185, %187 : vector<16x8xi1>
    %189 = arith.ori %183, %188 : vector<16x8xi1>
    %190 = arith.extui %189 : vector<16x8xi1> to vector<16x8xi32>
    %191 = arith.addi %180, %190 : vector<16x8xi32>
    %192 = vector.extract_strided_slice %124 {offsets = [6, 0], sizes = [1, 8], strides = [1, 1]} : vector<16x8xf32> to vector<1x8xf32>
    %193 = vector.broadcast %192 : vector<1x8xf32> to vector<16x8xf32>
    %194 = arith.cmpf ogt, %193, %124 : vector<16x8xf32>
    %195 = vector.broadcast %192 : vector<1x8xf32> to vector<16x8xf32>
    %196 = arith.cmpf oeq, %195, %124 : vector<16x8xf32>
    %c6_i32 = arith.constant 6 : i32
    %197 = vector.broadcast %c6_i32 : i32 to vector<16x8xi32>
    %198 = arith.cmpi sgt, %53, %197 : vector<16x8xi32>
    %199 = arith.andi %196, %198 : vector<16x8xi1>
    %200 = arith.ori %194, %199 : vector<16x8xi1>
    %201 = arith.extui %200 : vector<16x8xi1> to vector<16x8xi32>
    %202 = arith.addi %191, %201 : vector<16x8xi32>
    %203 = vector.extract_strided_slice %124 {offsets = [7, 0], sizes = [1, 8], strides = [1, 1]} : vector<16x8xf32> to vector<1x8xf32>
    %204 = vector.broadcast %203 : vector<1x8xf32> to vector<16x8xf32>
    %205 = arith.cmpf ogt, %204, %124 : vector<16x8xf32>
    %206 = vector.broadcast %203 : vector<1x8xf32> to vector<16x8xf32>
    %207 = arith.cmpf oeq, %206, %124 : vector<16x8xf32>
    %c7_i32 = arith.constant 7 : i32
    %208 = vector.broadcast %c7_i32 : i32 to vector<16x8xi32>
    %209 = arith.cmpi sgt, %53, %208 : vector<16x8xi32>
    %210 = arith.andi %207, %209 : vector<16x8xi1>
    %211 = arith.ori %205, %210 : vector<16x8xi1>
    %212 = arith.extui %211 : vector<16x8xi1> to vector<16x8xi32>
    %213 = arith.addi %202, %212 : vector<16x8xi32>
    %214 = vector.extract_strided_slice %124 {offsets = [8, 0], sizes = [1, 8], strides = [1, 1]} : vector<16x8xf32> to vector<1x8xf32>
    %215 = vector.broadcast %214 : vector<1x8xf32> to vector<16x8xf32>
    %216 = arith.cmpf ogt, %215, %124 : vector<16x8xf32>
    %217 = vector.broadcast %214 : vector<1x8xf32> to vector<16x8xf32>
    %218 = arith.cmpf oeq, %217, %124 : vector<16x8xf32>
    %c8_i32 = arith.constant 8 : i32
    %219 = vector.broadcast %c8_i32 : i32 to vector<16x8xi32>
    %220 = arith.cmpi sgt, %53, %219 : vector<16x8xi32>
    %221 = arith.andi %218, %220 : vector<16x8xi1>
    %222 = arith.ori %216, %221 : vector<16x8xi1>
    %223 = arith.extui %222 : vector<16x8xi1> to vector<16x8xi32>
    %224 = arith.addi %213, %223 : vector<16x8xi32>
    %225 = vector.extract_strided_slice %124 {offsets = [9, 0], sizes = [1, 8], strides = [1, 1]} : vector<16x8xf32> to vector<1x8xf32>
    %226 = vector.broadcast %225 : vector<1x8xf32> to vector<16x8xf32>
    %227 = arith.cmpf ogt, %226, %124 : vector<16x8xf32>
    %228 = vector.broadcast %225 : vector<1x8xf32> to vector<16x8xf32>
    %229 = arith.cmpf oeq, %228, %124 : vector<16x8xf32>
    %c9_i32 = arith.constant 9 : i32
    %230 = vector.broadcast %c9_i32 : i32 to vector<16x8xi32>
    %231 = arith.cmpi sgt, %53, %230 : vector<16x8xi32>
    %232 = arith.andi %229, %231 : vector<16x8xi1>
    %233 = arith.ori %227, %232 : vector<16x8xi1>
    %234 = arith.extui %233 : vector<16x8xi1> to vector<16x8xi32>
    %235 = arith.addi %224, %234 : vector<16x8xi32>
    %236 = vector.extract_strided_slice %124 {offsets = [10, 0], sizes = [1, 8], strides = [1, 1]} : vector<16x8xf32> to vector<1x8xf32>
    %237 = vector.broadcast %236 : vector<1x8xf32> to vector<16x8xf32>
    %238 = arith.cmpf ogt, %237, %124 : vector<16x8xf32>
    %239 = vector.broadcast %236 : vector<1x8xf32> to vector<16x8xf32>
    %240 = arith.cmpf oeq, %239, %124 : vector<16x8xf32>
    %c10_i32 = arith.constant 10 : i32
    %241 = vector.broadcast %c10_i32 : i32 to vector<16x8xi32>
    %242 = arith.cmpi sgt, %53, %241 : vector<16x8xi32>
    %243 = arith.andi %240, %242 : vector<16x8xi1>
    %244 = arith.ori %238, %243 : vector<16x8xi1>
    %245 = arith.extui %244 : vector<16x8xi1> to vector<16x8xi32>
    %246 = arith.addi %235, %245 : vector<16x8xi32>
    %247 = vector.extract_strided_slice %124 {offsets = [11, 0], sizes = [1, 8], strides = [1, 1]} : vector<16x8xf32> to vector<1x8xf32>
    %248 = vector.broadcast %247 : vector<1x8xf32> to vector<16x8xf32>
    %249 = arith.cmpf ogt, %248, %124 : vector<16x8xf32>
    %250 = vector.broadcast %247 : vector<1x8xf32> to vector<16x8xf32>
    %251 = arith.cmpf oeq, %250, %124 : vector<16x8xf32>
    %c11_i32 = arith.constant 11 : i32
    %252 = vector.broadcast %c11_i32 : i32 to vector<16x8xi32>
    %253 = arith.cmpi sgt, %53, %252 : vector<16x8xi32>
    %254 = arith.andi %251, %253 : vector<16x8xi1>
    %255 = arith.ori %249, %254 : vector<16x8xi1>
    %256 = arith.extui %255 : vector<16x8xi1> to vector<16x8xi32>
    %257 = arith.addi %246, %256 : vector<16x8xi32>
    %258 = vector.extract_strided_slice %124 {offsets = [12, 0], sizes = [1, 8], strides = [1, 1]} : vector<16x8xf32> to vector<1x8xf32>
    %259 = vector.broadcast %258 : vector<1x8xf32> to vector<16x8xf32>
    %260 = arith.cmpf ogt, %259, %124 : vector<16x8xf32>
    %261 = vector.broadcast %258 : vector<1x8xf32> to vector<16x8xf32>
    %262 = arith.cmpf oeq, %261, %124 : vector<16x8xf32>
    %c12_i32 = arith.constant 12 : i32
    %263 = vector.broadcast %c12_i32 : i32 to vector<16x8xi32>
    %264 = arith.cmpi sgt, %53, %263 : vector<16x8xi32>
    %265 = arith.andi %262, %264 : vector<16x8xi1>
    %266 = arith.ori %260, %265 : vector<16x8xi1>
    %267 = arith.extui %266 : vector<16x8xi1> to vector<16x8xi32>
    %268 = arith.addi %257, %267 : vector<16x8xi32>
    %269 = vector.extract_strided_slice %124 {offsets = [13, 0], sizes = [1, 8], strides = [1, 1]} : vector<16x8xf32> to vector<1x8xf32>
    %270 = vector.broadcast %269 : vector<1x8xf32> to vector<16x8xf32>
    %271 = arith.cmpf ogt, %270, %124 : vector<16x8xf32>
    %272 = vector.broadcast %269 : vector<1x8xf32> to vector<16x8xf32>
    %273 = arith.cmpf oeq, %272, %124 : vector<16x8xf32>
    %c13_i32 = arith.constant 13 : i32
    %274 = vector.broadcast %c13_i32 : i32 to vector<16x8xi32>
    %275 = arith.cmpi sgt, %53, %274 : vector<16x8xi32>
    %276 = arith.andi %273, %275 : vector<16x8xi1>
    %277 = arith.ori %271, %276 : vector<16x8xi1>
    %278 = arith.extui %277 : vector<16x8xi1> to vector<16x8xi32>
    %279 = arith.addi %268, %278 : vector<16x8xi32>
    %280 = vector.extract_strided_slice %124 {offsets = [14, 0], sizes = [1, 8], strides = [1, 1]} : vector<16x8xf32> to vector<1x8xf32>
    %281 = vector.broadcast %280 : vector<1x8xf32> to vector<16x8xf32>
    %282 = arith.cmpf ogt, %281, %124 : vector<16x8xf32>
    %283 = vector.broadcast %280 : vector<1x8xf32> to vector<16x8xf32>
    %284 = arith.cmpf oeq, %283, %124 : vector<16x8xf32>
    %c14_i32 = arith.constant 14 : i32
    %285 = vector.broadcast %c14_i32 : i32 to vector<16x8xi32>
    %286 = arith.cmpi sgt, %53, %285 : vector<16x8xi32>
    %287 = arith.andi %284, %286 : vector<16x8xi1>
    %288 = arith.ori %282, %287 : vector<16x8xi1>
    %289 = arith.extui %288 : vector<16x8xi1> to vector<16x8xi32>
    %290 = arith.addi %279, %289 : vector<16x8xi32>
    %291 = vector.extract_strided_slice %124 {offsets = [15, 0], sizes = [1, 8], strides = [1, 1]} : vector<16x8xf32> to vector<1x8xf32>
    %292 = vector.broadcast %291 : vector<1x8xf32> to vector<16x8xf32>
    %293 = arith.cmpf ogt, %292, %124 : vector<16x8xf32>
    %294 = vector.broadcast %291 : vector<1x8xf32> to vector<16x8xf32>
    %295 = arith.cmpf oeq, %294, %124 : vector<16x8xf32>
    %c15_i32 = arith.constant 15 : i32
    %296 = vector.broadcast %c15_i32 : i32 to vector<16x8xi32>
    %297 = arith.cmpi sgt, %53, %296 : vector<16x8xi32>
    %298 = arith.andi %295, %297 : vector<16x8xi1>
    %299 = arith.ori %293, %298 : vector<16x8xi1>
    %300 = arith.extui %299 : vector<16x8xi1> to vector<16x8xi32>
    %301 = arith.addi %290, %300 : vector<16x8xi32>
    %c0_i32_26 = arith.constant 0 : i32
    %302 = vector.broadcast %c0_i32_26 : i32 to vector<16x8xi32>
    %303 = arith.cmpi eq, %301, %302 : vector<16x8xi32>
    %c1_i32_27 = arith.constant 1 : i32
    %304 = vector.broadcast %c1_i32_27 : i32 to vector<16x8xi32>
    %305 = arith.subi %301, %304 : vector<16x8xi32>
    %c15_i32_28 = arith.constant 15 : i32
    %306 = vector.broadcast %c15_i32_28 : i32 to vector<16x8xi32>
    %307 = arith.select %303, %306, %305 : vector<16x8xi1>, vector<16x8xi32>
    %308 = vector.extract_strided_slice %301 {offsets = [0, 0], sizes = [1, 8], strides = [1, 1]} : vector<16x8xi32> to vector<1x8xi32>
    %309 = vector.broadcast %308 : vector<1x8xi32> to vector<16x8xi32>
    %310 = arith.cmpi eq, %307, %309 : vector<16x8xi32>
    %311 = arith.extui %310 : vector<16x8xi1> to vector<16x8xi32>
    %312 = arith.sitofp %311 : vector<16x8xi32> to vector<16x8xf32>
    %313 = vector.extract_strided_slice %301 {offsets = [1, 0], sizes = [1, 8], strides = [1, 1]} : vector<16x8xi32> to vector<1x8xi32>
    %314 = vector.broadcast %313 : vector<1x8xi32> to vector<16x8xi32>
    %315 = arith.cmpi eq, %307, %314 : vector<16x8xi32>
    %316 = arith.extui %315 : vector<16x8xi1> to vector<16x8xi32>
    %317 = arith.sitofp %316 : vector<16x8xi32> to vector<16x8xf32>
    %318 = vector.extract_strided_slice %301 {offsets = [2, 0], sizes = [1, 8], strides = [1, 1]} : vector<16x8xi32> to vector<1x8xi32>
    %319 = vector.broadcast %318 : vector<1x8xi32> to vector<16x8xi32>
    %320 = arith.cmpi eq, %307, %319 : vector<16x8xi32>
    %321 = arith.extui %320 : vector<16x8xi1> to vector<16x8xi32>
    %322 = arith.sitofp %321 : vector<16x8xi32> to vector<16x8xf32>
    %323 = vector.extract_strided_slice %301 {offsets = [3, 0], sizes = [1, 8], strides = [1, 1]} : vector<16x8xi32> to vector<1x8xi32>
    %324 = vector.broadcast %323 : vector<1x8xi32> to vector<16x8xi32>
    %325 = arith.cmpi eq, %307, %324 : vector<16x8xi32>
    %326 = arith.extui %325 : vector<16x8xi1> to vector<16x8xi32>
    %327 = arith.sitofp %326 : vector<16x8xi32> to vector<16x8xf32>
    %328 = vector.extract_strided_slice %301 {offsets = [4, 0], sizes = [1, 8], strides = [1, 1]} : vector<16x8xi32> to vector<1x8xi32>
    %329 = vector.broadcast %328 : vector<1x8xi32> to vector<16x8xi32>
    %330 = arith.cmpi eq, %307, %329 : vector<16x8xi32>
    %331 = arith.extui %330 : vector<16x8xi1> to vector<16x8xi32>
    %332 = arith.sitofp %331 : vector<16x8xi32> to vector<16x8xf32>
    %333 = vector.extract_strided_slice %301 {offsets = [5, 0], sizes = [1, 8], strides = [1, 1]} : vector<16x8xi32> to vector<1x8xi32>
    %334 = vector.broadcast %333 : vector<1x8xi32> to vector<16x8xi32>
    %335 = arith.cmpi eq, %307, %334 : vector<16x8xi32>
    %336 = arith.extui %335 : vector<16x8xi1> to vector<16x8xi32>
    %337 = arith.sitofp %336 : vector<16x8xi32> to vector<16x8xf32>
    %338 = vector.extract_strided_slice %301 {offsets = [6, 0], sizes = [1, 8], strides = [1, 1]} : vector<16x8xi32> to vector<1x8xi32>
    %339 = vector.broadcast %338 : vector<1x8xi32> to vector<16x8xi32>
    %340 = arith.cmpi eq, %307, %339 : vector<16x8xi32>
    %341 = arith.extui %340 : vector<16x8xi1> to vector<16x8xi32>
    %342 = arith.sitofp %341 : vector<16x8xi32> to vector<16x8xf32>
    %343 = vector.extract_strided_slice %301 {offsets = [7, 0], sizes = [1, 8], strides = [1, 1]} : vector<16x8xi32> to vector<1x8xi32>
    %344 = vector.broadcast %343 : vector<1x8xi32> to vector<16x8xi32>
    %345 = arith.cmpi eq, %307, %344 : vector<16x8xi32>
    %346 = arith.extui %345 : vector<16x8xi1> to vector<16x8xi32>
    %347 = arith.sitofp %346 : vector<16x8xi32> to vector<16x8xf32>
    %348 = vector.extract_strided_slice %301 {offsets = [8, 0], sizes = [1, 8], strides = [1, 1]} : vector<16x8xi32> to vector<1x8xi32>
    %349 = vector.broadcast %348 : vector<1x8xi32> to vector<16x8xi32>
    %350 = arith.cmpi eq, %307, %349 : vector<16x8xi32>
    %351 = arith.extui %350 : vector<16x8xi1> to vector<16x8xi32>
    %352 = arith.sitofp %351 : vector<16x8xi32> to vector<16x8xf32>
    %353 = vector.extract_strided_slice %301 {offsets = [9, 0], sizes = [1, 8], strides = [1, 1]} : vector<16x8xi32> to vector<1x8xi32>
    %354 = vector.broadcast %353 : vector<1x8xi32> to vector<16x8xi32>
    %355 = arith.cmpi eq, %307, %354 : vector<16x8xi32>
    %356 = arith.extui %355 : vector<16x8xi1> to vector<16x8xi32>
    %357 = arith.sitofp %356 : vector<16x8xi32> to vector<16x8xf32>
    %358 = vector.extract_strided_slice %301 {offsets = [10, 0], sizes = [1, 8], strides = [1, 1]} : vector<16x8xi32> to vector<1x8xi32>
    %359 = vector.broadcast %358 : vector<1x8xi32> to vector<16x8xi32>
    %360 = arith.cmpi eq, %307, %359 : vector<16x8xi32>
    %361 = arith.extui %360 : vector<16x8xi1> to vector<16x8xi32>
    %362 = arith.sitofp %361 : vector<16x8xi32> to vector<16x8xf32>
    %363 = vector.extract_strided_slice %301 {offsets = [11, 0], sizes = [1, 8], strides = [1, 1]} : vector<16x8xi32> to vector<1x8xi32>
    %364 = vector.broadcast %363 : vector<1x8xi32> to vector<16x8xi32>
    %365 = arith.cmpi eq, %307, %364 : vector<16x8xi32>
    %366 = arith.extui %365 : vector<16x8xi1> to vector<16x8xi32>
    %367 = arith.sitofp %366 : vector<16x8xi32> to vector<16x8xf32>
    %368 = vector.extract_strided_slice %301 {offsets = [12, 0], sizes = [1, 8], strides = [1, 1]} : vector<16x8xi32> to vector<1x8xi32>
    %369 = vector.broadcast %368 : vector<1x8xi32> to vector<16x8xi32>
    %370 = arith.cmpi eq, %307, %369 : vector<16x8xi32>
    %371 = arith.extui %370 : vector<16x8xi1> to vector<16x8xi32>
    %372 = arith.sitofp %371 : vector<16x8xi32> to vector<16x8xf32>
    %373 = vector.extract_strided_slice %301 {offsets = [13, 0], sizes = [1, 8], strides = [1, 1]} : vector<16x8xi32> to vector<1x8xi32>
    %374 = vector.broadcast %373 : vector<1x8xi32> to vector<16x8xi32>
    %375 = arith.cmpi eq, %307, %374 : vector<16x8xi32>
    %376 = arith.extui %375 : vector<16x8xi1> to vector<16x8xi32>
    %377 = arith.sitofp %376 : vector<16x8xi32> to vector<16x8xf32>
    %378 = vector.extract_strided_slice %301 {offsets = [14, 0], sizes = [1, 8], strides = [1, 1]} : vector<16x8xi32> to vector<1x8xi32>
    %379 = vector.broadcast %378 : vector<1x8xi32> to vector<16x8xi32>
    %380 = arith.cmpi eq, %307, %379 : vector<16x8xi32>
    %381 = arith.extui %380 : vector<16x8xi1> to vector<16x8xi32>
    %382 = arith.sitofp %381 : vector<16x8xi32> to vector<16x8xf32>
    %383 = vector.extract_strided_slice %301 {offsets = [15, 0], sizes = [1, 8], strides = [1, 1]} : vector<16x8xi32> to vector<1x8xi32>
    %384 = vector.broadcast %383 : vector<1x8xi32> to vector<16x8xi32>
    %385 = arith.cmpi eq, %307, %384 : vector<16x8xi32>
    %386 = arith.extui %385 : vector<16x8xi1> to vector<16x8xi32>
    %387 = arith.sitofp %386 : vector<16x8xi32> to vector<16x8xf32>
    %388 = vector.extract_strided_slice %124 {offsets = [0, 0], sizes = [1, 8], strides = [1, 1]} : vector<16x8xf32> to vector<1x8xf32>
    %389 = vector.broadcast %388 : vector<1x8xf32> to vector<16x8xf32>
    %390 = arith.mulf %312, %389 : vector<16x8xf32>
    %391 = vector.extract_strided_slice %124 {offsets = [1, 0], sizes = [1, 8], strides = [1, 1]} : vector<16x8xf32> to vector<1x8xf32>
    %392 = vector.broadcast %391 : vector<1x8xf32> to vector<16x8xf32>
    %393 = arith.mulf %317, %392 : vector<16x8xf32>
    %394 = arith.addf %390, %393 : vector<16x8xf32>
    %395 = vector.extract_strided_slice %124 {offsets = [2, 0], sizes = [1, 8], strides = [1, 1]} : vector<16x8xf32> to vector<1x8xf32>
    %396 = vector.broadcast %395 : vector<1x8xf32> to vector<16x8xf32>
    %397 = arith.mulf %322, %396 : vector<16x8xf32>
    %398 = arith.addf %394, %397 : vector<16x8xf32>
    %399 = vector.extract_strided_slice %124 {offsets = [3, 0], sizes = [1, 8], strides = [1, 1]} : vector<16x8xf32> to vector<1x8xf32>
    %400 = vector.broadcast %399 : vector<1x8xf32> to vector<16x8xf32>
    %401 = arith.mulf %327, %400 : vector<16x8xf32>
    %402 = arith.addf %398, %401 : vector<16x8xf32>
    %403 = vector.extract_strided_slice %124 {offsets = [4, 0], sizes = [1, 8], strides = [1, 1]} : vector<16x8xf32> to vector<1x8xf32>
    %404 = vector.broadcast %403 : vector<1x8xf32> to vector<16x8xf32>
    %405 = arith.mulf %332, %404 : vector<16x8xf32>
    %406 = arith.addf %402, %405 : vector<16x8xf32>
    %407 = vector.extract_strided_slice %124 {offsets = [5, 0], sizes = [1, 8], strides = [1, 1]} : vector<16x8xf32> to vector<1x8xf32>
    %408 = vector.broadcast %407 : vector<1x8xf32> to vector<16x8xf32>
    %409 = arith.mulf %337, %408 : vector<16x8xf32>
    %410 = arith.addf %406, %409 : vector<16x8xf32>
    %411 = vector.extract_strided_slice %124 {offsets = [6, 0], sizes = [1, 8], strides = [1, 1]} : vector<16x8xf32> to vector<1x8xf32>
    %412 = vector.broadcast %411 : vector<1x8xf32> to vector<16x8xf32>
    %413 = arith.mulf %342, %412 : vector<16x8xf32>
    %414 = arith.addf %410, %413 : vector<16x8xf32>
    %415 = vector.extract_strided_slice %124 {offsets = [7, 0], sizes = [1, 8], strides = [1, 1]} : vector<16x8xf32> to vector<1x8xf32>
    %416 = vector.broadcast %415 : vector<1x8xf32> to vector<16x8xf32>
    %417 = arith.mulf %347, %416 : vector<16x8xf32>
    %418 = arith.addf %414, %417 : vector<16x8xf32>
    %419 = vector.extract_strided_slice %124 {offsets = [8, 0], sizes = [1, 8], strides = [1, 1]} : vector<16x8xf32> to vector<1x8xf32>
    %420 = vector.broadcast %419 : vector<1x8xf32> to vector<16x8xf32>
    %421 = arith.mulf %352, %420 : vector<16x8xf32>
    %422 = arith.addf %418, %421 : vector<16x8xf32>
    %423 = vector.extract_strided_slice %124 {offsets = [9, 0], sizes = [1, 8], strides = [1, 1]} : vector<16x8xf32> to vector<1x8xf32>
    %424 = vector.broadcast %423 : vector<1x8xf32> to vector<16x8xf32>
    %425 = arith.mulf %357, %424 : vector<16x8xf32>
    %426 = arith.addf %422, %425 : vector<16x8xf32>
    %427 = vector.extract_strided_slice %124 {offsets = [10, 0], sizes = [1, 8], strides = [1, 1]} : vector<16x8xf32> to vector<1x8xf32>
    %428 = vector.broadcast %427 : vector<1x8xf32> to vector<16x8xf32>
    %429 = arith.mulf %362, %428 : vector<16x8xf32>
    %430 = arith.addf %426, %429 : vector<16x8xf32>
    %431 = vector.extract_strided_slice %124 {offsets = [11, 0], sizes = [1, 8], strides = [1, 1]} : vector<16x8xf32> to vector<1x8xf32>
    %432 = vector.broadcast %431 : vector<1x8xf32> to vector<16x8xf32>
    %433 = arith.mulf %367, %432 : vector<16x8xf32>
    %434 = arith.addf %430, %433 : vector<16x8xf32>
    %435 = vector.extract_strided_slice %124 {offsets = [12, 0], sizes = [1, 8], strides = [1, 1]} : vector<16x8xf32> to vector<1x8xf32>
    %436 = vector.broadcast %435 : vector<1x8xf32> to vector<16x8xf32>
    %437 = arith.mulf %372, %436 : vector<16x8xf32>
    %438 = arith.addf %434, %437 : vector<16x8xf32>
    %439 = vector.extract_strided_slice %124 {offsets = [13, 0], sizes = [1, 8], strides = [1, 1]} : vector<16x8xf32> to vector<1x8xf32>
    %440 = vector.broadcast %439 : vector<1x8xf32> to vector<16x8xf32>
    %441 = arith.mulf %377, %440 : vector<16x8xf32>
    %442 = arith.addf %438, %441 : vector<16x8xf32>
    %443 = vector.extract_strided_slice %124 {offsets = [14, 0], sizes = [1, 8], strides = [1, 1]} : vector<16x8xf32> to vector<1x8xf32>
    %444 = vector.broadcast %443 : vector<1x8xf32> to vector<16x8xf32>
    %445 = arith.mulf %382, %444 : vector<16x8xf32>
    %446 = arith.addf %442, %445 : vector<16x8xf32>
    %447 = vector.extract_strided_slice %124 {offsets = [15, 0], sizes = [1, 8], strides = [1, 1]} : vector<16x8xf32> to vector<1x8xf32>
    %448 = vector.broadcast %447 : vector<1x8xf32> to vector<16x8xf32>
    %449 = arith.mulf %387, %448 : vector<16x8xf32>
    %450 = arith.addf %446, %449 : vector<16x8xf32>
    %451 = vector.extract_strided_slice %7 {offsets = [0, 0], sizes = [1, 8], strides = [1, 1]} : vector<16x8xf32> to vector<1x8xf32>
    %452 = vector.broadcast %451 : vector<1x8xf32> to vector<16x8xf32>
    %453 = arith.mulf %312, %452 : vector<16x8xf32>
    %454 = vector.extract_strided_slice %7 {offsets = [1, 0], sizes = [1, 8], strides = [1, 1]} : vector<16x8xf32> to vector<1x8xf32>
    %455 = vector.broadcast %454 : vector<1x8xf32> to vector<16x8xf32>
    %456 = arith.mulf %317, %455 : vector<16x8xf32>
    %457 = arith.addf %453, %456 : vector<16x8xf32>
    %458 = vector.extract_strided_slice %7 {offsets = [2, 0], sizes = [1, 8], strides = [1, 1]} : vector<16x8xf32> to vector<1x8xf32>
    %459 = vector.broadcast %458 : vector<1x8xf32> to vector<16x8xf32>
    %460 = arith.mulf %322, %459 : vector<16x8xf32>
    %461 = arith.addf %457, %460 : vector<16x8xf32>
    %462 = vector.extract_strided_slice %7 {offsets = [3, 0], sizes = [1, 8], strides = [1, 1]} : vector<16x8xf32> to vector<1x8xf32>
    %463 = vector.broadcast %462 : vector<1x8xf32> to vector<16x8xf32>
    %464 = arith.mulf %327, %463 : vector<16x8xf32>
    %465 = arith.addf %461, %464 : vector<16x8xf32>
    %466 = vector.extract_strided_slice %7 {offsets = [4, 0], sizes = [1, 8], strides = [1, 1]} : vector<16x8xf32> to vector<1x8xf32>
    %467 = vector.broadcast %466 : vector<1x8xf32> to vector<16x8xf32>
    %468 = arith.mulf %332, %467 : vector<16x8xf32>
    %469 = arith.addf %465, %468 : vector<16x8xf32>
    %470 = vector.extract_strided_slice %7 {offsets = [5, 0], sizes = [1, 8], strides = [1, 1]} : vector<16x8xf32> to vector<1x8xf32>
    %471 = vector.broadcast %470 : vector<1x8xf32> to vector<16x8xf32>
    %472 = arith.mulf %337, %471 : vector<16x8xf32>
    %473 = arith.addf %469, %472 : vector<16x8xf32>
    %474 = vector.extract_strided_slice %7 {offsets = [6, 0], sizes = [1, 8], strides = [1, 1]} : vector<16x8xf32> to vector<1x8xf32>
    %475 = vector.broadcast %474 : vector<1x8xf32> to vector<16x8xf32>
    %476 = arith.mulf %342, %475 : vector<16x8xf32>
    %477 = arith.addf %473, %476 : vector<16x8xf32>
    %478 = vector.extract_strided_slice %7 {offsets = [7, 0], sizes = [1, 8], strides = [1, 1]} : vector<16x8xf32> to vector<1x8xf32>
    %479 = vector.broadcast %478 : vector<1x8xf32> to vector<16x8xf32>
    %480 = arith.mulf %347, %479 : vector<16x8xf32>
    %481 = arith.addf %477, %480 : vector<16x8xf32>
    %482 = vector.extract_strided_slice %7 {offsets = [8, 0], sizes = [1, 8], strides = [1, 1]} : vector<16x8xf32> to vector<1x8xf32>
    %483 = vector.broadcast %482 : vector<1x8xf32> to vector<16x8xf32>
    %484 = arith.mulf %352, %483 : vector<16x8xf32>
    %485 = arith.addf %481, %484 : vector<16x8xf32>
    %486 = vector.extract_strided_slice %7 {offsets = [9, 0], sizes = [1, 8], strides = [1, 1]} : vector<16x8xf32> to vector<1x8xf32>
    %487 = vector.broadcast %486 : vector<1x8xf32> to vector<16x8xf32>
    %488 = arith.mulf %357, %487 : vector<16x8xf32>
    %489 = arith.addf %485, %488 : vector<16x8xf32>
    %490 = vector.extract_strided_slice %7 {offsets = [10, 0], sizes = [1, 8], strides = [1, 1]} : vector<16x8xf32> to vector<1x8xf32>
    %491 = vector.broadcast %490 : vector<1x8xf32> to vector<16x8xf32>
    %492 = arith.mulf %362, %491 : vector<16x8xf32>
    %493 = arith.addf %489, %492 : vector<16x8xf32>
    %494 = vector.extract_strided_slice %7 {offsets = [11, 0], sizes = [1, 8], strides = [1, 1]} : vector<16x8xf32> to vector<1x8xf32>
    %495 = vector.broadcast %494 : vector<1x8xf32> to vector<16x8xf32>
    %496 = arith.mulf %367, %495 : vector<16x8xf32>
    %497 = arith.addf %493, %496 : vector<16x8xf32>
    %498 = vector.extract_strided_slice %7 {offsets = [12, 0], sizes = [1, 8], strides = [1, 1]} : vector<16x8xf32> to vector<1x8xf32>
    %499 = vector.broadcast %498 : vector<1x8xf32> to vector<16x8xf32>
    %500 = arith.mulf %372, %499 : vector<16x8xf32>
    %501 = arith.addf %497, %500 : vector<16x8xf32>
    %502 = vector.extract_strided_slice %7 {offsets = [13, 0], sizes = [1, 8], strides = [1, 1]} : vector<16x8xf32> to vector<1x8xf32>
    %503 = vector.broadcast %502 : vector<1x8xf32> to vector<16x8xf32>
    %504 = arith.mulf %377, %503 : vector<16x8xf32>
    %505 = arith.addf %501, %504 : vector<16x8xf32>
    %506 = vector.extract_strided_slice %7 {offsets = [14, 0], sizes = [1, 8], strides = [1, 1]} : vector<16x8xf32> to vector<1x8xf32>
    %507 = vector.broadcast %506 : vector<1x8xf32> to vector<16x8xf32>
    %508 = arith.mulf %382, %507 : vector<16x8xf32>
    %509 = arith.addf %505, %508 : vector<16x8xf32>
    %510 = vector.extract_strided_slice %7 {offsets = [15, 0], sizes = [1, 8], strides = [1, 1]} : vector<16x8xf32> to vector<1x8xf32>
    %511 = vector.broadcast %510 : vector<1x8xf32> to vector<16x8xf32>
    %512 = arith.mulf %387, %511 : vector<16x8xf32>
    %513 = arith.addf %509, %512 : vector<16x8xf32>
    %514 = vector.extract_strided_slice %9 {offsets = [0, 0], sizes = [1, 8], strides = [1, 1]} : vector<16x8xf32> to vector<1x8xf32>
    %515 = vector.broadcast %514 : vector<1x8xf32> to vector<16x8xf32>
    %516 = arith.mulf %312, %515 : vector<16x8xf32>
    %517 = vector.extract_strided_slice %9 {offsets = [1, 0], sizes = [1, 8], strides = [1, 1]} : vector<16x8xf32> to vector<1x8xf32>
    %518 = vector.broadcast %517 : vector<1x8xf32> to vector<16x8xf32>
    %519 = arith.mulf %317, %518 : vector<16x8xf32>
    %520 = arith.addf %516, %519 : vector<16x8xf32>
    %521 = vector.extract_strided_slice %9 {offsets = [2, 0], sizes = [1, 8], strides = [1, 1]} : vector<16x8xf32> to vector<1x8xf32>
    %522 = vector.broadcast %521 : vector<1x8xf32> to vector<16x8xf32>
    %523 = arith.mulf %322, %522 : vector<16x8xf32>
    %524 = arith.addf %520, %523 : vector<16x8xf32>
    %525 = vector.extract_strided_slice %9 {offsets = [3, 0], sizes = [1, 8], strides = [1, 1]} : vector<16x8xf32> to vector<1x8xf32>
    %526 = vector.broadcast %525 : vector<1x8xf32> to vector<16x8xf32>
    %527 = arith.mulf %327, %526 : vector<16x8xf32>
    %528 = arith.addf %524, %527 : vector<16x8xf32>
    %529 = vector.extract_strided_slice %9 {offsets = [4, 0], sizes = [1, 8], strides = [1, 1]} : vector<16x8xf32> to vector<1x8xf32>
    %530 = vector.broadcast %529 : vector<1x8xf32> to vector<16x8xf32>
    %531 = arith.mulf %332, %530 : vector<16x8xf32>
    %532 = arith.addf %528, %531 : vector<16x8xf32>
    %533 = vector.extract_strided_slice %9 {offsets = [5, 0], sizes = [1, 8], strides = [1, 1]} : vector<16x8xf32> to vector<1x8xf32>
    %534 = vector.broadcast %533 : vector<1x8xf32> to vector<16x8xf32>
    %535 = arith.mulf %337, %534 : vector<16x8xf32>
    %536 = arith.addf %532, %535 : vector<16x8xf32>
    %537 = vector.extract_strided_slice %9 {offsets = [6, 0], sizes = [1, 8], strides = [1, 1]} : vector<16x8xf32> to vector<1x8xf32>
    %538 = vector.broadcast %537 : vector<1x8xf32> to vector<16x8xf32>
    %539 = arith.mulf %342, %538 : vector<16x8xf32>
    %540 = arith.addf %536, %539 : vector<16x8xf32>
    %541 = vector.extract_strided_slice %9 {offsets = [7, 0], sizes = [1, 8], strides = [1, 1]} : vector<16x8xf32> to vector<1x8xf32>
    %542 = vector.broadcast %541 : vector<1x8xf32> to vector<16x8xf32>
    %543 = arith.mulf %347, %542 : vector<16x8xf32>
    %544 = arith.addf %540, %543 : vector<16x8xf32>
    %545 = vector.extract_strided_slice %9 {offsets = [8, 0], sizes = [1, 8], strides = [1, 1]} : vector<16x8xf32> to vector<1x8xf32>
    %546 = vector.broadcast %545 : vector<1x8xf32> to vector<16x8xf32>
    %547 = arith.mulf %352, %546 : vector<16x8xf32>
    %548 = arith.addf %544, %547 : vector<16x8xf32>
    %549 = vector.extract_strided_slice %9 {offsets = [9, 0], sizes = [1, 8], strides = [1, 1]} : vector<16x8xf32> to vector<1x8xf32>
    %550 = vector.broadcast %549 : vector<1x8xf32> to vector<16x8xf32>
    %551 = arith.mulf %357, %550 : vector<16x8xf32>
    %552 = arith.addf %548, %551 : vector<16x8xf32>
    %553 = vector.extract_strided_slice %9 {offsets = [10, 0], sizes = [1, 8], strides = [1, 1]} : vector<16x8xf32> to vector<1x8xf32>
    %554 = vector.broadcast %553 : vector<1x8xf32> to vector<16x8xf32>
    %555 = arith.mulf %362, %554 : vector<16x8xf32>
    %556 = arith.addf %552, %555 : vector<16x8xf32>
    %557 = vector.extract_strided_slice %9 {offsets = [11, 0], sizes = [1, 8], strides = [1, 1]} : vector<16x8xf32> to vector<1x8xf32>
    %558 = vector.broadcast %557 : vector<1x8xf32> to vector<16x8xf32>
    %559 = arith.mulf %367, %558 : vector<16x8xf32>
    %560 = arith.addf %556, %559 : vector<16x8xf32>
    %561 = vector.extract_strided_slice %9 {offsets = [12, 0], sizes = [1, 8], strides = [1, 1]} : vector<16x8xf32> to vector<1x8xf32>
    %562 = vector.broadcast %561 : vector<1x8xf32> to vector<16x8xf32>
    %563 = arith.mulf %372, %562 : vector<16x8xf32>
    %564 = arith.addf %560, %563 : vector<16x8xf32>
    %565 = vector.extract_strided_slice %9 {offsets = [13, 0], sizes = [1, 8], strides = [1, 1]} : vector<16x8xf32> to vector<1x8xf32>
    %566 = vector.broadcast %565 : vector<1x8xf32> to vector<16x8xf32>
    %567 = arith.mulf %377, %566 : vector<16x8xf32>
    %568 = arith.addf %564, %567 : vector<16x8xf32>
    %569 = vector.extract_strided_slice %9 {offsets = [14, 0], sizes = [1, 8], strides = [1, 1]} : vector<16x8xf32> to vector<1x8xf32>
    %570 = vector.broadcast %569 : vector<1x8xf32> to vector<16x8xf32>
    %571 = arith.mulf %382, %570 : vector<16x8xf32>
    %572 = arith.addf %568, %571 : vector<16x8xf32>
    %573 = vector.extract_strided_slice %9 {offsets = [15, 0], sizes = [1, 8], strides = [1, 1]} : vector<16x8xf32> to vector<1x8xf32>
    %574 = vector.broadcast %573 : vector<1x8xf32> to vector<16x8xf32>
    %575 = arith.mulf %387, %574 : vector<16x8xf32>
    %576 = arith.addf %572, %575 : vector<16x8xf32>
    %577 = vector.extract_strided_slice %11 {offsets = [0, 0], sizes = [1, 8], strides = [1, 1]} : vector<16x8xf32> to vector<1x8xf32>
    %578 = vector.broadcast %577 : vector<1x8xf32> to vector<16x8xf32>
    %579 = arith.mulf %312, %578 : vector<16x8xf32>
    %580 = vector.extract_strided_slice %11 {offsets = [1, 0], sizes = [1, 8], strides = [1, 1]} : vector<16x8xf32> to vector<1x8xf32>
    %581 = vector.broadcast %580 : vector<1x8xf32> to vector<16x8xf32>
    %582 = arith.mulf %317, %581 : vector<16x8xf32>
    %583 = arith.addf %579, %582 : vector<16x8xf32>
    %584 = vector.extract_strided_slice %11 {offsets = [2, 0], sizes = [1, 8], strides = [1, 1]} : vector<16x8xf32> to vector<1x8xf32>
    %585 = vector.broadcast %584 : vector<1x8xf32> to vector<16x8xf32>
    %586 = arith.mulf %322, %585 : vector<16x8xf32>
    %587 = arith.addf %583, %586 : vector<16x8xf32>
    %588 = vector.extract_strided_slice %11 {offsets = [3, 0], sizes = [1, 8], strides = [1, 1]} : vector<16x8xf32> to vector<1x8xf32>
    %589 = vector.broadcast %588 : vector<1x8xf32> to vector<16x8xf32>
    %590 = arith.mulf %327, %589 : vector<16x8xf32>
    %591 = arith.addf %587, %590 : vector<16x8xf32>
    %592 = vector.extract_strided_slice %11 {offsets = [4, 0], sizes = [1, 8], strides = [1, 1]} : vector<16x8xf32> to vector<1x8xf32>
    %593 = vector.broadcast %592 : vector<1x8xf32> to vector<16x8xf32>
    %594 = arith.mulf %332, %593 : vector<16x8xf32>
    %595 = arith.addf %591, %594 : vector<16x8xf32>
    %596 = vector.extract_strided_slice %11 {offsets = [5, 0], sizes = [1, 8], strides = [1, 1]} : vector<16x8xf32> to vector<1x8xf32>
    %597 = vector.broadcast %596 : vector<1x8xf32> to vector<16x8xf32>
    %598 = arith.mulf %337, %597 : vector<16x8xf32>
    %599 = arith.addf %595, %598 : vector<16x8xf32>
    %600 = vector.extract_strided_slice %11 {offsets = [6, 0], sizes = [1, 8], strides = [1, 1]} : vector<16x8xf32> to vector<1x8xf32>
    %601 = vector.broadcast %600 : vector<1x8xf32> to vector<16x8xf32>
    %602 = arith.mulf %342, %601 : vector<16x8xf32>
    %603 = arith.addf %599, %602 : vector<16x8xf32>
    %604 = vector.extract_strided_slice %11 {offsets = [7, 0], sizes = [1, 8], strides = [1, 1]} : vector<16x8xf32> to vector<1x8xf32>
    %605 = vector.broadcast %604 : vector<1x8xf32> to vector<16x8xf32>
    %606 = arith.mulf %347, %605 : vector<16x8xf32>
    %607 = arith.addf %603, %606 : vector<16x8xf32>
    %608 = vector.extract_strided_slice %11 {offsets = [8, 0], sizes = [1, 8], strides = [1, 1]} : vector<16x8xf32> to vector<1x8xf32>
    %609 = vector.broadcast %608 : vector<1x8xf32> to vector<16x8xf32>
    %610 = arith.mulf %352, %609 : vector<16x8xf32>
    %611 = arith.addf %607, %610 : vector<16x8xf32>
    %612 = vector.extract_strided_slice %11 {offsets = [9, 0], sizes = [1, 8], strides = [1, 1]} : vector<16x8xf32> to vector<1x8xf32>
    %613 = vector.broadcast %612 : vector<1x8xf32> to vector<16x8xf32>
    %614 = arith.mulf %357, %613 : vector<16x8xf32>
    %615 = arith.addf %611, %614 : vector<16x8xf32>
    %616 = vector.extract_strided_slice %11 {offsets = [10, 0], sizes = [1, 8], strides = [1, 1]} : vector<16x8xf32> to vector<1x8xf32>
    %617 = vector.broadcast %616 : vector<1x8xf32> to vector<16x8xf32>
    %618 = arith.mulf %362, %617 : vector<16x8xf32>
    %619 = arith.addf %615, %618 : vector<16x8xf32>
    %620 = vector.extract_strided_slice %11 {offsets = [11, 0], sizes = [1, 8], strides = [1, 1]} : vector<16x8xf32> to vector<1x8xf32>
    %621 = vector.broadcast %620 : vector<1x8xf32> to vector<16x8xf32>
    %622 = arith.mulf %367, %621 : vector<16x8xf32>
    %623 = arith.addf %619, %622 : vector<16x8xf32>
    %624 = vector.extract_strided_slice %11 {offsets = [12, 0], sizes = [1, 8], strides = [1, 1]} : vector<16x8xf32> to vector<1x8xf32>
    %625 = vector.broadcast %624 : vector<1x8xf32> to vector<16x8xf32>
    %626 = arith.mulf %372, %625 : vector<16x8xf32>
    %627 = arith.addf %623, %626 : vector<16x8xf32>
    %628 = vector.extract_strided_slice %11 {offsets = [13, 0], sizes = [1, 8], strides = [1, 1]} : vector<16x8xf32> to vector<1x8xf32>
    %629 = vector.broadcast %628 : vector<1x8xf32> to vector<16x8xf32>
    %630 = arith.mulf %377, %629 : vector<16x8xf32>
    %631 = arith.addf %627, %630 : vector<16x8xf32>
    %632 = vector.extract_strided_slice %11 {offsets = [14, 0], sizes = [1, 8], strides = [1, 1]} : vector<16x8xf32> to vector<1x8xf32>
    %633 = vector.broadcast %632 : vector<1x8xf32> to vector<16x8xf32>
    %634 = arith.mulf %382, %633 : vector<16x8xf32>
    %635 = arith.addf %631, %634 : vector<16x8xf32>
    %636 = vector.extract_strided_slice %11 {offsets = [15, 0], sizes = [1, 8], strides = [1, 1]} : vector<16x8xf32> to vector<1x8xf32>
    %637 = vector.broadcast %636 : vector<1x8xf32> to vector<16x8xf32>
    %638 = arith.mulf %387, %637 : vector<16x8xf32>
    %639 = arith.addf %635, %638 : vector<16x8xf32>
    %640 = vector.extract_strided_slice %13 {offsets = [0, 0], sizes = [1, 8], strides = [1, 1]} : vector<16x8xf32> to vector<1x8xf32>
    %641 = vector.broadcast %640 : vector<1x8xf32> to vector<16x8xf32>
    %642 = arith.mulf %312, %641 : vector<16x8xf32>
    %643 = vector.extract_strided_slice %13 {offsets = [1, 0], sizes = [1, 8], strides = [1, 1]} : vector<16x8xf32> to vector<1x8xf32>
    %644 = vector.broadcast %643 : vector<1x8xf32> to vector<16x8xf32>
    %645 = arith.mulf %317, %644 : vector<16x8xf32>
    %646 = arith.addf %642, %645 : vector<16x8xf32>
    %647 = vector.extract_strided_slice %13 {offsets = [2, 0], sizes = [1, 8], strides = [1, 1]} : vector<16x8xf32> to vector<1x8xf32>
    %648 = vector.broadcast %647 : vector<1x8xf32> to vector<16x8xf32>
    %649 = arith.mulf %322, %648 : vector<16x8xf32>
    %650 = arith.addf %646, %649 : vector<16x8xf32>
    %651 = vector.extract_strided_slice %13 {offsets = [3, 0], sizes = [1, 8], strides = [1, 1]} : vector<16x8xf32> to vector<1x8xf32>
    %652 = vector.broadcast %651 : vector<1x8xf32> to vector<16x8xf32>
    %653 = arith.mulf %327, %652 : vector<16x8xf32>
    %654 = arith.addf %650, %653 : vector<16x8xf32>
    %655 = vector.extract_strided_slice %13 {offsets = [4, 0], sizes = [1, 8], strides = [1, 1]} : vector<16x8xf32> to vector<1x8xf32>
    %656 = vector.broadcast %655 : vector<1x8xf32> to vector<16x8xf32>
    %657 = arith.mulf %332, %656 : vector<16x8xf32>
    %658 = arith.addf %654, %657 : vector<16x8xf32>
    %659 = vector.extract_strided_slice %13 {offsets = [5, 0], sizes = [1, 8], strides = [1, 1]} : vector<16x8xf32> to vector<1x8xf32>
    %660 = vector.broadcast %659 : vector<1x8xf32> to vector<16x8xf32>
    %661 = arith.mulf %337, %660 : vector<16x8xf32>
    %662 = arith.addf %658, %661 : vector<16x8xf32>
    %663 = vector.extract_strided_slice %13 {offsets = [6, 0], sizes = [1, 8], strides = [1, 1]} : vector<16x8xf32> to vector<1x8xf32>
    %664 = vector.broadcast %663 : vector<1x8xf32> to vector<16x8xf32>
    %665 = arith.mulf %342, %664 : vector<16x8xf32>
    %666 = arith.addf %662, %665 : vector<16x8xf32>
    %667 = vector.extract_strided_slice %13 {offsets = [7, 0], sizes = [1, 8], strides = [1, 1]} : vector<16x8xf32> to vector<1x8xf32>
    %668 = vector.broadcast %667 : vector<1x8xf32> to vector<16x8xf32>
    %669 = arith.mulf %347, %668 : vector<16x8xf32>
    %670 = arith.addf %666, %669 : vector<16x8xf32>
    %671 = vector.extract_strided_slice %13 {offsets = [8, 0], sizes = [1, 8], strides = [1, 1]} : vector<16x8xf32> to vector<1x8xf32>
    %672 = vector.broadcast %671 : vector<1x8xf32> to vector<16x8xf32>
    %673 = arith.mulf %352, %672 : vector<16x8xf32>
    %674 = arith.addf %670, %673 : vector<16x8xf32>
    %675 = vector.extract_strided_slice %13 {offsets = [9, 0], sizes = [1, 8], strides = [1, 1]} : vector<16x8xf32> to vector<1x8xf32>
    %676 = vector.broadcast %675 : vector<1x8xf32> to vector<16x8xf32>
    %677 = arith.mulf %357, %676 : vector<16x8xf32>
    %678 = arith.addf %674, %677 : vector<16x8xf32>
    %679 = vector.extract_strided_slice %13 {offsets = [10, 0], sizes = [1, 8], strides = [1, 1]} : vector<16x8xf32> to vector<1x8xf32>
    %680 = vector.broadcast %679 : vector<1x8xf32> to vector<16x8xf32>
    %681 = arith.mulf %362, %680 : vector<16x8xf32>
    %682 = arith.addf %678, %681 : vector<16x8xf32>
    %683 = vector.extract_strided_slice %13 {offsets = [11, 0], sizes = [1, 8], strides = [1, 1]} : vector<16x8xf32> to vector<1x8xf32>
    %684 = vector.broadcast %683 : vector<1x8xf32> to vector<16x8xf32>
    %685 = arith.mulf %367, %684 : vector<16x8xf32>
    %686 = arith.addf %682, %685 : vector<16x8xf32>
    %687 = vector.extract_strided_slice %13 {offsets = [12, 0], sizes = [1, 8], strides = [1, 1]} : vector<16x8xf32> to vector<1x8xf32>
    %688 = vector.broadcast %687 : vector<1x8xf32> to vector<16x8xf32>
    %689 = arith.mulf %372, %688 : vector<16x8xf32>
    %690 = arith.addf %686, %689 : vector<16x8xf32>
    %691 = vector.extract_strided_slice %13 {offsets = [13, 0], sizes = [1, 8], strides = [1, 1]} : vector<16x8xf32> to vector<1x8xf32>
    %692 = vector.broadcast %691 : vector<1x8xf32> to vector<16x8xf32>
    %693 = arith.mulf %377, %692 : vector<16x8xf32>
    %694 = arith.addf %690, %693 : vector<16x8xf32>
    %695 = vector.extract_strided_slice %13 {offsets = [14, 0], sizes = [1, 8], strides = [1, 1]} : vector<16x8xf32> to vector<1x8xf32>
    %696 = vector.broadcast %695 : vector<1x8xf32> to vector<16x8xf32>
    %697 = arith.mulf %382, %696 : vector<16x8xf32>
    %698 = arith.addf %694, %697 : vector<16x8xf32>
    %699 = vector.extract_strided_slice %13 {offsets = [15, 0], sizes = [1, 8], strides = [1, 1]} : vector<16x8xf32> to vector<1x8xf32>
    %700 = vector.broadcast %699 : vector<1x8xf32> to vector<16x8xf32>
    %701 = arith.mulf %387, %700 : vector<16x8xf32>
    %702 = arith.addf %698, %701 : vector<16x8xf32>
    %703 = vector.extract_strided_slice %15 {offsets = [0, 0], sizes = [1, 8], strides = [1, 1]} : vector<16x8xf32> to vector<1x8xf32>
    %704 = vector.broadcast %703 : vector<1x8xf32> to vector<16x8xf32>
    %705 = arith.mulf %312, %704 : vector<16x8xf32>
    %706 = vector.extract_strided_slice %15 {offsets = [1, 0], sizes = [1, 8], strides = [1, 1]} : vector<16x8xf32> to vector<1x8xf32>
    %707 = vector.broadcast %706 : vector<1x8xf32> to vector<16x8xf32>
    %708 = arith.mulf %317, %707 : vector<16x8xf32>
    %709 = arith.addf %705, %708 : vector<16x8xf32>
    %710 = vector.extract_strided_slice %15 {offsets = [2, 0], sizes = [1, 8], strides = [1, 1]} : vector<16x8xf32> to vector<1x8xf32>
    %711 = vector.broadcast %710 : vector<1x8xf32> to vector<16x8xf32>
    %712 = arith.mulf %322, %711 : vector<16x8xf32>
    %713 = arith.addf %709, %712 : vector<16x8xf32>
    %714 = vector.extract_strided_slice %15 {offsets = [3, 0], sizes = [1, 8], strides = [1, 1]} : vector<16x8xf32> to vector<1x8xf32>
    %715 = vector.broadcast %714 : vector<1x8xf32> to vector<16x8xf32>
    %716 = arith.mulf %327, %715 : vector<16x8xf32>
    %717 = arith.addf %713, %716 : vector<16x8xf32>
    %718 = vector.extract_strided_slice %15 {offsets = [4, 0], sizes = [1, 8], strides = [1, 1]} : vector<16x8xf32> to vector<1x8xf32>
    %719 = vector.broadcast %718 : vector<1x8xf32> to vector<16x8xf32>
    %720 = arith.mulf %332, %719 : vector<16x8xf32>
    %721 = arith.addf %717, %720 : vector<16x8xf32>
    %722 = vector.extract_strided_slice %15 {offsets = [5, 0], sizes = [1, 8], strides = [1, 1]} : vector<16x8xf32> to vector<1x8xf32>
    %723 = vector.broadcast %722 : vector<1x8xf32> to vector<16x8xf32>
    %724 = arith.mulf %337, %723 : vector<16x8xf32>
    %725 = arith.addf %721, %724 : vector<16x8xf32>
    %726 = vector.extract_strided_slice %15 {offsets = [6, 0], sizes = [1, 8], strides = [1, 1]} : vector<16x8xf32> to vector<1x8xf32>
    %727 = vector.broadcast %726 : vector<1x8xf32> to vector<16x8xf32>
    %728 = arith.mulf %342, %727 : vector<16x8xf32>
    %729 = arith.addf %725, %728 : vector<16x8xf32>
    %730 = vector.extract_strided_slice %15 {offsets = [7, 0], sizes = [1, 8], strides = [1, 1]} : vector<16x8xf32> to vector<1x8xf32>
    %731 = vector.broadcast %730 : vector<1x8xf32> to vector<16x8xf32>
    %732 = arith.mulf %347, %731 : vector<16x8xf32>
    %733 = arith.addf %729, %732 : vector<16x8xf32>
    %734 = vector.extract_strided_slice %15 {offsets = [8, 0], sizes = [1, 8], strides = [1, 1]} : vector<16x8xf32> to vector<1x8xf32>
    %735 = vector.broadcast %734 : vector<1x8xf32> to vector<16x8xf32>
    %736 = arith.mulf %352, %735 : vector<16x8xf32>
    %737 = arith.addf %733, %736 : vector<16x8xf32>
    %738 = vector.extract_strided_slice %15 {offsets = [9, 0], sizes = [1, 8], strides = [1, 1]} : vector<16x8xf32> to vector<1x8xf32>
    %739 = vector.broadcast %738 : vector<1x8xf32> to vector<16x8xf32>
    %740 = arith.mulf %357, %739 : vector<16x8xf32>
    %741 = arith.addf %737, %740 : vector<16x8xf32>
    %742 = vector.extract_strided_slice %15 {offsets = [10, 0], sizes = [1, 8], strides = [1, 1]} : vector<16x8xf32> to vector<1x8xf32>
    %743 = vector.broadcast %742 : vector<1x8xf32> to vector<16x8xf32>
    %744 = arith.mulf %362, %743 : vector<16x8xf32>
    %745 = arith.addf %741, %744 : vector<16x8xf32>
    %746 = vector.extract_strided_slice %15 {offsets = [11, 0], sizes = [1, 8], strides = [1, 1]} : vector<16x8xf32> to vector<1x8xf32>
    %747 = vector.broadcast %746 : vector<1x8xf32> to vector<16x8xf32>
    %748 = arith.mulf %367, %747 : vector<16x8xf32>
    %749 = arith.addf %745, %748 : vector<16x8xf32>
    %750 = vector.extract_strided_slice %15 {offsets = [12, 0], sizes = [1, 8], strides = [1, 1]} : vector<16x8xf32> to vector<1x8xf32>
    %751 = vector.broadcast %750 : vector<1x8xf32> to vector<16x8xf32>
    %752 = arith.mulf %372, %751 : vector<16x8xf32>
    %753 = arith.addf %749, %752 : vector<16x8xf32>
    %754 = vector.extract_strided_slice %15 {offsets = [13, 0], sizes = [1, 8], strides = [1, 1]} : vector<16x8xf32> to vector<1x8xf32>
    %755 = vector.broadcast %754 : vector<1x8xf32> to vector<16x8xf32>
    %756 = arith.mulf %377, %755 : vector<16x8xf32>
    %757 = arith.addf %753, %756 : vector<16x8xf32>
    %758 = vector.extract_strided_slice %15 {offsets = [14, 0], sizes = [1, 8], strides = [1, 1]} : vector<16x8xf32> to vector<1x8xf32>
    %759 = vector.broadcast %758 : vector<1x8xf32> to vector<16x8xf32>
    %760 = arith.mulf %382, %759 : vector<16x8xf32>
    %761 = arith.addf %757, %760 : vector<16x8xf32>
    %762 = vector.extract_strided_slice %15 {offsets = [15, 0], sizes = [1, 8], strides = [1, 1]} : vector<16x8xf32> to vector<1x8xf32>
    %763 = vector.broadcast %762 : vector<1x8xf32> to vector<16x8xf32>
    %764 = arith.mulf %387, %763 : vector<16x8xf32>
    %765 = arith.addf %761, %764 : vector<16x8xf32>
    %766 = vector.extract_strided_slice %17 {offsets = [0, 0], sizes = [1, 8], strides = [1, 1]} : vector<16x8xf32> to vector<1x8xf32>
    %767 = vector.broadcast %766 : vector<1x8xf32> to vector<16x8xf32>
    %768 = arith.mulf %312, %767 : vector<16x8xf32>
    %769 = vector.extract_strided_slice %17 {offsets = [1, 0], sizes = [1, 8], strides = [1, 1]} : vector<16x8xf32> to vector<1x8xf32>
    %770 = vector.broadcast %769 : vector<1x8xf32> to vector<16x8xf32>
    %771 = arith.mulf %317, %770 : vector<16x8xf32>
    %772 = arith.addf %768, %771 : vector<16x8xf32>
    %773 = vector.extract_strided_slice %17 {offsets = [2, 0], sizes = [1, 8], strides = [1, 1]} : vector<16x8xf32> to vector<1x8xf32>
    %774 = vector.broadcast %773 : vector<1x8xf32> to vector<16x8xf32>
    %775 = arith.mulf %322, %774 : vector<16x8xf32>
    %776 = arith.addf %772, %775 : vector<16x8xf32>
    %777 = vector.extract_strided_slice %17 {offsets = [3, 0], sizes = [1, 8], strides = [1, 1]} : vector<16x8xf32> to vector<1x8xf32>
    %778 = vector.broadcast %777 : vector<1x8xf32> to vector<16x8xf32>
    %779 = arith.mulf %327, %778 : vector<16x8xf32>
    %780 = arith.addf %776, %779 : vector<16x8xf32>
    %781 = vector.extract_strided_slice %17 {offsets = [4, 0], sizes = [1, 8], strides = [1, 1]} : vector<16x8xf32> to vector<1x8xf32>
    %782 = vector.broadcast %781 : vector<1x8xf32> to vector<16x8xf32>
    %783 = arith.mulf %332, %782 : vector<16x8xf32>
    %784 = arith.addf %780, %783 : vector<16x8xf32>
    %785 = vector.extract_strided_slice %17 {offsets = [5, 0], sizes = [1, 8], strides = [1, 1]} : vector<16x8xf32> to vector<1x8xf32>
    %786 = vector.broadcast %785 : vector<1x8xf32> to vector<16x8xf32>
    %787 = arith.mulf %337, %786 : vector<16x8xf32>
    %788 = arith.addf %784, %787 : vector<16x8xf32>
    %789 = vector.extract_strided_slice %17 {offsets = [6, 0], sizes = [1, 8], strides = [1, 1]} : vector<16x8xf32> to vector<1x8xf32>
    %790 = vector.broadcast %789 : vector<1x8xf32> to vector<16x8xf32>
    %791 = arith.mulf %342, %790 : vector<16x8xf32>
    %792 = arith.addf %788, %791 : vector<16x8xf32>
    %793 = vector.extract_strided_slice %17 {offsets = [7, 0], sizes = [1, 8], strides = [1, 1]} : vector<16x8xf32> to vector<1x8xf32>
    %794 = vector.broadcast %793 : vector<1x8xf32> to vector<16x8xf32>
    %795 = arith.mulf %347, %794 : vector<16x8xf32>
    %796 = arith.addf %792, %795 : vector<16x8xf32>
    %797 = vector.extract_strided_slice %17 {offsets = [8, 0], sizes = [1, 8], strides = [1, 1]} : vector<16x8xf32> to vector<1x8xf32>
    %798 = vector.broadcast %797 : vector<1x8xf32> to vector<16x8xf32>
    %799 = arith.mulf %352, %798 : vector<16x8xf32>
    %800 = arith.addf %796, %799 : vector<16x8xf32>
    %801 = vector.extract_strided_slice %17 {offsets = [9, 0], sizes = [1, 8], strides = [1, 1]} : vector<16x8xf32> to vector<1x8xf32>
    %802 = vector.broadcast %801 : vector<1x8xf32> to vector<16x8xf32>
    %803 = arith.mulf %357, %802 : vector<16x8xf32>
    %804 = arith.addf %800, %803 : vector<16x8xf32>
    %805 = vector.extract_strided_slice %17 {offsets = [10, 0], sizes = [1, 8], strides = [1, 1]} : vector<16x8xf32> to vector<1x8xf32>
    %806 = vector.broadcast %805 : vector<1x8xf32> to vector<16x8xf32>
    %807 = arith.mulf %362, %806 : vector<16x8xf32>
    %808 = arith.addf %804, %807 : vector<16x8xf32>
    %809 = vector.extract_strided_slice %17 {offsets = [11, 0], sizes = [1, 8], strides = [1, 1]} : vector<16x8xf32> to vector<1x8xf32>
    %810 = vector.broadcast %809 : vector<1x8xf32> to vector<16x8xf32>
    %811 = arith.mulf %367, %810 : vector<16x8xf32>
    %812 = arith.addf %808, %811 : vector<16x8xf32>
    %813 = vector.extract_strided_slice %17 {offsets = [12, 0], sizes = [1, 8], strides = [1, 1]} : vector<16x8xf32> to vector<1x8xf32>
    %814 = vector.broadcast %813 : vector<1x8xf32> to vector<16x8xf32>
    %815 = arith.mulf %372, %814 : vector<16x8xf32>
    %816 = arith.addf %812, %815 : vector<16x8xf32>
    %817 = vector.extract_strided_slice %17 {offsets = [13, 0], sizes = [1, 8], strides = [1, 1]} : vector<16x8xf32> to vector<1x8xf32>
    %818 = vector.broadcast %817 : vector<1x8xf32> to vector<16x8xf32>
    %819 = arith.mulf %377, %818 : vector<16x8xf32>
    %820 = arith.addf %816, %819 : vector<16x8xf32>
    %821 = vector.extract_strided_slice %17 {offsets = [14, 0], sizes = [1, 8], strides = [1, 1]} : vector<16x8xf32> to vector<1x8xf32>
    %822 = vector.broadcast %821 : vector<1x8xf32> to vector<16x8xf32>
    %823 = arith.mulf %382, %822 : vector<16x8xf32>
    %824 = arith.addf %820, %823 : vector<16x8xf32>
    %825 = vector.extract_strided_slice %17 {offsets = [15, 0], sizes = [1, 8], strides = [1, 1]} : vector<16x8xf32> to vector<1x8xf32>
    %826 = vector.broadcast %825 : vector<1x8xf32> to vector<16x8xf32>
    %827 = arith.mulf %387, %826 : vector<16x8xf32>
    %828 = arith.addf %824, %827 : vector<16x8xf32>
    %829 = arith.mulf %7, %7 : vector<16x8xf32>
    %830 = arith.mulf %9, %9 : vector<16x8xf32>
    %831 = arith.addf %829, %830 : vector<16x8xf32>
    %832 = arith.mulf %11, %11 : vector<16x8xf32>
    %833 = arith.addf %831, %832 : vector<16x8xf32>
    %834 = math.rsqrt %833 : vector<16x8xf32>
    %cst_29 = arith.constant 0.000000e+00 : f32
    %835 = vector.broadcast %cst_29 : f32 to vector<16x8xf32>
    %836 = arith.cmpf ogt, %833, %835 : vector<16x8xf32>
    %cst_30 = arith.constant 0.000000e+00 : f32
    %837 = vector.broadcast %cst_30 : f32 to vector<16x8xf32>
    %838 = arith.mulf %7, %834 : vector<16x8xf32>
    %839 = arith.select %836, %838, %837 : vector<16x8xi1>, vector<16x8xf32>
    %840 = arith.mulf %9, %834 : vector<16x8xf32>
    %841 = arith.select %836, %840, %837 : vector<16x8xi1>, vector<16x8xf32>
    %842 = arith.mulf %11, %834 : vector<16x8xf32>
    %843 = arith.select %836, %842, %837 : vector<16x8xi1>, vector<16x8xf32>
    %844 = math.sqrt %833 : vector<16x8xf32>
    %c0_i32_31 = arith.constant 0 : i32
    %845 = vector.broadcast %c0_i32_31 : i32 to vector<16x8xi32>
    %846 = arith.cmpi eq, %301, %845 : vector<16x8xi32>
    %cst_32 = arith.constant -3.000000e+00 : f32
    %847 = vector.broadcast %cst_32 : f32 to vector<16x8xf32>
    %848 = arith.subf %847, %450 : vector<16x8xf32>
    %849 = arith.subf %124, %450 : vector<16x8xf32>
    %850 = arith.select %846, %848, %849 : vector<16x8xi1>, vector<16x8xf32>
    %851 = vector.broadcast %18 : vector<1x8xf32> to vector<16x8xf32>
    %852 = arith.mulf %839, %851 : vector<16x8xf32>
    %853 = vector.broadcast %19 : vector<1x8xf32> to vector<16x8xf32>
    %854 = arith.mulf %841, %853 : vector<16x8xf32>
    %855 = arith.addf %852, %854 : vector<16x8xf32>
    %856 = vector.broadcast %20 : vector<1x8xf32> to vector<16x8xf32>
    %857 = arith.mulf %843, %856 : vector<16x8xf32>
    %858 = arith.addf %855, %857 : vector<16x8xf32>
    %859 = arith.mulf %839, %13 : vector<16x8xf32>
    %860 = arith.mulf %841, %15 : vector<16x8xf32>
    %861 = arith.addf %859, %860 : vector<16x8xf32>
    %862 = arith.mulf %843, %17 : vector<16x8xf32>
    %863 = arith.addf %861, %862 : vector<16x8xf32>
    %864 = vector.broadcast %18 : vector<1x8xf32> to vector<16x8xf32>
    %865 = arith.mulf %13, %864 : vector<16x8xf32>
    %866 = vector.broadcast %19 : vector<1x8xf32> to vector<16x8xf32>
    %867 = arith.mulf %15, %866 : vector<16x8xf32>
    %868 = arith.addf %865, %867 : vector<16x8xf32>
    %869 = vector.broadcast %20 : vector<1x8xf32> to vector<16x8xf32>
    %870 = arith.mulf %17, %869 : vector<16x8xf32>
    %871 = arith.addf %868, %870 : vector<16x8xf32>
    %cst_33 = arith.constant -0.99999988 : f32
    %cst_34 = arith.constant 0.99999988 : f32
    %872 = vector.broadcast %cst_33 : f32 to vector<16x8xf32>
    %873 = arith.maximumf %872, %871 : vector<16x8xf32>
    %874 = vector.broadcast %cst_34 : f32 to vector<16x8xf32>
    %875 = arith.minimumf %874, %873 : vector<16x8xf32>
    %876 = math.absf %875 : vector<16x8xf32>
    %cst_35 = arith.constant 5.000000e-01 : f32
    %877 = vector.broadcast %cst_35 : f32 to vector<16x8xf32>
    %878 = arith.cmpf ogt, %876, %877 : vector<16x8xf32>
    %cst_36 = arith.constant 1.000000e+00 : f32
    %879 = vector.broadcast %cst_36 : f32 to vector<16x8xf32>
    %880 = arith.subf %879, %876 : vector<16x8xf32>
    %cst_37 = arith.constant 5.000000e-01 : f32
    %881 = vector.broadcast %cst_37 : f32 to vector<16x8xf32>
    %882 = arith.mulf %881, %880 : vector<16x8xf32>
    %883 = arith.mulf %876, %876 : vector<16x8xf32>
    %884 = arith.select %878, %882, %883 : vector<16x8xi1>, vector<16x8xf32>
    %cst_38 = arith.constant 1.000000e+00 : f32
    %885 = vector.broadcast %cst_38 : f32 to vector<16x8xf32>
    %886 = arith.subf %885, %876 : vector<16x8xf32>
    %cst_39 = arith.constant 5.000000e-01 : f32
    %887 = vector.broadcast %cst_39 : f32 to vector<16x8xf32>
    %888 = arith.mulf %887, %886 : vector<16x8xf32>
    %889 = math.sqrt %888 : vector<16x8xf32>
    %890 = arith.select %878, %889, %876 : vector<16x8xi1>, vector<16x8xf32>
    %cst_40 = arith.constant 4.216320e-02 : f32
    %891 = vector.broadcast %cst_40 : f32 to vector<16x8xf32>
    %892 = arith.mulf %891, %884 : vector<16x8xf32>
    %cst_41 = arith.constant 0.024181312 : f32
    %893 = vector.broadcast %cst_41 : f32 to vector<16x8xf32>
    %894 = arith.addf %892, %893 : vector<16x8xf32>
    %895 = arith.mulf %894, %884 : vector<16x8xf32>
    %cst_42 = arith.constant 0.0454700254 : f32
    %896 = vector.broadcast %cst_42 : f32 to vector<16x8xf32>
    %897 = arith.addf %895, %896 : vector<16x8xf32>
    %898 = arith.mulf %897, %884 : vector<16x8xf32>
    %cst_43 = arith.constant 0.0749530047 : f32
    %899 = vector.broadcast %cst_43 : f32 to vector<16x8xf32>
    %900 = arith.addf %898, %899 : vector<16x8xf32>
    %901 = arith.mulf %900, %884 : vector<16x8xf32>
    %cst_44 = arith.constant 0.166667521 : f32
    %902 = vector.broadcast %cst_44 : f32 to vector<16x8xf32>
    %903 = arith.addf %901, %902 : vector<16x8xf32>
    %904 = arith.mulf %890, %884 : vector<16x8xf32>
    %905 = arith.mulf %904, %903 : vector<16x8xf32>
    %906 = arith.addf %890, %905 : vector<16x8xf32>
    %cst_45 = arith.constant 2.000000e+00 : f32
    %907 = vector.broadcast %cst_45 : f32 to vector<16x8xf32>
    %908 = arith.mulf %907, %906 : vector<16x8xf32>
    %cst_46 = arith.constant 1.57079637 : f32
    %909 = vector.broadcast %cst_46 : f32 to vector<16x8xf32>
    %910 = arith.subf %909, %908 : vector<16x8xf32>
    %911 = arith.select %878, %910, %906 : vector<16x8xi1>, vector<16x8xf32>
    %cst_47 = arith.constant 0.000000e+00 : f32
    %912 = vector.broadcast %cst_47 : f32 to vector<16x8xf32>
    %913 = arith.cmpf olt, %875, %912 : vector<16x8xf32>
    %cst_48 = arith.constant 0.000000e+00 : f32
    %914 = vector.broadcast %cst_48 : f32 to vector<16x8xf32>
    %915 = arith.subf %914, %911 : vector<16x8xf32>
    %916 = arith.select %913, %915, %911 : vector<16x8xi1>, vector<16x8xf32>
    %cst_49 = arith.constant 1.57079637 : f32
    %917 = vector.broadcast %cst_49 : f32 to vector<16x8xf32>
    %918 = arith.subf %917, %916 : vector<16x8xf32>
    %919 = arith.cmpf olt, %858, %863 : vector<16x8xf32>
    %cst_50 = arith.constant 1.000000e+00 : f32
    %cst_51 = arith.constant -1.000000e+00 : f32
    %920 = vector.broadcast %cst_50 : f32 to vector<16x8xf32>
    %921 = vector.broadcast %cst_51 : f32 to vector<16x8xf32>
    %922 = arith.select %919, %920, %921 : vector<16x8xi1>, vector<16x8xf32>
    %923 = arith.mulf %922, %918 : vector<16x8xf32>
    %924 = arith.subf %7, %513 : vector<16x8xf32>
    %925 = arith.subf %9, %576 : vector<16x8xf32>
    %926 = arith.subf %11, %639 : vector<16x8xf32>
    %927 = arith.mulf %924, %924 : vector<16x8xf32>
    %928 = arith.mulf %925, %925 : vector<16x8xf32>
    %929 = arith.addf %927, %928 : vector<16x8xf32>
    %930 = arith.mulf %926, %926 : vector<16x8xf32>
    %931 = arith.addf %929, %930 : vector<16x8xf32>
    %932 = math.rsqrt %931 : vector<16x8xf32>
    %cst_52 = arith.constant 0.000000e+00 : f32
    %933 = vector.broadcast %cst_52 : f32 to vector<16x8xf32>
    %934 = arith.cmpf ogt, %931, %933 : vector<16x8xf32>
    %cst_53 = arith.constant 0.000000e+00 : f32
    %935 = vector.broadcast %cst_53 : f32 to vector<16x8xf32>
    %936 = arith.mulf %924, %932 : vector<16x8xf32>
    %937 = arith.select %934, %936, %935 : vector<16x8xi1>, vector<16x8xf32>
    %938 = arith.mulf %925, %932 : vector<16x8xf32>
    %939 = arith.select %934, %938, %935 : vector<16x8xi1>, vector<16x8xf32>
    %940 = arith.mulf %926, %932 : vector<16x8xf32>
    %941 = arith.select %934, %940, %935 : vector<16x8xi1>, vector<16x8xf32>
    %942 = arith.mulf %937, %13 : vector<16x8xf32>
    %943 = arith.mulf %939, %15 : vector<16x8xf32>
    %944 = arith.addf %942, %943 : vector<16x8xf32>
    %945 = arith.mulf %941, %17 : vector<16x8xf32>
    %946 = arith.addf %944, %945 : vector<16x8xf32>
    %947 = arith.mulf %937, %702 : vector<16x8xf32>
    %948 = arith.mulf %939, %765 : vector<16x8xf32>
    %949 = arith.addf %947, %948 : vector<16x8xf32>
    %950 = arith.mulf %941, %828 : vector<16x8xf32>
    %951 = arith.addf %949, %950 : vector<16x8xf32>
    %952 = arith.mulf %13, %702 : vector<16x8xf32>
    %953 = arith.mulf %15, %765 : vector<16x8xf32>
    %954 = arith.addf %952, %953 : vector<16x8xf32>
    %955 = arith.mulf %17, %828 : vector<16x8xf32>
    %956 = arith.addf %954, %955 : vector<16x8xf32>
    %cst_54 = arith.constant -0.99999988 : f32
    %cst_55 = arith.constant 0.99999988 : f32
    %957 = vector.broadcast %cst_54 : f32 to vector<16x8xf32>
    %958 = arith.maximumf %957, %956 : vector<16x8xf32>
    %959 = vector.broadcast %cst_55 : f32 to vector<16x8xf32>
    %960 = arith.minimumf %959, %958 : vector<16x8xf32>
    %961 = math.absf %960 : vector<16x8xf32>
    %cst_56 = arith.constant 5.000000e-01 : f32
    %962 = vector.broadcast %cst_56 : f32 to vector<16x8xf32>
    %963 = arith.cmpf ogt, %961, %962 : vector<16x8xf32>
    %cst_57 = arith.constant 1.000000e+00 : f32
    %964 = vector.broadcast %cst_57 : f32 to vector<16x8xf32>
    %965 = arith.subf %964, %961 : vector<16x8xf32>
    %cst_58 = arith.constant 5.000000e-01 : f32
    %966 = vector.broadcast %cst_58 : f32 to vector<16x8xf32>
    %967 = arith.mulf %966, %965 : vector<16x8xf32>
    %968 = arith.mulf %961, %961 : vector<16x8xf32>
    %969 = arith.select %963, %967, %968 : vector<16x8xi1>, vector<16x8xf32>
    %cst_59 = arith.constant 1.000000e+00 : f32
    %970 = vector.broadcast %cst_59 : f32 to vector<16x8xf32>
    %971 = arith.subf %970, %961 : vector<16x8xf32>
    %cst_60 = arith.constant 5.000000e-01 : f32
    %972 = vector.broadcast %cst_60 : f32 to vector<16x8xf32>
    %973 = arith.mulf %972, %971 : vector<16x8xf32>
    %974 = math.sqrt %973 : vector<16x8xf32>
    %975 = arith.select %963, %974, %961 : vector<16x8xi1>, vector<16x8xf32>
    %cst_61 = arith.constant 4.216320e-02 : f32
    %976 = vector.broadcast %cst_61 : f32 to vector<16x8xf32>
    %977 = arith.mulf %976, %969 : vector<16x8xf32>
    %cst_62 = arith.constant 0.024181312 : f32
    %978 = vector.broadcast %cst_62 : f32 to vector<16x8xf32>
    %979 = arith.addf %977, %978 : vector<16x8xf32>
    %980 = arith.mulf %979, %969 : vector<16x8xf32>
    %cst_63 = arith.constant 0.0454700254 : f32
    %981 = vector.broadcast %cst_63 : f32 to vector<16x8xf32>
    %982 = arith.addf %980, %981 : vector<16x8xf32>
    %983 = arith.mulf %982, %969 : vector<16x8xf32>
    %cst_64 = arith.constant 0.0749530047 : f32
    %984 = vector.broadcast %cst_64 : f32 to vector<16x8xf32>
    %985 = arith.addf %983, %984 : vector<16x8xf32>
    %986 = arith.mulf %985, %969 : vector<16x8xf32>
    %cst_65 = arith.constant 0.166667521 : f32
    %987 = vector.broadcast %cst_65 : f32 to vector<16x8xf32>
    %988 = arith.addf %986, %987 : vector<16x8xf32>
    %989 = arith.mulf %975, %969 : vector<16x8xf32>
    %990 = arith.mulf %989, %988 : vector<16x8xf32>
    %991 = arith.addf %975, %990 : vector<16x8xf32>
    %cst_66 = arith.constant 2.000000e+00 : f32
    %992 = vector.broadcast %cst_66 : f32 to vector<16x8xf32>
    %993 = arith.mulf %992, %991 : vector<16x8xf32>
    %cst_67 = arith.constant 1.57079637 : f32
    %994 = vector.broadcast %cst_67 : f32 to vector<16x8xf32>
    %995 = arith.subf %994, %993 : vector<16x8xf32>
    %996 = arith.select %963, %995, %991 : vector<16x8xi1>, vector<16x8xf32>
    %cst_68 = arith.constant 0.000000e+00 : f32
    %997 = vector.broadcast %cst_68 : f32 to vector<16x8xf32>
    %998 = arith.cmpf olt, %960, %997 : vector<16x8xf32>
    %cst_69 = arith.constant 0.000000e+00 : f32
    %999 = vector.broadcast %cst_69 : f32 to vector<16x8xf32>
    %1000 = arith.subf %999, %996 : vector<16x8xf32>
    %1001 = arith.select %998, %1000, %996 : vector<16x8xi1>, vector<16x8xf32>
    %cst_70 = arith.constant 1.57079637 : f32
    %1002 = vector.broadcast %cst_70 : f32 to vector<16x8xf32>
    %1003 = arith.subf %1002, %1001 : vector<16x8xf32>
    %1004 = arith.cmpf olt, %946, %951 : vector<16x8xf32>
    %cst_71 = arith.constant 1.000000e+00 : f32
    %cst_72 = arith.constant -1.000000e+00 : f32
    %1005 = vector.broadcast %cst_71 : f32 to vector<16x8xf32>
    %1006 = vector.broadcast %cst_72 : f32 to vector<16x8xf32>
    %1007 = arith.select %1004, %1005, %1006 : vector<16x8xi1>, vector<16x8xf32>
    %1008 = arith.mulf %1007, %1003 : vector<16x8xf32>
    %c0_73 = arith.constant 0 : index
    %c0_74 = arith.constant 0 : index
    %1009 = vector.load %arg5[%c0_73, %c0_74] : memref<64x8xbf16, #tpu.memory_space<vmem>>, vector<64x8xbf16>
    %c0_75 = arith.constant 0 : index
    %c0_76 = arith.constant 0 : index
    %1010 = vector.load %arg7[%c0_75, %c0_76] : memref<128x64xbf16, #tpu.memory_space<vmem>>, vector<128x64xbf16>
    %c0_77 = arith.constant 0 : index
    %c0_78 = arith.constant 0 : index
    %1011 = vector.load %arg9[%c0_77, %c0_78] : memref<128x128xbf16, #tpu.memory_space<vmem>>, vector<128x128xbf16>
    %c0_79 = arith.constant 0 : index
    %c0_80 = arith.constant 0 : index
    %1012 = vector.load %arg11[%c0_79, %c0_80] : memref<256x128xbf16, #tpu.memory_space<vmem>>, vector<256x128xbf16>
    %c0_81 = arith.constant 0 : index
    %c0_82 = arith.constant 0 : index
    %1013 = vector.load %arg6[%c0_81, %c0_82] : memref<64x1xf32, #tpu.memory_space<vmem>>, vector<64x1xf32>
    %c0_83 = arith.constant 0 : index
    %c0_84 = arith.constant 0 : index
    %1014 = vector.load %arg8[%c0_83, %c0_84] : memref<128x1xf32, #tpu.memory_space<vmem>>, vector<128x1xf32>
    %c0_85 = arith.constant 0 : index
    %c0_86 = arith.constant 0 : index
    %1015 = vector.load %arg10[%c0_85, %c0_86] : memref<128x1xf32, #tpu.memory_space<vmem>>, vector<128x1xf32>
    %c0_87 = arith.constant 0 : index
    %c0_88 = arith.constant 0 : index
    %1016 = vector.load %arg12[%c0_87, %c0_88] : memref<256x1xf32, #tpu.memory_space<vmem>>, vector<256x1xf32>
    %1017 = vector.extract_strided_slice %844 {offsets = [0, 0], sizes = [1, 8], strides = [1, 1]} : vector<16x8xf32> to vector<1x8xf32>
    %1018 = vector.extract_strided_slice %850 {offsets = [0, 0], sizes = [1, 8], strides = [1, 1]} : vector<16x8xf32> to vector<1x8xf32>
    %1019 = vector.extract_strided_slice %858 {offsets = [0, 0], sizes = [1, 8], strides = [1, 1]} : vector<16x8xf32> to vector<1x8xf32>
    %1020 = vector.extract_strided_slice %863 {offsets = [0, 0], sizes = [1, 8], strides = [1, 1]} : vector<16x8xf32> to vector<1x8xf32>
    %1021 = vector.extract_strided_slice %923 {offsets = [0, 0], sizes = [1, 8], strides = [1, 1]} : vector<16x8xf32> to vector<1x8xf32>
    %1022 = vector.extract_strided_slice %946 {offsets = [0, 0], sizes = [1, 8], strides = [1, 1]} : vector<16x8xf32> to vector<1x8xf32>
    %1023 = vector.extract_strided_slice %951 {offsets = [0, 0], sizes = [1, 8], strides = [1, 1]} : vector<16x8xf32> to vector<1x8xf32>
    %1024 = vector.extract_strided_slice %1008 {offsets = [0, 0], sizes = [1, 8], strides = [1, 1]} : vector<16x8xf32> to vector<1x8xf32>
    %1025 = tpu.concatenate %1017, %1018, %1019, %1020, %1021, %1022, %1023, %1024 in 0 : vector<1x8xf32>, vector<1x8xf32>, vector<1x8xf32>, vector<1x8xf32>, vector<1x8xf32>, vector<1x8xf32>, vector<1x8xf32>, vector<1x8xf32> -> vector<8x8xf32>
    %1026 = arith.truncf %1025 : vector<8x8xf32> to vector<8x8xbf16>
    %cst_89 = arith.constant dense<0.000000e+00> : vector<64x8xf32>
    %1027 = tpu.matmul %1009, %1026, %cst_89 {dimension_numbers = #tpu.dot_dimension_numbers<[1], [0], [0], [1], [0, 0, 1, 1], [], []>} : vector<64x8xbf16>, vector<8x8xbf16>, vector<64x8xf32> -> vector<64x8xf32>
    %1028 = vector.broadcast %1013 : vector<64x1xf32> to vector<64x8xf32>
    %1029 = arith.addf %1027, %1028 : vector<64x8xf32>
    %cst_90 = arith.constant 0.000000e+00 : f32
    %1030 = vector.broadcast %cst_90 : f32 to vector<64x8xf32>
    %1031 = arith.maximumf %1029, %1030 : vector<64x8xf32>
    %1032 = arith.truncf %1031 : vector<64x8xf32> to vector<64x8xbf16>
    %cst_91 = arith.constant dense<0.000000e+00> : vector<128x8xf32>
    %1033 = tpu.matmul %1010, %1032, %cst_91 {dimension_numbers = #tpu.dot_dimension_numbers<[1], [0], [0], [1], [0, 0, 1, 1], [], []>} : vector<128x64xbf16>, vector<64x8xbf16>, vector<128x8xf32> -> vector<128x8xf32>
    %1034 = vector.broadcast %1014 : vector<128x1xf32> to vector<128x8xf32>
    %1035 = arith.addf %1033, %1034 : vector<128x8xf32>
    %cst_92 = arith.constant 0.000000e+00 : f32
    %1036 = vector.broadcast %cst_92 : f32 to vector<128x8xf32>
    %1037 = arith.maximumf %1035, %1036 : vector<128x8xf32>
    %1038 = arith.truncf %1037 : vector<128x8xf32> to vector<128x8xbf16>
    %cst_93 = arith.constant dense<0.000000e+00> : vector<128x8xf32>
    %1039 = tpu.matmul %1011, %1038, %cst_93 {dimension_numbers = #tpu.dot_dimension_numbers<[1], [0], [0], [1], [0, 0, 1, 1], [], []>} : vector<128x128xbf16>, vector<128x8xbf16>, vector<128x8xf32> -> vector<128x8xf32>
    %1040 = vector.broadcast %1015 : vector<128x1xf32> to vector<128x8xf32>
    %1041 = arith.addf %1039, %1040 : vector<128x8xf32>
    %cst_94 = arith.constant 0.000000e+00 : f32
    %1042 = vector.broadcast %cst_94 : f32 to vector<128x8xf32>
    %1043 = arith.maximumf %1041, %1042 : vector<128x8xf32>
    %1044 = arith.truncf %1043 : vector<128x8xf32> to vector<128x8xbf16>
    %cst_95 = arith.constant dense<0.000000e+00> : vector<256x8xf32>
    %1045 = tpu.matmul %1012, %1044, %cst_95 {dimension_numbers = #tpu.dot_dimension_numbers<[1], [0], [0], [1], [0, 0, 1, 1], [], []>} : vector<256x128xbf16>, vector<128x8xbf16>, vector<256x8xf32> -> vector<256x8xf32>
    %1046 = vector.broadcast %1016 : vector<256x1xf32> to vector<256x8xf32>
    %1047 = arith.addf %1045, %1046 : vector<256x8xf32>
    %cst_96 = arith.constant 0.000000e+00 : f32
    %1048 = vector.broadcast %cst_96 : f32 to vector<256x8xf32>
    %1049 = arith.maximumf %1047, %1048 : vector<256x8xf32>
    %1050 = vector.extract_strided_slice %844 {offsets = [1, 0], sizes = [1, 8], strides = [1, 1]} : vector<16x8xf32> to vector<1x8xf32>
    %1051 = vector.extract_strided_slice %850 {offsets = [1, 0], sizes = [1, 8], strides = [1, 1]} : vector<16x8xf32> to vector<1x8xf32>
    %1052 = vector.extract_strided_slice %858 {offsets = [1, 0], sizes = [1, 8], strides = [1, 1]} : vector<16x8xf32> to vector<1x8xf32>
    %1053 = vector.extract_strided_slice %863 {offsets = [1, 0], sizes = [1, 8], strides = [1, 1]} : vector<16x8xf32> to vector<1x8xf32>
    %1054 = vector.extract_strided_slice %923 {offsets = [1, 0], sizes = [1, 8], strides = [1, 1]} : vector<16x8xf32> to vector<1x8xf32>
    %1055 = vector.extract_strided_slice %946 {offsets = [1, 0], sizes = [1, 8], strides = [1, 1]} : vector<16x8xf32> to vector<1x8xf32>
    %1056 = vector.extract_strided_slice %951 {offsets = [1, 0], sizes = [1, 8], strides = [1, 1]} : vector<16x8xf32> to vector<1x8xf32>
    %1057 = vector.extract_strided_slice %1008 {offsets = [1, 0], sizes = [1, 8], strides = [1, 1]} : vector<16x8xf32> to vector<1x8xf32>
    %1058 = tpu.concatenate %1050, %1051, %1052, %1053, %1054, %1055, %1056, %1057 in 0 : vector<1x8xf32>, vector<1x8xf32>, vector<1x8xf32>, vector<1x8xf32>, vector<1x8xf32>, vector<1x8xf32>, vector<1x8xf32>, vector<1x8xf32> -> vector<8x8xf32>
    %1059 = arith.truncf %1058 : vector<8x8xf32> to vector<8x8xbf16>
    %cst_97 = arith.constant dense<0.000000e+00> : vector<64x8xf32>
    %1060 = tpu.matmul %1009, %1059, %cst_97 {dimension_numbers = #tpu.dot_dimension_numbers<[1], [0], [0], [1], [0, 0, 1, 1], [], []>} : vector<64x8xbf16>, vector<8x8xbf16>, vector<64x8xf32> -> vector<64x8xf32>
    %1061 = vector.broadcast %1013 : vector<64x1xf32> to vector<64x8xf32>
    %1062 = arith.addf %1060, %1061 : vector<64x8xf32>
    %cst_98 = arith.constant 0.000000e+00 : f32
    %1063 = vector.broadcast %cst_98 : f32 to vector<64x8xf32>
    %1064 = arith.maximumf %1062, %1063 : vector<64x8xf32>
    %1065 = arith.truncf %1064 : vector<64x8xf32> to vector<64x8xbf16>
    %cst_99 = arith.constant dense<0.000000e+00> : vector<128x8xf32>
    %1066 = tpu.matmul %1010, %1065, %cst_99 {dimension_numbers = #tpu.dot_dimension_numbers<[1], [0], [0], [1], [0, 0, 1, 1], [], []>} : vector<128x64xbf16>, vector<64x8xbf16>, vector<128x8xf32> -> vector<128x8xf32>
    %1067 = vector.broadcast %1014 : vector<128x1xf32> to vector<128x8xf32>
    %1068 = arith.addf %1066, %1067 : vector<128x8xf32>
    %cst_100 = arith.constant 0.000000e+00 : f32
    %1069 = vector.broadcast %cst_100 : f32 to vector<128x8xf32>
    %1070 = arith.maximumf %1068, %1069 : vector<128x8xf32>
    %1071 = arith.truncf %1070 : vector<128x8xf32> to vector<128x8xbf16>
    %cst_101 = arith.constant dense<0.000000e+00> : vector<128x8xf32>
    %1072 = tpu.matmul %1011, %1071, %cst_101 {dimension_numbers = #tpu.dot_dimension_numbers<[1], [0], [0], [1], [0, 0, 1, 1], [], []>} : vector<128x128xbf16>, vector<128x8xbf16>, vector<128x8xf32> -> vector<128x8xf32>
    %1073 = vector.broadcast %1015 : vector<128x1xf32> to vector<128x8xf32>
    %1074 = arith.addf %1072, %1073 : vector<128x8xf32>
    %cst_102 = arith.constant 0.000000e+00 : f32
    %1075 = vector.broadcast %cst_102 : f32 to vector<128x8xf32>
    %1076 = arith.maximumf %1074, %1075 : vector<128x8xf32>
    %1077 = arith.truncf %1076 : vector<128x8xf32> to vector<128x8xbf16>
    %cst_103 = arith.constant dense<0.000000e+00> : vector<256x8xf32>
    %1078 = tpu.matmul %1012, %1077, %cst_103 {dimension_numbers = #tpu.dot_dimension_numbers<[1], [0], [0], [1], [0, 0, 1, 1], [], []>} : vector<256x128xbf16>, vector<128x8xbf16>, vector<256x8xf32> -> vector<256x8xf32>
    %1079 = vector.broadcast %1016 : vector<256x1xf32> to vector<256x8xf32>
    %1080 = arith.addf %1078, %1079 : vector<256x8xf32>
    %cst_104 = arith.constant 0.000000e+00 : f32
    %1081 = vector.broadcast %cst_104 : f32 to vector<256x8xf32>
    %1082 = arith.maximumf %1080, %1081 : vector<256x8xf32>
    %1083 = arith.maximumf %1049, %1082 : vector<256x8xf32>
    %1084 = vector.extract_strided_slice %844 {offsets = [2, 0], sizes = [1, 8], strides = [1, 1]} : vector<16x8xf32> to vector<1x8xf32>
    %1085 = vector.extract_strided_slice %850 {offsets = [2, 0], sizes = [1, 8], strides = [1, 1]} : vector<16x8xf32> to vector<1x8xf32>
    %1086 = vector.extract_strided_slice %858 {offsets = [2, 0], sizes = [1, 8], strides = [1, 1]} : vector<16x8xf32> to vector<1x8xf32>
    %1087 = vector.extract_strided_slice %863 {offsets = [2, 0], sizes = [1, 8], strides = [1, 1]} : vector<16x8xf32> to vector<1x8xf32>
    %1088 = vector.extract_strided_slice %923 {offsets = [2, 0], sizes = [1, 8], strides = [1, 1]} : vector<16x8xf32> to vector<1x8xf32>
    %1089 = vector.extract_strided_slice %946 {offsets = [2, 0], sizes = [1, 8], strides = [1, 1]} : vector<16x8xf32> to vector<1x8xf32>
    %1090 = vector.extract_strided_slice %951 {offsets = [2, 0], sizes = [1, 8], strides = [1, 1]} : vector<16x8xf32> to vector<1x8xf32>
    %1091 = vector.extract_strided_slice %1008 {offsets = [2, 0], sizes = [1, 8], strides = [1, 1]} : vector<16x8xf32> to vector<1x8xf32>
    %1092 = tpu.concatenate %1084, %1085, %1086, %1087, %1088, %1089, %1090, %1091 in 0 : vector<1x8xf32>, vector<1x8xf32>, vector<1x8xf32>, vector<1x8xf32>, vector<1x8xf32>, vector<1x8xf32>, vector<1x8xf32>, vector<1x8xf32> -> vector<8x8xf32>
    %1093 = arith.truncf %1092 : vector<8x8xf32> to vector<8x8xbf16>
    %cst_105 = arith.constant dense<0.000000e+00> : vector<64x8xf32>
    %1094 = tpu.matmul %1009, %1093, %cst_105 {dimension_numbers = #tpu.dot_dimension_numbers<[1], [0], [0], [1], [0, 0, 1, 1], [], []>} : vector<64x8xbf16>, vector<8x8xbf16>, vector<64x8xf32> -> vector<64x8xf32>
    %1095 = vector.broadcast %1013 : vector<64x1xf32> to vector<64x8xf32>
    %1096 = arith.addf %1094, %1095 : vector<64x8xf32>
    %cst_106 = arith.constant 0.000000e+00 : f32
    %1097 = vector.broadcast %cst_106 : f32 to vector<64x8xf32>
    %1098 = arith.maximumf %1096, %1097 : vector<64x8xf32>
    %1099 = arith.truncf %1098 : vector<64x8xf32> to vector<64x8xbf16>
    %cst_107 = arith.constant dense<0.000000e+00> : vector<128x8xf32>
    %1100 = tpu.matmul %1010, %1099, %cst_107 {dimension_numbers = #tpu.dot_dimension_numbers<[1], [0], [0], [1], [0, 0, 1, 1], [], []>} : vector<128x64xbf16>, vector<64x8xbf16>, vector<128x8xf32> -> vector<128x8xf32>
    %1101 = vector.broadcast %1014 : vector<128x1xf32> to vector<128x8xf32>
    %1102 = arith.addf %1100, %1101 : vector<128x8xf32>
    %cst_108 = arith.constant 0.000000e+00 : f32
    %1103 = vector.broadcast %cst_108 : f32 to vector<128x8xf32>
    %1104 = arith.maximumf %1102, %1103 : vector<128x8xf32>
    %1105 = arith.truncf %1104 : vector<128x8xf32> to vector<128x8xbf16>
    %cst_109 = arith.constant dense<0.000000e+00> : vector<128x8xf32>
    %1106 = tpu.matmul %1011, %1105, %cst_109 {dimension_numbers = #tpu.dot_dimension_numbers<[1], [0], [0], [1], [0, 0, 1, 1], [], []>} : vector<128x128xbf16>, vector<128x8xbf16>, vector<128x8xf32> -> vector<128x8xf32>
    %1107 = vector.broadcast %1015 : vector<128x1xf32> to vector<128x8xf32>
    %1108 = arith.addf %1106, %1107 : vector<128x8xf32>
    %cst_110 = arith.constant 0.000000e+00 : f32
    %1109 = vector.broadcast %cst_110 : f32 to vector<128x8xf32>
    %1110 = arith.maximumf %1108, %1109 : vector<128x8xf32>
    %1111 = arith.truncf %1110 : vector<128x8xf32> to vector<128x8xbf16>
    %cst_111 = arith.constant dense<0.000000e+00> : vector<256x8xf32>
    %1112 = tpu.matmul %1012, %1111, %cst_111 {dimension_numbers = #tpu.dot_dimension_numbers<[1], [0], [0], [1], [0, 0, 1, 1], [], []>} : vector<256x128xbf16>, vector<128x8xbf16>, vector<256x8xf32> -> vector<256x8xf32>
    %1113 = vector.broadcast %1016 : vector<256x1xf32> to vector<256x8xf32>
    %1114 = arith.addf %1112, %1113 : vector<256x8xf32>
    %cst_112 = arith.constant 0.000000e+00 : f32
    %1115 = vector.broadcast %cst_112 : f32 to vector<256x8xf32>
    %1116 = arith.maximumf %1114, %1115 : vector<256x8xf32>
    %1117 = arith.maximumf %1083, %1116 : vector<256x8xf32>
    %1118 = vector.extract_strided_slice %844 {offsets = [3, 0], sizes = [1, 8], strides = [1, 1]} : vector<16x8xf32> to vector<1x8xf32>
    %1119 = vector.extract_strided_slice %850 {offsets = [3, 0], sizes = [1, 8], strides = [1, 1]} : vector<16x8xf32> to vector<1x8xf32>
    %1120 = vector.extract_strided_slice %858 {offsets = [3, 0], sizes = [1, 8], strides = [1, 1]} : vector<16x8xf32> to vector<1x8xf32>
    %1121 = vector.extract_strided_slice %863 {offsets = [3, 0], sizes = [1, 8], strides = [1, 1]} : vector<16x8xf32> to vector<1x8xf32>
    %1122 = vector.extract_strided_slice %923 {offsets = [3, 0], sizes = [1, 8], strides = [1, 1]} : vector<16x8xf32> to vector<1x8xf32>
    %1123 = vector.extract_strided_slice %946 {offsets = [3, 0], sizes = [1, 8], strides = [1, 1]} : vector<16x8xf32> to vector<1x8xf32>
    %1124 = vector.extract_strided_slice %951 {offsets = [3, 0], sizes = [1, 8], strides = [1, 1]} : vector<16x8xf32> to vector<1x8xf32>
    %1125 = vector.extract_strided_slice %1008 {offsets = [3, 0], sizes = [1, 8], strides = [1, 1]} : vector<16x8xf32> to vector<1x8xf32>
    %1126 = tpu.concatenate %1118, %1119, %1120, %1121, %1122, %1123, %1124, %1125 in 0 : vector<1x8xf32>, vector<1x8xf32>, vector<1x8xf32>, vector<1x8xf32>, vector<1x8xf32>, vector<1x8xf32>, vector<1x8xf32>, vector<1x8xf32> -> vector<8x8xf32>
    %1127 = arith.truncf %1126 : vector<8x8xf32> to vector<8x8xbf16>
    %cst_113 = arith.constant dense<0.000000e+00> : vector<64x8xf32>
    %1128 = tpu.matmul %1009, %1127, %cst_113 {dimension_numbers = #tpu.dot_dimension_numbers<[1], [0], [0], [1], [0, 0, 1, 1], [], []>} : vector<64x8xbf16>, vector<8x8xbf16>, vector<64x8xf32> -> vector<64x8xf32>
    %1129 = vector.broadcast %1013 : vector<64x1xf32> to vector<64x8xf32>
    %1130 = arith.addf %1128, %1129 : vector<64x8xf32>
    %cst_114 = arith.constant 0.000000e+00 : f32
    %1131 = vector.broadcast %cst_114 : f32 to vector<64x8xf32>
    %1132 = arith.maximumf %1130, %1131 : vector<64x8xf32>
    %1133 = arith.truncf %1132 : vector<64x8xf32> to vector<64x8xbf16>
    %cst_115 = arith.constant dense<0.000000e+00> : vector<128x8xf32>
    %1134 = tpu.matmul %1010, %1133, %cst_115 {dimension_numbers = #tpu.dot_dimension_numbers<[1], [0], [0], [1], [0, 0, 1, 1], [], []>} : vector<128x64xbf16>, vector<64x8xbf16>, vector<128x8xf32> -> vector<128x8xf32>
    %1135 = vector.broadcast %1014 : vector<128x1xf32> to vector<128x8xf32>
    %1136 = arith.addf %1134, %1135 : vector<128x8xf32>
    %cst_116 = arith.constant 0.000000e+00 : f32
    %1137 = vector.broadcast %cst_116 : f32 to vector<128x8xf32>
    %1138 = arith.maximumf %1136, %1137 : vector<128x8xf32>
    %1139 = arith.truncf %1138 : vector<128x8xf32> to vector<128x8xbf16>
    %cst_117 = arith.constant dense<0.000000e+00> : vector<128x8xf32>
    %1140 = tpu.matmul %1011, %1139, %cst_117 {dimension_numbers = #tpu.dot_dimension_numbers<[1], [0], [0], [1], [0, 0, 1, 1], [], []>} : vector<128x128xbf16>, vector<128x8xbf16>, vector<128x8xf32> -> vector<128x8xf32>
    %1141 = vector.broadcast %1015 : vector<128x1xf32> to vector<128x8xf32>
    %1142 = arith.addf %1140, %1141 : vector<128x8xf32>
    %cst_118 = arith.constant 0.000000e+00 : f32
    %1143 = vector.broadcast %cst_118 : f32 to vector<128x8xf32>
    %1144 = arith.maximumf %1142, %1143 : vector<128x8xf32>
    %1145 = arith.truncf %1144 : vector<128x8xf32> to vector<128x8xbf16>
    %cst_119 = arith.constant dense<0.000000e+00> : vector<256x8xf32>
    %1146 = tpu.matmul %1012, %1145, %cst_119 {dimension_numbers = #tpu.dot_dimension_numbers<[1], [0], [0], [1], [0, 0, 1, 1], [], []>} : vector<256x128xbf16>, vector<128x8xbf16>, vector<256x8xf32> -> vector<256x8xf32>
    %1147 = vector.broadcast %1016 : vector<256x1xf32> to vector<256x8xf32>
    %1148 = arith.addf %1146, %1147 : vector<256x8xf32>
    %cst_120 = arith.constant 0.000000e+00 : f32
    %1149 = vector.broadcast %cst_120 : f32 to vector<256x8xf32>
    %1150 = arith.maximumf %1148, %1149 : vector<256x8xf32>
    %1151 = arith.maximumf %1117, %1150 : vector<256x8xf32>
    %1152 = vector.extract_strided_slice %844 {offsets = [4, 0], sizes = [1, 8], strides = [1, 1]} : vector<16x8xf32> to vector<1x8xf32>
    %1153 = vector.extract_strided_slice %850 {offsets = [4, 0], sizes = [1, 8], strides = [1, 1]} : vector<16x8xf32> to vector<1x8xf32>
    %1154 = vector.extract_strided_slice %858 {offsets = [4, 0], sizes = [1, 8], strides = [1, 1]} : vector<16x8xf32> to vector<1x8xf32>
    %1155 = vector.extract_strided_slice %863 {offsets = [4, 0], sizes = [1, 8], strides = [1, 1]} : vector<16x8xf32> to vector<1x8xf32>
    %1156 = vector.extract_strided_slice %923 {offsets = [4, 0], sizes = [1, 8], strides = [1, 1]} : vector<16x8xf32> to vector<1x8xf32>
    %1157 = vector.extract_strided_slice %946 {offsets = [4, 0], sizes = [1, 8], strides = [1, 1]} : vector<16x8xf32> to vector<1x8xf32>
    %1158 = vector.extract_strided_slice %951 {offsets = [4, 0], sizes = [1, 8], strides = [1, 1]} : vector<16x8xf32> to vector<1x8xf32>
    %1159 = vector.extract_strided_slice %1008 {offsets = [4, 0], sizes = [1, 8], strides = [1, 1]} : vector<16x8xf32> to vector<1x8xf32>
    %1160 = tpu.concatenate %1152, %1153, %1154, %1155, %1156, %1157, %1158, %1159 in 0 : vector<1x8xf32>, vector<1x8xf32>, vector<1x8xf32>, vector<1x8xf32>, vector<1x8xf32>, vector<1x8xf32>, vector<1x8xf32>, vector<1x8xf32> -> vector<8x8xf32>
    %1161 = arith.truncf %1160 : vector<8x8xf32> to vector<8x8xbf16>
    %cst_121 = arith.constant dense<0.000000e+00> : vector<64x8xf32>
    %1162 = tpu.matmul %1009, %1161, %cst_121 {dimension_numbers = #tpu.dot_dimension_numbers<[1], [0], [0], [1], [0, 0, 1, 1], [], []>} : vector<64x8xbf16>, vector<8x8xbf16>, vector<64x8xf32> -> vector<64x8xf32>
    %1163 = vector.broadcast %1013 : vector<64x1xf32> to vector<64x8xf32>
    %1164 = arith.addf %1162, %1163 : vector<64x8xf32>
    %cst_122 = arith.constant 0.000000e+00 : f32
    %1165 = vector.broadcast %cst_122 : f32 to vector<64x8xf32>
    %1166 = arith.maximumf %1164, %1165 : vector<64x8xf32>
    %1167 = arith.truncf %1166 : vector<64x8xf32> to vector<64x8xbf16>
    %cst_123 = arith.constant dense<0.000000e+00> : vector<128x8xf32>
    %1168 = tpu.matmul %1010, %1167, %cst_123 {dimension_numbers = #tpu.dot_dimension_numbers<[1], [0], [0], [1], [0, 0, 1, 1], [], []>} : vector<128x64xbf16>, vector<64x8xbf16>, vector<128x8xf32> -> vector<128x8xf32>
    %1169 = vector.broadcast %1014 : vector<128x1xf32> to vector<128x8xf32>
    %1170 = arith.addf %1168, %1169 : vector<128x8xf32>
    %cst_124 = arith.constant 0.000000e+00 : f32
    %1171 = vector.broadcast %cst_124 : f32 to vector<128x8xf32>
    %1172 = arith.maximumf %1170, %1171 : vector<128x8xf32>
    %1173 = arith.truncf %1172 : vector<128x8xf32> to vector<128x8xbf16>
    %cst_125 = arith.constant dense<0.000000e+00> : vector<128x8xf32>
    %1174 = tpu.matmul %1011, %1173, %cst_125 {dimension_numbers = #tpu.dot_dimension_numbers<[1], [0], [0], [1], [0, 0, 1, 1], [], []>} : vector<128x128xbf16>, vector<128x8xbf16>, vector<128x8xf32> -> vector<128x8xf32>
    %1175 = vector.broadcast %1015 : vector<128x1xf32> to vector<128x8xf32>
    %1176 = arith.addf %1174, %1175 : vector<128x8xf32>
    %cst_126 = arith.constant 0.000000e+00 : f32
    %1177 = vector.broadcast %cst_126 : f32 to vector<128x8xf32>
    %1178 = arith.maximumf %1176, %1177 : vector<128x8xf32>
    %1179 = arith.truncf %1178 : vector<128x8xf32> to vector<128x8xbf16>
    %cst_127 = arith.constant dense<0.000000e+00> : vector<256x8xf32>
    %1180 = tpu.matmul %1012, %1179, %cst_127 {dimension_numbers = #tpu.dot_dimension_numbers<[1], [0], [0], [1], [0, 0, 1, 1], [], []>} : vector<256x128xbf16>, vector<128x8xbf16>, vector<256x8xf32> -> vector<256x8xf32>
    %1181 = vector.broadcast %1016 : vector<256x1xf32> to vector<256x8xf32>
    %1182 = arith.addf %1180, %1181 : vector<256x8xf32>
    %cst_128 = arith.constant 0.000000e+00 : f32
    %1183 = vector.broadcast %cst_128 : f32 to vector<256x8xf32>
    %1184 = arith.maximumf %1182, %1183 : vector<256x8xf32>
    %1185 = arith.maximumf %1151, %1184 : vector<256x8xf32>
    %1186 = vector.extract_strided_slice %844 {offsets = [5, 0], sizes = [1, 8], strides = [1, 1]} : vector<16x8xf32> to vector<1x8xf32>
    %1187 = vector.extract_strided_slice %850 {offsets = [5, 0], sizes = [1, 8], strides = [1, 1]} : vector<16x8xf32> to vector<1x8xf32>
    %1188 = vector.extract_strided_slice %858 {offsets = [5, 0], sizes = [1, 8], strides = [1, 1]} : vector<16x8xf32> to vector<1x8xf32>
    %1189 = vector.extract_strided_slice %863 {offsets = [5, 0], sizes = [1, 8], strides = [1, 1]} : vector<16x8xf32> to vector<1x8xf32>
    %1190 = vector.extract_strided_slice %923 {offsets = [5, 0], sizes = [1, 8], strides = [1, 1]} : vector<16x8xf32> to vector<1x8xf32>
    %1191 = vector.extract_strided_slice %946 {offsets = [5, 0], sizes = [1, 8], strides = [1, 1]} : vector<16x8xf32> to vector<1x8xf32>
    %1192 = vector.extract_strided_slice %951 {offsets = [5, 0], sizes = [1, 8], strides = [1, 1]} : vector<16x8xf32> to vector<1x8xf32>
    %1193 = vector.extract_strided_slice %1008 {offsets = [5, 0], sizes = [1, 8], strides = [1, 1]} : vector<16x8xf32> to vector<1x8xf32>
    %1194 = tpu.concatenate %1186, %1187, %1188, %1189, %1190, %1191, %1192, %1193 in 0 : vector<1x8xf32>, vector<1x8xf32>, vector<1x8xf32>, vector<1x8xf32>, vector<1x8xf32>, vector<1x8xf32>, vector<1x8xf32>, vector<1x8xf32> -> vector<8x8xf32>
    %1195 = arith.truncf %1194 : vector<8x8xf32> to vector<8x8xbf16>
    %cst_129 = arith.constant dense<0.000000e+00> : vector<64x8xf32>
    %1196 = tpu.matmul %1009, %1195, %cst_129 {dimension_numbers = #tpu.dot_dimension_numbers<[1], [0], [0], [1], [0, 0, 1, 1], [], []>} : vector<64x8xbf16>, vector<8x8xbf16>, vector<64x8xf32> -> vector<64x8xf32>
    %1197 = vector.broadcast %1013 : vector<64x1xf32> to vector<64x8xf32>
    %1198 = arith.addf %1196, %1197 : vector<64x8xf32>
    %cst_130 = arith.constant 0.000000e+00 : f32
    %1199 = vector.broadcast %cst_130 : f32 to vector<64x8xf32>
    %1200 = arith.maximumf %1198, %1199 : vector<64x8xf32>
    %1201 = arith.truncf %1200 : vector<64x8xf32> to vector<64x8xbf16>
    %cst_131 = arith.constant dense<0.000000e+00> : vector<128x8xf32>
    %1202 = tpu.matmul %1010, %1201, %cst_131 {dimension_numbers = #tpu.dot_dimension_numbers<[1], [0], [0], [1], [0, 0, 1, 1], [], []>} : vector<128x64xbf16>, vector<64x8xbf16>, vector<128x8xf32> -> vector<128x8xf32>
    %1203 = vector.broadcast %1014 : vector<128x1xf32> to vector<128x8xf32>
    %1204 = arith.addf %1202, %1203 : vector<128x8xf32>
    %cst_132 = arith.constant 0.000000e+00 : f32
    %1205 = vector.broadcast %cst_132 : f32 to vector<128x8xf32>
    %1206 = arith.maximumf %1204, %1205 : vector<128x8xf32>
    %1207 = arith.truncf %1206 : vector<128x8xf32> to vector<128x8xbf16>
    %cst_133 = arith.constant dense<0.000000e+00> : vector<128x8xf32>
    %1208 = tpu.matmul %1011, %1207, %cst_133 {dimension_numbers = #tpu.dot_dimension_numbers<[1], [0], [0], [1], [0, 0, 1, 1], [], []>} : vector<128x128xbf16>, vector<128x8xbf16>, vector<128x8xf32> -> vector<128x8xf32>
    %1209 = vector.broadcast %1015 : vector<128x1xf32> to vector<128x8xf32>
    %1210 = arith.addf %1208, %1209 : vector<128x8xf32>
    %cst_134 = arith.constant 0.000000e+00 : f32
    %1211 = vector.broadcast %cst_134 : f32 to vector<128x8xf32>
    %1212 = arith.maximumf %1210, %1211 : vector<128x8xf32>
    %1213 = arith.truncf %1212 : vector<128x8xf32> to vector<128x8xbf16>
    %cst_135 = arith.constant dense<0.000000e+00> : vector<256x8xf32>
    %1214 = tpu.matmul %1012, %1213, %cst_135 {dimension_numbers = #tpu.dot_dimension_numbers<[1], [0], [0], [1], [0, 0, 1, 1], [], []>} : vector<256x128xbf16>, vector<128x8xbf16>, vector<256x8xf32> -> vector<256x8xf32>
    %1215 = vector.broadcast %1016 : vector<256x1xf32> to vector<256x8xf32>
    %1216 = arith.addf %1214, %1215 : vector<256x8xf32>
    %cst_136 = arith.constant 0.000000e+00 : f32
    %1217 = vector.broadcast %cst_136 : f32 to vector<256x8xf32>
    %1218 = arith.maximumf %1216, %1217 : vector<256x8xf32>
    %1219 = arith.maximumf %1185, %1218 : vector<256x8xf32>
    %1220 = vector.extract_strided_slice %844 {offsets = [6, 0], sizes = [1, 8], strides = [1, 1]} : vector<16x8xf32> to vector<1x8xf32>
    %1221 = vector.extract_strided_slice %850 {offsets = [6, 0], sizes = [1, 8], strides = [1, 1]} : vector<16x8xf32> to vector<1x8xf32>
    %1222 = vector.extract_strided_slice %858 {offsets = [6, 0], sizes = [1, 8], strides = [1, 1]} : vector<16x8xf32> to vector<1x8xf32>
    %1223 = vector.extract_strided_slice %863 {offsets = [6, 0], sizes = [1, 8], strides = [1, 1]} : vector<16x8xf32> to vector<1x8xf32>
    %1224 = vector.extract_strided_slice %923 {offsets = [6, 0], sizes = [1, 8], strides = [1, 1]} : vector<16x8xf32> to vector<1x8xf32>
    %1225 = vector.extract_strided_slice %946 {offsets = [6, 0], sizes = [1, 8], strides = [1, 1]} : vector<16x8xf32> to vector<1x8xf32>
    %1226 = vector.extract_strided_slice %951 {offsets = [6, 0], sizes = [1, 8], strides = [1, 1]} : vector<16x8xf32> to vector<1x8xf32>
    %1227 = vector.extract_strided_slice %1008 {offsets = [6, 0], sizes = [1, 8], strides = [1, 1]} : vector<16x8xf32> to vector<1x8xf32>
    %1228 = tpu.concatenate %1220, %1221, %1222, %1223, %1224, %1225, %1226, %1227 in 0 : vector<1x8xf32>, vector<1x8xf32>, vector<1x8xf32>, vector<1x8xf32>, vector<1x8xf32>, vector<1x8xf32>, vector<1x8xf32>, vector<1x8xf32> -> vector<8x8xf32>
    %1229 = arith.truncf %1228 : vector<8x8xf32> to vector<8x8xbf16>
    %cst_137 = arith.constant dense<0.000000e+00> : vector<64x8xf32>
    %1230 = tpu.matmul %1009, %1229, %cst_137 {dimension_numbers = #tpu.dot_dimension_numbers<[1], [0], [0], [1], [0, 0, 1, 1], [], []>} : vector<64x8xbf16>, vector<8x8xbf16>, vector<64x8xf32> -> vector<64x8xf32>
    %1231 = vector.broadcast %1013 : vector<64x1xf32> to vector<64x8xf32>
    %1232 = arith.addf %1230, %1231 : vector<64x8xf32>
    %cst_138 = arith.constant 0.000000e+00 : f32
    %1233 = vector.broadcast %cst_138 : f32 to vector<64x8xf32>
    %1234 = arith.maximumf %1232, %1233 : vector<64x8xf32>
    %1235 = arith.truncf %1234 : vector<64x8xf32> to vector<64x8xbf16>
    %cst_139 = arith.constant dense<0.000000e+00> : vector<128x8xf32>
    %1236 = tpu.matmul %1010, %1235, %cst_139 {dimension_numbers = #tpu.dot_dimension_numbers<[1], [0], [0], [1], [0, 0, 1, 1], [], []>} : vector<128x64xbf16>, vector<64x8xbf16>, vector<128x8xf32> -> vector<128x8xf32>
    %1237 = vector.broadcast %1014 : vector<128x1xf32> to vector<128x8xf32>
    %1238 = arith.addf %1236, %1237 : vector<128x8xf32>
    %cst_140 = arith.constant 0.000000e+00 : f32
    %1239 = vector.broadcast %cst_140 : f32 to vector<128x8xf32>
    %1240 = arith.maximumf %1238, %1239 : vector<128x8xf32>
    %1241 = arith.truncf %1240 : vector<128x8xf32> to vector<128x8xbf16>
    %cst_141 = arith.constant dense<0.000000e+00> : vector<128x8xf32>
    %1242 = tpu.matmul %1011, %1241, %cst_141 {dimension_numbers = #tpu.dot_dimension_numbers<[1], [0], [0], [1], [0, 0, 1, 1], [], []>} : vector<128x128xbf16>, vector<128x8xbf16>, vector<128x8xf32> -> vector<128x8xf32>
    %1243 = vector.broadcast %1015 : vector<128x1xf32> to vector<128x8xf32>
    %1244 = arith.addf %1242, %1243 : vector<128x8xf32>
    %cst_142 = arith.constant 0.000000e+00 : f32
    %1245 = vector.broadcast %cst_142 : f32 to vector<128x8xf32>
    %1246 = arith.maximumf %1244, %1245 : vector<128x8xf32>
    %1247 = arith.truncf %1246 : vector<128x8xf32> to vector<128x8xbf16>
    %cst_143 = arith.constant dense<0.000000e+00> : vector<256x8xf32>
    %1248 = tpu.matmul %1012, %1247, %cst_143 {dimension_numbers = #tpu.dot_dimension_numbers<[1], [0], [0], [1], [0, 0, 1, 1], [], []>} : vector<256x128xbf16>, vector<128x8xbf16>, vector<256x8xf32> -> vector<256x8xf32>
    %1249 = vector.broadcast %1016 : vector<256x1xf32> to vector<256x8xf32>
    %1250 = arith.addf %1248, %1249 : vector<256x8xf32>
    %cst_144 = arith.constant 0.000000e+00 : f32
    %1251 = vector.broadcast %cst_144 : f32 to vector<256x8xf32>
    %1252 = arith.maximumf %1250, %1251 : vector<256x8xf32>
    %1253 = arith.maximumf %1219, %1252 : vector<256x8xf32>
    %1254 = vector.extract_strided_slice %844 {offsets = [7, 0], sizes = [1, 8], strides = [1, 1]} : vector<16x8xf32> to vector<1x8xf32>
    %1255 = vector.extract_strided_slice %850 {offsets = [7, 0], sizes = [1, 8], strides = [1, 1]} : vector<16x8xf32> to vector<1x8xf32>
    %1256 = vector.extract_strided_slice %858 {offsets = [7, 0], sizes = [1, 8], strides = [1, 1]} : vector<16x8xf32> to vector<1x8xf32>
    %1257 = vector.extract_strided_slice %863 {offsets = [7, 0], sizes = [1, 8], strides = [1, 1]} : vector<16x8xf32> to vector<1x8xf32>
    %1258 = vector.extract_strided_slice %923 {offsets = [7, 0], sizes = [1, 8], strides = [1, 1]} : vector<16x8xf32> to vector<1x8xf32>
    %1259 = vector.extract_strided_slice %946 {offsets = [7, 0], sizes = [1, 8], strides = [1, 1]} : vector<16x8xf32> to vector<1x8xf32>
    %1260 = vector.extract_strided_slice %951 {offsets = [7, 0], sizes = [1, 8], strides = [1, 1]} : vector<16x8xf32> to vector<1x8xf32>
    %1261 = vector.extract_strided_slice %1008 {offsets = [7, 0], sizes = [1, 8], strides = [1, 1]} : vector<16x8xf32> to vector<1x8xf32>
    %1262 = tpu.concatenate %1254, %1255, %1256, %1257, %1258, %1259, %1260, %1261 in 0 : vector<1x8xf32>, vector<1x8xf32>, vector<1x8xf32>, vector<1x8xf32>, vector<1x8xf32>, vector<1x8xf32>, vector<1x8xf32>, vector<1x8xf32> -> vector<8x8xf32>
    %1263 = arith.truncf %1262 : vector<8x8xf32> to vector<8x8xbf16>
    %cst_145 = arith.constant dense<0.000000e+00> : vector<64x8xf32>
    %1264 = tpu.matmul %1009, %1263, %cst_145 {dimension_numbers = #tpu.dot_dimension_numbers<[1], [0], [0], [1], [0, 0, 1, 1], [], []>} : vector<64x8xbf16>, vector<8x8xbf16>, vector<64x8xf32> -> vector<64x8xf32>
    %1265 = vector.broadcast %1013 : vector<64x1xf32> to vector<64x8xf32>
    %1266 = arith.addf %1264, %1265 : vector<64x8xf32>
    %cst_146 = arith.constant 0.000000e+00 : f32
    %1267 = vector.broadcast %cst_146 : f32 to vector<64x8xf32>
    %1268 = arith.maximumf %1266, %1267 : vector<64x8xf32>
    %1269 = arith.truncf %1268 : vector<64x8xf32> to vector<64x8xbf16>
    %cst_147 = arith.constant dense<0.000000e+00> : vector<128x8xf32>
    %1270 = tpu.matmul %1010, %1269, %cst_147 {dimension_numbers = #tpu.dot_dimension_numbers<[1], [0], [0], [1], [0, 0, 1, 1], [], []>} : vector<128x64xbf16>, vector<64x8xbf16>, vector<128x8xf32> -> vector<128x8xf32>
    %1271 = vector.broadcast %1014 : vector<128x1xf32> to vector<128x8xf32>
    %1272 = arith.addf %1270, %1271 : vector<128x8xf32>
    %cst_148 = arith.constant 0.000000e+00 : f32
    %1273 = vector.broadcast %cst_148 : f32 to vector<128x8xf32>
    %1274 = arith.maximumf %1272, %1273 : vector<128x8xf32>
    %1275 = arith.truncf %1274 : vector<128x8xf32> to vector<128x8xbf16>
    %cst_149 = arith.constant dense<0.000000e+00> : vector<128x8xf32>
    %1276 = tpu.matmul %1011, %1275, %cst_149 {dimension_numbers = #tpu.dot_dimension_numbers<[1], [0], [0], [1], [0, 0, 1, 1], [], []>} : vector<128x128xbf16>, vector<128x8xbf16>, vector<128x8xf32> -> vector<128x8xf32>
    %1277 = vector.broadcast %1015 : vector<128x1xf32> to vector<128x8xf32>
    %1278 = arith.addf %1276, %1277 : vector<128x8xf32>
    %cst_150 = arith.constant 0.000000e+00 : f32
    %1279 = vector.broadcast %cst_150 : f32 to vector<128x8xf32>
    %1280 = arith.maximumf %1278, %1279 : vector<128x8xf32>
    %1281 = arith.truncf %1280 : vector<128x8xf32> to vector<128x8xbf16>
    %cst_151 = arith.constant dense<0.000000e+00> : vector<256x8xf32>
    %1282 = tpu.matmul %1012, %1281, %cst_151 {dimension_numbers = #tpu.dot_dimension_numbers<[1], [0], [0], [1], [0, 0, 1, 1], [], []>} : vector<256x128xbf16>, vector<128x8xbf16>, vector<256x8xf32> -> vector<256x8xf32>
    %1283 = vector.broadcast %1016 : vector<256x1xf32> to vector<256x8xf32>
    %1284 = arith.addf %1282, %1283 : vector<256x8xf32>
    %cst_152 = arith.constant 0.000000e+00 : f32
    %1285 = vector.broadcast %cst_152 : f32 to vector<256x8xf32>
    %1286 = arith.maximumf %1284, %1285 : vector<256x8xf32>
    %1287 = arith.maximumf %1253, %1286 : vector<256x8xf32>
    %1288 = vector.extract_strided_slice %844 {offsets = [8, 0], sizes = [1, 8], strides = [1, 1]} : vector<16x8xf32> to vector<1x8xf32>
    %1289 = vector.extract_strided_slice %850 {offsets = [8, 0], sizes = [1, 8], strides = [1, 1]} : vector<16x8xf32> to vector<1x8xf32>
    %1290 = vector.extract_strided_slice %858 {offsets = [8, 0], sizes = [1, 8], strides = [1, 1]} : vector<16x8xf32> to vector<1x8xf32>
    %1291 = vector.extract_strided_slice %863 {offsets = [8, 0], sizes = [1, 8], strides = [1, 1]} : vector<16x8xf32> to vector<1x8xf32>
    %1292 = vector.extract_strided_slice %923 {offsets = [8, 0], sizes = [1, 8], strides = [1, 1]} : vector<16x8xf32> to vector<1x8xf32>
    %1293 = vector.extract_strided_slice %946 {offsets = [8, 0], sizes = [1, 8], strides = [1, 1]} : vector<16x8xf32> to vector<1x8xf32>
    %1294 = vector.extract_strided_slice %951 {offsets = [8, 0], sizes = [1, 8], strides = [1, 1]} : vector<16x8xf32> to vector<1x8xf32>
    %1295 = vector.extract_strided_slice %1008 {offsets = [8, 0], sizes = [1, 8], strides = [1, 1]} : vector<16x8xf32> to vector<1x8xf32>
    %1296 = tpu.concatenate %1288, %1289, %1290, %1291, %1292, %1293, %1294, %1295 in 0 : vector<1x8xf32>, vector<1x8xf32>, vector<1x8xf32>, vector<1x8xf32>, vector<1x8xf32>, vector<1x8xf32>, vector<1x8xf32>, vector<1x8xf32> -> vector<8x8xf32>
    %1297 = arith.truncf %1296 : vector<8x8xf32> to vector<8x8xbf16>
    %cst_153 = arith.constant dense<0.000000e+00> : vector<64x8xf32>
    %1298 = tpu.matmul %1009, %1297, %cst_153 {dimension_numbers = #tpu.dot_dimension_numbers<[1], [0], [0], [1], [0, 0, 1, 1], [], []>} : vector<64x8xbf16>, vector<8x8xbf16>, vector<64x8xf32> -> vector<64x8xf32>
    %1299 = vector.broadcast %1013 : vector<64x1xf32> to vector<64x8xf32>
    %1300 = arith.addf %1298, %1299 : vector<64x8xf32>
    %cst_154 = arith.constant 0.000000e+00 : f32
    %1301 = vector.broadcast %cst_154 : f32 to vector<64x8xf32>
    %1302 = arith.maximumf %1300, %1301 : vector<64x8xf32>
    %1303 = arith.truncf %1302 : vector<64x8xf32> to vector<64x8xbf16>
    %cst_155 = arith.constant dense<0.000000e+00> : vector<128x8xf32>
    %1304 = tpu.matmul %1010, %1303, %cst_155 {dimension_numbers = #tpu.dot_dimension_numbers<[1], [0], [0], [1], [0, 0, 1, 1], [], []>} : vector<128x64xbf16>, vector<64x8xbf16>, vector<128x8xf32> -> vector<128x8xf32>
    %1305 = vector.broadcast %1014 : vector<128x1xf32> to vector<128x8xf32>
    %1306 = arith.addf %1304, %1305 : vector<128x8xf32>
    %cst_156 = arith.constant 0.000000e+00 : f32
    %1307 = vector.broadcast %cst_156 : f32 to vector<128x8xf32>
    %1308 = arith.maximumf %1306, %1307 : vector<128x8xf32>
    %1309 = arith.truncf %1308 : vector<128x8xf32> to vector<128x8xbf16>
    %cst_157 = arith.constant dense<0.000000e+00> : vector<128x8xf32>
    %1310 = tpu.matmul %1011, %1309, %cst_157 {dimension_numbers = #tpu.dot_dimension_numbers<[1], [0], [0], [1], [0, 0, 1, 1], [], []>} : vector<128x128xbf16>, vector<128x8xbf16>, vector<128x8xf32> -> vector<128x8xf32>
    %1311 = vector.broadcast %1015 : vector<128x1xf32> to vector<128x8xf32>
    %1312 = arith.addf %1310, %1311 : vector<128x8xf32>
    %cst_158 = arith.constant 0.000000e+00 : f32
    %1313 = vector.broadcast %cst_158 : f32 to vector<128x8xf32>
    %1314 = arith.maximumf %1312, %1313 : vector<128x8xf32>
    %1315 = arith.truncf %1314 : vector<128x8xf32> to vector<128x8xbf16>
    %cst_159 = arith.constant dense<0.000000e+00> : vector<256x8xf32>
    %1316 = tpu.matmul %1012, %1315, %cst_159 {dimension_numbers = #tpu.dot_dimension_numbers<[1], [0], [0], [1], [0, 0, 1, 1], [], []>} : vector<256x128xbf16>, vector<128x8xbf16>, vector<256x8xf32> -> vector<256x8xf32>
    %1317 = vector.broadcast %1016 : vector<256x1xf32> to vector<256x8xf32>
    %1318 = arith.addf %1316, %1317 : vector<256x8xf32>
    %cst_160 = arith.constant 0.000000e+00 : f32
    %1319 = vector.broadcast %cst_160 : f32 to vector<256x8xf32>
    %1320 = arith.maximumf %1318, %1319 : vector<256x8xf32>
    %1321 = arith.maximumf %1287, %1320 : vector<256x8xf32>
    %1322 = vector.extract_strided_slice %844 {offsets = [9, 0], sizes = [1, 8], strides = [1, 1]} : vector<16x8xf32> to vector<1x8xf32>
    %1323 = vector.extract_strided_slice %850 {offsets = [9, 0], sizes = [1, 8], strides = [1, 1]} : vector<16x8xf32> to vector<1x8xf32>
    %1324 = vector.extract_strided_slice %858 {offsets = [9, 0], sizes = [1, 8], strides = [1, 1]} : vector<16x8xf32> to vector<1x8xf32>
    %1325 = vector.extract_strided_slice %863 {offsets = [9, 0], sizes = [1, 8], strides = [1, 1]} : vector<16x8xf32> to vector<1x8xf32>
    %1326 = vector.extract_strided_slice %923 {offsets = [9, 0], sizes = [1, 8], strides = [1, 1]} : vector<16x8xf32> to vector<1x8xf32>
    %1327 = vector.extract_strided_slice %946 {offsets = [9, 0], sizes = [1, 8], strides = [1, 1]} : vector<16x8xf32> to vector<1x8xf32>
    %1328 = vector.extract_strided_slice %951 {offsets = [9, 0], sizes = [1, 8], strides = [1, 1]} : vector<16x8xf32> to vector<1x8xf32>
    %1329 = vector.extract_strided_slice %1008 {offsets = [9, 0], sizes = [1, 8], strides = [1, 1]} : vector<16x8xf32> to vector<1x8xf32>
    %1330 = tpu.concatenate %1322, %1323, %1324, %1325, %1326, %1327, %1328, %1329 in 0 : vector<1x8xf32>, vector<1x8xf32>, vector<1x8xf32>, vector<1x8xf32>, vector<1x8xf32>, vector<1x8xf32>, vector<1x8xf32>, vector<1x8xf32> -> vector<8x8xf32>
    %1331 = arith.truncf %1330 : vector<8x8xf32> to vector<8x8xbf16>
    %cst_161 = arith.constant dense<0.000000e+00> : vector<64x8xf32>
    %1332 = tpu.matmul %1009, %1331, %cst_161 {dimension_numbers = #tpu.dot_dimension_numbers<[1], [0], [0], [1], [0, 0, 1, 1], [], []>} : vector<64x8xbf16>, vector<8x8xbf16>, vector<64x8xf32> -> vector<64x8xf32>
    %1333 = vector.broadcast %1013 : vector<64x1xf32> to vector<64x8xf32>
    %1334 = arith.addf %1332, %1333 : vector<64x8xf32>
    %cst_162 = arith.constant 0.000000e+00 : f32
    %1335 = vector.broadcast %cst_162 : f32 to vector<64x8xf32>
    %1336 = arith.maximumf %1334, %1335 : vector<64x8xf32>
    %1337 = arith.truncf %1336 : vector<64x8xf32> to vector<64x8xbf16>
    %cst_163 = arith.constant dense<0.000000e+00> : vector<128x8xf32>
    %1338 = tpu.matmul %1010, %1337, %cst_163 {dimension_numbers = #tpu.dot_dimension_numbers<[1], [0], [0], [1], [0, 0, 1, 1], [], []>} : vector<128x64xbf16>, vector<64x8xbf16>, vector<128x8xf32> -> vector<128x8xf32>
    %1339 = vector.broadcast %1014 : vector<128x1xf32> to vector<128x8xf32>
    %1340 = arith.addf %1338, %1339 : vector<128x8xf32>
    %cst_164 = arith.constant 0.000000e+00 : f32
    %1341 = vector.broadcast %cst_164 : f32 to vector<128x8xf32>
    %1342 = arith.maximumf %1340, %1341 : vector<128x8xf32>
    %1343 = arith.truncf %1342 : vector<128x8xf32> to vector<128x8xbf16>
    %cst_165 = arith.constant dense<0.000000e+00> : vector<128x8xf32>
    %1344 = tpu.matmul %1011, %1343, %cst_165 {dimension_numbers = #tpu.dot_dimension_numbers<[1], [0], [0], [1], [0, 0, 1, 1], [], []>} : vector<128x128xbf16>, vector<128x8xbf16>, vector<128x8xf32> -> vector<128x8xf32>
    %1345 = vector.broadcast %1015 : vector<128x1xf32> to vector<128x8xf32>
    %1346 = arith.addf %1344, %1345 : vector<128x8xf32>
    %cst_166 = arith.constant 0.000000e+00 : f32
    %1347 = vector.broadcast %cst_166 : f32 to vector<128x8xf32>
    %1348 = arith.maximumf %1346, %1347 : vector<128x8xf32>
    %1349 = arith.truncf %1348 : vector<128x8xf32> to vector<128x8xbf16>
    %cst_167 = arith.constant dense<0.000000e+00> : vector<256x8xf32>
    %1350 = tpu.matmul %1012, %1349, %cst_167 {dimension_numbers = #tpu.dot_dimension_numbers<[1], [0], [0], [1], [0, 0, 1, 1], [], []>} : vector<256x128xbf16>, vector<128x8xbf16>, vector<256x8xf32> -> vector<256x8xf32>
    %1351 = vector.broadcast %1016 : vector<256x1xf32> to vector<256x8xf32>
    %1352 = arith.addf %1350, %1351 : vector<256x8xf32>
    %cst_168 = arith.constant 0.000000e+00 : f32
    %1353 = vector.broadcast %cst_168 : f32 to vector<256x8xf32>
    %1354 = arith.maximumf %1352, %1353 : vector<256x8xf32>
    %1355 = arith.maximumf %1321, %1354 : vector<256x8xf32>
    %1356 = vector.extract_strided_slice %844 {offsets = [10, 0], sizes = [1, 8], strides = [1, 1]} : vector<16x8xf32> to vector<1x8xf32>
    %1357 = vector.extract_strided_slice %850 {offsets = [10, 0], sizes = [1, 8], strides = [1, 1]} : vector<16x8xf32> to vector<1x8xf32>
    %1358 = vector.extract_strided_slice %858 {offsets = [10, 0], sizes = [1, 8], strides = [1, 1]} : vector<16x8xf32> to vector<1x8xf32>
    %1359 = vector.extract_strided_slice %863 {offsets = [10, 0], sizes = [1, 8], strides = [1, 1]} : vector<16x8xf32> to vector<1x8xf32>
    %1360 = vector.extract_strided_slice %923 {offsets = [10, 0], sizes = [1, 8], strides = [1, 1]} : vector<16x8xf32> to vector<1x8xf32>
    %1361 = vector.extract_strided_slice %946 {offsets = [10, 0], sizes = [1, 8], strides = [1, 1]} : vector<16x8xf32> to vector<1x8xf32>
    %1362 = vector.extract_strided_slice %951 {offsets = [10, 0], sizes = [1, 8], strides = [1, 1]} : vector<16x8xf32> to vector<1x8xf32>
    %1363 = vector.extract_strided_slice %1008 {offsets = [10, 0], sizes = [1, 8], strides = [1, 1]} : vector<16x8xf32> to vector<1x8xf32>
    %1364 = tpu.concatenate %1356, %1357, %1358, %1359, %1360, %1361, %1362, %1363 in 0 : vector<1x8xf32>, vector<1x8xf32>, vector<1x8xf32>, vector<1x8xf32>, vector<1x8xf32>, vector<1x8xf32>, vector<1x8xf32>, vector<1x8xf32> -> vector<8x8xf32>
    %1365 = arith.truncf %1364 : vector<8x8xf32> to vector<8x8xbf16>
    %cst_169 = arith.constant dense<0.000000e+00> : vector<64x8xf32>
    %1366 = tpu.matmul %1009, %1365, %cst_169 {dimension_numbers = #tpu.dot_dimension_numbers<[1], [0], [0], [1], [0, 0, 1, 1], [], []>} : vector<64x8xbf16>, vector<8x8xbf16>, vector<64x8xf32> -> vector<64x8xf32>
    %1367 = vector.broadcast %1013 : vector<64x1xf32> to vector<64x8xf32>
    %1368 = arith.addf %1366, %1367 : vector<64x8xf32>
    %cst_170 = arith.constant 0.000000e+00 : f32
    %1369 = vector.broadcast %cst_170 : f32 to vector<64x8xf32>
    %1370 = arith.maximumf %1368, %1369 : vector<64x8xf32>
    %1371 = arith.truncf %1370 : vector<64x8xf32> to vector<64x8xbf16>
    %cst_171 = arith.constant dense<0.000000e+00> : vector<128x8xf32>
    %1372 = tpu.matmul %1010, %1371, %cst_171 {dimension_numbers = #tpu.dot_dimension_numbers<[1], [0], [0], [1], [0, 0, 1, 1], [], []>} : vector<128x64xbf16>, vector<64x8xbf16>, vector<128x8xf32> -> vector<128x8xf32>
    %1373 = vector.broadcast %1014 : vector<128x1xf32> to vector<128x8xf32>
    %1374 = arith.addf %1372, %1373 : vector<128x8xf32>
    %cst_172 = arith.constant 0.000000e+00 : f32
    %1375 = vector.broadcast %cst_172 : f32 to vector<128x8xf32>
    %1376 = arith.maximumf %1374, %1375 : vector<128x8xf32>
    %1377 = arith.truncf %1376 : vector<128x8xf32> to vector<128x8xbf16>
    %cst_173 = arith.constant dense<0.000000e+00> : vector<128x8xf32>
    %1378 = tpu.matmul %1011, %1377, %cst_173 {dimension_numbers = #tpu.dot_dimension_numbers<[1], [0], [0], [1], [0, 0, 1, 1], [], []>} : vector<128x128xbf16>, vector<128x8xbf16>, vector<128x8xf32> -> vector<128x8xf32>
    %1379 = vector.broadcast %1015 : vector<128x1xf32> to vector<128x8xf32>
    %1380 = arith.addf %1378, %1379 : vector<128x8xf32>
    %cst_174 = arith.constant 0.000000e+00 : f32
    %1381 = vector.broadcast %cst_174 : f32 to vector<128x8xf32>
    %1382 = arith.maximumf %1380, %1381 : vector<128x8xf32>
    %1383 = arith.truncf %1382 : vector<128x8xf32> to vector<128x8xbf16>
    %cst_175 = arith.constant dense<0.000000e+00> : vector<256x8xf32>
    %1384 = tpu.matmul %1012, %1383, %cst_175 {dimension_numbers = #tpu.dot_dimension_numbers<[1], [0], [0], [1], [0, 0, 1, 1], [], []>} : vector<256x128xbf16>, vector<128x8xbf16>, vector<256x8xf32> -> vector<256x8xf32>
    %1385 = vector.broadcast %1016 : vector<256x1xf32> to vector<256x8xf32>
    %1386 = arith.addf %1384, %1385 : vector<256x8xf32>
    %cst_176 = arith.constant 0.000000e+00 : f32
    %1387 = vector.broadcast %cst_176 : f32 to vector<256x8xf32>
    %1388 = arith.maximumf %1386, %1387 : vector<256x8xf32>
    %1389 = arith.maximumf %1355, %1388 : vector<256x8xf32>
    %1390 = vector.extract_strided_slice %844 {offsets = [11, 0], sizes = [1, 8], strides = [1, 1]} : vector<16x8xf32> to vector<1x8xf32>
    %1391 = vector.extract_strided_slice %850 {offsets = [11, 0], sizes = [1, 8], strides = [1, 1]} : vector<16x8xf32> to vector<1x8xf32>
    %1392 = vector.extract_strided_slice %858 {offsets = [11, 0], sizes = [1, 8], strides = [1, 1]} : vector<16x8xf32> to vector<1x8xf32>
    %1393 = vector.extract_strided_slice %863 {offsets = [11, 0], sizes = [1, 8], strides = [1, 1]} : vector<16x8xf32> to vector<1x8xf32>
    %1394 = vector.extract_strided_slice %923 {offsets = [11, 0], sizes = [1, 8], strides = [1, 1]} : vector<16x8xf32> to vector<1x8xf32>
    %1395 = vector.extract_strided_slice %946 {offsets = [11, 0], sizes = [1, 8], strides = [1, 1]} : vector<16x8xf32> to vector<1x8xf32>
    %1396 = vector.extract_strided_slice %951 {offsets = [11, 0], sizes = [1, 8], strides = [1, 1]} : vector<16x8xf32> to vector<1x8xf32>
    %1397 = vector.extract_strided_slice %1008 {offsets = [11, 0], sizes = [1, 8], strides = [1, 1]} : vector<16x8xf32> to vector<1x8xf32>
    %1398 = tpu.concatenate %1390, %1391, %1392, %1393, %1394, %1395, %1396, %1397 in 0 : vector<1x8xf32>, vector<1x8xf32>, vector<1x8xf32>, vector<1x8xf32>, vector<1x8xf32>, vector<1x8xf32>, vector<1x8xf32>, vector<1x8xf32> -> vector<8x8xf32>
    %1399 = arith.truncf %1398 : vector<8x8xf32> to vector<8x8xbf16>
    %cst_177 = arith.constant dense<0.000000e+00> : vector<64x8xf32>
    %1400 = tpu.matmul %1009, %1399, %cst_177 {dimension_numbers = #tpu.dot_dimension_numbers<[1], [0], [0], [1], [0, 0, 1, 1], [], []>} : vector<64x8xbf16>, vector<8x8xbf16>, vector<64x8xf32> -> vector<64x8xf32>
    %1401 = vector.broadcast %1013 : vector<64x1xf32> to vector<64x8xf32>
    %1402 = arith.addf %1400, %1401 : vector<64x8xf32>
    %cst_178 = arith.constant 0.000000e+00 : f32
    %1403 = vector.broadcast %cst_178 : f32 to vector<64x8xf32>
    %1404 = arith.maximumf %1402, %1403 : vector<64x8xf32>
    %1405 = arith.truncf %1404 : vector<64x8xf32> to vector<64x8xbf16>
    %cst_179 = arith.constant dense<0.000000e+00> : vector<128x8xf32>
    %1406 = tpu.matmul %1010, %1405, %cst_179 {dimension_numbers = #tpu.dot_dimension_numbers<[1], [0], [0], [1], [0, 0, 1, 1], [], []>} : vector<128x64xbf16>, vector<64x8xbf16>, vector<128x8xf32> -> vector<128x8xf32>
    %1407 = vector.broadcast %1014 : vector<128x1xf32> to vector<128x8xf32>
    %1408 = arith.addf %1406, %1407 : vector<128x8xf32>
    %cst_180 = arith.constant 0.000000e+00 : f32
    %1409 = vector.broadcast %cst_180 : f32 to vector<128x8xf32>
    %1410 = arith.maximumf %1408, %1409 : vector<128x8xf32>
    %1411 = arith.truncf %1410 : vector<128x8xf32> to vector<128x8xbf16>
    %cst_181 = arith.constant dense<0.000000e+00> : vector<128x8xf32>
    %1412 = tpu.matmul %1011, %1411, %cst_181 {dimension_numbers = #tpu.dot_dimension_numbers<[1], [0], [0], [1], [0, 0, 1, 1], [], []>} : vector<128x128xbf16>, vector<128x8xbf16>, vector<128x8xf32> -> vector<128x8xf32>
    %1413 = vector.broadcast %1015 : vector<128x1xf32> to vector<128x8xf32>
    %1414 = arith.addf %1412, %1413 : vector<128x8xf32>
    %cst_182 = arith.constant 0.000000e+00 : f32
    %1415 = vector.broadcast %cst_182 : f32 to vector<128x8xf32>
    %1416 = arith.maximumf %1414, %1415 : vector<128x8xf32>
    %1417 = arith.truncf %1416 : vector<128x8xf32> to vector<128x8xbf16>
    %cst_183 = arith.constant dense<0.000000e+00> : vector<256x8xf32>
    %1418 = tpu.matmul %1012, %1417, %cst_183 {dimension_numbers = #tpu.dot_dimension_numbers<[1], [0], [0], [1], [0, 0, 1, 1], [], []>} : vector<256x128xbf16>, vector<128x8xbf16>, vector<256x8xf32> -> vector<256x8xf32>
    %1419 = vector.broadcast %1016 : vector<256x1xf32> to vector<256x8xf32>
    %1420 = arith.addf %1418, %1419 : vector<256x8xf32>
    %cst_184 = arith.constant 0.000000e+00 : f32
    %1421 = vector.broadcast %cst_184 : f32 to vector<256x8xf32>
    %1422 = arith.maximumf %1420, %1421 : vector<256x8xf32>
    %1423 = arith.maximumf %1389, %1422 : vector<256x8xf32>
    %1424 = vector.extract_strided_slice %844 {offsets = [12, 0], sizes = [1, 8], strides = [1, 1]} : vector<16x8xf32> to vector<1x8xf32>
    %1425 = vector.extract_strided_slice %850 {offsets = [12, 0], sizes = [1, 8], strides = [1, 1]} : vector<16x8xf32> to vector<1x8xf32>
    %1426 = vector.extract_strided_slice %858 {offsets = [12, 0], sizes = [1, 8], strides = [1, 1]} : vector<16x8xf32> to vector<1x8xf32>
    %1427 = vector.extract_strided_slice %863 {offsets = [12, 0], sizes = [1, 8], strides = [1, 1]} : vector<16x8xf32> to vector<1x8xf32>
    %1428 = vector.extract_strided_slice %923 {offsets = [12, 0], sizes = [1, 8], strides = [1, 1]} : vector<16x8xf32> to vector<1x8xf32>
    %1429 = vector.extract_strided_slice %946 {offsets = [12, 0], sizes = [1, 8], strides = [1, 1]} : vector<16x8xf32> to vector<1x8xf32>
    %1430 = vector.extract_strided_slice %951 {offsets = [12, 0], sizes = [1, 8], strides = [1, 1]} : vector<16x8xf32> to vector<1x8xf32>
    %1431 = vector.extract_strided_slice %1008 {offsets = [12, 0], sizes = [1, 8], strides = [1, 1]} : vector<16x8xf32> to vector<1x8xf32>
    %1432 = tpu.concatenate %1424, %1425, %1426, %1427, %1428, %1429, %1430, %1431 in 0 : vector<1x8xf32>, vector<1x8xf32>, vector<1x8xf32>, vector<1x8xf32>, vector<1x8xf32>, vector<1x8xf32>, vector<1x8xf32>, vector<1x8xf32> -> vector<8x8xf32>
    %1433 = arith.truncf %1432 : vector<8x8xf32> to vector<8x8xbf16>
    %cst_185 = arith.constant dense<0.000000e+00> : vector<64x8xf32>
    %1434 = tpu.matmul %1009, %1433, %cst_185 {dimension_numbers = #tpu.dot_dimension_numbers<[1], [0], [0], [1], [0, 0, 1, 1], [], []>} : vector<64x8xbf16>, vector<8x8xbf16>, vector<64x8xf32> -> vector<64x8xf32>
    %1435 = vector.broadcast %1013 : vector<64x1xf32> to vector<64x8xf32>
    %1436 = arith.addf %1434, %1435 : vector<64x8xf32>
    %cst_186 = arith.constant 0.000000e+00 : f32
    %1437 = vector.broadcast %cst_186 : f32 to vector<64x8xf32>
    %1438 = arith.maximumf %1436, %1437 : vector<64x8xf32>
    %1439 = arith.truncf %1438 : vector<64x8xf32> to vector<64x8xbf16>
    %cst_187 = arith.constant dense<0.000000e+00> : vector<128x8xf32>
    %1440 = tpu.matmul %1010, %1439, %cst_187 {dimension_numbers = #tpu.dot_dimension_numbers<[1], [0], [0], [1], [0, 0, 1, 1], [], []>} : vector<128x64xbf16>, vector<64x8xbf16>, vector<128x8xf32> -> vector<128x8xf32>
    %1441 = vector.broadcast %1014 : vector<128x1xf32> to vector<128x8xf32>
    %1442 = arith.addf %1440, %1441 : vector<128x8xf32>
    %cst_188 = arith.constant 0.000000e+00 : f32
    %1443 = vector.broadcast %cst_188 : f32 to vector<128x8xf32>
    %1444 = arith.maximumf %1442, %1443 : vector<128x8xf32>
    %1445 = arith.truncf %1444 : vector<128x8xf32> to vector<128x8xbf16>
    %cst_189 = arith.constant dense<0.000000e+00> : vector<128x8xf32>
    %1446 = tpu.matmul %1011, %1445, %cst_189 {dimension_numbers = #tpu.dot_dimension_numbers<[1], [0], [0], [1], [0, 0, 1, 1], [], []>} : vector<128x128xbf16>, vector<128x8xbf16>, vector<128x8xf32> -> vector<128x8xf32>
    %1447 = vector.broadcast %1015 : vector<128x1xf32> to vector<128x8xf32>
    %1448 = arith.addf %1446, %1447 : vector<128x8xf32>
    %cst_190 = arith.constant 0.000000e+00 : f32
    %1449 = vector.broadcast %cst_190 : f32 to vector<128x8xf32>
    %1450 = arith.maximumf %1448, %1449 : vector<128x8xf32>
    %1451 = arith.truncf %1450 : vector<128x8xf32> to vector<128x8xbf16>
    %cst_191 = arith.constant dense<0.000000e+00> : vector<256x8xf32>
    %1452 = tpu.matmul %1012, %1451, %cst_191 {dimension_numbers = #tpu.dot_dimension_numbers<[1], [0], [0], [1], [0, 0, 1, 1], [], []>} : vector<256x128xbf16>, vector<128x8xbf16>, vector<256x8xf32> -> vector<256x8xf32>
    %1453 = vector.broadcast %1016 : vector<256x1xf32> to vector<256x8xf32>
    %1454 = arith.addf %1452, %1453 : vector<256x8xf32>
    %cst_192 = arith.constant 0.000000e+00 : f32
    %1455 = vector.broadcast %cst_192 : f32 to vector<256x8xf32>
    %1456 = arith.maximumf %1454, %1455 : vector<256x8xf32>
    %1457 = arith.maximumf %1423, %1456 : vector<256x8xf32>
    %1458 = vector.extract_strided_slice %844 {offsets = [13, 0], sizes = [1, 8], strides = [1, 1]} : vector<16x8xf32> to vector<1x8xf32>
    %1459 = vector.extract_strided_slice %850 {offsets = [13, 0], sizes = [1, 8], strides = [1, 1]} : vector<16x8xf32> to vector<1x8xf32>
    %1460 = vector.extract_strided_slice %858 {offsets = [13, 0], sizes = [1, 8], strides = [1, 1]} : vector<16x8xf32> to vector<1x8xf32>
    %1461 = vector.extract_strided_slice %863 {offsets = [13, 0], sizes = [1, 8], strides = [1, 1]} : vector<16x8xf32> to vector<1x8xf32>
    %1462 = vector.extract_strided_slice %923 {offsets = [13, 0], sizes = [1, 8], strides = [1, 1]} : vector<16x8xf32> to vector<1x8xf32>
    %1463 = vector.extract_strided_slice %946 {offsets = [13, 0], sizes = [1, 8], strides = [1, 1]} : vector<16x8xf32> to vector<1x8xf32>
    %1464 = vector.extract_strided_slice %951 {offsets = [13, 0], sizes = [1, 8], strides = [1, 1]} : vector<16x8xf32> to vector<1x8xf32>
    %1465 = vector.extract_strided_slice %1008 {offsets = [13, 0], sizes = [1, 8], strides = [1, 1]} : vector<16x8xf32> to vector<1x8xf32>
    %1466 = tpu.concatenate %1458, %1459, %1460, %1461, %1462, %1463, %1464, %1465 in 0 : vector<1x8xf32>, vector<1x8xf32>, vector<1x8xf32>, vector<1x8xf32>, vector<1x8xf32>, vector<1x8xf32>, vector<1x8xf32>, vector<1x8xf32> -> vector<8x8xf32>
    %1467 = arith.truncf %1466 : vector<8x8xf32> to vector<8x8xbf16>
    %cst_193 = arith.constant dense<0.000000e+00> : vector<64x8xf32>
    %1468 = tpu.matmul %1009, %1467, %cst_193 {dimension_numbers = #tpu.dot_dimension_numbers<[1], [0], [0], [1], [0, 0, 1, 1], [], []>} : vector<64x8xbf16>, vector<8x8xbf16>, vector<64x8xf32> -> vector<64x8xf32>
    %1469 = vector.broadcast %1013 : vector<64x1xf32> to vector<64x8xf32>
    %1470 = arith.addf %1468, %1469 : vector<64x8xf32>
    %cst_194 = arith.constant 0.000000e+00 : f32
    %1471 = vector.broadcast %cst_194 : f32 to vector<64x8xf32>
    %1472 = arith.maximumf %1470, %1471 : vector<64x8xf32>
    %1473 = arith.truncf %1472 : vector<64x8xf32> to vector<64x8xbf16>
    %cst_195 = arith.constant dense<0.000000e+00> : vector<128x8xf32>
    %1474 = tpu.matmul %1010, %1473, %cst_195 {dimension_numbers = #tpu.dot_dimension_numbers<[1], [0], [0], [1], [0, 0, 1, 1], [], []>} : vector<128x64xbf16>, vector<64x8xbf16>, vector<128x8xf32> -> vector<128x8xf32>
    %1475 = vector.broadcast %1014 : vector<128x1xf32> to vector<128x8xf32>
    %1476 = arith.addf %1474, %1475 : vector<128x8xf32>
    %cst_196 = arith.constant 0.000000e+00 : f32
    %1477 = vector.broadcast %cst_196 : f32 to vector<128x8xf32>
    %1478 = arith.maximumf %1476, %1477 : vector<128x8xf32>
    %1479 = arith.truncf %1478 : vector<128x8xf32> to vector<128x8xbf16>
    %cst_197 = arith.constant dense<0.000000e+00> : vector<128x8xf32>
    %1480 = tpu.matmul %1011, %1479, %cst_197 {dimension_numbers = #tpu.dot_dimension_numbers<[1], [0], [0], [1], [0, 0, 1, 1], [], []>} : vector<128x128xbf16>, vector<128x8xbf16>, vector<128x8xf32> -> vector<128x8xf32>
    %1481 = vector.broadcast %1015 : vector<128x1xf32> to vector<128x8xf32>
    %1482 = arith.addf %1480, %1481 : vector<128x8xf32>
    %cst_198 = arith.constant 0.000000e+00 : f32
    %1483 = vector.broadcast %cst_198 : f32 to vector<128x8xf32>
    %1484 = arith.maximumf %1482, %1483 : vector<128x8xf32>
    %1485 = arith.truncf %1484 : vector<128x8xf32> to vector<128x8xbf16>
    %cst_199 = arith.constant dense<0.000000e+00> : vector<256x8xf32>
    %1486 = tpu.matmul %1012, %1485, %cst_199 {dimension_numbers = #tpu.dot_dimension_numbers<[1], [0], [0], [1], [0, 0, 1, 1], [], []>} : vector<256x128xbf16>, vector<128x8xbf16>, vector<256x8xf32> -> vector<256x8xf32>
    %1487 = vector.broadcast %1016 : vector<256x1xf32> to vector<256x8xf32>
    %1488 = arith.addf %1486, %1487 : vector<256x8xf32>
    %cst_200 = arith.constant 0.000000e+00 : f32
    %1489 = vector.broadcast %cst_200 : f32 to vector<256x8xf32>
    %1490 = arith.maximumf %1488, %1489 : vector<256x8xf32>
    %1491 = arith.maximumf %1457, %1490 : vector<256x8xf32>
    %1492 = vector.extract_strided_slice %844 {offsets = [14, 0], sizes = [1, 8], strides = [1, 1]} : vector<16x8xf32> to vector<1x8xf32>
    %1493 = vector.extract_strided_slice %850 {offsets = [14, 0], sizes = [1, 8], strides = [1, 1]} : vector<16x8xf32> to vector<1x8xf32>
    %1494 = vector.extract_strided_slice %858 {offsets = [14, 0], sizes = [1, 8], strides = [1, 1]} : vector<16x8xf32> to vector<1x8xf32>
    %1495 = vector.extract_strided_slice %863 {offsets = [14, 0], sizes = [1, 8], strides = [1, 1]} : vector<16x8xf32> to vector<1x8xf32>
    %1496 = vector.extract_strided_slice %923 {offsets = [14, 0], sizes = [1, 8], strides = [1, 1]} : vector<16x8xf32> to vector<1x8xf32>
    %1497 = vector.extract_strided_slice %946 {offsets = [14, 0], sizes = [1, 8], strides = [1, 1]} : vector<16x8xf32> to vector<1x8xf32>
    %1498 = vector.extract_strided_slice %951 {offsets = [14, 0], sizes = [1, 8], strides = [1, 1]} : vector<16x8xf32> to vector<1x8xf32>
    %1499 = vector.extract_strided_slice %1008 {offsets = [14, 0], sizes = [1, 8], strides = [1, 1]} : vector<16x8xf32> to vector<1x8xf32>
    %1500 = tpu.concatenate %1492, %1493, %1494, %1495, %1496, %1497, %1498, %1499 in 0 : vector<1x8xf32>, vector<1x8xf32>, vector<1x8xf32>, vector<1x8xf32>, vector<1x8xf32>, vector<1x8xf32>, vector<1x8xf32>, vector<1x8xf32> -> vector<8x8xf32>
    %1501 = arith.truncf %1500 : vector<8x8xf32> to vector<8x8xbf16>
    %cst_201 = arith.constant dense<0.000000e+00> : vector<64x8xf32>
    %1502 = tpu.matmul %1009, %1501, %cst_201 {dimension_numbers = #tpu.dot_dimension_numbers<[1], [0], [0], [1], [0, 0, 1, 1], [], []>} : vector<64x8xbf16>, vector<8x8xbf16>, vector<64x8xf32> -> vector<64x8xf32>
    %1503 = vector.broadcast %1013 : vector<64x1xf32> to vector<64x8xf32>
    %1504 = arith.addf %1502, %1503 : vector<64x8xf32>
    %cst_202 = arith.constant 0.000000e+00 : f32
    %1505 = vector.broadcast %cst_202 : f32 to vector<64x8xf32>
    %1506 = arith.maximumf %1504, %1505 : vector<64x8xf32>
    %1507 = arith.truncf %1506 : vector<64x8xf32> to vector<64x8xbf16>
    %cst_203 = arith.constant dense<0.000000e+00> : vector<128x8xf32>
    %1508 = tpu.matmul %1010, %1507, %cst_203 {dimension_numbers = #tpu.dot_dimension_numbers<[1], [0], [0], [1], [0, 0, 1, 1], [], []>} : vector<128x64xbf16>, vector<64x8xbf16>, vector<128x8xf32> -> vector<128x8xf32>
    %1509 = vector.broadcast %1014 : vector<128x1xf32> to vector<128x8xf32>
    %1510 = arith.addf %1508, %1509 : vector<128x8xf32>
    %cst_204 = arith.constant 0.000000e+00 : f32
    %1511 = vector.broadcast %cst_204 : f32 to vector<128x8xf32>
    %1512 = arith.maximumf %1510, %1511 : vector<128x8xf32>
    %1513 = arith.truncf %1512 : vector<128x8xf32> to vector<128x8xbf16>
    %cst_205 = arith.constant dense<0.000000e+00> : vector<128x8xf32>
    %1514 = tpu.matmul %1011, %1513, %cst_205 {dimension_numbers = #tpu.dot_dimension_numbers<[1], [0], [0], [1], [0, 0, 1, 1], [], []>} : vector<128x128xbf16>, vector<128x8xbf16>, vector<128x8xf32> -> vector<128x8xf32>
    %1515 = vector.broadcast %1015 : vector<128x1xf32> to vector<128x8xf32>
    %1516 = arith.addf %1514, %1515 : vector<128x8xf32>
    %cst_206 = arith.constant 0.000000e+00 : f32
    %1517 = vector.broadcast %cst_206 : f32 to vector<128x8xf32>
    %1518 = arith.maximumf %1516, %1517 : vector<128x8xf32>
    %1519 = arith.truncf %1518 : vector<128x8xf32> to vector<128x8xbf16>
    %cst_207 = arith.constant dense<0.000000e+00> : vector<256x8xf32>
    %1520 = tpu.matmul %1012, %1519, %cst_207 {dimension_numbers = #tpu.dot_dimension_numbers<[1], [0], [0], [1], [0, 0, 1, 1], [], []>} : vector<256x128xbf16>, vector<128x8xbf16>, vector<256x8xf32> -> vector<256x8xf32>
    %1521 = vector.broadcast %1016 : vector<256x1xf32> to vector<256x8xf32>
    %1522 = arith.addf %1520, %1521 : vector<256x8xf32>
    %cst_208 = arith.constant 0.000000e+00 : f32
    %1523 = vector.broadcast %cst_208 : f32 to vector<256x8xf32>
    %1524 = arith.maximumf %1522, %1523 : vector<256x8xf32>
    %1525 = arith.maximumf %1491, %1524 : vector<256x8xf32>
    %1526 = vector.extract_strided_slice %844 {offsets = [15, 0], sizes = [1, 8], strides = [1, 1]} : vector<16x8xf32> to vector<1x8xf32>
    %1527 = vector.extract_strided_slice %850 {offsets = [15, 0], sizes = [1, 8], strides = [1, 1]} : vector<16x8xf32> to vector<1x8xf32>
    %1528 = vector.extract_strided_slice %858 {offsets = [15, 0], sizes = [1, 8], strides = [1, 1]} : vector<16x8xf32> to vector<1x8xf32>
    %1529 = vector.extract_strided_slice %863 {offsets = [15, 0], sizes = [1, 8], strides = [1, 1]} : vector<16x8xf32> to vector<1x8xf32>
    %1530 = vector.extract_strided_slice %923 {offsets = [15, 0], sizes = [1, 8], strides = [1, 1]} : vector<16x8xf32> to vector<1x8xf32>
    %1531 = vector.extract_strided_slice %946 {offsets = [15, 0], sizes = [1, 8], strides = [1, 1]} : vector<16x8xf32> to vector<1x8xf32>
    %1532 = vector.extract_strided_slice %951 {offsets = [15, 0], sizes = [1, 8], strides = [1, 1]} : vector<16x8xf32> to vector<1x8xf32>
    %1533 = vector.extract_strided_slice %1008 {offsets = [15, 0], sizes = [1, 8], strides = [1, 1]} : vector<16x8xf32> to vector<1x8xf32>
    %1534 = tpu.concatenate %1526, %1527, %1528, %1529, %1530, %1531, %1532, %1533 in 0 : vector<1x8xf32>, vector<1x8xf32>, vector<1x8xf32>, vector<1x8xf32>, vector<1x8xf32>, vector<1x8xf32>, vector<1x8xf32>, vector<1x8xf32> -> vector<8x8xf32>
    %1535 = arith.truncf %1534 : vector<8x8xf32> to vector<8x8xbf16>
    %cst_209 = arith.constant dense<0.000000e+00> : vector<64x8xf32>
    %1536 = tpu.matmul %1009, %1535, %cst_209 {dimension_numbers = #tpu.dot_dimension_numbers<[1], [0], [0], [1], [0, 0, 1, 1], [], []>} : vector<64x8xbf16>, vector<8x8xbf16>, vector<64x8xf32> -> vector<64x8xf32>
    %1537 = vector.broadcast %1013 : vector<64x1xf32> to vector<64x8xf32>
    %1538 = arith.addf %1536, %1537 : vector<64x8xf32>
    %cst_210 = arith.constant 0.000000e+00 : f32
    %1539 = vector.broadcast %cst_210 : f32 to vector<64x8xf32>
    %1540 = arith.maximumf %1538, %1539 : vector<64x8xf32>
    %1541 = arith.truncf %1540 : vector<64x8xf32> to vector<64x8xbf16>
    %cst_211 = arith.constant dense<0.000000e+00> : vector<128x8xf32>
    %1542 = tpu.matmul %1010, %1541, %cst_211 {dimension_numbers = #tpu.dot_dimension_numbers<[1], [0], [0], [1], [0, 0, 1, 1], [], []>} : vector<128x64xbf16>, vector<64x8xbf16>, vector<128x8xf32> -> vector<128x8xf32>
    %1543 = vector.broadcast %1014 : vector<128x1xf32> to vector<128x8xf32>
    %1544 = arith.addf %1542, %1543 : vector<128x8xf32>
    %cst_212 = arith.constant 0.000000e+00 : f32
    %1545 = vector.broadcast %cst_212 : f32 to vector<128x8xf32>
    %1546 = arith.maximumf %1544, %1545 : vector<128x8xf32>
    %1547 = arith.truncf %1546 : vector<128x8xf32> to vector<128x8xbf16>
    %cst_213 = arith.constant dense<0.000000e+00> : vector<128x8xf32>
    %1548 = tpu.matmul %1011, %1547, %cst_213 {dimension_numbers = #tpu.dot_dimension_numbers<[1], [0], [0], [1], [0, 0, 1, 1], [], []>} : vector<128x128xbf16>, vector<128x8xbf16>, vector<128x8xf32> -> vector<128x8xf32>
    %1549 = vector.broadcast %1015 : vector<128x1xf32> to vector<128x8xf32>
    %1550 = arith.addf %1548, %1549 : vector<128x8xf32>
    %cst_214 = arith.constant 0.000000e+00 : f32
    %1551 = vector.broadcast %cst_214 : f32 to vector<128x8xf32>
    %1552 = arith.maximumf %1550, %1551 : vector<128x8xf32>
    %1553 = arith.truncf %1552 : vector<128x8xf32> to vector<128x8xbf16>
    %cst_215 = arith.constant dense<0.000000e+00> : vector<256x8xf32>
    %1554 = tpu.matmul %1012, %1553, %cst_215 {dimension_numbers = #tpu.dot_dimension_numbers<[1], [0], [0], [1], [0, 0, 1, 1], [], []>} : vector<256x128xbf16>, vector<128x8xbf16>, vector<256x8xf32> -> vector<256x8xf32>
    %1555 = vector.broadcast %1016 : vector<256x1xf32> to vector<256x8xf32>
    %1556 = arith.addf %1554, %1555 : vector<256x8xf32>
    %cst_216 = arith.constant 0.000000e+00 : f32
    %1557 = vector.broadcast %cst_216 : f32 to vector<256x8xf32>
    %1558 = arith.maximumf %1556, %1557 : vector<256x8xf32>
    %1559 = arith.maximumf %1525, %1558 : vector<256x8xf32>
    %c0_217 = arith.constant 0 : index
    %c0_218 = arith.constant 0 : index
    %c0_219 = arith.constant 0 : index
    %1560 = vector.load %arg13[%c0_217, %c0_218, %c0_219] : memref<1x256x8xf32, #tpu.memory_space<vmem>>, vector<1x256x8xf32>
    %1561 = vector.shape_cast %1560 : vector<1x256x8xf32> to vector<256x8xf32>
    %1562 = vector.shape_cast %1559 : vector<256x8xf32> to vector<1x256x8xf32>
    tpu.vector_store %arg13[%c0_217, %c0_218, %c0_219], %1562 {strides = array<i32>} : memref<1x256x8xf32, #tpu.memory_space<vmem>>, vector<1x256x8xf32>,
    return
  }
  func.func @transform_0(%arg0: i32, %arg1: i32) -> (i32, i32, i32, i32) {
    %c0_i32 = arith.constant 0 : i32
    %c0_i32_0 = arith.constant 0 : i32
    %c0_i32_1 = arith.constant 0 : i32
    return %arg0, %c0_i32, %c0_i32_0, %arg1 : i32, i32, i32, i32
  }
  func.func @transform_1(%arg0: i32, %arg1: i32) -> (i32, i32, i32, i32) {
    %c0_i32 = arith.constant 0 : i32
    %c0_i32_0 = arith.constant 0 : i32
    %c0_i32_1 = arith.constant 0 : i32
    return %arg0, %c0_i32, %c0_i32_0, %arg1 : i32, i32, i32, i32
  }
  func.func @transform_2(%arg0: i32, %arg1: i32) -> (i32, i32, i32) {
    %c0_i32 = arith.constant 0 : i32
    %c0_i32_0 = arith.constant 0 : i32
    return %arg0, %c0_i32, %arg1 : i32, i32, i32
  }
  func.func @transform_3(%arg0: i32, %arg1: i32) -> (i32, i32) {
    %c0_i32 = arith.constant 0 : i32
    %c0_i32_0 = arith.constant 0 : i32
    %c0_i32_1 = arith.constant 0 : i32
    return %c0_i32, %c0_i32_0 : i32, i32
  }
  func.func @transform_4(%arg0: i32, %arg1: i32) -> (i32, i32) {
    %c0_i32 = arith.constant 0 : i32
    %c0_i32_0 = arith.constant 0 : i32
    %c0_i32_1 = arith.constant 0 : i32
    return %c0_i32, %c0_i32_0 : i32, i32
  }
  func.func @transform_5(%arg0: i32, %arg1: i32) -> (i32, i32) {
    %c0_i32 = arith.constant 0 : i32
    %c0_i32_0 = arith.constant 0 : i32
    %c0_i32_1 = arith.constant 0 : i32
    return %c0_i32, %c0_i32_0 : i32, i32
  }
  func.func @transform_6(%arg0: i32, %arg1: i32) -> (i32, i32) {
    %c0_i32 = arith.constant 0 : i32
    %c0_i32_0 = arith.constant 0 : i32
    %c0_i32_1 = arith.constant 0 : i32
    return %c0_i32, %c0_i32_0 : i32, i32
  }
  func.func @transform_7(%arg0: i32, %arg1: i32) -> (i32, i32) {
    %c0_i32 = arith.constant 0 : i32
    %c0_i32_0 = arith.constant 0 : i32
    %c0_i32_1 = arith.constant 0 : i32
    return %c0_i32, %c0_i32_0 : i32, i32
  }
  func.func @transform_8(%arg0: i32, %arg1: i32) -> (i32, i32) {
    %c0_i32 = arith.constant 0 : i32
    %c0_i32_0 = arith.constant 0 : i32
    %c0_i32_1 = arith.constant 0 : i32
    return %c0_i32, %c0_i32_0 : i32, i32
  }
  func.func @transform_9(%arg0: i32, %arg1: i32) -> (i32, i32) {
    %c0_i32 = arith.constant 0 : i32
    %c0_i32_0 = arith.constant 0 : i32
    %c0_i32_1 = arith.constant 0 : i32
    return %c0_i32, %c0_i32_0 : i32, i32
  }
  func.func @transform_10(%arg0: i32, %arg1: i32) -> (i32, i32) {
    %c0_i32 = arith.constant 0 : i32
    %c0_i32_0 = arith.constant 0 : i32
    %c0_i32_1 = arith.constant 0 : i32
    return %c0_i32, %c0_i32_0 : i32, i32
  }
  func.func @transform_11(%arg0: i32, %arg1: i32) -> (i32, i32, i32) {
    %c0_i32 = arith.constant 0 : i32
    %c0_i32_0 = arith.constant 0 : i32
    return %arg0, %c0_i32, %arg1 : i32, i32, i32
  }
}

</mosaic_0001>

<llo_original>
// kernel: ri_encoder_forward.1
$region0: #{ri_encoder_forward.1}
  #allocation0 [shape = 'u32[]', space=smem, size = 0x4, offset = 0x4, fixed_abs, tag = 'smem constant byte address 0x4 - core index']
  #allocation1 [shape = 'u32[72,128]{1,0:T(1,128)}', space=vmem, size = 0x9000, scoped, tag = 'internal scratch']
  %s0 = inlined_call_operand.vmem [shape: f32[2,3,16,8], index: 0, kind: input, shape index: {}]
  %s1 = inlined_call_operand.vmem [shape: f32[2,3,16,8], index: 1, kind: input, shape index: {}]
  %s2 = inlined_call_operand.vmem [shape: f32[2,3,8], index: 2, kind: input, shape index: {}]
  %s3 = inlined_call_operand.vmem [shape: bf16[64,8], index: 3, kind: input, shape index: {}]
  %s4 = inlined_call_operand.vmem [shape: f32[64,1], index: 4, kind: input, shape index: {}]
  %s5 = inlined_call_operand.vmem [shape: bf16[128,64], index: 5, kind: input, shape index: {}]
  %s6 = inlined_call_operand.vmem [shape: f32[128,1], index: 6, kind: input, shape index: {}]
  %s7 = inlined_call_operand.vmem [shape: bf16[128,128], index: 7, kind: input, shape index: {}]
  %s8 = inlined_call_operand.vmem [shape: f32[128,1], index: 8, kind: input, shape index: {}]
  %s9 = inlined_call_operand.vmem [shape: bf16[256,128], index: 9, kind: input, shape index: {}]
  %s10 = inlined_call_operand.vmem [shape: f32[256,1], index: 10, kind: input, shape index: {}]
  %s11 = inlined_call_operand.vmem [shape: f32[2,256,8], index: 11, kind: output, shape index: {}]
  %s12 = sld [smem:[#allocation0]]
  $region77: #{ri_encoder_forward.1} parent=0
    _
  %s14 = ssub.s32 1, %s12
  %s15 = scalar_select 0, %s14, %s12
  loop: start=0, step=1, limit=4
  $region2: #{ri_encoder_forward.1} parent=0 // loop_pre_header
    _
  $region3: #{ri_encoder_forward.1} parent=0 // loop_header
    %s17 = sphi 0, %s21
    %p18 = scmp.ge.s32.totalorder %s17, 4
    %s24 = sphi 0, %s36
    %s25 = sphi 0, %s32
    %s26 = sphi 0, %s24
    %s27 = sphi 0, %s25
    %s28 = sphi 0, %s26
    %s29 = sphi 0, %s27
    %s41 = sphi 0, %s43
    %s44 = sphi 0, %s41
    %s45 = sphi 0, %s44
    %s61 = sphi 0, %s45
    %s69 = sphi 0, %s71
    %s72 = sphi 0, %s69
    %s73 = sphi 0, %s72
    %s89 = sphi 0, %s73
    %s97 = sphi 0, %s99
    %s100 = sphi 0, %s97
    %s101 = sphi 0, %s100
    %s117 = sphi 0, %s101
    %s121 = sphi 0, %s121
    %s123 = sphi 0, %s121
    %s124 = sphi 0, %s123
    %s138 = sphi 0, %s124
    %s142 = sphi 0, %s142
    %s144 = sphi 0, %s142
    %s145 = sphi 0, %s144
    %s159 = sphi 0, %s145
    %s163 = sphi 0, %s163
    %s165 = sphi 0, %s163
    %s166 = sphi 0, %s165
    %s180 = sphi 0, %s166
    %s184 = sphi 0, %s184
    %s186 = sphi 0, %s184
    %s187 = sphi 0, %s186
    %s201 = sphi 0, %s187
    %s205 = sphi 0, %s205
    %s207 = sphi 0, %s205
    %s208 = sphi 0, %s207
    %s222 = sphi 0, %s208
    %s226 = sphi 0, %s226
    %s228 = sphi 0, %s226
    %s229 = sphi 0, %s228
    %s243 = sphi 0, %s229
    %s247 = sphi 0, %s247
    %s249 = sphi 0, %s247
    %s250 = sphi 0, %s249
    %s264 = sphi 0, %s250
    %s268 = sphi 0, %s268
    %s270 = sphi 0, %s268
    %s271 = sphi 0, %s270
    %s285 = sphi 0, %s271
    %s293 = sphi 0, %s295
    %s296 = sphi 0, %s293
    %s297 = sphi 0, %s296
    %s313 = sphi 0, %s297
  $region4: #{ri_encoder_forward.1} parent=0 // loop_header_branch
    %20 = sbr.rel (%p18) target = $region8
  $region5: #{ri_encoder_forward.1} parent=0 // loop_body
    %s22 = ssub.s32 %s17, 1
    %s23 = ssub.s32 %s17, 2
    %s30 = sadd.s32 1, %s25
    %p31 = scmp.ge.s32.totalorder %s30, 1
    %s32 = scalar_select %p31, 0, %s30
    %s33 = sadd.s32 1, %s24
    %s34 = scalar_select %p31, %s33, %s24
    %p35 = scmp.ge.s32.totalorder %s34, 2
    %s36 = scalar_select %p35, 0, %s34
    %s37 = ssub.s32 %s24, %s36
    %s38 = ssub.s32 %s25, %s32
    %s39 = sor.u32 %s37, %s38
    %p40 = scmp.eq.s32.totalorder %s39, 0
    %s42 = sadd.s32 %s41, 1
    %s43 = scalar_select %p40, %s41, %s42
    %p46 = pneg %p40
    %p47 = scmp.eq.s32.totalorder %s17, 1
    %p48 = por %p46, %p47
    %p49 = scmp.ne.s32.totalorder %s41, %s44
    %p50 = scmp.eq.s32.totalorder %s17, 0
    %p51 = por %p49, %p50
    %p52 = scmp.ne.s32.totalorder %s41, %s44
    %p53 = scmp.eq.s32.totalorder %s22, 1
    %p54 = por %p52, %p53
    %p55 = scmp.ne.s32.totalorder %s44, %s45
    %p56 = scmp.eq.s32.totalorder %s22, 0
    %p57 = por %p55, %p56
    %p58 = scmp.ne.s32.totalorder %s44, %s45
    %p59 = scmp.eq.s32.totalorder %s23, 1
    %p60 = por %p58, %p59
    %p62 = scmp.ne.s32.totalorder %s45, %s61
    %p63 = scmp.eq.s32.totalorder %s23, 0
    %p64 = por %p62, %p63
    %s65 = ssub.s32 %s24, %s36
    %s66 = ssub.s32 %s25, %s32
    %s67 = sor.u32 %s65, %s66
    %p68 = scmp.eq.s32.totalorder %s67, 0
    %s70 = sadd.s32 %s69, 1
    %s71 = scalar_select %p68, %s69, %s70
    %p74 = pneg %p68
    %p75 = scmp.eq.s32.totalorder %s17, 1
    %p76 = por %p74, %p75
    %p77 = scmp.ne.s32.totalorder %s69, %s72
    %p78 = scmp.eq.s32.totalorder %s17, 0
    %p79 = por %p77, %p78
    %p80 = scmp.ne.s32.totalorder %s69, %s72
    %p81 = scmp.eq.s32.totalorder %s22, 1
    %p82 = por %p80, %p81
    %p83 = scmp.ne.s32.totalorder %s72, %s73
    %p84 = scmp.eq.s32.totalorder %s22, 0
    %p85 = por %p83, %p84
    %p86 = scmp.ne.s32.totalorder %s72, %s73
    %p87 = scmp.eq.s32.totalorder %s23, 1
    %p88 = por %p86, %p87
    %p90 = scmp.ne.s32.totalorder %s73, %s89
    %p91 = scmp.eq.s32.totalorder %s23, 0
    %p92 = por %p90, %p91
    %s93 = ssub.s32 %s24, %s36
    %s94 = ssub.s32 %s25, %s32
    %s95 = sor.u32 %s93, %s94
    %p96 = scmp.eq.s32.totalorder %s95, 0
    %s98 = sadd.s32 %s97, 1
    %s99 = scalar_select %p96, %s97, %s98
    %p102 = pneg %p96
    %p103 = scmp.eq.s32.totalorder %s17, 1
    %p104 = por %p102, %p103
    %p105 = scmp.ne.s32.totalorder %s97, %s100
    %p106 = scmp.eq.s32.totalorder %s17, 0
    %p107 = por %p105, %p106
    %p108 = scmp.ne.s32.totalorder %s97, %s100
    %p109 = scmp.eq.s32.totalorder %s22, 1
    %p110 = por %p108, %p109
    %p111 = scmp.ne.s32.totalorder %s100, %s101
    %p112 = scmp.eq.s32.totalorder %s22, 0
    %p113 = por %p111, %p112
    %p114 = scmp.ne.s32.totalorder %s100, %s101
    %p115 = scmp.eq.s32.totalorder %s23, 1
    %p116 = por %p114, %p115
    %p118 = scmp.ne.s32.totalorder %s101, %s117
    %p119 = scmp.eq.s32.totalorder %s23, 0
    %p120 = por %p118, %p119
    %s122 = sadd.s32 %s121, 1
    %p125 = scmp.eq.s32.totalorder %s17, 1
    %p126 = scmp.ne.s32.totalorder %s121, %s123
    %p127 = scmp.eq.s32.totalorder %s17, 0
    %p128 = por %p126, %p127
    %p129 = scmp.ne.s32.totalorder %s121, %s123
    %p130 = scmp.eq.s32.totalorder %s22, 1
    %p131 = por %p129, %p130
    %p132 = scmp.ne.s32.totalorder %s123, %s124
    %p133 = scmp.eq.s32.totalorder %s22, 0
    %p134 = por %p132, %p133
    %p135 = scmp.ne.s32.totalorder %s123, %s124
    %p136 = scmp.eq.s32.totalorder %s23, 1
    %p137 = por %p135, %p136
    %p139 = scmp.ne.s32.totalorder %s124, %s138
    %p140 = scmp.eq.s32.totalorder %s23, 0
    %p141 = por %p139, %p140
    %s143 = sadd.s32 %s142, 1
    %p146 = scmp.eq.s32.totalorder %s17, 1
    %p147 = scmp.ne.s32.totalorder %s142, %s144
    %p148 = scmp.eq.s32.totalorder %s17, 0
    %p149 = por %p147, %p148
    %p150 = scmp.ne.s32.totalorder %s142, %s144
    %p151 = scmp.eq.s32.totalorder %s22, 1
    %p152 = por %p150, %p151
    %p153 = scmp.ne.s32.totalorder %s144, %s145
    %p154 = scmp.eq.s32.totalorder %s22, 0
    %p155 = por %p153, %p154
    %p156 = scmp.ne.s32.totalorder %s144, %s145
    %p157 = scmp.eq.s32.totalorder %s23, 1
    %p158 = por %p156, %p157
    %p160 = scmp.ne.s32.totalorder %s145, %s159
    %p161 = scmp.eq.s32.totalorder %s23, 0
    %p162 = por %p160, %p161
    %s164 = sadd.s32 %s163, 1
    %p167 = scmp.eq.s32.totalorder %s17, 1
    %p168 = scmp.ne.s32.totalorder %s163, %s165
    %p169 = scmp.eq.s32.totalorder %s17, 0
    %p170 = por %p168, %p169
    %p171 = scmp.ne.s32.totalorder %s163, %s165
    %p172 = scmp.eq.s32.totalorder %s22, 1
    %p173 = por %p171, %p172
    %p174 = scmp.ne.s32.totalorder %s165, %s166
    %p175 = scmp.eq.s32.totalorder %s22, 0
    %p176 = por %p174, %p175
    %p177 = scmp.ne.s32.totalorder %s165, %s166
    %p178 = scmp.eq.s32.totalorder %s23, 1
    %p179 = por %p177, %p178
    %p181 = scmp.ne.s32.totalorder %s166, %s180
    %p182 = scmp.eq.s32.totalorder %s23, 0
    %p183 = por %p181, %p182
    %s185 = sadd.s32 %s184, 1
    %p188 = scmp.eq.s32.totalorder %s17, 1
    %p189 = scmp.ne.s32.totalorder %s184, %s186
    %p190 = scmp.eq.s32.totalorder %s17, 0
    %p191 = por %p189, %p190
    %p192 = scmp.ne.s32.totalorder %s184, %s186
    %p193 = scmp.eq.s32.totalorder %s22, 1
    %p194 = por %p192, %p193
    %p195 = scmp.ne.s32.totalorder %s186, %s187
    %p196 = scmp.eq.s32.totalorder %s22, 0
    %p197 = por %p195, %p196
    %p198 = scmp.ne.s32.totalorder %s186, %s187
    %p199 = scmp.eq.s32.totalorder %s23, 1
    %p200 = por %p198, %p199
    %p202 = scmp.ne.s32.totalorder %s187, %s201
    %p203 = scmp.eq.s32.totalorder %s23, 0
    %p204 = por %p202, %p203
    %s206 = sadd.s32 %s205, 1
    %p209 = scmp.eq.s32.totalorder %s17, 1
    %p210 = scmp.ne.s32.totalorder %s205, %s207
    %p211 = scmp.eq.s32.totalorder %s17, 0
    %p212 = por %p210, %p211
    %p213 = scmp.ne.s32.totalorder %s205, %s207
    %p214 = scmp.eq.s32.totalorder %s22, 1
    %p215 = por %p213, %p214
    %p216 = scmp.ne.s32.totalorder %s207, %s208
    %p217 = scmp.eq.s32.totalorder %s22, 0
    %p218 = por %p216, %p217
    %p219 = scmp.ne.s32.totalorder %s207, %s208
    %p220 = scmp.eq.s32.totalorder %s23, 1
    %p221 = por %p219, %p220
    %p223 = scmp.ne.s32.totalorder %s208, %s222
    %p224 = scmp.eq.s32.totalorder %s23, 0
    %p225 = por %p223, %p224
    %s227 = sadd.s32 %s226, 1
    %p230 = scmp.eq.s32.totalorder %s17, 1
    %p231 = scmp.ne.s32.totalorder %s226, %s228
    %p232 = scmp.eq.s32.totalorder %s17, 0
    %p233 = por %p231, %p232
    %p234 = scmp.ne.s32.totalorder %s226, %s228
    %p235 = scmp.eq.s32.totalorder %s22, 1
    %p236 = por %p234, %p235
    %p237 = scmp.ne.s32.totalorder %s228, %s229
    %p238 = scmp.eq.s32.totalorder %s22, 0
    %p239 = por %p237, %p238
    %p240 = scmp.ne.s32.totalorder %s228, %s229
    %p241 = scmp.eq.s32.totalorder %s23, 1
    %p242 = por %p240, %p241
    %p244 = scmp.ne.s32.totalorder %s229, %s243
    %p245 = scmp.eq.s32.totalorder %s23, 0
    %p246 = por %p244, %p245
    %s248 = sadd.s32 %s247, 1
    %p251 = scmp.eq.s32.totalorder %s17, 1
    %p252 = scmp.ne.s32.totalorder %s247, %s249
    %p253 = scmp.eq.s32.totalorder %s17, 0
    %p254 = por %p252, %p253
    %p255 = scmp.ne.s32.totalorder %s247, %s249
    %p256 = scmp.eq.s32.totalorder %s22, 1
    %p257 = por %p255, %p256
    %p258 = scmp.ne.s32.totalorder %s249, %s250
    %p259 = scmp.eq.s32.totalorder %s22, 0
    %p260 = por %p258, %p259
    %p261 = scmp.ne.s32.totalorder %s249, %s250
    %p262 = scmp.eq.s32.totalorder %s23, 1
    %p263 = por %p261, %p262
    %p265 = scmp.ne.s32.totalorder %s250, %s264
    %p266 = scmp.eq.s32.totalorder %s23, 0
    %p267 = por %p265, %p266
    %s269 = sadd.s32 %s268, 1
    %p272 = scmp.eq.s32.totalorder %s17, 1
    %p273 = scmp.ne.s32.totalorder %s268, %s270
    %p274 = scmp.eq.s32.totalorder %s17, 0
    %p275 = por %p273, %p274
    %p276 = scmp.ne.s32.totalorder %s268, %s270
    %p277 = scmp.eq.s32.totalorder %s22, 1
    %p278 = por %p276, %p277
    %p279 = scmp.ne.s32.totalorder %s270, %s271
    %p280 = scmp.eq.s32.totalorder %s22, 0
    %p281 = por %p279, %p280
    %p282 = scmp.ne.s32.totalorder %s270, %s271
    %p283 = scmp.eq.s32.totalorder %s23, 1
    %p284 = por %p282, %p283
    %p286 = scmp.ne.s32.totalorder %s271, %s285
    %p287 = scmp.eq.s32.totalorder %s23, 0
    %p288 = por %p286, %p287
    %s289 = ssub.s32 %s24, %s36
    %s290 = ssub.s32 %s25, %s32
    %s291 = sor.u32 %s289, %s290
    %p292 = scmp.eq.s32.totalorder %s291, 0
    %s294 = sadd.s32 %s293, 1
    %s295 = scalar_select %p292, %s293, %s294
    %p298 = pneg %p292
    %p299 = scmp.eq.s32.totalorder %s17, 1
    %p300 = por %p298, %p299
    %p301 = scmp.ne.s32.totalorder %s293, %s296
    %p302 = scmp.eq.s32.totalorder %s17, 0
    %p303 = por %p301, %p302
    %p304 = scmp.ne.s32.totalorder %s293, %s296
    %p305 = scmp.eq.s32.totalorder %s22, 1
    %p306 = por %p304, %p305
    %p307 = scmp.ne.s32.totalorder %s296, %s297
    %p308 = scmp.eq.s32.totalorder %s22, 0
    %p309 = por %p307, %p308
    %p310 = scmp.ne.s32.totalorder %s296, %s297
    %p311 = scmp.eq.s32.totalorder %s23, 1
    %p312 = por %p310, %p311
    %p314 = scmp.ne.s32.totalorder %s297, %s313
    %p315 = scmp.eq.s32.totalorder %s23, 0
    %p316 = por %p314, %p315
    %p317 = scmp.le.s32.totalorder 1, %s17
    %p318 = scmp.lt.s32.totalorder %s17, 3
    %p319 = pnand %p317, %p318
    %p320 = pneg %p319
    // Predicated region
    $region9: #{ri_encoder_forward.1} parent=5 // pred_check
      _
    $region10: #{ri_encoder_forward.1} parent=5 // pred_check_branch
      %322 = sbr.rel (%p319) target = $region12
    $region11: #{ri_encoder_forward.1} parent=5 // pred_region
      %s323 = ssub.s32 %s17, 1
      // Predicated region
      $region13: #{ri_encoder_forward.1} parent=11 // pred_check
        %p324 = pneg %p134
      $region14: #{ri_encoder_forward.1} parent=11 // pred_check_branch
        %326 = sbr.rel (%p324) target = $region16
      $region15: #{ri_encoder_forward.1} parent=11 // pred_region
        _
      $region16: #{ri_encoder_forward.1} parent=11 // pred_fallthru
        _
      // Predicated region
      $region17: #{ri_encoder_forward.1} parent=11 // pred_check
        %p327 = pneg %p155
      $region18: #{ri_encoder_forward.1} parent=11 // pred_check_branch
        %329 = sbr.rel (%p327) target = $region20
      $region19: #{ri_encoder_forward.1} parent=11 // pred_region
        _
      $region20: #{ri_encoder_forward.1} parent=11 // pred_fallthru
        _
      // Predicated region
      $region21: #{ri_encoder_forward.1} parent=11 // pred_check
        %p330 = pneg %p176
      $region22: #{ri_encoder_forward.1} parent=11 // pred_check_branch
        %332 = sbr.rel (%p330) target = $region24
      $region23: #{ri_encoder_forward.1} parent=11 // pred_region
        _
      $region24: #{ri_encoder_forward.1} parent=11 // pred_fallthru
        _
      // Predicated region
      $region25: #{ri_encoder_forward.1} parent=11 // pred_check
        %p333 = pneg %p197
      $region26: #{ri_encoder_forward.1} parent=11 // pred_check_branch
        %335 = sbr.rel (%p333) target = $region28
      $region27: #{ri_encoder_forward.1} parent=11 // pred_region
        _
      $region28: #{ri_encoder_forward.1} parent=11 // pred_fallthru
        _
      // Predicated region
      $region29: #{ri_encoder_forward.1} parent=11 // pred_check
        %p336 = pneg %p218
      $region30: #{ri_encoder_forward.1} parent=11 // pred_check_branch
        %338 = sbr.rel (%p336) target = $region32
      $region31: #{ri_encoder_forward.1} parent=11 // pred_region
        _
      $region32: #{ri_encoder_forward.1} parent=11 // pred_fallthru
        _
      // Predicated region
      $region33: #{ri_encoder_forward.1} parent=11 // pred_check
        %p339 = pneg %p239
      $region34: #{ri_encoder_forward.1} parent=11 // pred_check_branch
        %341 = sbr.rel (%p339) target = $region36
      $region35: #{ri_encoder_forward.1} parent=11 // pred_region
        _
      $region36: #{ri_encoder_forward.1} parent=11 // pred_fallthru
        _
      // Predicated region
      $region37: #{ri_encoder_forward.1} parent=11 // pred_check
        %p342 = pneg %p260
      $region38: #{ri_encoder_forward.1} parent=11 // pred_check_branch
        %344 = sbr.rel (%p342) target = $region40
      $region39: #{ri_encoder_forward.1} parent=11 // pred_region
        _
      $region40: #{ri_encoder_forward.1} parent=11 // pred_fallthru
        _
      // Predicated region
      $region41: #{ri_encoder_forward.1} parent=11 // pred_check
        %p345 = pneg %p281
      $region42: #{ri_encoder_forward.1} parent=11 // pred_check_branch
        %347 = sbr.rel (%p345) target = $region44
      $region43: #{ri_encoder_forward.1} parent=11 // pred_region
        _
      $region44: #{ri_encoder_forward.1} parent=11 // pred_fallthru
        _
    $region12: #{ri_encoder_forward.1} parent=5 // pred_fallthru
      _
    %p348 = scmp.lt.s32.totalorder %s17, 2
    // Predicated region
    $region45: #{ri_encoder_forward.1} parent=5 // pred_check
      %p349 = pneg %p348
    $region46: #{ri_encoder_forward.1} parent=5 // pred_check_branch
      %351 = sbr.rel (%p349) target = $region48
    $region47: #{ri_encoder_forward.1} parent=5 // pred_region
      // Predicated region
      $region49: #{ri_encoder_forward.1} parent=47 // pred_check
        %p352 = pneg %p51
      $region50: #{ri_encoder_forward.1} parent=47 // pred_check_branch
        %354 = sbr.rel (%p352) target = $region52
      $region51: #{ri_encoder_forward.1} parent=47 // pred_region
        %p355 = scmp.lt.s32.totalorder %s24, 1
        %s356 = scalar_select %p355, %s24, 1
        %p357 = scmp.lt.s32.totalorder %s25, 0
        %s358 = scalar_select %p357, %s25, 0
        %s359 = smul.addr %s356, 6
        %s360 = sadd.s32 %s358, %s359
        %s361 = smul.addr %s360, 8
        %s362 = scalar_lea.vmem %s0, %s361
      $region52: #{ri_encoder_forward.1} parent=47 // pred_fallthru
        _
      // Predicated region
      $region53: #{ri_encoder_forward.1} parent=47 // pred_check
        %p363 = pneg %p79
      $region54: #{ri_encoder_forward.1} parent=47 // pred_check_branch
        %365 = sbr.rel (%p363) target = $region56
      $region55: #{ri_encoder_forward.1} parent=47 // pred_region
        %p366 = scmp.lt.s32.totalorder %s24, 1
        %s367 = scalar_select %p366, %s24, 1
        %p368 = scmp.lt.s32.totalorder %s25, 0
        %s369 = scalar_select %p368, %s25, 0
        %s370 = smul.addr %s367, 6
        %s371 = sadd.s32 %s369, %s370
        %s372 = smul.addr %s371, 8
        %s373 = scalar_lea.vmem %s1, %s372
      $region56: #{ri_encoder_forward.1} parent=47 // pred_fallthru
        _
      // Predicated region
      $region57: #{ri_encoder_forward.1} parent=47 // pred_check
        %p374 = pneg %p107
      $region58: #{ri_encoder_forward.1} parent=47 // pred_check_branch
        %376 = sbr.rel (%p374) target = $region60
      $region59: #{ri_encoder_forward.1} parent=47 // pred_region
        %p377 = scmp.lt.s32.totalorder %s24, 1
        %s378 = scalar_select %p377, %s24, 1
        %p379 = scmp.lt.s32.totalorder %s25, 0
        %s380 = scalar_select %p379, %s25, 0
        %s381 = sadd.s32 %s380, %s378
        %s382 = smul.addr %s381, 4
        %s383 = scalar_lea.vmem %s2, %s382
      $region60: #{ri_encoder_forward.1} parent=47 // pred_fallthru
        _
    $region48: #{ri_encoder_forward.1} parent=5 // pred_fallthru
      _
    %p384 = scmp.le.s32.totalorder 1, %s17
    %p385 = scmp.lt.s32.totalorder %s17, 3
    %p386 = pnand %p384, %p385
    %p387 = pneg %p386
    // Predicated region
    $region61: #{ri_encoder_forward.1} parent=5 // pred_check
      _
    $region62: #{ri_encoder_forward.1} parent=5 // pred_check_branch
      %389 = sbr.rel (%p386) target = $region64
    $region63: #{ri_encoder_forward.1} parent=5 // pred_region
      %s390 = ssub.s32 %s17, 1
      %p391 = scmp.lt.s32.totalorder %s26, 1
      %s392 = scalar_select %p391, %s26, 1
      %p393 = scmp.lt.s32.totalorder %s27, 0
      %s394 = scalar_select %p393, %s27, 0
      %s395 = smul.addr %s392, 6
      %s396 = sadd.s32 %s394, %s395
      %s397 = smul.addr %s396, 8
      %s398 = scalar_lea.vmem %s0, %s397
      %p399 = pneg %p57
      %p400 = pneg %p54
      %p401 = scmp.lt.s32.totalorder %s26, 1
      %s402 = scalar_select %p401, %s26, 1
      %p403 = scmp.lt.s32.totalorder %s27, 0
      %s404 = scalar_select %p403, %s27, 0
      %s405 = smul.addr %s402, 6
      %s406 = sadd.s32 %s404, %s405
      %s407 = smul.addr %s406, 8
      %s408 = scalar_lea.vmem %s1, %s407
      %p409 = pneg %p85
      %p410 = pneg %p82
      %p411 = scmp.lt.s32.totalorder %s26, 1
      %s412 = scalar_select %p411, %s26, 1
      %p413 = scmp.lt.s32.totalorder %s27, 0
      %s414 = scalar_select %p413, %s27, 0
      %s415 = sadd.s32 %s414, %s412
      %s416 = smul.addr %s415, 4
      %s417 = scalar_lea.vmem %s2, %s416
      %p418 = pneg %p113
      %p419 = pneg %p110
      %p420 = pneg %p134
      %p421 = pneg %p131
      %p422 = pneg %p155
      %p423 = pneg %p152
      %p424 = pneg %p176
      %p425 = pneg %p173
      %p426 = pneg %p197
      %p427 = pneg %p194
      %p428 = pneg %p218
      %p429 = pneg %p215
      %p430 = pneg %p239
      %p431 = pneg %p236
      %p432 = pneg %p260
      %p433 = pneg %p257
      %p434 = pneg %p281
      %p435 = pneg %p278
      %p436 = pneg %p309
      %p437 = pneg %p306
      %p438 = scmp.lt.s32.totalorder %s26, 1
      %s439 = scalar_select %p438, %s26, 1
      %p440 = scmp.lt.s32.totalorder %s27, 0
      %s441 = scalar_select %p440, %s27, 0
      %s442 = smul.addr %s439, 32
      %s443 = sadd.s32 %s441, %s442
      %s444 = smul.addr %s443, 8
      %s445 = scalar_lea.vmem %s11, %s444
      %p446 = scmp.lt.s32.totalorder %s26, 1
      %s447 = scalar_select %p446, %s26, 1
      %p448 = scmp.lt.s32.totalorder %s27, 0
      %s449 = scalar_select %p448, %s27, 0
      %s450 = smul.addr %s447, 6
      %s451 = sadd.s32 %s449, %s450
      %s452 = smul.addr %s451, 8
      %s453 = scalar_lea.vmem %s0, %s452
      %p454 = scmp.lt.s32.totalorder %s26, 1
      %s455 = scalar_select %p454, %s26, 1
      %p456 = scmp.lt.s32.totalorder %s27, 0
      %s457 = scalar_select %p456, %s27, 0
      %s458 = smul.addr %s455, 6
      %s459 = sadd.s32 %s457, %s458
      %s460 = smul.addr %s459, 8
      %s461 = scalar_lea.vmem %s1, %s460
      %p462 = scmp.lt.s32.totalorder %s26, 1
      %s463 = scalar_select %p462, %s26, 1
      %p464 = scmp.lt.s32.totalorder %s27, 0
      %s465 = scalar_select %p464, %s27, 0
      %s466 = sadd.s32 %s465, %s463
      %s467 = smul.addr %s466, 4
      %s468 = scalar_lea.vmem %s2, %s467
      %p469 = scmp.lt.s32.totalorder %s26, 1
      %s470 = scalar_select %p469, %s26, 1
      %p471 = scmp.lt.s32.totalorder %s27, 0
      %s472 = scalar_select %p471, %s27, 0
      %s473 = smul.addr %s470, 32
      %s474 = sadd.s32 %s472, %s473
      %s475 = smul.addr %s474, 8
      %s476 = scalar_lea.vmem %s11, %s475
      %v478 = vld [vmem:[%s453] sm:$0xff]
      %v479 = vld [vmem:[%s453 + $0x8] sm:$0xff]
      %v480 = vld [vmem:[%s453 + $0x10] sm:$0xff]
      %v481 = vld [vmem:[%s453 + $0x18] sm:$0xff]
      %v482 = vld [vmem:[%s453 + $0x20] sm:$0xff]
      %v483 = vld [vmem:[%s453 + $0x28] sm:$0xff]
      %v484 = vld [vmem:[%s461] sm:$0xff]
      %v485 = vld [vmem:[%s461 + $0x8] sm:$0xff]
      %v486 = vld [vmem:[%s461 + $0x10] sm:$0xff]
      %v487 = vld [vmem:[%s461 + $0x18] sm:$0xff]
      %v488 = vld [vmem:[%s461 + $0x20] sm:$0xff]
      %v489 = vld [vmem:[%s461 + $0x28] sm:$0xff]
      %v490 = vld [vmem:[%s468] sm:$0x7]
      %v491 = vperm.slane %v490, 0
      %v492 = vmul.f32 %v478, %v491
      %v493 = vmul.f32 %v479, %v491
      %v494 = vperm.slane %v490, 1
      %v495 = vmul.f32 %v480, %v494
      %v496 = vmul.f32 %v481, %v494
      %v497 = vadd.f32 %v492, %v495
      %v498 = vadd.f32 %v493, %v496
      %v499 = vperm.slane %v490, 2
      %v500 = vmul.f32 %v482, %v499
      %v501 = vmul.f32 %v483, %v499
      %v502 = vadd.f32 %v497, %v500
      %v503 = vadd.f32 %v498, %v501
      %v504 = vmul.f32 %v502, %v491
      %v505 = vmul.f32 %v503, %v491
      %v506 = vsub.f32 %v478, %v504
      %v507 = vsub.f32 %v479, %v505
      %v508 = vmul.f32 %v502, %v494
      %v509 = vmul.f32 %v503, %v494
      %v510 = vsub.f32 %v480, %v508
      %v511 = vsub.f32 %v481, %v509
      %v512 = vmul.f32 %v502, %v499
      %v513 = vmul.f32 %v503, %v499
      %v514 = vsub.f32 %v482, %v512
      %v515 = vsub.f32 %v483, %v513
      %v516 = vmul.f32 %v506, %v506
      %v517 = vmul.f32 %v507, %v507
      %v518 = vmul.f32 %v510, %v510
      %v519 = vmul.f32 %v511, %v511
      %v520 = vadd.f32 %v516, %v518
      %v521 = vadd.f32 %v517, %v519
      %v522 = vmul.f32 %v514, %v514
      %v523 = vmul.f32 %v515, %v515
      %v524 = vadd.f32 %v520, %v522
      %v525 = vadd.f32 %v521, %v523
      %v526 = vrsqrt.pop %v524
      %v527 = vmul.f32 %v526, %v524
      %v528 = vmul.f32 %v527, %v526
      %v529 = vmul.f32 0.5, %v528
      %v530 = vsub.f32 1.5, %v529
      %v531 = vmul.f32 %v526, %v530
      %vm532 = vweird.f32 %v524
      %vm533 = vweird.f32 %v526
      %vm534 = vmor %vm532, %vm533
      %v535 = vsel %vm534, %v526, %v531
      %v536 = vrsqrt.pop %v525
      %v537 = vmul.f32 %v536, %v525
      %v538 = vmul.f32 %v537, %v536
      %v539 = vmul.f32 0.5, %v538
      %v540 = vsub.f32 1.5, %v539
      %v541 = vmul.f32 %v536, %v540
      %vm542 = vweird.f32 %v525
      %vm543 = vweird.f32 %v536
      %vm544 = vmor %vm542, %vm543
      %v545 = vsel %vm544, %v536, %v541
      %vm546 = vcmp.gt.f32.partialorder %v524, 0.0
      %vm547 = vcmp.gt.f32.partialorder %v525, 0.0
      %v548 = vmul.f32 %v506, %v535
      %v549 = vmul.f32 %v507, %v545
      %v550 = vsel %vm546, %v548, 0.0
      %v551 = vsel %vm547, %v549, 0.0
      %v552 = vmul.f32 %v510, %v535
      %v553 = vmul.f32 %v511, %v545
      %v554 = vsel %vm546, %v552, 0.0
      %v555 = vsel %vm547, %v553, 0.0
      %v556 = vmul.f32 %v514, %v535
      %v557 = vmul.f32 %v515, %v545
      %v558 = vsel %vm546, %v556, 0.0
      %v559 = vsel %vm547, %v557, 0.0
      %v560 = vlaneseq
      %v561 = vshrl.u32 %v560, 7
      %v562 = vadd.s32 %v561, 8
      %v563 = vcvt.s32.f32 %v561
      %v564 = vcvt.s32.f32 %v562
      %vm565 = vcmask 64512
      %v566 = vsel %vm565, %v524, -inf
      %v567 = vsel %vm565, %v525, -inf
      %v568 = vmax.f32 %v566, %v567
      %v569 = vrot.slane %v568, 4
      %v570 = vmax.f32 %v568, %v569
      %v571 = vrot.slane %v570, 2
      %v572 = vmax.f32 %v570, %v571
      %v573 = vrot.slane %v572, 1
      %v574 = vmax.f32 %v572, %v573
      %vm575 = vcmp.eq.f32.partialorder %v524, %v574
      %vm576 = vcmp.eq.f32.partialorder %v525, %v574
      %v577 = vsel %vm575, %v563, 16.0
      %v578 = vsel %vm576, %v564, 16.0
      %v579 = vsel %vm565, %v577, inf
      %v580 = vsel %vm565, %v578, inf
      %v581 = vmin.f32 %v579, %v580
      %v582 = vrot.slane %v581, 4
      %v583 = vmin.f32 %v581, %v582
      %v584 = vrot.slane %v583, 2
      %v585 = vmin.f32 %v583, %v584
      %v586 = vrot.slane %v585, 1
      %v587 = vmin.f32 %v585, %v586
      %vm588 = vcmp.eq.f32.partialorder %v563, %v587
      %vm589 = vcmp.eq.f32.partialorder %v564, %v587
      %v590 = vsel %vm588, 1, 0
      %v591 = vsel %vm589, 1, 0
      %v592 = vcvt.s32.f32 %v590
      %v593 = vcvt.s32.f32 %v591
      %v594 = vmul.f32 %v550, %v592
      %v595 = vmul.f32 %v551, %v593
      %v596 = vsel %vm565, %v594, 0.0
      %v597 = vsel %vm565, %v595, 0.0
      %v598 = vadd.f32 %v596, %v597
      %v599 = vrot.slane %v598, 4
      %v600 = vadd.f32 %v598, %v599
      %v601 = vrot.slane %v600, 2
      %v602 = vadd.f32 %v600, %v601
      %v603 = vrot.slane %v602, 1
      %v604 = vadd.f32 %v602, %v603
      %v605 = vmul.f32 %v554, %v592
      %v606 = vmul.f32 %v555, %v593
      %v607 = vsel %vm565, %v605, 0.0
      %v608 = vsel %vm565, %v606, 0.0
      %v609 = vadd.f32 %v607, %v608
      %v610 = vrot.slane %v609, 4
      %v611 = vadd.f32 %v609, %v610
      %v612 = vrot.slane %v611, 2
      %v613 = vadd.f32 %v611, %v612
      %v614 = vrot.slane %v613, 1
      %v615 = vadd.f32 %v613, %v614
      %v616 = vmul.f32 %v558, %v592
      %v617 = vmul.f32 %v559, %v593
      %v618 = vsel %vm565, %v616, 0.0
      %v619 = vsel %vm565, %v617, 0.0
      %v620 = vadd.f32 %v618, %v619
      %v621 = vrot.slane %v620, 4
      %v622 = vadd.f32 %v620, %v621
      %v623 = vrot.slane %v622, 2
      %v624 = vadd.f32 %v622, %v623
      %v625 = vrot.slane %v624, 1
      %v626 = vadd.f32 %v624, %v625
      %v627 = vmul.f32 %v550, %v604
      %v628 = vmul.f32 %v551, %v604
      %v629 = vmul.f32 %v554, %v615
      %v630 = vmul.f32 %v555, %v615
      %v631 = vadd.f32 %v627, %v629
      %v632 = vadd.f32 %v628, %v630
      %v633 = vmul.f32 %v558, %v626
      %v634 = vmul.f32 %v559, %v626
      %v635 = vadd.f32 %v631, %v633
      %v636 = vadd.f32 %v632, %v634
      %v637 = vmul.f32 %v554, %v626
      %v638 = vmul.f32 %v555, %v626
      %v639 = vmul.f32 %v558, %v615
      %v640 = vmul.f32 %v559, %v615
      %v641 = vsub.f32 %v637, %v639
      %v642 = vsub.f32 %v638, %v640
      %v643 = vmul.f32 %v558, %v604
      %v644 = vmul.f32 %v559, %v604
      %v645 = vmul.f32 %v550, %v626
      %v646 = vmul.f32 %v551, %v626
      %v647 = vsub.f32 %v643, %v645
      %v648 = vsub.f32 %v644, %v646
      %v649 = vmul.f32 %v550, %v615
      %v650 = vmul.f32 %v551, %v615
      %v651 = vmul.f32 %v554, %v604
      %v652 = vmul.f32 %v555, %v604
      %v653 = vsub.f32 %v649, %v651
      %v654 = vsub.f32 %v650, %v652
      %v655 = vmul.f32 %v641, %v491
      %v656 = vmul.f32 %v642, %v491
      %v657 = vmul.f32 %v647, %v494
      %v658 = vmul.f32 %v648, %v494
      %v659 = vadd.f32 %v655, %v657
      %v660 = vadd.f32 %v656, %v658
      %v661 = vmul.f32 %v653, %v499
      %v662 = vmul.f32 %v654, %v499
      %v663 = vadd.f32 %v659, %v661
      %v664 = vadd.f32 %v660, %v662
      %vm665 = vcmp.gt.f32.partialorder %v663, 0.0
      %vm666 = vcmp.gt.f32.partialorder %v664, 0.0
      %vm667 = vcmp.lt.f32.partialorder %v663, 0.0
      %vm668 = vcmp.lt.f32.partialorder %v664, 0.0
      %v669 = vsel %vm667, -1.0, 0.0
      %v670 = vsel %vm668, -1.0, 0.0
      %v671 = vsel %vm665, 1.0, %v669
      %v672 = vsel %vm666, 1.0, %v670
      %vm673 = vcmp.eq.s32.totalorder %v561, 0
      %vm674 = vcmp.eq.s32.totalorder %v562, 0
      %v675 = vsel %vm673, 1.0, %v671
      %v676 = vsel %vm674, 1.0, %v672
      %v677 = vmul.f32 %v675, %v635
      %v678 = vmul.f32 %v676, %v636
      %v679 = vsub.f32 1.0, %v675
      %v680 = vsub.f32 1.0, %v676
      %v681 = vsub.f32 %v677, %v679
      %v682 = vsub.f32 %v678, %v680
      %v683 = vperm.slane %v681, 0
      %vm684 = vcmp.gt.f32.partialorder %v683, %v681
      %vm685 = vcmp.gt.f32.partialorder %v683, %v682
      %vm686 = vcmp.eq.f32.partialorder %v683, %v681
      %vm687 = vcmp.eq.f32.partialorder %v683, %v682
      %vm688 = vcmp.gt.s32.totalorder %v561, 0
      %vm689 = vcmp.gt.s32.totalorder %v562, 0
      %vm690 = vmand %vm686, %vm688
      %vm691 = vmand %vm687, %vm689
      %vm692 = vmor %vm684, %vm690
      %vm693 = vmor %vm685, %vm691
      %v694 = vsel %vm692, 1, 0
      %v695 = vsel %vm693, 1, 0
      %v696 = vperm.slane %v681, 1
      %vm697 = vcmp.gt.f32.partialorder %v696, %v681
      %vm698 = vcmp.gt.f32.partialorder %v696, %v682
      %vm699 = vcmp.eq.f32.partialorder %v696, %v681
      %vm700 = vcmp.eq.f32.partialorder %v696, %v682
      %vm701 = vcmp.gt.s32.totalorder %v561, 1
      %vm702 = vcmp.gt.s32.totalorder %v562, 1
      %vm703 = vmand %vm699, %vm701
      %vm704 = vmand %vm700, %vm702
      %vm705 = vmor %vm697, %vm703
      %vm706 = vmor %vm698, %vm704
      %v707 = vsel %vm705, 1, 0
      %v708 = vsel %vm706, 1, 0
      %v709 = vadd.s32 %v694, %v707
      %v710 = vadd.s32 %v695, %v708
      %v711 = vperm.slane %v681, 2
      %vm712 = vcmp.gt.f32.partialorder %v711, %v681
      %vm713 = vcmp.gt.f32.partialorder %v711, %v682
      %vm714 = vcmp.eq.f32.partialorder %v711, %v681
      %vm715 = vcmp.eq.f32.partialorder %v711, %v682
      %vm716 = vcmp.gt.s32.totalorder %v561, 2
      %vm717 = vcmp.gt.s32.totalorder %v562, 2
      %vm718 = vmand %vm714, %vm716
      %vm719 = vmand %vm715, %vm717
      %vm720 = vmor %vm712, %vm718
      %vm721 = vmor %vm713, %vm719
      %v722 = vsel %vm720, 1, 0
      %v723 = vsel %vm721, 1, 0
      %v724 = vadd.s32 %v709, %v722
      %v725 = vadd.s32 %v710, %v723
      %v726 = vperm.slane %v681, 3
      %vm727 = vcmp.gt.f32.partialorder %v726, %v681
      %vm728 = vcmp.gt.f32.partialorder %v726, %v682
      %vm729 = vcmp.eq.f32.partialorder %v726, %v681
      %vm730 = vcmp.eq.f32.partialorder %v726, %v682
      %vm731 = vcmp.gt.s32.totalorder %v561, 3
      %vm732 = vcmp.gt.s32.totalorder %v562, 3
      %vm733 = vmand %vm729, %vm731
      %vm734 = vmand %vm730, %vm732
      %vm735 = vmor %vm727, %vm733
      %vm736 = vmor %vm728, %vm734
      %v737 = vsel %vm735, 1, 0
      %v738 = vsel %vm736, 1, 0
      %v739 = vadd.s32 %v724, %v737
      %v740 = vadd.s32 %v725, %v738
      %v741 = vperm.slane %v681, 4
      %vm742 = vcmp.gt.f32.partialorder %v741, %v681
      %vm743 = vcmp.gt.f32.partialorder %v741, %v682
      %vm744 = vcmp.eq.f32.partialorder %v741, %v681
      %vm745 = vcmp.eq.f32.partialorder %v741, %v682
      %vm746 = vcmp.gt.s32.totalorder %v561, 4
      %vm747 = vcmp.gt.s32.totalorder %v562, 4
      %vm748 = vmand %vm744, %vm746
      %vm749 = vmand %vm745, %vm747
      %vm750 = vmor %vm742, %vm748
      %vm751 = vmor %vm743, %vm749
      %v752 = vsel %vm750, 1, 0
      %v753 = vsel %vm751, 1, 0
      %v754 = vadd.s32 %v739, %v752
      %v755 = vadd.s32 %v740, %v753
      %v756 = vperm.slane %v681, 5
      %vm757 = vcmp.gt.f32.partialorder %v756, %v681
      %vm758 = vcmp.gt.f32.partialorder %v756, %v682
      %vm759 = vcmp.eq.f32.partialorder %v756, %v681
      %vm760 = vcmp.eq.f32.partialorder %v756, %v682
      %vm761 = vcmp.gt.s32.totalorder %v561, 5
      %vm762 = vcmp.gt.s32.totalorder %v562, 5
      %vm763 = vmand %vm759, %vm761
      %vm764 = vmand %vm760, %vm762
      %vm765 = vmor %vm757, %vm763
      %vm766 = vmor %vm758, %vm764
      %v767 = vsel %vm765, 1, 0
      %v768 = vsel %vm766, 1, 0
      %v769 = vadd.s32 %v754, %v767
      %v770 = vadd.s32 %v755, %v768
      %v771 = vperm.slane %v681, 6
      %vm772 = vcmp.gt.f32.partialorder %v771, %v681
      %vm773 = vcmp.gt.f32.partialorder %v771, %v682
      %vm774 = vcmp.eq.f32.partialorder %v771, %v681
      %vm775 = vcmp.eq.f32.partialorder %v771, %v682
      %vm776 = vcmp.gt.s32.totalorder %v561, 6
      %vm777 = vcmp.gt.s32.totalorder %v562, 6
      %vm778 = vmand %vm774, %vm776
      %vm779 = vmand %vm775, %vm777
      %vm780 = vmor %vm772, %vm778
      %vm781 = vmor %vm773, %vm779
      %v782 = vsel %vm780, 1, 0
      %v783 = vsel %vm781, 1, 0
      %v784 = vadd.s32 %v769, %v782
      %v785 = vadd.s32 %v770, %v783
      %v786 = vperm.slane %v681, 7
      %vm787 = vcmp.gt.f32.partialorder %v786, %v681
      %vm788 = vcmp.gt.f32.partialorder %v786, %v682
      %vm789 = vcmp.eq.f32.partialorder %v786, %v681
      %vm790 = vcmp.eq.f32.partialorder %v786, %v682
      %vm791 = vcmp.gt.s32.totalorder %v561, 7
      %vm792 = vcmp.gt.s32.totalorder %v562, 7
      %vm793 = vmand %vm789, %vm791
      %vm794 = vmand %vm790, %vm792
      %vm795 = vmor %vm787, %vm793
      %vm796 = vmor %vm788, %vm794
      %v797 = vsel %vm795, 1, 0
      %v798 = vsel %vm796, 1, 0
      %v799 = vadd.s32 %v784, %v797
      %v800 = vadd.s32 %v785, %v798
      %v801 = vperm.slane %v682, 0
      %vm802 = vcmp.gt.f32.partialorder %v801, %v681
      %vm803 = vcmp.gt.f32.partialorder %v801, %v682
      %vm804 = vcmp.eq.f32.partialorder %v801, %v681
      %vm805 = vcmp.eq.f32.partialorder %v801, %v682
      %vm806 = vcmp.gt.s32.totalorder %v561, 8
      %vm807 = vcmp.gt.s32.totalorder %v562, 8
      %vm808 = vmand %vm804, %vm806
      %vm809 = vmand %vm805, %vm807
      %vm810 = vmor %vm802, %vm808
      %vm811 = vmor %vm803, %vm809
      %v812 = vsel %vm810, 1, 0
      %v813 = vsel %vm811, 1, 0
      %v814 = vadd.s32 %v799, %v812
      %v815 = vadd.s32 %v800, %v813
      %v816 = vperm.slane %v682, 1
      %vm817 = vcmp.gt.f32.partialorder %v816, %v681
      %vm818 = vcmp.gt.f32.partialorder %v816, %v682
      %vm819 = vcmp.eq.f32.partialorder %v816, %v681
      %vm820 = vcmp.eq.f32.partialorder %v816, %v682
      %vm821 = vcmp.gt.s32.totalorder %v561, 9
      %vm822 = vcmp.gt.s32.totalorder %v562, 9
      %vm823 = vmand %vm819, %vm821
      %vm824 = vmand %vm820, %vm822
      %vm825 = vmor %vm817, %vm823
      %vm826 = vmor %vm818, %vm824
      %v827 = vsel %vm825, 1, 0
      %v828 = vsel %vm826, 1, 0
      %v829 = vadd.s32 %v814, %v827
      %v830 = vadd.s32 %v815, %v828
      %v831 = vperm.slane %v682, 2
      %vm832 = vcmp.gt.f32.partialorder %v831, %v681
      %vm833 = vcmp.gt.f32.partialorder %v831, %v682
      %vm834 = vcmp.eq.f32.partialorder %v831, %v681
      %vm835 = vcmp.eq.f32.partialorder %v831, %v682
      %vm836 = vcmp.gt.s32.totalorder %v561, 10
      %vm837 = vcmp.gt.s32.totalorder %v562, 10
      %vm838 = vmand %vm834, %vm836
      %vm839 = vmand %vm835, %vm837
      %vm840 = vmor %vm832, %vm838
      %vm841 = vmor %vm833, %vm839
      %v842 = vsel %vm840, 1, 0
      %v843 = vsel %vm841, 1, 0
      %v844 = vadd.s32 %v829, %v842
      %v845 = vadd.s32 %v830, %v843
      %v846 = vperm.slane %v682, 3
      %vm847 = vcmp.gt.f32.partialorder %v846, %v681
      %vm848 = vcmp.gt.f32.partialorder %v846, %v682
      %vm849 = vcmp.eq.f32.partialorder %v846, %v681
      %vm850 = vcmp.eq.f32.partialorder %v846, %v682
      %vm851 = vcmp.gt.s32.totalorder %v561, 11
      %vm852 = vcmp.gt.s32.totalorder %v562, 11
      %vm853 = vmand %vm849, %vm851
      %vm854 = vmand %vm850, %vm852
      %vm855 = vmor %vm847, %vm853
      %vm856 = vmor %vm848, %vm854
      %v857 = vsel %vm855, 1, 0
      %v858 = vsel %vm856, 1, 0
      %v859 = vadd.s32 %v844, %v857
      %v860 = vadd.s32 %v845, %v858
      %v861 = vperm.slane %v682, 4
      %vm862 = vcmp.gt.f32.partialorder %v861, %v681
      %vm863 = vcmp.gt.f32.partialorder %v861, %v682
      %vm864 = vcmp.eq.f32.partialorder %v861, %v681
      %vm865 = vcmp.eq.f32.partialorder %v861, %v682
      %vm866 = vcmp.gt.s32.totalorder %v561, 12
      %vm867 = vcmp.gt.s32.totalorder %v562, 12
      %vm868 = vmand %vm864, %vm866
      %vm869 = vmand %vm865, %vm867
      %vm870 = vmor %vm862, %vm868
      %vm871 = vmor %vm863, %vm869
      %v872 = vsel %vm870, 1, 0
      %v873 = vsel %vm871, 1, 0
      %v874 = vadd.s32 %v859, %v872
      %v875 = vadd.s32 %v860, %v873
      %v876 = vperm.slane %v682, 5
      %vm877 = vcmp.gt.f32.partialorder %v876, %v681
      %vm878 = vcmp.gt.f32.partialorder %v876, %v682
      %vm879 = vcmp.eq.f32.partialorder %v876, %v681
      %vm880 = vcmp.eq.f32.partialorder %v876, %v682
      %vm881 = vcmp.gt.s32.totalorder %v561, 13
      %vm882 = vcmp.gt.s32.totalorder %v562, 13
      %vm883 = vmand %vm879, %vm881
      %vm884 = vmand %vm880, %vm882
      %vm885 = vmor %vm877, %vm883
      %vm886 = vmor %vm878, %vm884
      %v887 = vsel %vm885, 1, 0
      %v888 = vsel %vm886, 1, 0
      %v889 = vadd.s32 %v874, %v887
      %v890 = vadd.s32 %v875, %v888
      %v891 = vperm.slane %v682, 6
      %vm892 = vcmp.gt.f32.partialorder %v891, %v681
      %vm893 = vcmp.gt.f32.partialorder %v891, %v682
      %vm894 = vcmp.eq.f32.partialorder %v891, %v681
      %vm895 = vcmp.eq.f32.partialorder %v891, %v682
      %vm896 = vcmp.gt.s32.totalorder %v561, 14
      %vm897 = vcmp.gt.s32.totalorder %v562, 14
      %vm898 = vmand %vm894, %vm896
      %vm899 = vmand %vm895, %vm897
      %vm900 = vmor %vm892, %vm898
      %vm901 = vmor %vm893, %vm899
      %v902 = vsel %vm900, 1, 0
      %v903 = vsel %vm901, 1, 0
      %v904 = vadd.s32 %v889, %v902
      %v905 = vadd.s32 %v890, %v903
      %v906 = vperm.slane %v682, 7
      %vm907 = vcmp.gt.f32.partialorder %v906, %v681
      %vm908 = vcmp.gt.f32.partialorder %v906, %v682
      %vm909 = vcmp.eq.f32.partialorder %v906, %v681
      %vm910 = vcmp.eq.f32.partialorder %v906, %v682
      %vm911 = vcmp.gt.s32.totalorder %v561, 15
      %vm912 = vcmp.gt.s32.totalorder %v562, 15
      %vm913 = vmand %vm909, %vm911
      %vm914 = vmand %vm910, %vm912
      %vm915 = vmor %vm907, %vm913
      %vm916 = vmor %vm908, %vm914
      %v917 = vsel %vm915, 1, 0
      %v918 = vsel %vm916, 1, 0
      %v919 = vadd.s32 %v904, %v917
      %v920 = vadd.s32 %v905, %v918
      %vm921 = vcmp.eq.s32.totalorder %v919, 0
      %vm922 = vcmp.eq.s32.totalorder %v920, 0
      %v923 = vsub.s32 %v919, 1
      %v924 = vsub.s32 %v920, 1
      %v925 = vsel %vm921, 15, %v923
      %v926 = vsel %vm922, 15, %v924
      %v927 = vperm.slane %v919, 0
      %vm928 = vcmp.eq.s32.totalorder %v925, %v927
      %vm929 = vcmp.eq.s32.totalorder %v926, %v927
      %v930 = vsel %vm928, 1, 0
      %v931 = vsel %vm929, 1, 0
      %v932 = vcvt.s32.f32 %v930
      %v933 = vcvt.s32.f32 %v931
      %v934 = vperm.slane %v919, 1
      %vm935 = vcmp.eq.s32.totalorder %v925, %v934
      %vm936 = vcmp.eq.s32.totalorder %v926, %v934
      %v937 = vsel %vm935, 1, 0
      %v938 = vsel %vm936, 1, 0
      %v939 = vcvt.s32.f32 %v937
      %v940 = vcvt.s32.f32 %v938
      %v941 = vperm.slane %v919, 2
      %vm942 = vcmp.eq.s32.totalorder %v925, %v941
      %vm943 = vcmp.eq.s32.totalorder %v926, %v941
      %v944 = vsel %vm942, 1, 0
      %v945 = vsel %vm943, 1, 0
      %v946 = vcvt.s32.f32 %v944
      %v947 = vcvt.s32.f32 %v945
      %v948 = vperm.slane %v919, 3
      %vm949 = vcmp.eq.s32.totalorder %v925, %v948
      %vm950 = vcmp.eq.s32.totalorder %v926, %v948
      %v951 = vsel %vm949, 1, 0
      %v952 = vsel %vm950, 1, 0
      %v953 = vcvt.s32.f32 %v951
      %v954 = vcvt.s32.f32 %v952
      %v955 = vperm.slane %v919, 4
      %vm956 = vcmp.eq.s32.totalorder %v925, %v955
      %vm957 = vcmp.eq.s32.totalorder %v926, %v955
      %v958 = vsel %vm956, 1, 0
      %v959 = vsel %vm957, 1, 0
      %v960 = vcvt.s32.f32 %v958
      %v961 = vcvt.s32.f32 %v959
      %v962 = vperm.slane %v919, 5
      %vm963 = vcmp.eq.s32.totalorder %v925, %v962
      %vm964 = vcmp.eq.s32.totalorder %v926, %v962
      %v965 = vsel %vm963, 1, 0
      %v966 = vsel %vm964, 1, 0
      %v967 = vcvt.s32.f32 %v965
      %v968 = vcvt.s32.f32 %v966
      %v969 = vperm.slane %v919, 6
      %vm970 = vcmp.eq.s32.totalorder %v925, %v969
      %vm971 = vcmp.eq.s32.totalorder %v926, %v969
      %v972 = vsel %vm970, 1, 0
      %v973 = vsel %vm971, 1, 0
      %v974 = vcvt.s32.f32 %v972
      %v975 = vcvt.s32.f32 %v973
      %v976 = vperm.slane %v919, 7
      %vm977 = vcmp.eq.s32.totalorder %v925, %v976
      %vm978 = vcmp.eq.s32.totalorder %v926, %v976
      %v979 = vsel %vm977, 1, 0
      %v980 = vsel %vm978, 1, 0
      %v981 = vcvt.s32.f32 %v979
      %v982 = vcvt.s32.f32 %v980
      %v983 = vperm.slane %v920, 0
      %vm984 = vcmp.eq.s32.totalorder %v925, %v983
      %vm985 = vcmp.eq.s32.totalorder %v926, %v983
      %v986 = vsel %vm984, 1, 0
      %v987 = vsel %vm985, 1, 0
      %v988 = vcvt.s32.f32 %v986
      %v989 = vcvt.s32.f32 %v987
      %v990 = vperm.slane %v920, 1
      %vm991 = vcmp.eq.s32.totalorder %v925, %v990
      %vm992 = vcmp.eq.s32.totalorder %v926, %v990
      %v993 = vsel %vm991, 1, 0
      %v994 = vsel %vm992, 1, 0
      %v995 = vcvt.s32.f32 %v993
      %v996 = vcvt.s32.f32 %v994
      %v997 = vperm.slane %v920, 2
      %vm998 = vcmp.eq.s32.totalorder %v925, %v997
      %vm999 = vcmp.eq.s32.totalorder %v926, %v997
      %v1000 = vsel %vm998, 1, 0
      %v1001 = vsel %vm999, 1, 0
      %v1002 = vcvt.s32.f32 %v1000
      %v1003 = vcvt.s32.f32 %v1001
      %v1004 = vperm.slane %v920, 3
      %vm1005 = vcmp.eq.s32.totalorder %v925, %v1004
      %vm1006 = vcmp.eq.s32.totalorder %v926, %v1004
      %v1007 = vsel %vm1005, 1, 0
      %v1008 = vsel %vm1006, 1, 0
      %v1009 = vcvt.s32.f32 %v1007
      %v1010 = vcvt.s32.f32 %v1008
      %v1011 = vperm.slane %v920, 4
      %vm1012 = vcmp.eq.s32.totalorder %v925, %v1011
      %vm1013 = vcmp.eq.s32.totalorder %v926, %v1011
      %v1014 = vsel %vm1012, 1, 0
      %v1015 = vsel %vm1013, 1, 0
      %v1016 = vcvt.s32.f32 %v1014
      %v1017 = vcvt.s32.f32 %v1015
      %v1018 = vperm.slane %v920, 5
      %vm1019 = vcmp.eq.s32.totalorder %v925, %v1018
      %vm1020 = vcmp.eq.s32.totalorder %v926, %v1018
      %v1021 = vsel %vm1019, 1, 0
      %v1022 = vsel %vm1020, 1, 0
      %v1023 = vcvt.s32.f32 %v1021
      %v1024 = vcvt.s32.f32 %v1022
      %v1025 = vperm.slane %v920, 6
      %vm1026 = vcmp.eq.s32.totalorder %v925, %v1025
      %vm1027 = vcmp.eq.s32.totalorder %v926, %v1025
      %v1028 = vsel %vm1026, 1, 0
      %v1029 = vsel %vm1027, 1, 0
      %v1030 = vcvt.s32.f32 %v1028
      %v1031 = vcvt.s32.f32 %v1029
      %v1032 = vperm.slane %v920, 7
      %vm1033 = vcmp.eq.s32.totalorder %v925, %v1032
      %vm1034 = vcmp.eq.s32.totalorder %v926, %v1032
      %v1035 = vsel %vm1033, 1, 0
      %v1036 = vsel %vm1034, 1, 0
      %v1037 = vcvt.s32.f32 %v1035
      %v1038 = vcvt.s32.f32 %v1036
      %v1039 = vmul.f32 %v932, %v683
      %v1040 = vmul.f32 %v933, %v683
      %v1041 = vmul.f32 %v939, %v696
      %v1042 = vmul.f32 %v940, %v696
      %v1043 = vadd.f32 %v1039, %v1041
      %v1044 = vadd.f32 %v1040, %v1042
      %v1045 = vmul.f32 %v946, %v711
      %v1046 = vmul.f32 %v947, %v711
      %v1047 = vadd.f32 %v1043, %v1045
      %v1048 = vadd.f32 %v1044, %v1046
      %v1049 = vmul.f32 %v953, %v726
      %v1050 = vmul.f32 %v954, %v726
      %v1051 = vadd.f32 %v1047, %v1049
      %v1052 = vadd.f32 %v1048, %v1050
      %v1053 = vmul.f32 %v960, %v741
      %v1054 = vmul.f32 %v961, %v741
      %v1055 = vadd.f32 %v1051, %v1053
      %v1056 = vadd.f32 %v1052, %v1054
      %v1057 = vmul.f32 %v967, %v756
      %v1058 = vmul.f32 %v968, %v756
      %v1059 = vadd.f32 %v1055, %v1057
      %v1060 = vadd.f32 %v1056, %v1058
      %v1061 = vmul.f32 %v974, %v771
      %v1062 = vmul.f32 %v975, %v771
      %v1063 = vadd.f32 %v1059, %v1061
      %v1064 = vadd.f32 %v1060, %v1062
      %v1065 = vmul.f32 %v981, %v786
      %v1066 = vmul.f32 %v982, %v786
      %v1067 = vadd.f32 %v1063, %v1065
      %v1068 = vadd.f32 %v1064, %v1066
      %v1069 = vmul.f32 %v988, %v801
      %v1070 = vmul.f32 %v989, %v801
      %v1071 = vadd.f32 %v1067, %v1069
      %v1072 = vadd.f32 %v1068, %v1070
      %v1073 = vmul.f32 %v995, %v816
      %v1074 = vmul.f32 %v996, %v816
      %v1075 = vadd.f32 %v1071, %v1073
      %v1076 = vadd.f32 %v1072, %v1074
      %v1077 = vmul.f32 %v1002, %v831
      %v1078 = vmul.f32 %v1003, %v831
      %v1079 = vadd.f32 %v1075, %v1077
      %v1080 = vadd.f32 %v1076, %v1078
      %v1081 = vmul.f32 %v1009, %v846
      %v1082 = vmul.f32 %v1010, %v846
      %v1083 = vadd.f32 %v1079, %v1081
      %v1084 = vadd.f32 %v1080, %v1082
      %v1085 = vmul.f32 %v1016, %v861
      %v1086 = vmul.f32 %v1017, %v861
      %v1087 = vadd.f32 %v1083, %v1085
      %v1088 = vadd.f32 %v1084, %v1086
      %v1089 = vmul.f32 %v1023, %v876
      %v1090 = vmul.f32 %v1024, %v876
      %v1091 = vadd.f32 %v1087, %v1089
      %v1092 = vadd.f32 %v1088, %v1090
      %v1093 = vmul.f32 %v1030, %v891
      %v1094 = vmul.f32 %v1031, %v891
      %v1095 = vadd.f32 %v1091, %v1093
      %v1096 = vadd.f32 %v1092, %v1094
      %v1097 = vmul.f32 %v1037, %v906
      %v1098 = vmul.f32 %v1038, %v906
      %v1099 = vadd.f32 %v1095, %v1097
      %v1100 = vadd.f32 %v1096, %v1098
      %v1101 = vperm.slane %v478, 0
      %v1102 = vmul.f32 %v932, %v1101
      %v1103 = vmul.f32 %v933, %v1101
      %v1104 = vperm.slane %v478, 1
      %v1105 = vmul.f32 %v939, %v1104
      %v1106 = vmul.f32 %v940, %v1104
      %v1107 = vadd.f32 %v1102, %v1105
      %v1108 = vadd.f32 %v1103, %v1106
      %v1109 = vperm.slane %v478, 2
      %v1110 = vmul.f32 %v946, %v1109
      %v1111 = vmul.f32 %v947, %v1109
      %v1112 = vadd.f32 %v1107, %v1110
      %v1113 = vadd.f32 %v1108, %v1111
      %v1114 = vperm.slane %v478, 3
      %v1115 = vmul.f32 %v953, %v1114
      %v1116 = vmul.f32 %v954, %v1114
      %v1117 = vadd.f32 %v1112, %v1115
      %v1118 = vadd.f32 %v1113, %v1116
      %v1119 = vperm.slane %v478, 4
      %v1120 = vmul.f32 %v960, %v1119
      %v1121 = vmul.f32 %v961, %v1119
      %v1122 = vadd.f32 %v1117, %v1120
      %v1123 = vadd.f32 %v1118, %v1121
      %v1124 = vperm.slane %v478, 5
      %v1125 = vmul.f32 %v967, %v1124
      %v1126 = vmul.f32 %v968, %v1124
      %v1127 = vadd.f32 %v1122, %v1125
      %v1128 = vadd.f32 %v1123, %v1126
      %v1129 = vperm.slane %v478, 6
      %v1130 = vmul.f32 %v974, %v1129
      %v1131 = vmul.f32 %v975, %v1129
      %v1132 = vadd.f32 %v1127, %v1130
      %v1133 = vadd.f32 %v1128, %v1131
      %v1134 = vperm.slane %v478, 7
      %v1135 = vmul.f32 %v981, %v1134
      %v1136 = vmul.f32 %v982, %v1134
      %v1137 = vadd.f32 %v1132, %v1135
      %v1138 = vadd.f32 %v1133, %v1136
      %v1139 = vperm.slane %v479, 0
      %v1140 = vmul.f32 %v988, %v1139
      %v1141 = vmul.f32 %v989, %v1139
      %v1142 = vadd.f32 %v1137, %v1140
      %v1143 = vadd.f32 %v1138, %v1141
      %v1144 = vperm.slane %v479, 1
      %v1145 = vmul.f32 %v995, %v1144
      %v1146 = vmul.f32 %v996, %v1144
      %v1147 = vadd.f32 %v1142, %v1145
      %v1148 = vadd.f32 %v1143, %v1146
      %v1149 = vperm.slane %v479, 2
      %v1150 = vmul.f32 %v1002, %v1149
      %v1151 = vmul.f32 %v1003, %v1149
      %v1152 = vadd.f32 %v1147, %v1150
      %v1153 = vadd.f32 %v1148, %v1151
      %v1154 = vperm.slane %v479, 3
      %v1155 = vmul.f32 %v1009, %v1154
      %v1156 = vmul.f32 %v1010, %v1154
      %v1157 = vadd.f32 %v1152, %v1155
      %v1158 = vadd.f32 %v1153, %v1156
      %v1159 = vperm.slane %v479, 4
      %v1160 = vmul.f32 %v1016, %v1159
      %v1161 = vmul.f32 %v1017, %v1159
      %v1162 = vadd.f32 %v1157, %v1160
      %v1163 = vadd.f32 %v1158, %v1161
      %v1164 = vperm.slane %v479, 5
      %v1165 = vmul.f32 %v1023, %v1164
      %v1166 = vmul.f32 %v1024, %v1164
      %v1167 = vadd.f32 %v1162, %v1165
      %v1168 = vadd.f32 %v1163, %v1166
      %v1169 = vperm.slane %v479, 6
      %v1170 = vmul.f32 %v1030, %v1169
      %v1171 = vmul.f32 %v1031, %v1169
      %v1172 = vadd.f32 %v1167, %v1170
      %v1173 = vadd.f32 %v1168, %v1171
      %v1174 = vperm.slane %v479, 7
      %v1175 = vmul.f32 %v1037, %v1174
      %v1176 = vmul.f32 %v1038, %v1174
      %v1177 = vadd.f32 %v1172, %v1175
      %v1178 = vadd.f32 %v1173, %v1176
      %v1179 = vperm.slane %v480, 0
      %v1180 = vmul.f32 %v932, %v1179
      %v1181 = vmul.f32 %v933, %v1179
      %v1182 = vperm.slane %v480, 1
      %v1183 = vmul.f32 %v939, %v1182
      %v1184 = vmul.f32 %v940, %v1182
      %v1185 = vadd.f32 %v1180, %v1183
      %v1186 = vadd.f32 %v1181, %v1184
      %v1187 = vperm.slane %v480, 2
      %v1188 = vmul.f32 %v946, %v1187
      %v1189 = vmul.f32 %v947, %v1187
      %v1190 = vadd.f32 %v1185, %v1188
      %v1191 = vadd.f32 %v1186, %v1189
      %v1192 = vperm.slane %v480, 3
      %v1193 = vmul.f32 %v953, %v1192
      %v1194 = vmul.f32 %v954, %v1192
      %v1195 = vadd.f32 %v1190, %v1193
      %v1196 = vadd.f32 %v1191, %v1194
      %v1197 = vperm.slane %v480, 4
      %v1198 = vmul.f32 %v960, %v1197
      %v1199 = vmul.f32 %v961, %v1197
      %v1200 = vadd.f32 %v1195, %v1198
      %v1201 = vadd.f32 %v1196, %v1199
      %v1202 = vperm.slane %v480, 5
      %v1203 = vmul.f32 %v967, %v1202
      %v1204 = vmul.f32 %v968, %v1202
      %v1205 = vadd.f32 %v1200, %v1203
      %v1206 = vadd.f32 %v1201, %v1204
      %v1207 = vperm.slane %v480, 6
      %v1208 = vmul.f32 %v974, %v1207
      %v1209 = vmul.f32 %v975, %v1207
      %v1210 = vadd.f32 %v1205, %v1208
      %v1211 = vadd.f32 %v1206, %v1209
      %v1212 = vperm.slane %v480, 7
      %v1213 = vmul.f32 %v981, %v1212
      %v1214 = vmul.f32 %v982, %v1212
      %v1215 = vadd.f32 %v1210, %v1213
      %v1216 = vadd.f32 %v1211, %v1214
      %v1217 = vperm.slane %v481, 0
      %v1218 = vmul.f32 %v988, %v1217
      %v1219 = vmul.f32 %v989, %v1217
      %v1220 = vadd.f32 %v1215, %v1218
      %v1221 = vadd.f32 %v1216, %v1219
      %v1222 = vperm.slane %v481, 1
      %v1223 = vmul.f32 %v995, %v1222
      %v1224 = vmul.f32 %v996, %v1222
      %v1225 = vadd.f32 %v1220, %v1223
      %v1226 = vadd.f32 %v1221, %v1224
      %v1227 = vperm.slane %v481, 2
      %v1228 = vmul.f32 %v1002, %v1227
      %v1229 = vmul.f32 %v1003, %v1227
      %v1230 = vadd.f32 %v1225, %v1228
      %v1231 = vadd.f32 %v1226, %v1229
      %v1232 = vperm.slane %v481, 3
      %v1233 = vmul.f32 %v1009, %v1232
      %v1234 = vmul.f32 %v1010, %v1232
      %v1235 = vadd.f32 %v1230, %v1233
      %v1236 = vadd.f32 %v1231, %v1234
      %v1237 = vperm.slane %v481, 4
      %v1238 = vmul.f32 %v1016, %v1237
      %v1239 = vmul.f32 %v1017, %v1237
      %v1240 = vadd.f32 %v1235, %v1238
      %v1241 = vadd.f32 %v1236, %v1239
      %v1242 = vperm.slane %v481, 5
      %v1243 = vmul.f32 %v1023, %v1242
      %v1244 = vmul.f32 %v1024, %v1242
      %v1245 = vadd.f32 %v1240, %v1243
      %v1246 = vadd.f32 %v1241, %v1244
      %v1247 = vperm.slane %v481, 6
      %v1248 = vmul.f32 %v1030, %v1247
      %v1249 = vmul.f32 %v1031, %v1247
      %v1250 = vadd.f32 %v1245, %v1248
      %v1251 = vadd.f32 %v1246, %v1249
      %v1252 = vperm.slane %v481, 7
      %v1253 = vmul.f32 %v1037, %v1252
      %v1254 = vmul.f32 %v1038, %v1252
      %v1255 = vadd.f32 %v1250, %v1253
      %v1256 = vadd.f32 %v1251, %v1254
      %v1257 = vperm.slane %v482, 0
      %v1258 = vmul.f32 %v932, %v1257
      %v1259 = vmul.f32 %v933, %v1257
      %v1260 = vperm.slane %v482, 1
      %v1261 = vmul.f32 %v939, %v1260
      %v1262 = vmul.f32 %v940, %v1260
      %v1263 = vadd.f32 %v1258, %v1261
      %v1264 = vadd.f32 %v1259, %v1262
      %v1265 = vperm.slane %v482, 2
      %v1266 = vmul.f32 %v946, %v1265
      %v1267 = vmul.f32 %v947, %v1265
      %v1268 = vadd.f32 %v1263, %v1266
      %v1269 = vadd.f32 %v1264, %v1267
      %v1270 = vperm.slane %v482, 3
      %v1271 = vmul.f32 %v953, %v1270
      %v1272 = vmul.f32 %v954, %v1270
      %v1273 = vadd.f32 %v1268, %v1271
      %v1274 = vadd.f32 %v1269, %v1272
      %v1275 = vperm.slane %v482, 4
      %v1276 = vmul.f32 %v960, %v1275
      %v1277 = vmul.f32 %v961, %v1275
      %v1278 = vadd.f32 %v1273, %v1276
      %v1279 = vadd.f32 %v1274, %v1277
      %v1280 = vperm.slane %v482, 5
      %v1281 = vmul.f32 %v967, %v1280
      %v1282 = vmul.f32 %v968, %v1280
      %v1283 = vadd.f32 %v1278, %v1281
      %v1284 = vadd.f32 %v1279, %v1282
      %v1285 = vperm.slane %v482, 6
      %v1286 = vmul.f32 %v974, %v1285
      %v1287 = vmul.f32 %v975, %v1285
      %v1288 = vadd.f32 %v1283, %v1286
      %v1289 = vadd.f32 %v1284, %v1287
      %v1290 = vperm.slane %v482, 7
      %v1291 = vmul.f32 %v981, %v1290
      %v1292 = vmul.f32 %v982, %v1290
      %v1293 = vadd.f32 %v1288, %v1291
      %v1294 = vadd.f32 %v1289, %v1292
      %v1295 = vperm.slane %v483, 0
      %v1296 = vmul.f32 %v988, %v1295
      %v1297 = vmul.f32 %v989, %v1295
      %v1298 = vadd.f32 %v1293, %v1296
      %v1299 = vadd.f32 %v1294, %v1297
      %v1300 = vperm.slane %v483, 1
      %v1301 = vmul.f32 %v995, %v1300
      %v1302 = vmul.f32 %v996, %v1300
      %v1303 = vadd.f32 %v1298, %v1301
      %v1304 = vadd.f32 %v1299, %v1302
      %v1305 = vperm.slane %v483, 2
      %v1306 = vmul.f32 %v1002, %v1305
      %v1307 = vmul.f32 %v1003, %v1305
      %v1308 = vadd.f32 %v1303, %v1306
      %v1309 = vadd.f32 %v1304, %v1307
      %v1310 = vperm.slane %v483, 3
      %v1311 = vmul.f32 %v1009, %v1310
      %v1312 = vmul.f32 %v1010, %v1310
      %v1313 = vadd.f32 %v1308, %v1311
      %v1314 = vadd.f32 %v1309, %v1312
      %v1315 = vperm.slane %v483, 4
      %v1316 = vmul.f32 %v1016, %v1315
      %v1317 = vmul.f32 %v1017, %v1315
      %v1318 = vadd.f32 %v1313, %v1316
      %v1319 = vadd.f32 %v1314, %v1317
      %v1320 = vperm.slane %v483, 5
      %v1321 = vmul.f32 %v1023, %v1320
      %v1322 = vmul.f32 %v1024, %v1320
      %v1323 = vadd.f32 %v1318, %v1321
      %v1324 = vadd.f32 %v1319, %v1322
      %v1325 = vperm.slane %v483, 6
      %v1326 = vmul.f32 %v1030, %v1325
      %v1327 = vmul.f32 %v1031, %v1325
      %v1328 = vadd.f32 %v1323, %v1326
      %v1329 = vadd.f32 %v1324, %v1327
      %v1330 = vperm.slane %v483, 7
      %v1331 = vmul.f32 %v1037, %v1330
      %v1332 = vmul.f32 %v1038, %v1330
      %v1333 = vadd.f32 %v1328, %v1331
      %v1334 = vadd.f32 %v1329, %v1332
      %v1335 = vperm.slane %v484, 0
      %v1336 = vmul.f32 %v932, %v1335
      %v1337 = vmul.f32 %v933, %v1335
      %v1338 = vperm.slane %v484, 1
      %v1339 = vmul.f32 %v939, %v1338
      %v1340 = vmul.f32 %v940, %v1338
      %v1341 = vadd.f32 %v1336, %v1339
      %v1342 = vadd.f32 %v1337, %v1340
      %v1343 = vperm.slane %v484, 2
      %v1344 = vmul.f32 %v946, %v1343
      %v1345 = vmul.f32 %v947, %v1343
      %v1346 = vadd.f32 %v1341, %v1344
      %v1347 = vadd.f32 %v1342, %v1345
      %v1348 = vperm.slane %v484, 3
      %v1349 = vmul.f32 %v953, %v1348
      %v1350 = vmul.f32 %v954, %v1348
      %v1351 = vadd.f32 %v1346, %v1349
      %v1352 = vadd.f32 %v1347, %v1350
      %v1353 = vperm.slane %v484, 4
      %v1354 = vmul.f32 %v960, %v1353
      %v1355 = vmul.f32 %v961, %v1353
      %v1356 = vadd.f32 %v1351, %v1354
      %v1357 = vadd.f32 %v1352, %v1355
      %v1358 = vperm.slane %v484, 5
      %v1359 = vmul.f32 %v967, %v1358
      %v1360 = vmul.f32 %v968, %v1358
      %v1361 = vadd.f32 %v1356, %v1359
      %v1362 = vadd.f32 %v1357, %v1360
      %v1363 = vperm.slane %v484, 6
      %v1364 = vmul.f32 %v974, %v1363
      %v1365 = vmul.f32 %v975, %v1363
      %v1366 = vadd.f32 %v1361, %v1364
      %v1367 = vadd.f32 %v1362, %v1365
      %v1368 = vperm.slane %v484, 7
      %v1369 = vmul.f32 %v981, %v1368
      %v1370 = vmul.f32 %v982, %v1368
      %v1371 = vadd.f32 %v1366, %v1369
      %v1372 = vadd.f32 %v1367, %v1370
      %v1373 = vperm.slane %v485, 0
      %v1374 = vmul.f32 %v988, %v1373
      %v1375 = vmul.f32 %v989, %v1373
      %v1376 = vadd.f32 %v1371, %v1374
      %v1377 = vadd.f32 %v1372, %v1375
      %v1378 = vperm.slane %v485, 1
      %v1379 = vmul.f32 %v995, %v1378
      %v1380 = vmul.f32 %v996, %v1378
      %v1381 = vadd.f32 %v1376, %v1379
      %v1382 = vadd.f32 %v1377, %v1380
      %v1383 = vperm.slane %v485, 2
      %v1384 = vmul.f32 %v1002, %v1383
      %v1385 = vmul.f32 %v1003, %v1383
      %v1386 = vadd.f32 %v1381, %v1384
      %v1387 = vadd.f32 %v1382, %v1385
      %v1388 = vperm.slane %v485, 3
      %v1389 = vmul.f32 %v1009, %v1388
      %v1390 = vmul.f32 %v1010, %v1388
      %v1391 = vadd.f32 %v1386, %v1389
      %v1392 = vadd.f32 %v1387, %v1390
      %v1393 = vperm.slane %v485, 4
      %v1394 = vmul.f32 %v1016, %v1393
      %v1395 = vmul.f32 %v1017, %v1393
      %v1396 = vadd.f32 %v1391, %v1394
      %v1397 = vadd.f32 %v1392, %v1395
      %v1398 = vperm.slane %v485, 5
      %v1399 = vmul.f32 %v1023, %v1398
      %v1400 = vmul.f32 %v1024, %v1398
      %v1401 = vadd.f32 %v1396, %v1399
      %v1402 = vadd.f32 %v1397, %v1400
      %v1403 = vperm.slane %v485, 6
      %v1404 = vmul.f32 %v1030, %v1403
      %v1405 = vmul.f32 %v1031, %v1403
      %v1406 = vadd.f32 %v1401, %v1404
      %v1407 = vadd.f32 %v1402, %v1405
      %v1408 = vperm.slane %v485, 7
      %v1409 = vmul.f32 %v1037, %v1408
      %v1410 = vmul.f32 %v1038, %v1408
      %v1411 = vadd.f32 %v1406, %v1409
      %v1412 = vadd.f32 %v1407, %v1410
      %v1413 = vperm.slane %v486, 0
      %v1414 = vmul.f32 %v932, %v1413
      %v1415 = vmul.f32 %v933, %v1413
      %v1416 = vperm.slane %v486, 1
      %v1417 = vmul.f32 %v939, %v1416
      %v1418 = vmul.f32 %v940, %v1416
      %v1419 = vadd.f32 %v1414, %v1417
      %v1420 = vadd.f32 %v1415, %v1418
      %v1421 = vperm.slane %v486, 2
      %v1422 = vmul.f32 %v946, %v1421
      %v1423 = vmul.f32 %v947, %v1421
      %v1424 = vadd.f32 %v1419, %v1422
      %v1425 = vadd.f32 %v1420, %v1423
      %v1426 = vperm.slane %v486, 3
      %v1427 = vmul.f32 %v953, %v1426
      %v1428 = vmul.f32 %v954, %v1426
      %v1429 = vadd.f32 %v1424, %v1427
      %v1430 = vadd.f32 %v1425, %v1428
      %v1431 = vperm.slane %v486, 4
      %v1432 = vmul.f32 %v960, %v1431
      %v1433 = vmul.f32 %v961, %v1431
      %v1434 = vadd.f32 %v1429, %v1432
      %v1435 = vadd.f32 %v1430, %v1433
      %v1436 = vperm.slane %v486, 5
      %v1437 = vmul.f32 %v967, %v1436
      %v1438 = vmul.f32 %v968, %v1436
      %v1439 = vadd.f32 %v1434, %v1437
      %v1440 = vadd.f32 %v1435, %v1438
      %v1441 = vperm.slane %v486, 6
      %v1442 = vmul.f32 %v974, %v1441
      %v1443 = vmul.f32 %v975, %v1441
      %v1444 = vadd.f32 %v1439, %v1442
      %v1445 = vadd.f32 %v1440, %v1443
      %v1446 = vperm.slane %v486, 7
      %v1447 = vmul.f32 %v981, %v1446
      %v1448 = vmul.f32 %v982, %v1446
      %v1449 = vadd.f32 %v1444, %v1447
      %v1450 = vadd.f32 %v1445, %v1448
      %v1451 = vperm.slane %v487, 0
      %v1452 = vmul.f32 %v988, %v1451
      %v1453 = vmul.f32 %v989, %v1451
      %v1454 = vadd.f32 %v1449, %v1452
      %v1455 = vadd.f32 %v1450, %v1453
      %v1456 = vperm.slane %v487, 1
      %v1457 = vmul.f32 %v995, %v1456
      %v1458 = vmul.f32 %v996, %v1456
      %v1459 = vadd.f32 %v1454, %v1457
      %v1460 = vadd.f32 %v1455, %v1458
      %v1461 = vperm.slane %v487, 2
      %v1462 = vmul.f32 %v1002, %v1461
      %v1463 = vmul.f32 %v1003, %v1461
      %v1464 = vadd.f32 %v1459, %v1462
      %v1465 = vadd.f32 %v1460, %v1463
      %v1466 = vperm.slane %v487, 3
      %v1467 = vmul.f32 %v1009, %v1466
      %v1468 = vmul.f32 %v1010, %v1466
      %v1469 = vadd.f32 %v1464, %v1467
      %v1470 = vadd.f32 %v1465, %v1468
      %v1471 = vperm.slane %v487, 4
      %v1472 = vmul.f32 %v1016, %v1471
      %v1473 = vmul.f32 %v1017, %v1471
      %v1474 = vadd.f32 %v1469, %v1472
      %v1475 = vadd.f32 %v1470, %v1473
      %v1476 = vperm.slane %v487, 5
      %v1477 = vmul.f32 %v1023, %v1476
      %v1478 = vmul.f32 %v1024, %v1476
      %v1479 = vadd.f32 %v1474, %v1477
      %v1480 = vadd.f32 %v1475, %v1478
      %v1481 = vperm.slane %v487, 6
      %v1482 = vmul.f32 %v1030, %v1481
      %v1483 = vmul.f32 %v1031, %v1481
      %v1484 = vadd.f32 %v1479, %v1482
      %v1485 = vadd.f32 %v1480, %v1483
      %v1486 = vperm.slane %v487, 7
      %v1487 = vmul.f32 %v1037, %v1486
      %v1488 = vmul.f32 %v1038, %v1486
      %v1489 = vadd.f32 %v1484, %v1487
      %v1490 = vadd.f32 %v1485, %v1488
      %v1491 = vperm.slane %v488, 0
      %v1492 = vmul.f32 %v932, %v1491
      %v1493 = vmul.f32 %v933, %v1491
      %v1494 = vperm.slane %v488, 1
      %v1495 = vmul.f32 %v939, %v1494
      %v1496 = vmul.f32 %v940, %v1494
      %v1497 = vadd.f32 %v1492, %v1495
      %v1498 = vadd.f32 %v1493, %v1496
      %v1499 = vperm.slane %v488, 2
      %v1500 = vmul.f32 %v946, %v1499
      %v1501 = vmul.f32 %v947, %v1499
      %v1502 = vadd.f32 %v1497, %v1500
      %v1503 = vadd.f32 %v1498, %v1501
      %v1504 = vperm.slane %v488, 3
      %v1505 = vmul.f32 %v953, %v1504
      %v1506 = vmul.f32 %v954, %v1504
      %v1507 = vadd.f32 %v1502, %v1505
      %v1508 = vadd.f32 %v1503, %v1506
      %v1509 = vperm.slane %v488, 4
      %v1510 = vmul.f32 %v960, %v1509
      %v1511 = vmul.f32 %v961, %v1509
      %v1512 = vadd.f32 %v1507, %v1510
      %v1513 = vadd.f32 %v1508, %v1511
      %v1514 = vperm.slane %v488, 5
      %v1515 = vmul.f32 %v967, %v1514
      %v1516 = vmul.f32 %v968, %v1514
      %v1517 = vadd.f32 %v1512, %v1515
      %v1518 = vadd.f32 %v1513, %v1516
      %v1519 = vperm.slane %v488, 6
      %v1520 = vmul.f32 %v974, %v1519
      %v1521 = vmul.f32 %v975, %v1519
      %v1522 = vadd.f32 %v1517, %v1520
      %v1523 = vadd.f32 %v1518, %v1521
      %v1524 = vperm.slane %v488, 7
      %v1525 = vmul.f32 %v981, %v1524
      %v1526 = vmul.f32 %v982, %v1524
      %v1527 = vadd.f32 %v1522, %v1525
      %v1528 = vadd.f32 %v1523, %v1526
      %v1529 = vperm.slane %v489, 0
      %v1530 = vmul.f32 %v988, %v1529
      %v1531 = vmul.f32 %v989, %v1529
      %v1532 = vadd.f32 %v1527, %v1530
      %v1533 = vadd.f32 %v1528, %v1531
      %v1534 = vperm.slane %v489, 1
      %v1535 = vmul.f32 %v995, %v1534
      %v1536 = vmul.f32 %v996, %v1534
      %v1537 = vadd.f32 %v1532, %v1535
      %v1538 = vadd.f32 %v1533, %v1536
      %v1539 = vperm.slane %v489, 2
      %v1540 = vmul.f32 %v1002, %v1539
      %v1541 = vmul.f32 %v1003, %v1539
      %v1542 = vadd.f32 %v1537, %v1540
      %v1543 = vadd.f32 %v1538, %v1541
      %v1544 = vperm.slane %v489, 3
      %v1545 = vmul.f32 %v1009, %v1544
      %v1546 = vmul.f32 %v1010, %v1544
      %v1547 = vadd.f32 %v1542, %v1545
      %v1548 = vadd.f32 %v1543, %v1546
      %v1549 = vperm.slane %v489, 4
      %v1550 = vmul.f32 %v1016, %v1549
      %v1551 = vmul.f32 %v1017, %v1549
      %v1552 = vadd.f32 %v1547, %v1550
      %v1553 = vadd.f32 %v1548, %v1551
      %v1554 = vperm.slane %v489, 5
      %v1555 = vmul.f32 %v1023, %v1554
      %v1556 = vmul.f32 %v1024, %v1554
      %v1557 = vadd.f32 %v1552, %v1555
      %v1558 = vadd.f32 %v1553, %v1556
      %v1559 = vperm.slane %v489, 6
      %v1560 = vmul.f32 %v1030, %v1559
      %v1561 = vmul.f32 %v1031, %v1559
      %v1562 = vadd.f32 %v1557, %v1560
      %v1563 = vadd.f32 %v1558, %v1561
      %v1564 = vperm.slane %v489, 7
      %v1565 = vmul.f32 %v1037, %v1564
      %v1566 = vmul.f32 %v1038, %v1564
      %v1567 = vadd.f32 %v1562, %v1565
      %v1568 = vadd.f32 %v1563, %v1566
      %v1569 = vmul.f32 %v478, %v478
      %v1570 = vmul.f32 %v479, %v479
      %v1571 = vmul.f32 %v480, %v480
      %v1572 = vmul.f32 %v481, %v481
      %v1573 = vadd.f32 %v1569, %v1571
      %v1574 = vadd.f32 %v1570, %v1572
      %v1575 = vmul.f32 %v482, %v482
      %v1576 = vmul.f32 %v483, %v483
      %v1577 = vadd.f32 %v1573, %v1575
      %v1578 = vadd.f32 %v1574, %v1576
      %v1579 = vrsqrt.pop %v1577
      %v1580 = vmul.f32 %v1579, %v1577
      %v1581 = vmul.f32 %v1580, %v1579
      %v1582 = vmul.f32 0.5, %v1581
      %v1583 = vsub.f32 1.5, %v1582
      %v1584 = vmul.f32 %v1579, %v1583
      %vm1585 = vweird.f32 %v1577
      %vm1586 = vweird.f32 %v1579
      %vm1587 = vmor %vm1585, %vm1586
      %v1588 = vsel %vm1587, %v1579, %v1584
      %v1589 = vrsqrt.pop %v1578
      %v1590 = vmul.f32 %v1589, %v1578
      %v1591 = vmul.f32 %v1590, %v1589
      %v1592 = vmul.f32 0.5, %v1591
      %v1593 = vsub.f32 1.5, %v1592
      %v1594 = vmul.f32 %v1589, %v1593
      %vm1595 = vweird.f32 %v1578
      %vm1596 = vweird.f32 %v1589
      %vm1597 = vmor %vm1595, %vm1596
      %v1598 = vsel %vm1597, %v1589, %v1594
      %vm1599 = vcmp.gt.f32.partialorder %v1577, 0.0
      %vm1600 = vcmp.gt.f32.partialorder %v1578, 0.0
      %v1601 = vmul.f32 %v478, %v1588
      %v1602 = vmul.f32 %v479, %v1598
      %v1603 = vsel %vm1599, %v1601, 0.0
      %v1604 = vsel %vm1600, %v1602, 0.0
      %v1605 = vmul.f32 %v480, %v1588
      %v1606 = vmul.f32 %v481, %v1598
      %v1607 = vsel %vm1599, %v1605, 0.0
      %v1608 = vsel %vm1600, %v1606, 0.0
      %v1609 = vmul.f32 %v482, %v1588
      %v1610 = vmul.f32 %v483, %v1598
      %v1611 = vsel %vm1599, %v1609, 0.0
      %v1612 = vsel %vm1600, %v1610, 0.0
      %v1613 = vrsqrt.pop %v1577
      %v1614 = vmul.f32 %v1613, %v1577
      %v1615 = vmul.f32 %v1614, %v1613
      %v1616 = vmul.f32 0.5, %v1615
      %v1617 = vsub.f32 1.5, %v1616
      %v1618 = vmul.f32 %v1613, %v1617
      %v1619 = vmul.f32 %v1577, %v1618
      %vm1620 = vcmp.eq.f32.partialorder %v1577, inf
      %v1621 = vsel %vm1620, %v1577, %v1619
      %vm1622 = vcmp.eq.f32.partialorder %v1577, 0.0
      %v1623 = vand.u32 %v1577, 2147483648
      %v1624 = vsel %vm1622, %v1623, %v1621
      %v1625 = vrsqrt.pop %v1578
      %v1626 = vmul.f32 %v1625, %v1578
      %v1627 = vmul.f32 %v1626, %v1625
      %v1628 = vmul.f32 0.5, %v1627
      %v1629 = vsub.f32 1.5, %v1628
      %v1630 = vmul.f32 %v1625, %v1629
      %v1631 = vmul.f32 %v1578, %v1630
      %vm1632 = vcmp.eq.f32.partialorder %v1578, inf
      %v1633 = vsel %vm1632, %v1578, %v1631
      %vm1634 = vcmp.eq.f32.partialorder %v1578, 0.0
      %v1635 = vand.u32 %v1578, 2147483648
      %v1636 = vsel %vm1634, %v1635, %v1633
      %v1637 = vsub.f32 -3.0, %v1099
      %v1638 = vsub.f32 -3.0, %v1100
      %v1639 = vsub.f32 %v681, %v1099
      %v1640 = vsub.f32 %v682, %v1100
      %v1641 = vsel %vm921, %v1637, %v1639
      %v1642 = vsel %vm922, %v1638, %v1640
      %v1643 = vmul.f32 %v1603, %v491
      %v1644 = vmul.f32 %v1604, %v491
      %v1645 = vmul.f32 %v1607, %v494
      %v1646 = vmul.f32 %v1608, %v494
      %v1647 = vadd.f32 %v1643, %v1645
      %v1648 = vadd.f32 %v1644, %v1646
      %v1649 = vmul.f32 %v1611, %v499
      %v1650 = vmul.f32 %v1612, %v499
      %v1651 = vadd.f32 %v1647, %v1649
      %v1652 = vadd.f32 %v1648, %v1650
      %v1653 = vmul.f32 %v1603, %v484
      %v1654 = vmul.f32 %v1604, %v485
      %v1655 = vmul.f32 %v1607, %v486
      %v1656 = vmul.f32 %v1608, %v487
      %v1657 = vadd.f32 %v1653, %v1655
      %v1658 = vadd.f32 %v1654, %v1656
      %v1659 = vmul.f32 %v1611, %v488
      %v1660 = vmul.f32 %v1612, %v489
      %v1661 = vadd.f32 %v1657, %v1659
      %v1662 = vadd.f32 %v1658, %v1660
      %v1663 = vmul.f32 %v484, %v491
      %v1664 = vmul.f32 %v485, %v491
      %v1665 = vmul.f32 %v486, %v494
      %v1666 = vmul.f32 %v487, %v494
      %v1667 = vadd.f32 %v1663, %v1665
      %v1668 = vadd.f32 %v1664, %v1666
      %v1669 = vmul.f32 %v488, %v499
      %v1670 = vmul.f32 %v489, %v499
      %v1671 = vadd.f32 %v1667, %v1669
      %v1672 = vadd.f32 %v1668, %v1670
      %v1673 = vmax.f32 %v1671, -0.9999999
      %v1674 = vmax.f32 %v1672, -0.9999999
      %v1675 = vmin.f32 %v1673, 0.9999999
      %v1676 = vmin.f32 %v1674, 0.9999999
      %v1677 = vand.u32 2147483647, %v1675
      %v1678 = vand.u32 2147483647, %v1676
      %vm1679 = vcmp.gt.f32.partialorder %v1677, 0.5
      %vm1680 = vcmp.gt.f32.partialorder %v1678, 0.5
      %v1681 = vsub.f32 1.0, %v1677
      %v1682 = vsub.f32 1.0, %v1678
      %v1683 = vmul.f32 %v1681, 0.5
      %v1684 = vmul.f32 %v1682, 0.5
      %v1685 = vmul.f32 %v1677, %v1677
      %v1686 = vmul.f32 %v1678, %v1678
      %v1687 = vsel %vm1679, %v1683, %v1685
      %v1688 = vsel %vm1680, %v1684, %v1686
      %v1689 = vrsqrt.pop %v1683
      %v1690 = vmul.f32 %v1689, %v1683
      %v1691 = vmul.f32 %v1690, %v1689
      %v1692 = vmul.f32 0.5, %v1691
      %v1693 = vsub.f32 1.5, %v1692
      %v1694 = vmul.f32 %v1689, %v1693
      %v1695 = vmul.f32 %v1683, %v1694
      %vm1696 = vcmp.eq.f32.partialorder %v1683, inf
      %v1697 = vsel %vm1696, %v1683, %v1695
      %vm1698 = vcmp.eq.f32.partialorder %v1683, 0.0
      %v1699 = vand.u32 %v1683, 2147483648
      %v1700 = vsel %vm1698, %v1699, %v1697
      %v1701 = vrsqrt.pop %v1684
      %v1702 = vmul.f32 %v1701, %v1684
      %v1703 = vmul.f32 %v1702, %v1701
      %v1704 = vmul.f32 0.5, %v1703
      %v1705 = vsub.f32 1.5, %v1704
      %v1706 = vmul.f32 %v1701, %v1705
      %v1707 = vmul.f32 %v1684, %v1706
      %vm1708 = vcmp.eq.f32.partialorder %v1684, inf
      %v1709 = vsel %vm1708, %v1684, %v1707
      %vm1710 = vcmp.eq.f32.partialorder %v1684, 0.0
      %v1711 = vand.u32 %v1684, 2147483648
      %v1712 = vsel %vm1710, %v1711, %v1709
      %v1713 = vsel %vm1679, %v1700, %v1677
      %v1714 = vsel %vm1680, %v1712, %v1678
      %v1715 = vmul.f32 %v1687, 0.0421632
      %v1716 = vmul.f32 %v1688, 0.0421632
      %v1717 = vadd.f32 %v1715, 0.024181312
      %v1718 = vadd.f32 %v1716, 0.024181312
      %v1719 = vmul.f32 %v1717, %v1687
      %v1720 = vmul.f32 %v1718, %v1688
      %v1721 = vadd.f32 %v1719, 0.045470025
      %v1722 = vadd.f32 %v1720, 0.045470025
      %v1723 = vmul.f32 %v1721, %v1687
      %v1724 = vmul.f32 %v1722, %v1688
      %v1725 = vadd.f32 %v1723, 0.074953005
      %v1726 = vadd.f32 %v1724, 0.074953005
      %v1727 = vmul.f32 %v1725, %v1687
      %v1728 = vmul.f32 %v1726, %v1688
      %v1729 = vadd.f32 %v1727, 0.16666752
      %v1730 = vadd.f32 %v1728, 0.16666752
      %v1731 = vmul.f32 %v1713, %v1687
      %v1732 = vmul.f32 %v1714, %v1688
      %v1733 = vmul.f32 %v1731, %v1729
      %v1734 = vmul.f32 %v1732, %v1730
      %v1735 = vadd.f32 %v1713, %v1733
      %v1736 = vadd.f32 %v1714, %v1734
      %v1737 = vmul.f32 %v1735, 2.0
      %v1738 = vmul.f32 %v1736, 2.0
      %v1739 = vsub.f32 1.5707964, %v1737
      %v1740 = vsub.f32 1.5707964, %v1738
      %v1741 = vsel %vm1679, %v1739, %v1735
      %v1742 = vsel %vm1680, %v1740, %v1736
      %vm1743 = vcmp.lt.f32.partialorder %v1675, 0.0
      %vm1744 = vcmp.lt.f32.partialorder %v1676, 0.0
      %v1745 = vsub.f32 0.0, %v1741
      %v1746 = vsub.f32 0.0, %v1742
      %v1747 = vsel %vm1743, %v1745, %v1741
      %v1748 = vsel %vm1744, %v1746, %v1742
      %v1749 = vsub.f32 1.5707964, %v1747
      %v1750 = vsub.f32 1.5707964, %v1748
      %vm1751 = vcmp.lt.f32.partialorder %v1651, %v1661
      %vm1752 = vcmp.lt.f32.partialorder %v1652, %v1662
      %v1753 = vsel %vm1751, 1.0, -1.0
      %v1754 = vsel %vm1752, 1.0, -1.0
      %v1755 = vmul.f32 %v1753, %v1749
      %v1756 = vmul.f32 %v1754, %v1750
      %v1757 = vsub.f32 %v478, %v1177
      %v1758 = vsub.f32 %v479, %v1178
      %v1759 = vsub.f32 %v480, %v1255
      %v1760 = vsub.f32 %v481, %v1256
      %v1761 = vsub.f32 %v482, %v1333
      %v1762 = vsub.f32 %v483, %v1334
      %v1763 = vmul.f32 %v1757, %v1757
      %v1764 = vmul.f32 %v1758, %v1758
      %v1765 = vmul.f32 %v1759, %v1759
      %v1766 = vmul.f32 %v1760, %v1760
      %v1767 = vadd.f32 %v1763, %v1765
      %v1768 = vadd.f32 %v1764, %v1766
      %v1769 = vmul.f32 %v1761, %v1761
      %v1770 = vmul.f32 %v1762, %v1762
      %v1771 = vadd.f32 %v1767, %v1769
      %v1772 = vadd.f32 %v1768, %v1770
      %v1773 = vrsqrt.pop %v1771
      %v1774 = vmul.f32 %v1773, %v1771
      %v1775 = vmul.f32 %v1774, %v1773
      %v1776 = vmul.f32 0.5, %v1775
      %v1777 = vsub.f32 1.5, %v1776
      %v1778 = vmul.f32 %v1773, %v1777
      %vm1779 = vweird.f32 %v1771
      %vm1780 = vweird.f32 %v1773
      %vm1781 = vmor %vm1779, %vm1780
      %v1782 = vsel %vm1781, %v1773, %v1778
      %v1783 = vrsqrt.pop %v1772
      %v1784 = vmul.f32 %v1783, %v1772
      %v1785 = vmul.f32 %v1784, %v1783
      %v1786 = vmul.f32 0.5, %v1785
      %v1787 = vsub.f32 1.5, %v1786
      %v1788 = vmul.f32 %v1783, %v1787
      %vm1789 = vweird.f32 %v1772
      %vm1790 = vweird.f32 %v1783
      %vm1791 = vmor %vm1789, %vm1790
      %v1792 = vsel %vm1791, %v1783, %v1788
      %vm1793 = vcmp.gt.f32.partialorder %v1771, 0.0
      %vm1794 = vcmp.gt.f32.partialorder %v1772, 0.0
      %v1795 = vmul.f32 %v1757, %v1782
      %v1796 = vmul.f32 %v1758, %v1792
      %v1797 = vsel %vm1793, %v1795, 0.0
      %v1798 = vsel %vm1794, %v1796, 0.0
      %v1799 = vmul.f32 %v1759, %v1782
      %v1800 = vmul.f32 %v1760, %v1792
      %v1801 = vsel %vm1793, %v1799, 0.0
      %v1802 = vsel %vm1794, %v1800, 0.0
      %v1803 = vmul.f32 %v1761, %v1782
      %v1804 = vmul.f32 %v1762, %v1792
      %v1805 = vsel %vm1793, %v1803, 0.0
      %v1806 = vsel %vm1794, %v1804, 0.0
      %v1807 = vmul.f32 %v1797, %v484
      %v1808 = vmul.f32 %v1798, %v485
      %v1809 = vmul.f32 %v1801, %v486
      %v1810 = vmul.f32 %v1802, %v487
      %v1811 = vadd.f32 %v1807, %v1809
      %v1812 = vadd.f32 %v1808, %v1810
      %v1813 = vmul.f32 %v1805, %v488
      %v1814 = vmul.f32 %v1806, %v489
      %v1815 = vadd.f32 %v1811, %v1813
      %v1816 = vadd.f32 %v1812, %v1814
      %v1817 = vmul.f32 %v1797, %v1411
      %v1818 = vmul.f32 %v1798, %v1412
      %v1819 = vmul.f32 %v1801, %v1489
      %v1820 = vmul.f32 %v1802, %v1490
      %v1821 = vadd.f32 %v1817, %v1819
      %v1822 = vadd.f32 %v1818, %v1820
      %v1823 = vmul.f32 %v1805, %v1567
      %v1824 = vmul.f32 %v1806, %v1568
      %v1825 = vadd.f32 %v1821, %v1823
      %v1826 = vadd.f32 %v1822, %v1824
      %v1827 = vmul.f32 %v484, %v1411
      %v1828 = vmul.f32 %v485, %v1412
      %v1829 = vmul.f32 %v486, %v1489
      %v1830 = vmul.f32 %v487, %v1490
      %v1831 = vadd.f32 %v1827, %v1829
      %v1832 = vadd.f32 %v1828, %v1830
      %v1833 = vmul.f32 %v488, %v1567
      %v1834 = vmul.f32 %v489, %v1568
      %v1835 = vadd.f32 %v1831, %v1833
      %v1836 = vadd.f32 %v1832, %v1834
      %v1837 = vmax.f32 %v1835, -0.9999999
      %v1838 = vmax.f32 %v1836, -0.9999999
      %v1839 = vmin.f32 %v1837, 0.9999999
      %v1840 = vmin.f32 %v1838, 0.9999999
      %v1841 = vand.u32 2147483647, %v1839
      %v1842 = vand.u32 2147483647, %v1840
      %vm1843 = vcmp.gt.f32.partialorder %v1841, 0.5
      %vm1844 = vcmp.gt.f32.partialorder %v1842, 0.5
      %v1845 = vsub.f32 1.0, %v1841
      %v1846 = vsub.f32 1.0, %v1842
      %v1847 = vmul.f32 %v1845, 0.5
      %v1848 = vmul.f32 %v1846, 0.5
      %v1849 = vmul.f32 %v1841, %v1841
      %v1850 = vmul.f32 %v1842, %v1842
      %v1851 = vsel %vm1843, %v1847, %v1849
      %v1852 = vsel %vm1844, %v1848, %v1850
      %v1853 = vrsqrt.pop %v1847
      %v1854 = vmul.f32 %v1853, %v1847
      %v1855 = vmul.f32 %v1854, %v1853
      %v1856 = vmul.f32 0.5, %v1855
      %v1857 = vsub.f32 1.5, %v1856
      %v1858 = vmul.f32 %v1853, %v1857
      %v1859 = vmul.f32 %v1847, %v1858
      %vm1860 = vcmp.eq.f32.partialorder %v1847, inf
      %v1861 = vsel %vm1860, %v1847, %v1859
      %vm1862 = vcmp.eq.f32.partialorder %v1847, 0.0
      %v1863 = vand.u32 %v1847, 2147483648
      %v1864 = vsel %vm1862, %v1863, %v1861
      %v1865 = vrsqrt.pop %v1848
      %v1866 = vmul.f32 %v1865, %v1848
      %v1867 = vmul.f32 %v1866, %v1865
      %v1868 = vmul.f32 0.5, %v1867
      %v1869 = vsub.f32 1.5, %v1868
      %v1870 = vmul.f32 %v1865, %v1869
      %v1871 = vmul.f32 %v1848, %v1870
      %vm1872 = vcmp.eq.f32.partialorder %v1848, inf
      %v1873 = vsel %vm1872, %v1848, %v1871
      %vm1874 = vcmp.eq.f32.partialorder %v1848, 0.0
      %v1875 = vand.u32 %v1848, 2147483648
      %v1876 = vsel %vm1874, %v1875, %v1873
      %v1877 = vsel %vm1843, %v1864, %v1841
      %v1878 = vsel %vm1844, %v1876, %v1842
      %v1879 = vmul.f32 %v1851, 0.0421632
      %v1880 = vmul.f32 %v1852, 0.0421632
      %v1881 = vadd.f32 %v1879, 0.024181312
      %v1882 = vadd.f32 %v1880, 0.024181312
      %v1883 = vmul.f32 %v1881, %v1851
      %v1884 = vmul.f32 %v1882, %v1852
      %v1885 = vadd.f32 %v1883, 0.045470025
      %v1886 = vadd.f32 %v1884, 0.045470025
      %v1887 = vmul.f32 %v1885, %v1851
      %v1888 = vmul.f32 %v1886, %v1852
      %v1889 = vadd.f32 %v1887, 0.074953005
      %v1890 = vadd.f32 %v1888, 0.074953005
      %v1891 = vmul.f32 %v1889, %v1851
      %v1892 = vmul.f32 %v1890, %v1852
      %v1893 = vadd.f32 %v1891, 0.16666752
      %v1894 = vadd.f32 %v1892, 0.16666752
      %v1895 = vmul.f32 %v1877, %v1851
      %v1896 = vmul.f32 %v1878, %v1852
      %v1897 = vmul.f32 %v1895, %v1893
      %v1898 = vmul.f32 %v1896, %v1894
      %v1899 = vadd.f32 %v1877, %v1897
      %v1900 = vadd.f32 %v1878, %v1898
      %v1901 = vmul.f32 %v1899, 2.0
      %v1902 = vmul.f32 %v1900, 2.0
      %v1903 = vsub.f32 1.5707964, %v1901
      %v1904 = vsub.f32 1.5707964, %v1902
      %v1905 = vsel %vm1843, %v1903, %v1899
      %v1906 = vsel %vm1844, %v1904, %v1900
      %vm1907 = vcmp.lt.f32.partialorder %v1839, 0.0
      %vm1908 = vcmp.lt.f32.partialorder %v1840, 0.0
      %v1909 = vsub.f32 0.0, %v1905
      %v1910 = vsub.f32 0.0, %v1906
      %v1911 = vsel %vm1907, %v1909, %v1905
      %v1912 = vsel %vm1908, %v1910, %v1906
      %v1913 = vsub.f32 1.5707964, %v1911
      %v1914 = vsub.f32 1.5707964, %v1912
      %vm1915 = vcmp.lt.f32.partialorder %v1815, %v1825
      %vm1916 = vcmp.lt.f32.partialorder %v1816, %v1826
      %v1917 = vsel %vm1915, 1.0, -1.0
      %v1918 = vsel %vm1916, 1.0, -1.0
      %v1919 = vmul.f32 %v1917, %v1913
      %v1920 = vmul.f32 %v1918, %v1914
      %v1921 = vld [vmem:[%s3] sm:$0xf]
      %v1922 = vld [vmem:[%s3 + $0x4] sm:$0xf]
      %v1923 = vld [vmem:[%s3 + $0x8] sm:$0xf]
      %v1924 = vld [vmem:[%s3 + $0xc] sm:$0xf]
      %v1925 = vld [vmem:[%s3 + $0x10] sm:$0xf]
      %v1926 = vld [vmem:[%s3 + $0x14] sm:$0xf]
      %v1927 = vld [vmem:[%s3 + $0x18] sm:$0xf]
      %v1928 = vld [vmem:[%s3 + $0x1c] sm:$0xf]
      %v1929 = vld [vmem:[%s5] sm:$0xf]
      %v1930 = vld [vmem:[%s5 + $0x4] sm:$0xf]
      %v1931 = vld [vmem:[%s5 + $0x8] sm:$0xf]
      %v1932 = vld [vmem:[%s5 + $0xc] sm:$0xf]
      %v1933 = vld [vmem:[%s5 + $0x10] sm:$0xf]
      %v1934 = vld [vmem:[%s5 + $0x14] sm:$0xf]
      %v1935 = vld [vmem:[%s5 + $0x18] sm:$0xf]
      %v1936 = vld [vmem:[%s5 + $0x1c] sm:$0xf]
      %v1937 = vld [vmem:[%s5 + $0x20] sm:$0xf]
      %v1938 = vld [vmem:[%s5 + $0x24] sm:$0xf]
      %v1939 = vld [vmem:[%s5 + $0x28] sm:$0xf]
      %v1940 = vld [vmem:[%s5 + $0x2c] sm:$0xf]
      %v1941 = vld [vmem:[%s5 + $0x30] sm:$0xf]
      %v1942 = vld [vmem:[%s5 + $0x34] sm:$0xf]
      %v1943 = vld [vmem:[%s5 + $0x38] sm:$0xf]
      %v1944 = vld [vmem:[%s5 + $0x3c] sm:$0xf]
      %v1945 = vld [vmem:[%s7] sm:$0xf]
      %v1946 = vld [vmem:[%s7 + $0x4] sm:$0xf]
      %v1947 = vld [vmem:[%s7 + $0x8] sm:$0xf]
      %v1948 = vld [vmem:[%s7 + $0xc] sm:$0xf]
      %v1949 = vld [vmem:[%s7 + $0x10] sm:$0xf]
      %v1950 = vld [vmem:[%s7 + $0x14] sm:$0xf]
      %v1951 = vld [vmem:[%s7 + $0x18] sm:$0xf]
      %v1952 = vld [vmem:[%s7 + $0x1c] sm:$0xf]
      %v1953 = vld [vmem:[%s7 + $0x20] sm:$0xf]
      %v1954 = vld [vmem:[%s7 + $0x24] sm:$0xf]
      %v1955 = vld [vmem:[%s7 + $0x28] sm:$0xf]
      %v1956 = vld [vmem:[%s7 + $0x2c] sm:$0xf]
      %v1957 = vld [vmem:[%s7 + $0x30] sm:$0xf]
      %v1958 = vld [vmem:[%s7 + $0x34] sm:$0xf]
      %v1959 = vld [vmem:[%s7 + $0x38] sm:$0xf]
      %v1960 = vld [vmem:[%s7 + $0x3c] sm:$0xf]
      %v1961 = vld [vmem:[%s9] sm:$0xf]
      %v1962 = vld [vmem:[%s9 + $0x4] sm:$0xf]
      %v1963 = vld [vmem:[%s9 + $0x8] sm:$0xf]
      %v1964 = vld [vmem:[%s9 + $0xc] sm:$0xf]
      %v1965 = vld [vmem:[%s9 + $0x10] sm:$0xf]
      %v1966 = vld [vmem:[%s9 + $0x14] sm:$0xf]
      %v1967 = vld [vmem:[%s9 + $0x18] sm:$0xf]
      %v1968 = vld [vmem:[%s9 + $0x1c] sm:$0xf]
      %v1969 = vld [vmem:[%s9 + $0x20] sm:$0xf]
      %v1970 = vld [vmem:[%s9 + $0x24] sm:$0xf]
      %v1971 = vld [vmem:[%s9 + $0x28] sm:$0xf]
      %v1972 = vld [vmem:[%s9 + $0x2c] sm:$0xf]
      %v1973 = vld [vmem:[%s9 + $0x30] sm:$0xf]
      %v1974 = vld [vmem:[%s9 + $0x34] sm:$0xf]
      %v1975 = vld [vmem:[%s9 + $0x38] sm:$0xf]
      %v1976 = vld [vmem:[%s9 + $0x3c] sm:$0xf]
      %v1977 = vld [vmem:[%s9 + $0x40] sm:$0xf]
      %v1978 = vld [vmem:[%s9 + $0x44] sm:$0xf]
      %v1979 = vld [vmem:[%s9 + $0x48] sm:$0xf]
      %v1980 = vld [vmem:[%s9 + $0x4c] sm:$0xf]
      %v1981 = vld [vmem:[%s9 + $0x50] sm:$0xf]
      %v1982 = vld [vmem:[%s9 + $0x54] sm:$0xf]
      %v1983 = vld [vmem:[%s9 + $0x58] sm:$0xf]
      %v1984 = vld [vmem:[%s9 + $0x5c] sm:$0xf]
      %v1985 = vld [vmem:[%s9 + $0x60] sm:$0xf]
      %v1986 = vld [vmem:[%s9 + $0x64] sm:$0xf]
      %v1987 = vld [vmem:[%s9 + $0x68] sm:$0xf]
      %v1988 = vld [vmem:[%s9 + $0x6c] sm:$0xf]
      %v1989 = vld [vmem:[%s9 + $0x70] sm:$0xf]
      %v1990 = vld [vmem:[%s9 + $0x74] sm:$0xf]
      %v1991 = vld [vmem:[%s9 + $0x78] sm:$0xf]
      %v1992 = vld [vmem:[%s9 + $0x7c] sm:$0xf]
      %v1993 = vld [vmem:[%s4] sm:$0xff]
      %v1994 = vld [vmem:[%s4 + $0x8] sm:$0xff]
      %v1995 = vld [vmem:[%s4 + $0x10] sm:$0xff]
      %v1996 = vld [vmem:[%s4 + $0x18] sm:$0xff]
      %v1997 = vld [vmem:[%s4 + $0x20] sm:$0xff]
      %v1998 = vld [vmem:[%s4 + $0x28] sm:$0xff]
      %v1999 = vld [vmem:[%s4 + $0x30] sm:$0xff]
      %v2000 = vld [vmem:[%s4 + $0x38] sm:$0xff]
      %v2001 = vld [vmem:[%s6] sm:$0xff]
      %v2002 = vld [vmem:[%s6 + $0x8] sm:$0xff]
      %v2003 = vld [vmem:[%s6 + $0x10] sm:$0xff]
      %v2004 = vld [vmem:[%s6 + $0x18] sm:$0xff]
      %v2005 = vld [vmem:[%s6 + $0x20] sm:$0xff]
      %v2006 = vld [vmem:[%s6 + $0x28] sm:$0xff]
      %v2007 = vld [vmem:[%s6 + $0x30] sm:$0xff]
      %v2008 = vld [vmem:[%s6 + $0x38] sm:$0xff]
      %v2009 = vld [vmem:[%s6 + $0x40] sm:$0xff]
      %v2010 = vld [vmem:[%s6 + $0x48] sm:$0xff]
      %v2011 = vld [vmem:[%s6 + $0x50] sm:$0xff]
      %v2012 = vld [vmem:[%s6 + $0x58] sm:$0xff]
      %v2013 = vld [vmem:[%s6 + $0x60] sm:$0xff]
      %v2014 = vld [vmem:[%s6 + $0x68] sm:$0xff]
      %v2015 = vld [vmem:[%s6 + $0x70] sm:$0xff]
      %v2016 = vld [vmem:[%s6 + $0x78] sm:$0xff]
      %v2017 = vld [vmem:[%s8] sm:$0xff]
      %v2018 = vld [vmem:[%s8 + $0x8] sm:$0xff]
      %v2019 = vld [vmem:[%s8 + $0x10] sm:$0xff]
      %v2020 = vld [vmem:[%s8 + $0x18] sm:$0xff]
      %v2021 = vld [vmem:[%s8 + $0x20] sm:$0xff]
      %v2022 = vld [vmem:[%s8 + $0x28] sm:$0xff]
      %v2023 = vld [vmem:[%s8 + $0x30] sm:$0xff]
      %v2024 = vld [vmem:[%s8 + $0x38] sm:$0xff]
      %v2025 = vld [vmem:[%s8 + $0x40] sm:$0xff]
      %v2026 = vld [vmem:[%s8 + $0x48] sm:$0xff]
      %v2027 = vld [vmem:[%s8 + $0x50] sm:$0xff]
      %v2028 = vld [vmem:[%s8 + $0x58] sm:$0xff]
      %v2029 = vld [vmem:[%s8 + $0x60] sm:$0xff]
      %v2030 = vld [vmem:[%s8 + $0x68] sm:$0xff]
      %v2031 = vld [vmem:[%s8 + $0x70] sm:$0xff]
      %v2032 = vld [vmem:[%s8 + $0x78] sm:$0xff]
      %v2033 = vld [vmem:[%s10] sm:$0xff]
      %v2034 = vld [vmem:[%s10 + $0x8] sm:$0xff]
      %v2035 = vld [vmem:[%s10 + $0x10] sm:$0xff]
      %v2036 = vld [vmem:[%s10 + $0x18] sm:$0xff]
      %v2037 = vld [vmem:[%s10 + $0x20] sm:$0xff]
      %v2038 = vld [vmem:[%s10 + $0x28] sm:$0xff]
      %v2039 = vld [vmem:[%s10 + $0x30] sm:$0xff]
      %v2040 = vld [vmem:[%s10 + $0x38] sm:$0xff]
      %v2041 = vld [vmem:[%s10 + $0x40] sm:$0xff]
      %v2042 = vld [vmem:[%s10 + $0x48] sm:$0xff]
      %v2043 = vld [vmem:[%s10 + $0x50] sm:$0xff]
      %v2044 = vld [vmem:[%s10 + $0x58] sm:$0xff]
      %v2045 = vld [vmem:[%s10 + $0x60] sm:$0xff]
      %v2046 = vld [vmem:[%s10 + $0x68] sm:$0xff]
      %v2047 = vld [vmem:[%s10 + $0x70] sm:$0xff]
      %v2048 = vld [vmem:[%s10 + $0x78] sm:$0xff]
      %v2049 = vld [vmem:[%s10 + $0x80] sm:$0xff]
      %v2050 = vld [vmem:[%s10 + $0x88] sm:$0xff]
      %v2051 = vld [vmem:[%s10 + $0x90] sm:$0xff]
      %v2052 = vld [vmem:[%s10 + $0x98] sm:$0xff]
      %v2053 = vld [vmem:[%s10 + $0xa0] sm:$0xff]
      %v2054 = vld [vmem:[%s10 + $0xa8] sm:$0xff]
      %v2055 = vld [vmem:[%s10 + $0xb0] sm:$0xff]
      %v2056 = vld [vmem:[%s10 + $0xb8] sm:$0xff]
      %v2057 = vld [vmem:[%s10 + $0xc0] sm:$0xff]
      %v2058 = vld [vmem:[%s10 + $0xc8] sm:$0xff]
      %v2059 = vld [vmem:[%s10 + $0xd0] sm:$0xff]
      %v2060 = vld [vmem:[%s10 + $0xd8] sm:$0xff]
      %v2061 = vld [vmem:[%s10 + $0xe0] sm:$0xff]
      %v2062 = vld [vmem:[%s10 + $0xe8] sm:$0xff]
      %v2063 = vld [vmem:[%s10 + $0xf0] sm:$0xff]
      %v2064 = vld [vmem:[%s10 + $0xf8] sm:$0xff]
      %v2066 = vrot.slane %v1641, 7
      %v2069 = vrot.slane %v1651, 6
      %v2072 = vrot.slane %v1661, 5
      %v2075 = vrot.slane %v1755, 4
      %v2078 = vrot.slane %v1815, 3
      %v2081 = vrot.slane %v1825, 2
      %v2084 = vrot.slane %v1919, 1
      %vm2086 = vcmask 1040384
      %v2087 = vsel %vm2086, %v1624, %v2066
      %vm2088 = vcmask 1041408
      %v2089 = vsel %vm2088, %v2087, %v2069
      %vm2090 = vcmask 1042432
      %v2091 = vsel %vm2090, %v2089, %v2072
      %vm2092 = vcmask 1043456
      %v2093 = vsel %vm2092, %v2091, %v2075
      %vm2094 = vcmask 1044480
      %v2095 = vsel %vm2094, %v2093, %v2078
      %vm2096 = vcmask 1045504
      %v2097 = vsel %vm2096, %v2095, %v2081
      %vm2098 = vcmask 1046528
      %v2099 = vsel %vm2098, %v2097, %v2084
      %v2100 = vpack.c.bf16 %v2099, %v2099
      %2102 = vset.pattern.permute.xlu0 0
      %2103 = vperm.xlu0 %2102, %v1993
      %v2104 = vpop.permute.xlu0 %2103
      %2107 = vset.pattern.permute.xlu0 0
      %2108 = vperm.xlu0 %2107, %v1994
      %v2109 = vpop.permute.xlu0 %2108
      %2112 = vset.pattern.permute.xlu0 0
      %2113 = vperm.xlu0 %2112, %v1995
      %v2114 = vpop.permute.xlu0 %2113
      %2117 = vset.pattern.permute.xlu0 0
      %2118 = vperm.xlu0 %2117, %v1996
      %v2119 = vpop.permute.xlu0 %2118
      %2122 = vset.pattern.permute.xlu0 0
      %2123 = vperm.xlu0 %2122, %v1997
      %v2124 = vpop.permute.xlu0 %2123
      %2127 = vset.pattern.permute.xlu0 0
      %2128 = vperm.xlu0 %2127, %v1998
      %v2129 = vpop.permute.xlu0 %2128
      %2132 = vset.pattern.permute.xlu0 0
      %2133 = vperm.xlu0 %2132, %v1999
      %v2134 = vpop.permute.xlu0 %2133
      %2137 = vset.pattern.permute.xlu0 0
      %2138 = vperm.xlu0 %2137, %v2000
      %v2139 = vpop.permute.xlu0 %2138
      %v2149 = vunpack.c.l.b16 %v1921
      %v2150 = vunpack.c.l.b16 %v1922
      %v2151 = vunpack.c.l.b16 %v1923
      %v2152 = vunpack.c.l.b16 %v1924
      %v2153 = vunpack.c.l.b16 %v1925
      %v2154 = vunpack.c.l.b16 %v1926
      %v2155 = vunpack.c.l.b16 %v1927
      %v2156 = vunpack.c.l.b16 %v1928
      %v2157 = vpack.c.b16 %v2150, %v2149
      %v2158 = vpack.c.b16 %v2152, %v2151
      %v2159 = vpack.c.b16 %v2154, %v2153
      %v2160 = vpack.c.b16 %v2156, %v2155
      %v2162 = vsel %vm565, %v2157, 0
      %v2165 = vsel %vm565, %v2158, 0
      %v2168 = vsel %vm565, %v2159, 0
      %v2171 = vsel %vm565, %v2160, 0
      %v2174 = vsel %vm2092, %v2100, 0
      %2176 = vmatpush.bf16.msra.mxu0 0
      %2177 = vmatpush.bf16.msra.mxu0 0
      %2178 = vmatpush.bf16.msra.mxu0 0
      %2179 = vmatpush.bf16.msra.mxu0 0
      %2180 = vmatpush.bf16.msra.mxu0 0
      %2181 = vmatpush.bf16.msra.mxu0 0
      %2182 = vmatpush.bf16.msra.mxu0 0
      %2183 = vmatpush.bf16.msra.mxu0 %v2174
      %2184 = vmatmul.bf16.gmra.mxu0 %v2162
      %v2185 = vpop.f32.mrf.mxu0
      %v2186 = vadd.f32 %v2104, %v2185
      %v2187 = vpop.f32.mrf.mxu0
      %v2188 = vadd.f32 %v2109, %v2187
      %2189 = vmatmul.bf16.gmra.mxu0 %v2165
      %v2190 = vpop.f32.mrf.mxu0
      %v2191 = vadd.f32 %v2114, %v2190
      %v2192 = vpop.f32.mrf.mxu0
      %v2193 = vadd.f32 %v2119, %v2192
      %2194 = vmatmul.bf16.gmra.mxu0 %v2168
      %v2195 = vpop.f32.mrf.mxu0
      %v2196 = vadd.f32 %v2124, %v2195
      %v2197 = vpop.f32.mrf.mxu0
      %v2198 = vadd.f32 %v2129, %v2197
      %2199 = vmatmul.bf16.gmra.mxu0 %v2171
      %v2200 = vpop.f32.mrf.mxu0
      %v2201 = vadd.f32 %v2134, %v2200
      %v2202 = vpop.f32.mrf.mxu0
      %v2203 = vadd.f32 %v2139, %v2202
      %2204 = vdwg.mxu0
      %v2205 = vmax.f32 %v2186, 0.0
      %v2206 = vmax.f32 %v2188, 0.0
      %v2207 = vmax.f32 %v2191, 0.0
      %v2208 = vmax.f32 %v2193, 0.0
      %v2209 = vmax.f32 %v2196, 0.0
      %v2210 = vmax.f32 %v2198, 0.0
      %v2211 = vmax.f32 %v2201, 0.0
      %v2212 = vmax.f32 %v2203, 0.0
      %v2213 = vpack.c.bf16 %v2206, %v2205
      %v2214 = vpack.c.bf16 %v2208, %v2207
      %v2215 = vpack.c.bf16 %v2210, %v2209
      %v2216 = vpack.c.bf16 %v2212, %v2211
      %2218 = vset.pattern.permute.xlu0 0
      %2219 = vperm.xlu0 %2218, %v2001
      %v2220 = vpop.permute.xlu0 %2219
      %2223 = vset.pattern.permute.xlu0 0
      %2224 = vperm.xlu0 %2223, %v2002
      %v2225 = vpop.permute.xlu0 %2224
      %2228 = vset.pattern.permute.xlu0 0
      %2229 = vperm.xlu0 %2228, %v2003
      %v2230 = vpop.permute.xlu0 %2229
      %2233 = vset.pattern.permute.xlu0 0
      %2234 = vperm.xlu0 %2233, %v2004
      %v2235 = vpop.permute.xlu0 %2234
      %2238 = vset.pattern.permute.xlu0 0
      %2239 = vperm.xlu0 %2238, %v2005
      %v2240 = vpop.permute.xlu0 %2239
      %2243 = vset.pattern.permute.xlu0 0
      %2244 = vperm.xlu0 %2243, %v2006
      %v2245 = vpop.permute.xlu0 %2244
      %2248 = vset.pattern.permute.xlu0 0
      %2249 = vperm.xlu0 %2248, %v2007
      %v2250 = vpop.permute.xlu0 %2249
      %2253 = vset.pattern.permute.xlu0 0
      %2254 = vperm.xlu0 %2253, %v2008
      %v2255 = vpop.permute.xlu0 %2254
      %2258 = vset.pattern.permute.xlu0 0
      %2259 = vperm.xlu0 %2258, %v2009
      %v2260 = vpop.permute.xlu0 %2259
      %2263 = vset.pattern.permute.xlu0 0
      %2264 = vperm.xlu0 %2263, %v2010
      %v2265 = vpop.permute.xlu0 %2264
      %2268 = vset.pattern.permute.xlu0 0
      %2269 = vperm.xlu0 %2268, %v2011
      %v2270 = vpop.permute.xlu0 %2269
      %2273 = vset.pattern.permute.xlu0 0
      %2274 = vperm.xlu0 %2273, %v2012
      %v2275 = vpop.permute.xlu0 %2274
      %2278 = vset.pattern.permute.xlu0 0
      %2279 = vperm.xlu0 %2278, %v2013
      %v2280 = vpop.permute.xlu0 %2279
      %2283 = vset.pattern.permute.xlu0 0
      %2284 = vperm.xlu0 %2283, %v2014
      %v2285 = vpop.permute.xlu0 %2284
      %2288 = vset.pattern.permute.xlu0 0
      %2289 = vperm.xlu0 %2288, %v2015
      %v2290 = vpop.permute.xlu0 %2289
      %2293 = vset.pattern.permute.xlu0 0
      %2294 = vperm.xlu0 %2293, %v2016
      %v2295 = vpop.permute.xlu0 %2294
      %v2313 = vunpack.c.l.b16 %v1929
      %v2314 = vunpack.c.l.b16 %v1930
      %v2315 = vunpack.c.l.b16 %v1931
      %v2316 = vunpack.c.l.b16 %v1932
      %v2317 = vunpack.c.l.b16 %v1933
      %v2318 = vunpack.c.l.b16 %v1934
      %v2319 = vunpack.c.l.b16 %v1935
      %v2320 = vunpack.c.l.b16 %v1936
      %v2321 = vunpack.c.l.b16 %v1937
      %v2322 = vunpack.c.l.b16 %v1938
      %v2323 = vunpack.c.l.b16 %v1939
      %v2324 = vunpack.c.l.b16 %v1940
      %v2325 = vunpack.c.l.b16 %v1941
      %v2326 = vunpack.c.l.b16 %v1942
      %v2327 = vunpack.c.l.b16 %v1943
      %v2328 = vunpack.c.l.b16 %v1944
      %v2329 = vpack.c.b16 %v2314, %v2313
      %v2330 = vpack.c.b16 %v2316, %v2315
      %v2331 = vpack.c.b16 %v2318, %v2317
      %v2332 = vpack.c.b16 %v2320, %v2319
      %v2333 = vpack.c.b16 %v2322, %v2321
      %v2334 = vpack.c.b16 %v2324, %v2323
      %v2335 = vpack.c.b16 %v2326, %v2325
      %v2336 = vpack.c.b16 %v2328, %v2327
      %vm2337 = vcmask 523264
      %v2339 = vsel %vm2337, %v2329, 0
      %v2342 = vsel %vm2337, %v2330, 0
      %v2345 = vsel %vm2337, %v2331, 0
      %v2348 = vsel %vm2337, %v2332, 0
      %v2351 = vsel %vm2337, %v2333, 0
      %v2354 = vsel %vm2337, %v2334, 0
      %v2357 = vsel %vm2337, %v2335, 0
      %v2360 = vsel %vm2337, %v2336, 0
      %2362 = vmatpush.bf16.msra.mxu0 0
      %2363 = vmatpush.bf16.msra.mxu0 0
      %2364 = vmatpush.bf16.msra.mxu0 0
      %2365 = vmatpush.bf16.msra.mxu0 0
      %2366 = vmatpush.bf16.msra.mxu0 %v2216
      %2367 = vmatpush.bf16.msra.mxu0 %v2215
      %2368 = vmatpush.bf16.msra.mxu0 %v2214
      %2369 = vmatpush.bf16.msra.mxu0 %v2213
      %2370 = vmatmul.bf16.gmra.mxu0 %v2339
      %v2371 = vpop.f32.mrf.mxu0
      %v2372 = vadd.f32 %v2220, %v2371
      %v2373 = vpop.f32.mrf.mxu0
      %v2374 = vadd.f32 %v2225, %v2373
      %2375 = vmatmul.bf16.gmra.mxu0 %v2342
      %v2376 = vpop.f32.mrf.mxu0
      %v2377 = vadd.f32 %v2230, %v2376
      %v2378 = vpop.f32.mrf.mxu0
      %v2379 = vadd.f32 %v2235, %v2378
      %2380 = vmatmul.bf16.gmra.mxu0 %v2345
      %v2381 = vpop.f32.mrf.mxu0
      %v2382 = vadd.f32 %v2240, %v2381
      %v2383 = vpop.f32.mrf.mxu0
      %v2384 = vadd.f32 %v2245, %v2383
      %2385 = vmatmul.bf16.gmra.mxu0 %v2348
      %v2386 = vpop.f32.mrf.mxu0
      %v2387 = vadd.f32 %v2250, %v2386
      %v2388 = vpop.f32.mrf.mxu0
      %v2389 = vadd.f32 %v2255, %v2388
      %2390 = vmatmul.bf16.gmra.mxu0 %v2351
      %v2391 = vpop.f32.mrf.mxu0
      %v2392 = vadd.f32 %v2260, %v2391
      %v2393 = vpop.f32.mrf.mxu0
      %v2394 = vadd.f32 %v2265, %v2393
      %2395 = vmatmul.bf16.gmra.mxu0 %v2354
      %v2396 = vpop.f32.mrf.mxu0
      %v2397 = vadd.f32 %v2270, %v2396
      %v2398 = vpop.f32.mrf.mxu0
      %v2399 = vadd.f32 %v2275, %v2398
      %2400 = vmatmul.bf16.gmra.mxu0 %v2357
      %v2401 = vpop.f32.mrf.mxu0
      %v2402 = vadd.f32 %v2280, %v2401
      %v2403 = vpop.f32.mrf.mxu0
      %v2404 = vadd.f32 %v2285, %v2403
      %2405 = vmatmul.bf16.gmra.mxu0 %v2360
      %v2406 = vpop.f32.mrf.mxu0
      %v2407 = vadd.f32 %v2290, %v2406
      %v2408 = vpop.f32.mrf.mxu0
      %v2409 = vadd.f32 %v2295, %v2408
      %2410 = vdwg.mxu0
      %v2411 = vmax.f32 %v2372, 0.0
      %v2412 = vmax.f32 %v2374, 0.0
      %v2413 = vmax.f32 %v2377, 0.0
      %v2414 = vmax.f32 %v2379, 0.0
      %v2415 = vmax.f32 %v2382, 0.0
      %v2416 = vmax.f32 %v2384, 0.0
      %v2417 = vmax.f32 %v2387, 0.0
      %v2418 = vmax.f32 %v2389, 0.0
      %v2419 = vmax.f32 %v2392, 0.0
      %v2420 = vmax.f32 %v2394, 0.0
      %v2421 = vmax.f32 %v2397, 0.0
      %v2422 = vmax.f32 %v2399, 0.0
      %v2423 = vmax.f32 %v2402, 0.0
      %v2424 = vmax.f32 %v2404, 0.0
      %v2425 = vmax.f32 %v2407, 0.0
      %v2426 = vmax.f32 %v2409, 0.0
      %v2427 = vpack.c.bf16 %v2412, %v2411
      %v2428 = vpack.c.bf16 %v2414, %v2413
      %v2429 = vpack.c.bf16 %v2416, %v2415
      %v2430 = vpack.c.bf16 %v2418, %v2417
      %v2431 = vpack.c.bf16 %v2420, %v2419
      %v2432 = vpack.c.bf16 %v2422, %v2421
      %v2433 = vpack.c.bf16 %v2424, %v2423
      %v2434 = vpack.c.bf16 %v2426, %v2425
      %2436 = vset.pattern.permute.xlu0 0
      %2437 = vperm.xlu0 %2436, %v2017
      %v2438 = vpop.permute.xlu0 %2437
      %2441 = vset.pattern.permute.xlu0 0
      %2442 = vperm.xlu0 %2441, %v2018
      %v2443 = vpop.permute.xlu0 %2442
      %2446 = vset.pattern.permute.xlu0 0
      %2447 = vperm.xlu0 %2446, %v2019
      %v2448 = vpop.permute.xlu0 %2447
      %2451 = vset.pattern.permute.xlu0 0
      %2452 = vperm.xlu0 %2451, %v2020
      %v2453 = vpop.permute.xlu0 %2452
      %2456 = vset.pattern.permute.xlu0 0
      %2457 = vperm.xlu0 %2456, %v2021
      %v2458 = vpop.permute.xlu0 %2457
      %2461 = vset.pattern.permute.xlu0 0
      %2462 = vperm.xlu0 %2461, %v2022
      %v2463 = vpop.permute.xlu0 %2462
      %2466 = vset.pattern.permute.xlu0 0
      %2467 = vperm.xlu0 %2466, %v2023
      %v2468 = vpop.permute.xlu0 %2467
      %2471 = vset.pattern.permute.xlu0 0
      %2472 = vperm.xlu0 %2471, %v2024
      %v2473 = vpop.permute.xlu0 %2472
      %2476 = vset.pattern.permute.xlu0 0
      %2477 = vperm.xlu0 %2476, %v2025
      %v2478 = vpop.permute.xlu0 %2477
      %2481 = vset.pattern.permute.xlu0 0
      %2482 = vperm.xlu0 %2481, %v2026
      %v2483 = vpop.permute.xlu0 %2482
      %2486 = vset.pattern.permute.xlu0 0
      %2487 = vperm.xlu0 %2486, %v2027
      %v2488 = vpop.permute.xlu0 %2487
      %2491 = vset.pattern.permute.xlu0 0
      %2492 = vperm.xlu0 %2491, %v2028
      %v2493 = vpop.permute.xlu0 %2492
      %2496 = vset.pattern.permute.xlu0 0
      %2497 = vperm.xlu0 %2496, %v2029
      %v2498 = vpop.permute.xlu0 %2497
      %2501 = vset.pattern.permute.xlu0 0
      %2502 = vperm.xlu0 %2501, %v2030
      %v2503 = vpop.permute.xlu0 %2502
      %2506 = vset.pattern.permute.xlu0 0
      %2507 = vperm.xlu0 %2506, %v2031
      %v2508 = vpop.permute.xlu0 %2507
      %2511 = vset.pattern.permute.xlu0 0
      %2512 = vperm.xlu0 %2511, %v2032
      %v2513 = vpop.permute.xlu0 %2512
      %v2531 = vunpack.c.l.b16 %v1945
      %v2532 = vunpack.c.l.b16 %v1946
      %v2533 = vunpack.c.l.b16 %v1947
      %v2534 = vunpack.c.l.b16 %v1948
      %v2535 = vunpack.c.l.b16 %v1949
      %v2536 = vunpack.c.l.b16 %v1950
      %v2537 = vunpack.c.l.b16 %v1951
      %v2538 = vunpack.c.l.b16 %v1952
      %v2539 = vunpack.c.l.b16 %v1953
      %v2540 = vunpack.c.l.b16 %v1954
      %v2541 = vunpack.c.l.b16 %v1955
      %v2542 = vunpack.c.l.b16 %v1956
      %v2543 = vunpack.c.l.b16 %v1957
      %v2544 = vunpack.c.l.b16 %v1958
      %v2545 = vunpack.c.l.b16 %v1959
      %v2546 = vunpack.c.l.b16 %v1960
      %v2547 = vpack.c.b16 %v2532, %v2531
      %v2548 = vpack.c.b16 %v2534, %v2533
      %v2549 = vpack.c.b16 %v2536, %v2535
      %v2550 = vpack.c.b16 %v2538, %v2537
      %v2551 = vpack.c.b16 %v2540, %v2539
      %v2552 = vpack.c.b16 %v2542, %v2541
      %v2553 = vpack.c.b16 %v2544, %v2543
      %v2554 = vpack.c.b16 %v2546, %v2545
      %2563 = vmatpush.bf16.msra.mxu0 %v2434
      %2564 = vmatpush.bf16.msra.mxu0 %v2433
      %2565 = vmatpush.bf16.msra.mxu0 %v2432
      %2566 = vmatpush.bf16.msra.mxu0 %v2431
      %2567 = vmatpush.bf16.msra.mxu0 %v2430
      %2568 = vmatpush.bf16.msra.mxu0 %v2429
      %2569 = vmatpush.bf16.msra.mxu0 %v2428
      %2570 = vmatpush.bf16.msra.mxu0 %v2427
      %2571 = vmatmul.bf16.gmra.mxu0 %v2547
      %v2572 = vpop.f32.mrf.mxu0
      %v2573 = vadd.f32 %v2438, %v2572
      %v2574 = vpop.f32.mrf.mxu0
      %v2575 = vadd.f32 %v2443, %v2574
      %2576 = vmatmul.bf16.gmra.mxu0 %v2548
      %v2577 = vpop.f32.mrf.mxu0
      %v2578 = vadd.f32 %v2448, %v2577
      %v2579 = vpop.f32.mrf.mxu0
      %v2580 = vadd.f32 %v2453, %v2579
      %2581 = vmatmul.bf16.gmra.mxu0 %v2549
      %v2582 = vpop.f32.mrf.mxu0
      %v2583 = vadd.f32 %v2458, %v2582
      %v2584 = vpop.f32.mrf.mxu0
      %v2585 = vadd.f32 %v2463, %v2584
      %2586 = vmatmul.bf16.gmra.mxu0 %v2550
      %v2587 = vpop.f32.mrf.mxu0
      %v2588 = vadd.f32 %v2468, %v2587
      %v2589 = vpop.f32.mrf.mxu0
      %v2590 = vadd.f32 %v2473, %v2589
      %2591 = vmatmul.bf16.gmra.mxu0 %v2551
      %v2592 = vpop.f32.mrf.mxu0
      %v2593 = vadd.f32 %v2478, %v2592
      %v2594 = vpop.f32.mrf.mxu0
      %v2595 = vadd.f32 %v2483, %v2594
      %2596 = vmatmul.bf16.gmra.mxu0 %v2552
      %v2597 = vpop.f32.mrf.mxu0
      %v2598 = vadd.f32 %v2488, %v2597
      %v2599 = vpop.f32.mrf.mxu0
      %v2600 = vadd.f32 %v2493, %v2599
      %2601 = vmatmul.bf16.gmra.mxu0 %v2553
      %v2602 = vpop.f32.mrf.mxu0
      %v2603 = vadd.f32 %v2498, %v2602
      %v2604 = vpop.f32.mrf.mxu0
      %v2605 = vadd.f32 %v2503, %v2604
      %2606 = vmatmul.bf16.gmra.mxu0 %v2554
      %v2607 = vpop.f32.mrf.mxu0
      %v2608 = vadd.f32 %v2508, %v2607
      %v2609 = vpop.f32.mrf.mxu0
      %v2610 = vadd.f32 %v2513, %v2609
      %2611 = vdwg.mxu0
      %v2612 = vmax.f32 %v2573, 0.0
      %v2613 = vmax.f32 %v2575, 0.0
      %v2614 = vmax.f32 %v2578, 0.0
      %v2615 = vmax.f32 %v2580, 0.0
      %v2616 = vmax.f32 %v2583, 0.0
      %v2617 = vmax.f32 %v2585, 0.0
      %v2618 = vmax.f32 %v2588, 0.0
      %v2619 = vmax.f32 %v2590, 0.0
      %v2620 = vmax.f32 %v2593, 0.0
      %v2621 = vmax.f32 %v2595, 0.0
      %v2622 = vmax.f32 %v2598, 0.0
      %v2623 = vmax.f32 %v2600, 0.0
      %v2624 = vmax.f32 %v2603, 0.0
      %v2625 = vmax.f32 %v2605, 0.0
      %v2626 = vmax.f32 %v2608, 0.0
      %v2627 = vmax.f32 %v2610, 0.0
      %v2628 = vpack.c.bf16 %v2613, %v2612
      %v2629 = vpack.c.bf16 %v2615, %v2614
      %v2630 = vpack.c.bf16 %v2617, %v2616
      %v2631 = vpack.c.bf16 %v2619, %v2618
      %v2632 = vpack.c.bf16 %v2621, %v2620
      %v2633 = vpack.c.bf16 %v2623, %v2622
      %v2634 = vpack.c.bf16 %v2625, %v2624
      %v2635 = vpack.c.bf16 %v2627, %v2626
      %2637 = vset.pattern.permute.xlu0 0
      %2638 = vperm.xlu0 %2637, %v2033
      %v2639 = vpop.permute.xlu0 %2638
      %2642 = vset.pattern.permute.xlu0 0
      %2643 = vperm.xlu0 %2642, %v2034
      %v2644 = vpop.permute.xlu0 %2643
      %2647 = vset.pattern.permute.xlu0 0
      %2648 = vperm.xlu0 %2647, %v2035
      %v2649 = vpop.permute.xlu0 %2648
      %2652 = vset.pattern.permute.xlu0 0
      %2653 = vperm.xlu0 %2652, %v2036
      %v2654 = vpop.permute.xlu0 %2653
      %2657 = vset.pattern.permute.xlu0 0
      %2658 = vperm.xlu0 %2657, %v2037
      %v2659 = vpop.permute.xlu0 %2658
      %2662 = vset.pattern.permute.xlu0 0
      %2663 = vperm.xlu0 %2662, %v2038
      %v2664 = vpop.permute.xlu0 %2663
      %2667 = vset.pattern.permute.xlu0 0
      %2668 = vperm.xlu0 %2667, %v2039
      %v2669 = vpop.permute.xlu0 %2668
      %2672 = vset.pattern.permute.xlu0 0
      %2673 = vperm.xlu0 %2672, %v2040
      %v2674 = vpop.permute.xlu0 %2673
      %2677 = vset.pattern.permute.xlu0 0
      %2678 = vperm.xlu0 %2677, %v2041
      %v2679 = vpop.permute.xlu0 %2678
      %2682 = vset.pattern.permute.xlu0 0
      %2683 = vperm.xlu0 %2682, %v2042
      %v2684 = vpop.permute.xlu0 %2683
      %2687 = vset.pattern.permute.xlu0 0
      %2688 = vperm.xlu0 %2687, %v2043
      %v2689 = vpop.permute.xlu0 %2688
      %2692 = vset.pattern.permute.xlu0 0
      %2693 = vperm.xlu0 %2692, %v2044
      %v2694 = vpop.permute.xlu0 %2693
      %2697 = vset.pattern.permute.xlu0 0
      %2698 = vperm.xlu0 %2697, %v2045
      %v2699 = vpop.permute.xlu0 %2698
      %2702 = vset.pattern.permute.xlu0 0
      %2703 = vperm.xlu0 %2702, %v2046
      %v2704 = vpop.permute.xlu0 %2703
      %2707 = vset.pattern.permute.xlu0 0
      %2708 = vperm.xlu0 %2707, %v2047
      %v2709 = vpop.permute.xlu0 %2708
      %2712 = vset.pattern.permute.xlu0 0
      %2713 = vperm.xlu0 %2712, %v2048
      %v2714 = vpop.permute.xlu0 %2713
      %2717 = vset.pattern.permute.xlu0 0
      %2718 = vperm.xlu0 %2717, %v2049
      %v2719 = vpop.permute.xlu0 %2718
      %2722 = vset.pattern.permute.xlu0 0
      %2723 = vperm.xlu0 %2722, %v2050
      %v2724 = vpop.permute.xlu0 %2723
      %2727 = vset.pattern.permute.xlu0 0
      %2728 = vperm.xlu0 %2727, %v2051
      %v2729 = vpop.permute.xlu0 %2728
      %2732 = vset.pattern.permute.xlu0 0
      %2733 = vperm.xlu0 %2732, %v2052
      %v2734 = vpop.permute.xlu0 %2733
      %2737 = vset.pattern.permute.xlu0 0
      %2738 = vperm.xlu0 %2737, %v2053
      %v2739 = vpop.permute.xlu0 %2738
      %2742 = vset.pattern.permute.xlu0 0
      %2743 = vperm.xlu0 %2742, %v2054
      %v2744 = vpop.permute.xlu0 %2743
      %2747 = vset.pattern.permute.xlu0 0
      %2748 = vperm.xlu0 %2747, %v2055
      %v2749 = vpop.permute.xlu0 %2748
      %2752 = vset.pattern.permute.xlu0 0
      %2753 = vperm.xlu0 %2752, %v2056
      %v2754 = vpop.permute.xlu0 %2753
      %2757 = vset.pattern.permute.xlu0 0
      %2758 = vperm.xlu0 %2757, %v2057
      %v2759 = vpop.permute.xlu0 %2758
      %2762 = vset.pattern.permute.xlu0 0
      %2763 = vperm.xlu0 %2762, %v2058
      %v2764 = vpop.permute.xlu0 %2763
      %2767 = vset.pattern.permute.xlu0 0
      %2768 = vperm.xlu0 %2767, %v2059
      %v2769 = vpop.permute.xlu0 %2768
      %2772 = vset.pattern.permute.xlu0 0
      %2773 = vperm.xlu0 %2772, %v2060
      %v2774 = vpop.permute.xlu0 %2773
      %2777 = vset.pattern.permute.xlu0 0
      %2778 = vperm.xlu0 %2777, %v2061
      %v2779 = vpop.permute.xlu0 %2778
      %2782 = vset.pattern.permute.xlu0 0
      %2783 = vperm.xlu0 %2782, %v2062
      %v2784 = vpop.permute.xlu0 %2783
      %2787 = vset.pattern.permute.xlu0 0
      %2788 = vperm.xlu0 %2787, %v2063
      %v2789 = vpop.permute.xlu0 %2788
      %2792 = vset.pattern.permute.xlu0 0
      %2793 = vperm.xlu0 %2792, %v2064
      %v2794 = vpop.permute.xlu0 %2793
      %v2828 = vunpack.c.l.b16 %v1961
      %v2829 = vunpack.c.l.b16 %v1962
      %v2830 = vunpack.c.l.b16 %v1963
      %v2831 = vunpack.c.l.b16 %v1964
      %v2832 = vunpack.c.l.b16 %v1965
      %v2833 = vunpack.c.l.b16 %v1966
      %v2834 = vunpack.c.l.b16 %v1967
      %v2835 = vunpack.c.l.b16 %v1968
      %v2836 = vunpack.c.l.b16 %v1969
      %v2837 = vunpack.c.l.b16 %v1970
      %v2838 = vunpack.c.l.b16 %v1971
      %v2839 = vunpack.c.l.b16 %v1972
      %v2840 = vunpack.c.l.b16 %v1973
      %v2841 = vunpack.c.l.b16 %v1974
      %v2842 = vunpack.c.l.b16 %v1975
      %v2843 = vunpack.c.l.b16 %v1976
      %v2844 = vunpack.c.l.b16 %v1977
      %v2845 = vunpack.c.l.b16 %v1978
      %v2846 = vunpack.c.l.b16 %v1979
      %v2847 = vunpack.c.l.b16 %v1980
      %v2848 = vunpack.c.l.b16 %v1981
      %v2849 = vunpack.c.l.b16 %v1982
      %v2850 = vunpack.c.l.b16 %v1983
      %v2851 = vunpack.c.l.b16 %v1984
      %v2852 = vunpack.c.l.b16 %v1985
      %v2853 = vunpack.c.l.b16 %v1986
      %v2854 = vunpack.c.l.b16 %v1987
      %v2855 = vunpack.c.l.b16 %v1988
      %v2856 = vunpack.c.l.b16 %v1989
      %v2857 = vunpack.c.l.b16 %v1990
      %v2858 = vunpack.c.l.b16 %v1991
      %v2859 = vunpack.c.l.b16 %v1992
      %v2860 = vpack.c.b16 %v2829, %v2828
      %v2861 = vpack.c.b16 %v2831, %v2830
      %v2862 = vpack.c.b16 %v2833, %v2832
      %v2863 = vpack.c.b16 %v2835, %v2834
      %v2864 = vpack.c.b16 %v2837, %v2836
      %v2865 = vpack.c.b16 %v2839, %v2838
      %v2866 = vpack.c.b16 %v2841, %v2840
      %v2867 = vpack.c.b16 %v2843, %v2842
      %v2868 = vpack.c.b16 %v2845, %v2844
      %v2869 = vpack.c.b16 %v2847, %v2846
      %v2870 = vpack.c.b16 %v2849, %v2848
      %v2871 = vpack.c.b16 %v2851, %v2850
      %v2872 = vpack.c.b16 %v2853, %v2852
      %v2873 = vpack.c.b16 %v2855, %v2854
      %v2874 = vpack.c.b16 %v2857, %v2856
      %v2875 = vpack.c.b16 %v2859, %v2858
      %2892 = vmatpush.bf16.msra.mxu0 %v2635
      %2893 = vmatpush.bf16.msra.mxu0 %v2634
      %2894 = vmatpush.bf16.msra.mxu0 %v2633
      %2895 = vmatpush.bf16.msra.mxu0 %v2632
      %2896 = vmatpush.bf16.msra.mxu0 %v2631
      %2897 = vmatpush.bf16.msra.mxu0 %v2630
      %2898 = vmatpush.bf16.msra.mxu0 %v2629
      %2899 = vmatpush.bf16.msra.mxu0 %v2628
      %2900 = vmatmul.bf16.gmra.mxu0 %v2860
      %v2901 = vpop.f32.mrf.mxu0
      %v2902 = vadd.f32 %v2639, %v2901
      %v2903 = vpop.f32.mrf.mxu0
      %v2904 = vadd.f32 %v2644, %v2903
      %2905 = vmatmul.bf16.gmra.mxu0 %v2861
      %v2906 = vpop.f32.mrf.mxu0
      %v2907 = vadd.f32 %v2649, %v2906
      %v2908 = vpop.f32.mrf.mxu0
      %v2909 = vadd.f32 %v2654, %v2908
      %2910 = vmatmul.bf16.gmra.mxu0 %v2862
      %v2911 = vpop.f32.mrf.mxu0
      %v2912 = vadd.f32 %v2659, %v2911
      %v2913 = vpop.f32.mrf.mxu0
      %v2914 = vadd.f32 %v2664, %v2913
      %2915 = vmatmul.bf16.gmra.mxu0 %v2863
      %v2916 = vpop.f32.mrf.mxu0
      %v2917 = vadd.f32 %v2669, %v2916
      %v2918 = vpop.f32.mrf.mxu0
      %v2919 = vadd.f32 %v2674, %v2918
      %2920 = vmatmul.bf16.gmra.mxu0 %v2864
      %v2921 = vpop.f32.mrf.mxu0
      %v2922 = vadd.f32 %v2679, %v2921
      %v2923 = vpop.f32.mrf.mxu0
      %v2924 = vadd.f32 %v2684, %v2923
      %2925 = vmatmul.bf16.gmra.mxu0 %v2865
      %v2926 = vpop.f32.mrf.mxu0
      %v2927 = vadd.f32 %v2689, %v2926
      %v2928 = vpop.f32.mrf.mxu0
      %v2929 = vadd.f32 %v2694, %v2928
      %2930 = vmatmul.bf16.gmra.mxu0 %v2866
      %v2931 = vpop.f32.mrf.mxu0
      %v2932 = vadd.f32 %v2699, %v2931
      %v2933 = vpop.f32.mrf.mxu0
      %v2934 = vadd.f32 %v2704, %v2933
      %2935 = vmatmul.bf16.gmra.mxu0 %v2867
      %v2936 = vpop.f32.mrf.mxu0
      %v2937 = vadd.f32 %v2709, %v2936
      %v2938 = vpop.f32.mrf.mxu0
      %v2939 = vadd.f32 %v2714, %v2938
      %2940 = vmatmul.bf16.gmra.mxu0 %v2868
      %v2941 = vpop.f32.mrf.mxu0
      %v2942 = vadd.f32 %v2719, %v2941
      %v2943 = vpop.f32.mrf.mxu0
      %v2944 = vadd.f32 %v2724, %v2943
      %2945 = vmatmul.bf16.gmra.mxu0 %v2869
      %v2946 = vpop.f32.mrf.mxu0
      %v2947 = vadd.f32 %v2729, %v2946
      %v2948 = vpop.f32.mrf.mxu0
      %v2949 = vadd.f32 %v2734, %v2948
      %2950 = vmatmul.bf16.gmra.mxu0 %v2870
      %v2951 = vpop.f32.mrf.mxu0
      %v2952 = vadd.f32 %v2739, %v2951
      %v2953 = vpop.f32.mrf.mxu0
      %v2954 = vadd.f32 %v2744, %v2953
      %2955 = vmatmul.bf16.gmra.mxu0 %v2871
      %v2956 = vpop.f32.mrf.mxu0
      %v2957 = vadd.f32 %v2749, %v2956
      %v2958 = vpop.f32.mrf.mxu0
      %v2959 = vadd.f32 %v2754, %v2958
      %2960 = vmatmul.bf16.gmra.mxu0 %v2872
      %v2961 = vpop.f32.mrf.mxu0
      %v2962 = vadd.f32 %v2759, %v2961
      %v2963 = vpop.f32.mrf.mxu0
      %v2964 = vadd.f32 %v2764, %v2963
      %2965 = vmatmul.bf16.gmra.mxu0 %v2873
      %v2966 = vpop.f32.mrf.mxu0
      %v2967 = vadd.f32 %v2769, %v2966
      %v2968 = vpop.f32.mrf.mxu0
      %v2969 = vadd.f32 %v2774, %v2968
      %2970 = vmatmul.bf16.gmra.mxu0 %v2874
      %v2971 = vpop.f32.mrf.mxu0
      %v2972 = vadd.f32 %v2779, %v2971
      %v2973 = vpop.f32.mrf.mxu0
      %v2974 = vadd.f32 %v2784, %v2973
      %2975 = vmatmul.bf16.gmra.mxu0 %v2875
      %v2976 = vpop.f32.mrf.mxu0
      %v2977 = vadd.f32 %v2789, %v2976
      %v2978 = vpop.f32.mrf.mxu0
      %v2979 = vadd.f32 %v2794, %v2978
      %2980 = vdwg.mxu0
      %v2981 = vmax.f32 %v2902, 0.0
      %v2982 = vmax.f32 %v2904, 0.0
      %v2983 = vmax.f32 %v2907, 0.0
      %v2984 = vmax.f32 %v2909, 0.0
      %v2985 = vmax.f32 %v2912, 0.0
      %v2986 = vmax.f32 %v2914, 0.0
      %v2987 = vmax.f32 %v2917, 0.0
      %v2988 = vmax.f32 %v2919, 0.0
      %v2989 = vmax.f32 %v2922, 0.0
      %v2990 = vmax.f32 %v2924, 0.0
      %v2991 = vmax.f32 %v2927, 0.0
      %v2992 = vmax.f32 %v2929, 0.0
      %v2993 = vmax.f32 %v2932, 0.0
      %v2994 = vmax.f32 %v2934, 0.0
      %v2995 = vmax.f32 %v2937, 0.0
      %v2996 = vmax.f32 %v2939, 0.0
      %v2997 = vmax.f32 %v2942, 0.0
      %v2998 = vmax.f32 %v2944, 0.0
      %v2999 = vmax.f32 %v2947, 0.0
      %v3000 = vmax.f32 %v2949, 0.0
      %v3001 = vmax.f32 %v2952, 0.0
      %v3002 = vmax.f32 %v2954, 0.0
      %v3003 = vmax.f32 %v2957, 0.0
      %v3004 = vmax.f32 %v2959, 0.0
      %v3005 = vmax.f32 %v2962, 0.0
      %v3006 = vmax.f32 %v2964, 0.0
      %v3007 = vmax.f32 %v2967, 0.0
      %v3008 = vmax.f32 %v2969, 0.0
      %v3009 = vmax.f32 %v2972, 0.0
      %v3010 = vmax.f32 %v2974, 0.0
      %v3011 = vmax.f32 %v2977, 0.0
      %v3012 = vmax.f32 %v2979, 0.0
      %v3014 = vrot.slane %v1624, 1
      %v3016 = vrot.slane %v1651, 7
      %v3018 = vrot.slane %v1661, 6
      %v3020 = vrot.slane %v1755, 5
      %v3022 = vrot.slane %v1815, 4
      %v3024 = vrot.slane %v1825, 3
      %v3026 = vrot.slane %v1919, 2
      %v3028 = vsel %vm2086, %v3014, %v1641
      %v3029 = vsel %vm2088, %v3028, %v3016
      %v3030 = vsel %vm2090, %v3029, %v3018
      %v3031 = vsel %vm2092, %v3030, %v3020
      %v3032 = vsel %vm2094, %v3031, %v3022
      %v3033 = vsel %vm2096, %v3032, %v3024
      %v3034 = vsel %vm2098, %v3033, %v3026
      %v3035 = vpack.c.bf16 %v3034, %v3034
      %v3037 = vsel %vm2092, %v3035, 0
      %3039 = vmatpush.bf16.msra.mxu0 0
      %3040 = vmatpush.bf16.msra.mxu0 0
      %3041 = vmatpush.bf16.msra.mxu0 0
      %3042 = vmatpush.bf16.msra.mxu0 0
      %3043 = vmatpush.bf16.msra.mxu0 0
      %3044 = vmatpush.bf16.msra.mxu0 0
      %3045 = vmatpush.bf16.msra.mxu0 0
      %3046 = vmatpush.bf16.msra.mxu0 %v3037
      %3047 = vmatmul.bf16.gmra.mxu0 %v2162
      %v3048 = vpop.f32.mrf.mxu0
      %v3049 = vadd.f32 %v2104, %v3048
      %v3050 = vpop.f32.mrf.mxu0
      %v3051 = vadd.f32 %v2109, %v3050
      %3052 = vmatmul.bf16.gmra.mxu0 %v2165
      %v3053 = vpop.f32.mrf.mxu0
      %v3054 = vadd.f32 %v2114, %v3053
      %v3055 = vpop.f32.mrf.mxu0
      %v3056 = vadd.f32 %v2119, %v3055
      %3057 = vmatmul.bf16.gmra.mxu0 %v2168
      %v3058 = vpop.f32.mrf.mxu0
      %v3059 = vadd.f32 %v2124, %v3058
      %v3060 = vpop.f32.mrf.mxu0
      %v3061 = vadd.f32 %v2129, %v3060
      %3062 = vmatmul.bf16.gmra.mxu0 %v2171
      %v3063 = vpop.f32.mrf.mxu0
      %v3064 = vadd.f32 %v2134, %v3063
      %v3065 = vpop.f32.mrf.mxu0
      %v3066 = vadd.f32 %v2139, %v3065
      %3067 = vdwg.mxu0
      %v3068 = vmax.f32 %v3049, 0.0
      %v3069 = vmax.f32 %v3051, 0.0
      %v3070 = vmax.f32 %v3054, 0.0
      %v3071 = vmax.f32 %v3056, 0.0
      %v3072 = vmax.f32 %v3059, 0.0
      %v3073 = vmax.f32 %v3061, 0.0
      %v3074 = vmax.f32 %v3064, 0.0
      %v3075 = vmax.f32 %v3066, 0.0
      %v3076 = vpack.c.bf16 %v3069, %v3068
      %v3077 = vpack.c.bf16 %v3071, %v3070
      %v3078 = vpack.c.bf16 %v3073, %v3072
      %v3079 = vpack.c.bf16 %v3075, %v3074
      %3080 = vmatpush.bf16.msra.mxu0 0
      %3081 = vmatpush.bf16.msra.mxu0 0
      %3082 = vmatpush.bf16.msra.mxu0 0
      %3083 = vmatpush.bf16.msra.mxu0 0
      %3084 = vmatpush.bf16.msra.mxu0 %v3079
      %3085 = vmatpush.bf16.msra.mxu0 %v3078
      %3086 = vmatpush.bf16.msra.mxu0 %v3077
      %3087 = vmatpush.bf16.msra.mxu0 %v3076
      %3088 = vmatmul.bf16.gmra.mxu0 %v2339
      %v3089 = vpop.f32.mrf.mxu0
      %v3090 = vadd.f32 %v2220, %v3089
      %v3091 = vpop.f32.mrf.mxu0
      %v3092 = vadd.f32 %v2225, %v3091
      %3093 = vmatmul.bf16.gmra.mxu0 %v2342
      %v3094 = vpop.f32.mrf.mxu0
      %v3095 = vadd.f32 %v2230, %v3094
      %v3096 = vpop.f32.mrf.mxu0
      %v3097 = vadd.f32 %v2235, %v3096
      %3098 = vmatmul.bf16.gmra.mxu0 %v2345
      %v3099 = vpop.f32.mrf.mxu0
      %v3100 = vadd.f32 %v2240, %v3099
      %v3101 = vpop.f32.mrf.mxu0
      %v3102 = vadd.f32 %v2245, %v3101
      %3103 = vmatmul.bf16.gmra.mxu0 %v2348
      %v3104 = vpop.f32.mrf.mxu0
      %v3105 = vadd.f32 %v2250, %v3104
      %v3106 = vpop.f32.mrf.mxu0
      %v3107 = vadd.f32 %v2255, %v3106
      %3108 = vmatmul.bf16.gmra.mxu0 %v2351
      %v3109 = vpop.f32.mrf.mxu0
      %v3110 = vadd.f32 %v2260, %v3109
      %v3111 = vpop.f32.mrf.mxu0
      %v3112 = vadd.f32 %v2265, %v3111
      %3113 = vmatmul.bf16.gmra.mxu0 %v2354
      %v3114 = vpop.f32.mrf.mxu0
      %v3115 = vadd.f32 %v2270, %v3114
      %v3116 = vpop.f32.mrf.mxu0
      %v3117 = vadd.f32 %v2275, %v3116
      %3118 = vmatmul.bf16.gmra.mxu0 %v2357
      %v3119 = vpop.f32.mrf.mxu0
      %v3120 = vadd.f32 %v2280, %v3119
      %v3121 = vpop.f32.mrf.mxu0
      %v3122 = vadd.f32 %v2285, %v3121
      %3123 = vmatmul.bf16.gmra.mxu0 %v2360
      %v3124 = vpop.f32.mrf.mxu0
      %v3125 = vadd.f32 %v2290, %v3124
      %v3126 = vpop.f32.mrf.mxu0
      %v3127 = vadd.f32 %v2295, %v3126
      %3128 = vdwg.mxu0
      %v3129 = vmax.f32 %v3090, 0.0
      %v3130 = vmax.f32 %v3092, 0.0
      %v3131 = vmax.f32 %v3095, 0.0
      %v3132 = vmax.f32 %v3097, 0.0
      %v3133 = vmax.f32 %v3100, 0.0
      %v3134 = vmax.f32 %v3102, 0.0
      %v3135 = vmax.f32 %v3105, 0.0
      %v3136 = vmax.f32 %v3107, 0.0
      %v3137 = vmax.f32 %v3110, 0.0
      %v3138 = vmax.f32 %v3112, 0.0
      %v3139 = vmax.f32 %v3115, 0.0
      %v3140 = vmax.f32 %v3117, 0.0
      %v3141 = vmax.f32 %v3120, 0.0
      %v3142 = vmax.f32 %v3122, 0.0
      %v3143 = vmax.f32 %v3125, 0.0
      %v3144 = vmax.f32 %v3127, 0.0
      %v3145 = vpack.c.bf16 %v3130, %v3129
      %v3146 = vpack.c.bf16 %v3132, %v3131
      %v3147 = vpack.c.bf16 %v3134, %v3133
      %v3148 = vpack.c.bf16 %v3136, %v3135
      %v3149 = vpack.c.bf16 %v3138, %v3137
      %v3150 = vpack.c.bf16 %v3140, %v3139
      %v3151 = vpack.c.bf16 %v3142, %v3141
      %v3152 = vpack.c.bf16 %v3144, %v3143
      %3153 = vmatpush.bf16.msra.mxu0 %v3152
      %3154 = vmatpush.bf16.msra.mxu0 %v3151
      %3155 = vmatpush.bf16.msra.mxu0 %v3150
      %3156 = vmatpush.bf16.msra.mxu0 %v3149
      %3157 = vmatpush.bf16.msra.mxu0 %v3148
      %3158 = vmatpush.bf16.msra.mxu0 %v3147
      %3159 = vmatpush.bf16.msra.mxu0 %v3146
      %3160 = vmatpush.bf16.msra.mxu0 %v3145
      %3161 = vmatmul.bf16.gmra.mxu0 %v2547
      %v3162 = vpop.f32.mrf.mxu0
      %v3163 = vadd.f32 %v2438, %v3162
      %v3164 = vpop.f32.mrf.mxu0
      %v3165 = vadd.f32 %v2443, %v3164
      %3166 = vmatmul.bf16.gmra.mxu0 %v2548
      %v3167 = vpop.f32.mrf.mxu0
      %v3168 = vadd.f32 %v2448, %v3167
      %v3169 = vpop.f32.mrf.mxu0
      %v3170 = vadd.f32 %v2453, %v3169
      %3171 = vmatmul.bf16.gmra.mxu0 %v2549
      %v3172 = vpop.f32.mrf.mxu0
      %v3173 = vadd.f32 %v2458, %v3172
      %v3174 = vpop.f32.mrf.mxu0
      %v3175 = vadd.f32 %v2463, %v3174
      %3176 = vmatmul.bf16.gmra.mxu0 %v2550
      %v3177 = vpop.f32.mrf.mxu0
      %v3178 = vadd.f32 %v2468, %v3177
      %v3179 = vpop.f32.mrf.mxu0
      %v3180 = vadd.f32 %v2473, %v3179
      %3181 = vmatmul.bf16.gmra.mxu0 %v2551
      %v3182 = vpop.f32.mrf.mxu0
      %v3183 = vadd.f32 %v2478, %v3182
      %v3184 = vpop.f32.mrf.mxu0
      %v3185 = vadd.f32 %v2483, %v3184
      %3186 = vmatmul.bf16.gmra.mxu0 %v2552
      %v3187 = vpop.f32.mrf.mxu0
      %v3188 = vadd.f32 %v2488, %v3187
      %v3189 = vpop.f32.mrf.mxu0
      %v3190 = vadd.f32 %v2493, %v3189
      %3191 = vmatmul.bf16.gmra.mxu0 %v2553
      %v3192 = vpop.f32.mrf.mxu0
      %v3193 = vadd.f32 %v2498, %v3192
      %v3194 = vpop.f32.mrf.mxu0
      %v3195 = vadd.f32 %v2503, %v3194
      %3196 = vmatmul.bf16.gmra.mxu0 %v2554
      %v3197 = vpop.f32.mrf.mxu0
      %v3198 = vadd.f32 %v2508, %v3197
      %v3199 = vpop.f32.mrf.mxu0
      %v3200 = vadd.f32 %v2513, %v3199
      %3201 = vdwg.mxu0
      %v3202 = vmax.f32 %v3163, 0.0
      %v3203 = vmax.f32 %v3165, 0.0
      %v3204 = vmax.f32 %v3168, 0.0
      %v3205 = vmax.f32 %v3170, 0.0
      %v3206 = vmax.f32 %v3173, 0.0
      %v3207 = vmax.f32 %v3175, 0.0
      %v3208 = vmax.f32 %v3178, 0.0
      %v3209 = vmax.f32 %v3180, 0.0
      %v3210 = vmax.f32 %v3183, 0.0
      %v3211 = vmax.f32 %v3185, 0.0
      %v3212 = vmax.f32 %v3188, 0.0
      %v3213 = vmax.f32 %v3190, 0.0
      %v3214 = vmax.f32 %v3193, 0.0
      %v3215 = vmax.f32 %v3195, 0.0
      %v3216 = vmax.f32 %v3198, 0.0
      %v3217 = vmax.f32 %v3200, 0.0
      %v3218 = vpack.c.bf16 %v3203, %v3202
      %v3219 = vpack.c.bf16 %v3205, %v3204
      %v3220 = vpack.c.bf16 %v3207, %v3206
      %v3221 = vpack.c.bf16 %v3209, %v3208
      %v3222 = vpack.c.bf16 %v3211, %v3210
      %v3223 = vpack.c.bf16 %v3213, %v3212
      %v3224 = vpack.c.bf16 %v3215, %v3214
      %v3225 = vpack.c.bf16 %v3217, %v3216
      %3226 = vmatpush.bf16.msra.mxu0 %v3225
      %3227 = vmatpush.bf16.msra.mxu0 %v3224
      %3228 = vmatpush.bf16.msra.mxu0 %v3223
      %3229 = vmatpush.bf16.msra.mxu0 %v3222
      %3230 = vmatpush.bf16.msra.mxu0 %v3221
      %3231 = vmatpush.bf16.msra.mxu0 %v3220
      %3232 = vmatpush.bf16.msra.mxu0 %v3219
      %3233 = vmatpush.bf16.msra.mxu0 %v3218
      %3234 = vmatmul.bf16.gmra.mxu0 %v2860
      %v3235 = vpop.f32.mrf.mxu0
      %v3236 = vadd.f32 %v2639, %v3235
      %v3237 = vpop.f32.mrf.mxu0
      %v3238 = vadd.f32 %v2644, %v3237
      %3239 = vmatmul.bf16.gmra.mxu0 %v2861
      %v3240 = vpop.f32.mrf.mxu0
      %v3241 = vadd.f32 %v2649, %v3240
      %v3242 = vpop.f32.mrf.mxu0
      %v3243 = vadd.f32 %v2654, %v3242
      %3244 = vmatmul.bf16.gmra.mxu0 %v2862
      %v3245 = vpop.f32.mrf.mxu0
      %v3246 = vadd.f32 %v2659, %v3245
      %v3247 = vpop.f32.mrf.mxu0
      %v3248 = vadd.f32 %v2664, %v3247
      %3249 = vmatmul.bf16.gmra.mxu0 %v2863
      %v3250 = vpop.f32.mrf.mxu0
      %v3251 = vadd.f32 %v2669, %v3250
      %v3252 = vpop.f32.mrf.mxu0
      %v3253 = vadd.f32 %v2674, %v3252
      %3254 = vmatmul.bf16.gmra.mxu0 %v2864
      %v3255 = vpop.f32.mrf.mxu0
      %v3256 = vadd.f32 %v2679, %v3255
      %v3257 = vpop.f32.mrf.mxu0
      %v3258 = vadd.f32 %v2684, %v3257
      %3259 = vmatmul.bf16.gmra.mxu0 %v2865
      %v3260 = vpop.f32.mrf.mxu0
      %v3261 = vadd.f32 %v2689, %v3260
      %v3262 = vpop.f32.mrf.mxu0
      %v3263 = vadd.f32 %v2694, %v3262
      %3264 = vmatmul.bf16.gmra.mxu0 %v2866
      %v3265 = vpop.f32.mrf.mxu0
      %v3266 = vadd.f32 %v2699, %v3265
      %v3267 = vpop.f32.mrf.mxu0
      %v3268 = vadd.f32 %v2704, %v3267
      %3269 = vmatmul.bf16.gmra.mxu0 %v2867
      %v3270 = vpop.f32.mrf.mxu0
      %v3271 = vadd.f32 %v2709, %v3270
      %v3272 = vpop.f32.mrf.mxu0
      %v3273 = vadd.f32 %v2714, %v3272
      %3274 = vmatmul.bf16.gmra.mxu0 %v2868
      %v3275 = vpop.f32.mrf.mxu0
      %v3276 = vadd.f32 %v2719, %v3275
      %v3277 = vpop.f32.mrf.mxu0
      %v3278 = vadd.f32 %v2724, %v3277
      %3279 = vmatmul.bf16.gmra.mxu0 %v2869
      %v3280 = vpop.f32.mrf.mxu0
      %v3281 = vadd.f32 %v2729, %v3280
      %v3282 = vpop.f32.mrf.mxu0
      %v3283 = vadd.f32 %v2734, %v3282
      %3284 = vmatmul.bf16.gmra.mxu0 %v2870
      %v3285 = vpop.f32.mrf.mxu0
      %v3286 = vadd.f32 %v2739, %v3285
      %v3287 = vpop.f32.mrf.mxu0
      %v3288 = vadd.f32 %v2744, %v3287
      %3289 = vmatmul.bf16.gmra.mxu0 %v2871
      %v3290 = vpop.f32.mrf.mxu0
      %v3291 = vadd.f32 %v2749, %v3290
      %v3292 = vpop.f32.mrf.mxu0
      %v3293 = vadd.f32 %v2754, %v3292
      %3294 = vmatmul.bf16.gmra.mxu0 %v2872
      %v3295 = vpop.f32.mrf.mxu0
      %v3296 = vadd.f32 %v2759, %v3295
      %v3297 = vpop.f32.mrf.mxu0
      %v3298 = vadd.f32 %v2764, %v3297
      %3299 = vmatmul.bf16.gmra.mxu0 %v2873
      %v3300 = vpop.f32.mrf.mxu0
      %v3301 = vadd.f32 %v2769, %v3300
      %v3302 = vpop.f32.mrf.mxu0
      %v3303 = vadd.f32 %v2774, %v3302
      %3304 = vmatmul.bf16.gmra.mxu0 %v2874
      %v3305 = vpop.f32.mrf.mxu0
      %v3306 = vadd.f32 %v2779, %v3305
      %v3307 = vpop.f32.mrf.mxu0
      %v3308 = vadd.f32 %v2784, %v3307
      %3309 = vmatmul.bf16.gmra.mxu0 %v2875
      %v3310 = vpop.f32.mrf.mxu0
      %v3311 = vadd.f32 %v2789, %v3310
      %v3312 = vpop.f32.mrf.mxu0
      %v3313 = vadd.f32 %v2794, %v3312
      %3314 = vdwg.mxu0
      %v3315 = vmax.f32 %v3236, 0.0
      %v3316 = vmax.f32 %v3238, 0.0
      %v3317 = vmax.f32 %v3241, 0.0
      %v3318 = vmax.f32 %v3243, 0.0
      %v3319 = vmax.f32 %v3246, 0.0
      %v3320 = vmax.f32 %v3248, 0.0
      %v3321 = vmax.f32 %v3251, 0.0
      %v3322 = vmax.f32 %v3253, 0.0
      %v3323 = vmax.f32 %v3256, 0.0
      %v3324 = vmax.f32 %v3258, 0.0
      %v3325 = vmax.f32 %v3261, 0.0
      %v3326 = vmax.f32 %v3263, 0.0
      %v3327 = vmax.f32 %v3266, 0.0
      %v3328 = vmax.f32 %v3268, 0.0
      %v3329 = vmax.f32 %v3271, 0.0
      %v3330 = vmax.f32 %v3273, 0.0
      %v3331 = vmax.f32 %v3276, 0.0
      %v3332 = vmax.f32 %v3278, 0.0
      %v3333 = vmax.f32 %v3281, 0.0
      %v3334 = vmax.f32 %v3283, 0.0
      %v3335 = vmax.f32 %v3286, 0.0
      %v3336 = vmax.f32 %v3288, 0.0
      %v3337 = vmax.f32 %v3291, 0.0
      %v3338 = vmax.f32 %v3293, 0.0
      %v3339 = vmax.f32 %v3296, 0.0
      %v3340 = vmax.f32 %v3298, 0.0
      %v3341 = vmax.f32 %v3301, 0.0
      %v3342 = vmax.f32 %v3303, 0.0
      %v3343 = vmax.f32 %v3306, 0.0
      %v3344 = vmax.f32 %v3308, 0.0
      %v3345 = vmax.f32 %v3311, 0.0
      %v3346 = vmax.f32 %v3313, 0.0
      %v3347 = vmax.f32 %v2981, %v3315
      %v3348 = vmax.f32 %v2982, %v3316
      %v3349 = vmax.f32 %v2983, %v3317
      %v3350 = vmax.f32 %v2984, %v3318
      %v3351 = vmax.f32 %v2985, %v3319
      %v3352 = vmax.f32 %v2986, %v3320
      %v3353 = vmax.f32 %v2987, %v3321
      %v3354 = vmax.f32 %v2988, %v3322
      %v3355 = vmax.f32 %v2989, %v3323
      %v3356 = vmax.f32 %v2990, %v3324
      %v3357 = vmax.f32 %v2991, %v3325
      %v3358 = vmax.f32 %v2992, %v3326
      %v3359 = vmax.f32 %v2993, %v3327
      %v3360 = vmax.f32 %v2994, %v3328
      %v3361 = vmax.f32 %v2995, %v3329
      %v3362 = vmax.f32 %v2996, %v3330
      %v3363 = vmax.f32 %v2997, %v3331
      %v3364 = vmax.f32 %v2998, %v3332
      %v3365 = vmax.f32 %v2999, %v3333
      %v3366 = vmax.f32 %v3000, %v3334
      %v3367 = vmax.f32 %v3001, %v3335
      %v3368 = vmax.f32 %v3002, %v3336
      %v3369 = vmax.f32 %v3003, %v3337
      %v3370 = vmax.f32 %v3004, %v3338
      %v3371 = vmax.f32 %v3005, %v3339
      %v3372 = vmax.f32 %v3006, %v3340
      %v3373 = vmax.f32 %v3007, %v3341
      %v3374 = vmax.f32 %v3008, %v3342
      %v3375 = vmax.f32 %v3009, %v3343
      %v3376 = vmax.f32 %v3010, %v3344
      %v3377 = vmax.f32 %v3011, %v3345
      %v3378 = vmax.f32 %v3012, %v3346
      %v3379 = vrot.slane %v1624, 2
      %v3381 = vrot.slane %v1641, 1
      %v3383 = vrot.slane %v1661, 7
      %v3385 = vrot.slane %v1755, 6
      %v3387 = vrot.slane %v1815, 5
      %v3389 = vrot.slane %v1825, 4
      %v3391 = vrot.slane %v1919, 3
      %v3393 = vsel %vm2086, %v3379, %v3381
      %v3394 = vsel %vm2088, %v3393, %v1651
      %v3395 = vsel %vm2090, %v3394, %v3383
      %v3396 = vsel %vm2092, %v3395, %v3385
      %v3397 = vsel %vm2094, %v3396, %v3387
      %v3398 = vsel %vm2096, %v3397, %v3389
      %v3399 = vsel %vm2098, %v3398, %v3391
      %v3400 = vpack.c.bf16 %v3399, %v3399
      %v3402 = vsel %vm2092, %v3400, 0
      %3404 = vmatpush.bf16.msra.mxu0 0
      %3405 = vmatpush.bf16.msra.mxu0 0
      %3406 = vmatpush.bf16.msra.mxu0 0
      %3407 = vmatpush.bf16.msra.mxu0 0
      %3408 = vmatpush.bf16.msra.mxu0 0
      %3409 = vmatpush.bf16.msra.mxu0 0
      %3410 = vmatpush.bf16.msra.mxu0 0
      %3411 = vmatpush.bf16.msra.mxu0 %v3402
      %3412 = vmatmul.bf16.gmra.mxu0 %v2162
      %v3413 = vpop.f32.mrf.mxu0
      %v3414 = vadd.f32 %v2104, %v3413
      %v3415 = vpop.f32.mrf.mxu0
      %v3416 = vadd.f32 %v2109, %v3415
      %3417 = vmatmul.bf16.gmra.mxu0 %v2165
      %v3418 = vpop.f32.mrf.mxu0
      %v3419 = vadd.f32 %v2114, %v3418
      %v3420 = vpop.f32.mrf.mxu0
      %v3421 = vadd.f32 %v2119, %v3420
      %3422 = vmatmul.bf16.gmra.mxu0 %v2168
      %v3423 = vpop.f32.mrf.mxu0
      %v3424 = vadd.f32 %v2124, %v3423
      %v3425 = vpop.f32.mrf.mxu0
      %v3426 = vadd.f32 %v2129, %v3425
      %3427 = vmatmul.bf16.gmra.mxu0 %v2171
      %v3428 = vpop.f32.mrf.mxu0
      %v3429 = vadd.f32 %v2134, %v3428
      %v3430 = vpop.f32.mrf.mxu0
      %v3431 = vadd.f32 %v2139, %v3430
      %3432 = vdwg.mxu0
      %v3433 = vmax.f32 %v3414, 0.0
      %v3434 = vmax.f32 %v3416, 0.0
      %v3435 = vmax.f32 %v3419, 0.0
      %v3436 = vmax.f32 %v3421, 0.0
      %v3437 = vmax.f32 %v3424, 0.0
      %v3438 = vmax.f32 %v3426, 0.0
      %v3439 = vmax.f32 %v3429, 0.0
      %v3440 = vmax.f32 %v3431, 0.0
      %v3441 = vpack.c.bf16 %v3434, %v3433
      %v3442 = vpack.c.bf16 %v3436, %v3435
      %v3443 = vpack.c.bf16 %v3438, %v3437
      %v3444 = vpack.c.bf16 %v3440, %v3439
      %3445 = vmatpush.bf16.msra.mxu0 0
      %3446 = vmatpush.bf16.msra.mxu0 0
      %3447 = vmatpush.bf16.msra.mxu0 0
      %3448 = vmatpush.bf16.msra.mxu0 0
      %3449 = vmatpush.bf16.msra.mxu0 %v3444
      %3450 = vmatpush.bf16.msra.mxu0 %v3443
      %3451 = vmatpush.bf16.msra.mxu0 %v3442
      %3452 = vmatpush.bf16.msra.mxu0 %v3441
      %3453 = vmatmul.bf16.gmra.mxu0 %v2339
      %v3454 = vpop.f32.mrf.mxu0
      %v3455 = vadd.f32 %v2220, %v3454
      %v3456 = vpop.f32.mrf.mxu0
      %v3457 = vadd.f32 %v2225, %v3456
      %3458 = vmatmul.bf16.gmra.mxu0 %v2342
      %v3459 = vpop.f32.mrf.mxu0
      %v3460 = vadd.f32 %v2230, %v3459
      %v3461 = vpop.f32.mrf.mxu0
      %v3462 = vadd.f32 %v2235, %v3461
      %3463 = vmatmul.bf16.gmra.mxu0 %v2345
      %v3464 = vpop.f32.mrf.mxu0
      %v3465 = vadd.f32 %v2240, %v3464
      %v3466 = vpop.f32.mrf.mxu0
      %v3467 = vadd.f32 %v2245, %v3466
      %3468 = vmatmul.bf16.gmra.mxu0 %v2348
      %v3469 = vpop.f32.mrf.mxu0
      %v3470 = vadd.f32 %v2250, %v3469
      %v3471 = vpop.f32.mrf.mxu0
      %v3472 = vadd.f32 %v2255, %v3471
      %3473 = vmatmul.bf16.gmra.mxu0 %v2351
      %v3474 = vpop.f32.mrf.mxu0
      %v3475 = vadd.f32 %v2260, %v3474
      %v3476 = vpop.f32.mrf.mxu0
      %v3477 = vadd.f32 %v2265, %v3476
      %3478 = vmatmul.bf16.gmra.mxu0 %v2354
      %v3479 = vpop.f32.mrf.mxu0
      %v3480 = vadd.f32 %v2270, %v3479
      %v3481 = vpop.f32.mrf.mxu0
      %v3482 = vadd.f32 %v2275, %v3481
      %3483 = vmatmul.bf16.gmra.mxu0 %v2357
      %v3484 = vpop.f32.mrf.mxu0
      %v3485 = vadd.f32 %v2280, %v3484
      %v3486 = vpop.f32.mrf.mxu0
      %v3487 = vadd.f32 %v2285, %v3486
      %3488 = vmatmul.bf16.gmra.mxu0 %v2360
      %v3489 = vpop.f32.mrf.mxu0
      %v3490 = vadd.f32 %v2290, %v3489
      %v3491 = vpop.f32.mrf.mxu0
      %v3492 = vadd.f32 %v2295, %v3491
      %3493 = vdwg.mxu0
      %v3494 = vmax.f32 %v3455, 0.0
      %v3495 = vmax.f32 %v3457, 0.0
      %v3496 = vmax.f32 %v3460, 0.0
      %v3497 = vmax.f32 %v3462, 0.0
      %v3498 = vmax.f32 %v3465, 0.0
      %v3499 = vmax.f32 %v3467, 0.0
      %v3500 = vmax.f32 %v3470, 0.0
      %v3501 = vmax.f32 %v3472, 0.0
      %v3502 = vmax.f32 %v3475, 0.0
      %v3503 = vmax.f32 %v3477, 0.0
      %v3504 = vmax.f32 %v3480, 0.0
      %v3505 = vmax.f32 %v3482, 0.0
      %v3506 = vmax.f32 %v3485, 0.0
      %v3507 = vmax.f32 %v3487, 0.0
      %v3508 = vmax.f32 %v3490, 0.0
      %v3509 = vmax.f32 %v3492, 0.0
      %v3510 = vpack.c.bf16 %v3495, %v3494
      %v3511 = vpack.c.bf16 %v3497, %v3496
      %v3512 = vpack.c.bf16 %v3499, %v3498
      %v3513 = vpack.c.bf16 %v3501, %v3500
      %v3514 = vpack.c.bf16 %v3503, %v3502
      %v3515 = vpack.c.bf16 %v3505, %v3504
      %v3516 = vpack.c.bf16 %v3507, %v3506
      %v3517 = vpack.c.bf16 %v3509, %v3508
      %3518 = vmatpush.bf16.msra.mxu0 %v3517
      %3519 = vmatpush.bf16.msra.mxu0 %v3516
      %3520 = vmatpush.bf16.msra.mxu0 %v3515
      %3521 = vmatpush.bf16.msra.mxu0 %v3514
      %3522 = vmatpush.bf16.msra.mxu0 %v3513
      %3523 = vmatpush.bf16.msra.mxu0 %v3512
      %3524 = vmatpush.bf16.msra.mxu0 %v3511
      %3525 = vmatpush.bf16.msra.mxu0 %v3510
      %3526 = vmatmul.bf16.gmra.mxu0 %v2547
      %v3527 = vpop.f32.mrf.mxu0
      %v3528 = vadd.f32 %v2438, %v3527
      %v3529 = vpop.f32.mrf.mxu0
      %v3530 = vadd.f32 %v2443, %v3529
      %3531 = vmatmul.bf16.gmra.mxu0 %v2548
      %v3532 = vpop.f32.mrf.mxu0
      %v3533 = vadd.f32 %v2448, %v3532
      %v3534 = vpop.f32.mrf.mxu0
      %v3535 = vadd.f32 %v2453, %v3534
      %3536 = vmatmul.bf16.gmra.mxu0 %v2549
      %v3537 = vpop.f32.mrf.mxu0
      %v3538 = vadd.f32 %v2458, %v3537
      %v3539 = vpop.f32.mrf.mxu0
      %v3540 = vadd.f32 %v2463, %v3539
      %3541 = vmatmul.bf16.gmra.mxu0 %v2550
      %v3542 = vpop.f32.mrf.mxu0
      %v3543 = vadd.f32 %v2468, %v3542
      %v3544 = vpop.f32.mrf.mxu0
      %v3545 = vadd.f32 %v2473, %v3544
      %3546 = vmatmul.bf16.gmra.mxu0 %v2551
      %v3547 = vpop.f32.mrf.mxu0
      %v3548 = vadd.f32 %v2478, %v3547
      %v3549 = vpop.f32.mrf.mxu0
      %v3550 = vadd.f32 %v2483, %v3549
      %3551 = vmatmul.bf16.gmra.mxu0 %v2552
      %v3552 = vpop.f32.mrf.mxu0
      %v3553 = vadd.f32 %v2488, %v3552
      %v3554 = vpop.f32.mrf.mxu0
      %v3555 = vadd.f32 %v2493, %v3554
      %3556 = vmatmul.bf16.gmra.mxu0 %v2553
      %v3557 = vpop.f32.mrf.mxu0
      %v3558 = vadd.f32 %v2498, %v3557
      %v3559 = vpop.f32.mrf.mxu0
      %v3560 = vadd.f32 %v2503, %v3559
      %3561 = vmatmul.bf16.gmra.mxu0 %v2554
      %v3562 = vpop.f32.mrf.mxu0
      %v3563 = vadd.f32 %v2508, %v3562
      %v3564 = vpop.f32.mrf.mxu0
      %v3565 = vadd.f32 %v2513, %v3564
      %3566 = vdwg.mxu0
      %v3567 = vmax.f32 %v3528, 0.0
      %v3568 = vmax.f32 %v3530, 0.0
      %v3569 = vmax.f32 %v3533, 0.0
      %v3570 = vmax.f32 %v3535, 0.0
      %v3571 = vmax.f32 %v3538, 0.0
      %v3572 = vmax.f32 %v3540, 0.0
      %v3573 = vmax.f32 %v3543, 0.0
      %v3574 = vmax.f32 %v3545, 0.0
      %v3575 = vmax.f32 %v3548, 0.0
      %v3576 = vmax.f32 %v3550, 0.0
      %v3577 = vmax.f32 %v3553, 0.0
      %v3578 = vmax.f32 %v3555, 0.0
      %v3579 = vmax.f32 %v3558, 0.0
      %v3580 = vmax.f32 %v3560, 0.0
      %v3581 = vmax.f32 %v3563, 0.0
      %v3582 = vmax.f32 %v3565, 0.0
      %v3583 = vpack.c.bf16 %v3568, %v3567
      %v3584 = vpack.c.bf16 %v3570, %v3569
      %v3585 = vpack.c.bf16 %v3572, %v3571
      %v3586 = vpack.c.bf16 %v3574, %v3573
      %v3587 = vpack.c.bf16 %v3576, %v3575
      %v3588 = vpack.c.bf16 %v3578, %v3577
      %v3589 = vpack.c.bf16 %v3580, %v3579
      %v3590 = vpack.c.bf16 %v3582, %v3581
      %3591 = vmatpush.bf16.msra.mxu0 %v3590
      %3592 = vmatpush.bf16.msra.mxu0 %v3589
      %3593 = vmatpush.bf16.msra.mxu0 %v3588
      %3594 = vmatpush.bf16.msra.mxu0 %v3587
      %3595 = vmatpush.bf16.msra.mxu0 %v3586
      %3596 = vmatpush.bf16.msra.mxu0 %v3585
      %3597 = vmatpush.bf16.msra.mxu0 %v3584
      %3598 = vmatpush.bf16.msra.mxu0 %v3583
      %3599 = vmatmul.bf16.gmra.mxu0 %v2860
      %v3600 = vpop.f32.mrf.mxu0
      %v3601 = vadd.f32 %v2639, %v3600
      %v3602 = vpop.f32.mrf.mxu0
      %v3603 = vadd.f32 %v2644, %v3602
      %3604 = vmatmul.bf16.gmra.mxu0 %v2861
      %v3605 = vpop.f32.mrf.mxu0
      %v3606 = vadd.f32 %v2649, %v3605
      %v3607 = vpop.f32.mrf.mxu0
      %v3608 = vadd.f32 %v2654, %v3607
      %3609 = vmatmul.bf16.gmra.mxu0 %v2862
      %v3610 = vpop.f32.mrf.mxu0
      %v3611 = vadd.f32 %v2659, %v3610
      %v3612 = vpop.f32.mrf.mxu0
      %v3613 = vadd.f32 %v2664, %v3612
      %3614 = vmatmul.bf16.gmra.mxu0 %v2863
      %v3615 = vpop.f32.mrf.mxu0
      %v3616 = vadd.f32 %v2669, %v3615
      %v3617 = vpop.f32.mrf.mxu0
      %v3618 = vadd.f32 %v2674, %v3617
      %3619 = vmatmul.bf16.gmra.mxu0 %v2864
      %v3620 = vpop.f32.mrf.mxu0
      %v3621 = vadd.f32 %v2679, %v3620
      %v3622 = vpop.f32.mrf.mxu0
      %v3623 = vadd.f32 %v2684, %v3622
      %3624 = vmatmul.bf16.gmra.mxu0 %v2865
      %v3625 = vpop.f32.mrf.mxu0
      %v3626 = vadd.f32 %v2689, %v3625
      %v3627 = vpop.f32.mrf.mxu0
      %v3628 = vadd.f32 %v2694, %v3627
      %3629 = vmatmul.bf16.gmra.mxu0 %v2866
      %v3630 = vpop.f32.mrf.mxu0
      %v3631 = vadd.f32 %v2699, %v3630
      %v3632 = vpop.f32.mrf.mxu0
      %v3633 = vadd.f32 %v2704, %v3632
      %3634 = vmatmul.bf16.gmra.mxu0 %v2867
      %v3635 = vpop.f32.mrf.mxu0
      %v3636 = vadd.f32 %v2709, %v3635
      %v3637 = vpop.f32.mrf.mxu0
      %v3638 = vadd.f32 %v2714, %v3637
      %3639 = vmatmul.bf16.gmra.mxu0 %v2868
      %v3640 = vpop.f32.mrf.mxu0
      %v3641 = vadd.f32 %v2719, %v3640
      %v3642 = vpop.f32.mrf.mxu0
      %v3643 = vadd.f32 %v2724, %v3642
      %3644 = vmatmul.bf16.gmra.mxu0 %v2869
      %v3645 = vpop.f32.mrf.mxu0
      %v3646 = vadd.f32 %v2729, %v3645
      %v3647 = vpop.f32.mrf.mxu0
      %v3648 = vadd.f32 %v2734, %v3647
      %3649 = vmatmul.bf16.gmra.mxu0 %v2870
      %v3650 = vpop.f32.mrf.mxu0
      %v3651 = vadd.f32 %v2739, %v3650
      %v3652 = vpop.f32.mrf.mxu0
      %v3653 = vadd.f32 %v2744, %v3652
      %3654 = vmatmul.bf16.gmra.mxu0 %v2871
      %v3655 = vpop.f32.mrf.mxu0
      %v3656 = vadd.f32 %v2749, %v3655
      %v3657 = vpop.f32.mrf.mxu0
      %v3658 = vadd.f32 %v2754, %v3657
      %3659 = vmatmul.bf16.gmra.mxu0 %v2872
      %v3660 = vpop.f32.mrf.mxu0
      %v3661 = vadd.f32 %v2759, %v3660
      %v3662 = vpop.f32.mrf.mxu0
      %v3663 = vadd.f32 %v2764, %v3662
      %3664 = vmatmul.bf16.gmra.mxu0 %v2873
      %v3665 = vpop.f32.mrf.mxu0
      %v3666 = vadd.f32 %v2769, %v3665
      %v3667 = vpop.f32.mrf.mxu0
      %v3668 = vadd.f32 %v2774, %v3667
      %3669 = vmatmul.bf16.gmra.mxu0 %v2874
      %v3670 = vpop.f32.mrf.mxu0
      %v3671 = vadd.f32 %v2779, %v3670
      %v3672 = vpop.f32.mrf.mxu0
      %v3673 = vadd.f32 %v2784, %v3672
      %3674 = vmatmul.bf16.gmra.mxu0 %v2875
      %v3675 = vpop.f32.mrf.mxu0
      %v3676 = vadd.f32 %v2789, %v3675
      %v3677 = vpop.f32.mrf.mxu0
      %v3678 = vadd.f32 %v2794, %v3677
      %3679 = vdwg.mxu0
      %v3680 = vmax.f32 %v3601, 0.0
      %v3681 = vmax.f32 %v3603, 0.0
      %v3682 = vmax.f32 %v3606, 0.0
      %v3683 = vmax.f32 %v3608, 0.0
      %v3684 = vmax.f32 %v3611, 0.0
      %v3685 = vmax.f32 %v3613, 0.0
      %v3686 = vmax.f32 %v3616, 0.0
      %v3687 = vmax.f32 %v3618, 0.0
      %v3688 = vmax.f32 %v3621, 0.0
      %v3689 = vmax.f32 %v3623, 0.0
      %v3690 = vmax.f32 %v3626, 0.0
      %v3691 = vmax.f32 %v3628, 0.0
      %v3692 = vmax.f32 %v3631, 0.0
      %v3693 = vmax.f32 %v3633, 0.0
      %v3694 = vmax.f32 %v3636, 0.0
      %v3695 = vmax.f32 %v3638, 0.0
      %v3696 = vmax.f32 %v3641, 0.0
      %v3697 = vmax.f32 %v3643, 0.0
      %v3698 = vmax.f32 %v3646, 0.0
      %v3699 = vmax.f32 %v3648, 0.0
      %v3700 = vmax.f32 %v3651, 0.0
      %v3701 = vmax.f32 %v3653, 0.0
      %v3702 = vmax.f32 %v3656, 0.0
      %v3703 = vmax.f32 %v3658, 0.0
      %v3704 = vmax.f32 %v3661, 0.0
      %v3705 = vmax.f32 %v3663, 0.0
      %v3706 = vmax.f32 %v3666, 0.0
      %v3707 = vmax.f32 %v3668, 0.0
      %v3708 = vmax.f32 %v3671, 0.0
      %v3709 = vmax.f32 %v3673, 0.0
      %v3710 = vmax.f32 %v3676, 0.0
      %v3711 = vmax.f32 %v3678, 0.0
      %v3712 = vmax.f32 %v3347, %v3680
      %v3713 = vmax.f32 %v3348, %v3681
      %v3714 = vmax.f32 %v3349, %v3682
      %v3715 = vmax.f32 %v3350, %v3683
      %v3716 = vmax.f32 %v3351, %v3684
      %v3717 = vmax.f32 %v3352, %v3685
      %v3718 = vmax.f32 %v3353, %v3686
      %v3719 = vmax.f32 %v3354, %v3687
      %v3720 = vmax.f32 %v3355, %v3688
      %v3721 = vmax.f32 %v3356, %v3689
      %v3722 = vmax.f32 %v3357, %v3690
      %v3723 = vmax.f32 %v3358, %v3691
      %v3724 = vmax.f32 %v3359, %v3692
      %v3725 = vmax.f32 %v3360, %v3693
      %v3726 = vmax.f32 %v3361, %v3694
      %v3727 = vmax.f32 %v3362, %v3695
      %v3728 = vmax.f32 %v3363, %v3696
      %v3729 = vmax.f32 %v3364, %v3697
      %v3730 = vmax.f32 %v3365, %v3698
      %v3731 = vmax.f32 %v3366, %v3699
      %v3732 = vmax.f32 %v3367, %v3700
      %v3733 = vmax.f32 %v3368, %v3701
      %v3734 = vmax.f32 %v3369, %v3702
      %v3735 = vmax.f32 %v3370, %v3703
      %v3736 = vmax.f32 %v3371, %v3704
      %v3737 = vmax.f32 %v3372, %v3705
      %v3738 = vmax.f32 %v3373, %v3706
      %v3739 = vmax.f32 %v3374, %v3707
      %v3740 = vmax.f32 %v3375, %v3708
      %v3741 = vmax.f32 %v3376, %v3709
      %v3742 = vmax.f32 %v3377, %v3710
      %v3743 = vmax.f32 %v3378, %v3711
      %v3744 = vrot.slane %v1624, 3
      %v3746 = vrot.slane %v1641, 2
      %v3748 = vrot.slane %v1651, 1
      %v3750 = vrot.slane %v1755, 7
      %v3752 = vrot.slane %v1815, 6
      %v3754 = vrot.slane %v1825, 5
      %v3756 = vrot.slane %v1919, 4
      %v3758 = vsel %vm2086, %v3744, %v3746
      %v3759 = vsel %vm2088, %v3758, %v3748
      %v3760 = vsel %vm2090, %v3759, %v1661
      %v3761 = vsel %vm2092, %v3760, %v3750
      %v3762 = vsel %vm2094, %v3761, %v3752
      %v3763 = vsel %vm2096, %v3762, %v3754
      %v3764 = vsel %vm2098, %v3763, %v3756
      %v3765 = vpack.c.bf16 %v3764, %v3764
      %v3767 = vsel %vm2092, %v3765, 0
      %3769 = vmatpush.bf16.msra.mxu0 0
      %3770 = vmatpush.bf16.msra.mxu0 0
      %3771 = vmatpush.bf16.msra.mxu0 0
      %3772 = vmatpush.bf16.msra.mxu0 0
      %3773 = vmatpush.bf16.msra.mxu0 0
      %3774 = vmatpush.bf16.msra.mxu0 0
      %3775 = vmatpush.bf16.msra.mxu0 0
      %3776 = vmatpush.bf16.msra.mxu0 %v3767
      %3777 = vmatmul.bf16.gmra.mxu0 %v2162
      %v3778 = vpop.f32.mrf.mxu0
      %v3779 = vadd.f32 %v2104, %v3778
      %v3780 = vpop.f32.mrf.mxu0
      %v3781 = vadd.f32 %v2109, %v3780
      %3782 = vmatmul.bf16.gmra.mxu0 %v2165
      %v3783 = vpop.f32.mrf.mxu0
      %v3784 = vadd.f32 %v2114, %v3783
      %v3785 = vpop.f32.mrf.mxu0
      %v3786 = vadd.f32 %v2119, %v3785
      %3787 = vmatmul.bf16.gmra.mxu0 %v2168
      %v3788 = vpop.f32.mrf.mxu0
      %v3789 = vadd.f32 %v2124, %v3788
      %v3790 = vpop.f32.mrf.mxu0
      %v3791 = vadd.f32 %v2129, %v3790
      %3792 = vmatmul.bf16.gmra.mxu0 %v2171
      %v3793 = vpop.f32.mrf.mxu0
      %v3794 = vadd.f32 %v2134, %v3793
      %v3795 = vpop.f32.mrf.mxu0
      %v3796 = vadd.f32 %v2139, %v3795
      %3797 = vdwg.mxu0
      %v3798 = vmax.f32 %v3779, 0.0
      %v3799 = vmax.f32 %v3781, 0.0
      %v3800 = vmax.f32 %v3784, 0.0
      %v3801 = vmax.f32 %v3786, 0.0
      %v3802 = vmax.f32 %v3789, 0.0
      %v3803 = vmax.f32 %v3791, 0.0
      %v3804 = vmax.f32 %v3794, 0.0
      %v3805 = vmax.f32 %v3796, 0.0
      %v3806 = vpack.c.bf16 %v3799, %v3798
      %v3807 = vpack.c.bf16 %v3801, %v3800
      %v3808 = vpack.c.bf16 %v3803, %v3802
      %v3809 = vpack.c.bf16 %v3805, %v3804
      %3810 = vmatpush.bf16.msra.mxu0 0
      %3811 = vmatpush.bf16.msra.mxu0 0
      %3812 = vmatpush.bf16.msra.mxu0 0
      %3813 = vmatpush.bf16.msra.mxu0 0
      %3814 = vmatpush.bf16.msra.mxu0 %v3809
      %3815 = vmatpush.bf16.msra.mxu0 %v3808
      %3816 = vmatpush.bf16.msra.mxu0 %v3807
      %3817 = vmatpush.bf16.msra.mxu0 %v3806
      %3818 = vmatmul.bf16.gmra.mxu0 %v2339
      %v3819 = vpop.f32.mrf.mxu0
      %v3820 = vadd.f32 %v2220, %v3819
      %v3821 = vpop.f32.mrf.mxu0
      %v3822 = vadd.f32 %v2225, %v3821
      %3823 = vmatmul.bf16.gmra.mxu0 %v2342
      %v3824 = vpop.f32.mrf.mxu0
      %v3825 = vadd.f32 %v2230, %v3824
      %v3826 = vpop.f32.mrf.mxu0
      %v3827 = vadd.f32 %v2235, %v3826
      %3828 = vmatmul.bf16.gmra.mxu0 %v2345
      %v3829 = vpop.f32.mrf.mxu0
      %v3830 = vadd.f32 %v2240, %v3829
      %v3831 = vpop.f32.mrf.mxu0
      %v3832 = vadd.f32 %v2245, %v3831
      %3833 = vmatmul.bf16.gmra.mxu0 %v2348
      %v3834 = vpop.f32.mrf.mxu0
      %v3835 = vadd.f32 %v2250, %v3834
      %v3836 = vpop.f32.mrf.mxu0
      %v3837 = vadd.f32 %v2255, %v3836
      %3838 = vmatmul.bf16.gmra.mxu0 %v2351
      %v3839 = vpop.f32.mrf.mxu0
      %v3840 = vadd.f32 %v2260, %v3839
      %v3841 = vpop.f32.mrf.mxu0
      %v3842 = vadd.f32 %v2265, %v3841
      %3843 = vmatmul.bf16.gmra.mxu0 %v2354
      %v3844 = vpop.f32.mrf.mxu0
      %v3845 = vadd.f32 %v2270, %v3844
      %v3846 = vpop.f32.mrf.mxu0
      %v3847 = vadd.f32 %v2275, %v3846
      %3848 = vmatmul.bf16.gmra.mxu0 %v2357
      %v3849 = vpop.f32.mrf.mxu0
      %v3850 = vadd.f32 %v2280, %v3849
      %v3851 = vpop.f32.mrf.mxu0
      %v3852 = vadd.f32 %v2285, %v3851
      %3853 = vmatmul.bf16.gmra.mxu0 %v2360
      %v3854 = vpop.f32.mrf.mxu0
      %v3855 = vadd.f32 %v2290, %v3854
      %v3856 = vpop.f32.mrf.mxu0
      %v3857 = vadd.f32 %v2295, %v3856
      %3858 = vdwg.mxu0
      %v3859 = vmax.f32 %v3820, 0.0
      %v3860 = vmax.f32 %v3822, 0.0
      %v3861 = vmax.f32 %v3825, 0.0
      %v3862 = vmax.f32 %v3827, 0.0
      %v3863 = vmax.f32 %v3830, 0.0
      %v3864 = vmax.f32 %v3832, 0.0
      %v3865 = vmax.f32 %v3835, 0.0
      %v3866 = vmax.f32 %v3837, 0.0
      %v3867 = vmax.f32 %v3840, 0.0
      %v3868 = vmax.f32 %v3842, 0.0
      %v3869 = vmax.f32 %v3845, 0.0
      %v3870 = vmax.f32 %v3847, 0.0
      %v3871 = vmax.f32 %v3850, 0.0
      %v3872 = vmax.f32 %v3852, 0.0
      %v3873 = vmax.f32 %v3855, 0.0
      %v3874 = vmax.f32 %v3857, 0.0
      %v3875 = vpack.c.bf16 %v3860, %v3859
      %v3876 = vpack.c.bf16 %v3862, %v3861
      %v3877 = vpack.c.bf16 %v3864, %v3863
      %v3878 = vpack.c.bf16 %v3866, %v3865
      %v3879 = vpack.c.bf16 %v3868, %v3867
      %v3880 = vpack.c.bf16 %v3870, %v3869
      %v3881 = vpack.c.bf16 %v3872, %v3871
      %v3882 = vpack.c.bf16 %v3874, %v3873
      %3883 = vmatpush.bf16.msra.mxu0 %v3882
      %3884 = vmatpush.bf16.msra.mxu0 %v3881
      %3885 = vmatpush.bf16.msra.mxu0 %v3880
      %3886 = vmatpush.bf16.msra.mxu0 %v3879
      %3887 = vmatpush.bf16.msra.mxu0 %v3878
      %3888 = vmatpush.bf16.msra.mxu0 %v3877
      %3889 = vmatpush.bf16.msra.mxu0 %v3876
      %3890 = vmatpush.bf16.msra.mxu0 %v3875
      %3891 = vmatmul.bf16.gmra.mxu0 %v2547
      %v3892 = vpop.f32.mrf.mxu0
      %v3893 = vadd.f32 %v2438, %v3892
      %v3894 = vpop.f32.mrf.mxu0
      %v3895 = vadd.f32 %v2443, %v3894
      %3896 = vmatmul.bf16.gmra.mxu0 %v2548
      %v3897 = vpop.f32.mrf.mxu0
      %v3898 = vadd.f32 %v2448, %v3897
      %v3899 = vpop.f32.mrf.mxu0
      %v3900 = vadd.f32 %v2453, %v3899
      %3901 = vmatmul.bf16.gmra.mxu0 %v2549
      %v3902 = vpop.f32.mrf.mxu0
      %v3903 = vadd.f32 %v2458, %v3902
      %v3904 = vpop.f32.mrf.mxu0
      %v3905 = vadd.f32 %v2463, %v3904
      %3906 = vmatmul.bf16.gmra.mxu0 %v2550
      %v3907 = vpop.f32.mrf.mxu0
      %v3908 = vadd.f32 %v2468, %v3907
      %v3909 = vpop.f32.mrf.mxu0
      %v3910 = vadd.f32 %v2473, %v3909
      %3911 = vmatmul.bf16.gmra.mxu0 %v2551
      %v3912 = vpop.f32.mrf.mxu0
      %v3913 = vadd.f32 %v2478, %v3912
      %v3914 = vpop.f32.mrf.mxu0
      %v3915 = vadd.f32 %v2483, %v3914
      %3916 = vmatmul.bf16.gmra.mxu0 %v2552
      %v3917 = vpop.f32.mrf.mxu0
      %v3918 = vadd.f32 %v2488, %v3917
      %v3919 = vpop.f32.mrf.mxu0
      %v3920 = vadd.f32 %v2493, %v3919
      %3921 = vmatmul.bf16.gmra.mxu0 %v2553
      %v3922 = vpop.f32.mrf.mxu0
      %v3923 = vadd.f32 %v2498, %v3922
      %v3924 = vpop.f32.mrf.mxu0
      %v3925 = vadd.f32 %v2503, %v3924
      %3926 = vmatmul.bf16.gmra.mxu0 %v2554
      %v3927 = vpop.f32.mrf.mxu0
      %v3928 = vadd.f32 %v2508, %v3927
      %v3929 = vpop.f32.mrf.mxu0
      %v3930 = vadd.f32 %v2513, %v3929
      %3931 = vdwg.mxu0
      %v3932 = vmax.f32 %v3893, 0.0
      %v3933 = vmax.f32 %v3895, 0.0
      %v3934 = vmax.f32 %v3898, 0.0
      %v3935 = vmax.f32 %v3900, 0.0
      %v3936 = vmax.f32 %v3903, 0.0
      %v3937 = vmax.f32 %v3905, 0.0
      %v3938 = vmax.f32 %v3908, 0.0
      %v3939 = vmax.f32 %v3910, 0.0
      %v3940 = vmax.f32 %v3913, 0.0
      %v3941 = vmax.f32 %v3915, 0.0
      %v3942 = vmax.f32 %v3918, 0.0
      %v3943 = vmax.f32 %v3920, 0.0
      %v3944 = vmax.f32 %v3923, 0.0
      %v3945 = vmax.f32 %v3925, 0.0
      %v3946 = vmax.f32 %v3928, 0.0
      %v3947 = vmax.f32 %v3930, 0.0
      %v3948 = vpack.c.bf16 %v3933, %v3932
      %v3949 = vpack.c.bf16 %v3935, %v3934
      %v3950 = vpack.c.bf16 %v3937, %v3936
      %v3951 = vpack.c.bf16 %v3939, %v3938
      %v3952 = vpack.c.bf16 %v3941, %v3940
      %v3953 = vpack.c.bf16 %v3943, %v3942
      %v3954 = vpack.c.bf16 %v3945, %v3944
      %v3955 = vpack.c.bf16 %v3947, %v3946
      %3956 = vmatpush.bf16.msra.mxu0 %v3955
      %3957 = vmatpush.bf16.msra.mxu0 %v3954
      %3958 = vmatpush.bf16.msra.mxu0 %v3953
      %3959 = vmatpush.bf16.msra.mxu0 %v3952
      %3960 = vmatpush.bf16.msra.mxu0 %v3951
      %3961 = vmatpush.bf16.msra.mxu0 %v3950
      %3962 = vmatpush.bf16.msra.mxu0 %v3949
      %3963 = vmatpush.bf16.msra.mxu0 %v3948
      %3964 = vmatmul.bf16.gmra.mxu0 %v2860
      %v3965 = vpop.f32.mrf.mxu0
      %v3966 = vadd.f32 %v2639, %v3965
      %v3967 = vpop.f32.mrf.mxu0
      %v3968 = vadd.f32 %v2644, %v3967
      %3969 = vmatmul.bf16.gmra.mxu0 %v2861
      %v3970 = vpop.f32.mrf.mxu0
      %v3971 = vadd.f32 %v2649, %v3970
      %v3972 = vpop.f32.mrf.mxu0
      %v3973 = vadd.f32 %v2654, %v3972
      %3974 = vmatmul.bf16.gmra.mxu0 %v2862
      %v3975 = vpop.f32.mrf.mxu0
      %v3976 = vadd.f32 %v2659, %v3975
      %v3977 = vpop.f32.mrf.mxu0
      %v3978 = vadd.f32 %v2664, %v3977
      %3979 = vmatmul.bf16.gmra.mxu0 %v2863
      %v3980 = vpop.f32.mrf.mxu0
      %v3981 = vadd.f32 %v2669, %v3980
      %v3982 = vpop.f32.mrf.mxu0
      %v3983 = vadd.f32 %v2674, %v3982
      %3984 = vmatmul.bf16.gmra.mxu0 %v2864
      %v3985 = vpop.f32.mrf.mxu0
      %v3986 = vadd.f32 %v2679, %v3985
      %v3987 = vpop.f32.mrf.mxu0
      %v3988 = vadd.f32 %v2684, %v3987
      %3989 = vmatmul.bf16.gmra.mxu0 %v2865
      %v3990 = vpop.f32.mrf.mxu0
      %v3991 = vadd.f32 %v2689, %v3990
      %v3992 = vpop.f32.mrf.mxu0
      %v3993 = vadd.f32 %v2694, %v3992
      %3994 = vmatmul.bf16.gmra.mxu0 %v2866
      %v3995 = vpop.f32.mrf.mxu0
      %v3996 = vadd.f32 %v2699, %v3995
      %v3997 = vpop.f32.mrf.mxu0
      %v3998 = vadd.f32 %v2704, %v3997
      %3999 = vmatmul.bf16.gmra.mxu0 %v2867
      %v4000 = vpop.f32.mrf.mxu0
      %v4001 = vadd.f32 %v2709, %v4000
      %v4002 = vpop.f32.mrf.mxu0
      %v4003 = vadd.f32 %v2714, %v4002
      %4004 = vmatmul.bf16.gmra.mxu0 %v2868
      %v4005 = vpop.f32.mrf.mxu0
      %v4006 = vadd.f32 %v2719, %v4005
      %v4007 = vpop.f32.mrf.mxu0
      %v4008 = vadd.f32 %v2724, %v4007
      %4009 = vmatmul.bf16.gmra.mxu0 %v2869
      %v4010 = vpop.f32.mrf.mxu0
      %v4011 = vadd.f32 %v2729, %v4010
      %v4012 = vpop.f32.mrf.mxu0
      %v4013 = vadd.f32 %v2734, %v4012
      %4014 = vmatmul.bf16.gmra.mxu0 %v2870
      %v4015 = vpop.f32.mrf.mxu0
      %v4016 = vadd.f32 %v2739, %v4015
      %v4017 = vpop.f32.mrf.mxu0
      %v4018 = vadd.f32 %v2744, %v4017
      %4019 = vmatmul.bf16.gmra.mxu0 %v2871
      %v4020 = vpop.f32.mrf.mxu0
      %v4021 = vadd.f32 %v2749, %v4020
      %v4022 = vpop.f32.mrf.mxu0
      %v4023 = vadd.f32 %v2754, %v4022
      %4024 = vmatmul.bf16.gmra.mxu0 %v2872
      %v4025 = vpop.f32.mrf.mxu0
      %v4026 = vadd.f32 %v2759, %v4025
      %v4027 = vpop.f32.mrf.mxu0
      %v4028 = vadd.f32 %v2764, %v4027
      %4029 = vmatmul.bf16.gmra.mxu0 %v2873
      %v4030 = vpop.f32.mrf.mxu0
      %v4031 = vadd.f32 %v2769, %v4030
      %v4032 = vpop.f32.mrf.mxu0
      %v4033 = vadd.f32 %v2774, %v4032
      %4034 = vmatmul.bf16.gmra.mxu0 %v2874
      %v4035 = vpop.f32.mrf.mxu0
      %v4036 = vadd.f32 %v2779, %v4035
      %v4037 = vpop.f32.mrf.mxu0
      %v4038 = vadd.f32 %v2784, %v4037
      %4039 = vmatmul.bf16.gmra.mxu0 %v2875
      %v4040 = vpop.f32.mrf.mxu0
      %v4041 = vadd.f32 %v2789, %v4040
      %v4042 = vpop.f32.mrf.mxu0
      %v4043 = vadd.f32 %v2794, %v4042
      %4044 = vdwg.mxu0
      %v4045 = vmax.f32 %v3966, 0.0
      %v4046 = vmax.f32 %v3968, 0.0
      %v4047 = vmax.f32 %v3971, 0.0
      %v4048 = vmax.f32 %v3973, 0.0
      %v4049 = vmax.f32 %v3976, 0.0
      %v4050 = vmax.f32 %v3978, 0.0
      %v4051 = vmax.f32 %v3981, 0.0
      %v4052 = vmax.f32 %v3983, 0.0
      %v4053 = vmax.f32 %v3986, 0.0
      %v4054 = vmax.f32 %v3988, 0.0
      %v4055 = vmax.f32 %v3991, 0.0
      %v4056 = vmax.f32 %v3993, 0.0
      %v4057 = vmax.f32 %v3996, 0.0
      %v4058 = vmax.f32 %v3998, 0.0
      %v4059 = vmax.f32 %v4001, 0.0
      %v4060 = vmax.f32 %v4003, 0.0
      %v4061 = vmax.f32 %v4006, 0.0
      %v4062 = vmax.f32 %v4008, 0.0
      %v4063 = vmax.f32 %v4011, 0.0
      %v4064 = vmax.f32 %v4013, 0.0
      %v4065 = vmax.f32 %v4016, 0.0
      %v4066 = vmax.f32 %v4018, 0.0
      %v4067 = vmax.f32 %v4021, 0.0
      %v4068 = vmax.f32 %v4023, 0.0
      %v4069 = vmax.f32 %v4026, 0.0
      %v4070 = vmax.f32 %v4028, 0.0
      %v4071 = vmax.f32 %v4031, 0.0
      %v4072 = vmax.f32 %v4033, 0.0
      %v4073 = vmax.f32 %v4036, 0.0
      %v4074 = vmax.f32 %v4038, 0.0
      %v4075 = vmax.f32 %v4041, 0.0
      %v4076 = vmax.f32 %v4043, 0.0
      %v4077 = vmax.f32 %v3712, %v4045
      %v4078 = vmax.f32 %v3713, %v4046
      %v4079 = vmax.f32 %v3714, %v4047
      %v4080 = vmax.f32 %v3715, %v4048
      %v4081 = vmax.f32 %v3716, %v4049
      %v4082 = vmax.f32 %v3717, %v4050
      %v4083 = vmax.f32 %v3718, %v4051
      %v4084 = vmax.f32 %v3719, %v4052
      %v4085 = vmax.f32 %v3720, %v4053
      %v4086 = vmax.f32 %v3721, %v4054
      %v4087 = vmax.f32 %v3722, %v4055
      %v4088 = vmax.f32 %v3723, %v4056
      %v4089 = vmax.f32 %v3724, %v4057
      %v4090 = vmax.f32 %v3725, %v4058
      %v4091 = vmax.f32 %v3726, %v4059
      %v4092 = vmax.f32 %v3727, %v4060
      %v4093 = vmax.f32 %v3728, %v4061
      %v4094 = vmax.f32 %v3729, %v4062
      %v4095 = vmax.f32 %v3730, %v4063
      %v4096 = vmax.f32 %v3731, %v4064
      %v4097 = vmax.f32 %v3732, %v4065
      %v4098 = vmax.f32 %v3733, %v4066
      %v4099 = vmax.f32 %v3734, %v4067
      %v4100 = vmax.f32 %v3735, %v4068
      %v4101 = vmax.f32 %v3736, %v4069
      %v4102 = vmax.f32 %v3737, %v4070
      %v4103 = vmax.f32 %v3738, %v4071
      %v4104 = vmax.f32 %v3739, %v4072
      %v4105 = vmax.f32 %v3740, %v4073
      %v4106 = vmax.f32 %v3741, %v4074
      %v4107 = vmax.f32 %v3742, %v4075
      %v4108 = vmax.f32 %v3743, %v4076
      %v4109 = vrot.slane %v1624, 4
      %v4111 = vrot.slane %v1641, 3
      %v4113 = vrot.slane %v1651, 2
      %v4115 = vrot.slane %v1661, 1
      %v4117 = vrot.slane %v1815, 7
      %v4119 = vrot.slane %v1825, 6
      %v4121 = vrot.slane %v1919, 5
      %v4123 = vsel %vm2086, %v4109, %v4111
      %v4124 = vsel %vm2088, %v4123, %v4113
      %v4125 = vsel %vm2090, %v4124, %v4115
      %v4126 = vsel %vm2092, %v4125, %v1755
      %v4127 = vsel %vm2094, %v4126, %v4117
      %v4128 = vsel %vm2096, %v4127, %v4119
      %v4129 = vsel %vm2098, %v4128, %v4121
      %v4130 = vpack.c.bf16 %v4129, %v4129
      %v4132 = vsel %vm2092, %v4130, 0
      %4134 = vmatpush.bf16.msra.mxu0 0
      %4135 = vmatpush.bf16.msra.mxu0 0
      %4136 = vmatpush.bf16.msra.mxu0 0
      %4137 = vmatpush.bf16.msra.mxu0 0
      %4138 = vmatpush.bf16.msra.mxu0 0
      %4139 = vmatpush.bf16.msra.mxu0 0
      %4140 = vmatpush.bf16.msra.mxu0 0
      %4141 = vmatpush.bf16.msra.mxu0 %v4132
      %4142 = vmatmul.bf16.gmra.mxu0 %v2162
      %v4143 = vpop.f32.mrf.mxu0
      %v4144 = vadd.f32 %v2104, %v4143
      %v4145 = vpop.f32.mrf.mxu0
      %v4146 = vadd.f32 %v2109, %v4145
      %4147 = vmatmul.bf16.gmra.mxu0 %v2165
      %v4148 = vpop.f32.mrf.mxu0
      %v4149 = vadd.f32 %v2114, %v4148
      %v4150 = vpop.f32.mrf.mxu0
      %v4151 = vadd.f32 %v2119, %v4150
      %4152 = vmatmul.bf16.gmra.mxu0 %v2168
      %v4153 = vpop.f32.mrf.mxu0
      %v4154 = vadd.f32 %v2124, %v4153
      %v4155 = vpop.f32.mrf.mxu0
      %v4156 = vadd.f32 %v2129, %v4155
      %4157 = vmatmul.bf16.gmra.mxu0 %v2171
      %v4158 = vpop.f32.mrf.mxu0
      %v4159 = vadd.f32 %v2134, %v4158
      %v4160 = vpop.f32.mrf.mxu0
      %v4161 = vadd.f32 %v2139, %v4160
      %4162 = vdwg.mxu0
      %v4163 = vmax.f32 %v4144, 0.0
      %v4164 = vmax.f32 %v4146, 0.0
      %v4165 = vmax.f32 %v4149, 0.0
      %v4166 = vmax.f32 %v4151, 0.0
      %v4167 = vmax.f32 %v4154, 0.0
      %v4168 = vmax.f32 %v4156, 0.0
      %v4169 = vmax.f32 %v4159, 0.0
      %v4170 = vmax.f32 %v4161, 0.0
      %v4171 = vpack.c.bf16 %v4164, %v4163
      %v4172 = vpack.c.bf16 %v4166, %v4165
      %v4173 = vpack.c.bf16 %v4168, %v4167
      %v4174 = vpack.c.bf16 %v4170, %v4169
      %4175 = vmatpush.bf16.msra.mxu0 0
      %4176 = vmatpush.bf16.msra.mxu0 0
      %4177 = vmatpush.bf16.msra.mxu0 0
      %4178 = vmatpush.bf16.msra.mxu0 0
      %4179 = vmatpush.bf16.msra.mxu0 %v4174
      %4180 = vmatpush.bf16.msra.mxu0 %v4173
      %4181 = vmatpush.bf16.msra.mxu0 %v4172
      %4182 = vmatpush.bf16.msra.mxu0 %v4171
      %4183 = vmatmul.bf16.gmra.mxu0 %v2339
      %v4184 = vpop.f32.mrf.mxu0
      %v4185 = vadd.f32 %v2220, %v4184
      %v4186 = vpop.f32.mrf.mxu0
      %v4187 = vadd.f32 %v2225, %v4186
      %4188 = vmatmul.bf16.gmra.mxu0 %v2342
      %v4189 = vpop.f32.mrf.mxu0
      %v4190 = vadd.f32 %v2230, %v4189
      %v4191 = vpop.f32.mrf.mxu0
      %v4192 = vadd.f32 %v2235, %v4191
      %4193 = vmatmul.bf16.gmra.mxu0 %v2345
      %v4194 = vpop.f32.mrf.mxu0
      %v4195 = vadd.f32 %v2240, %v4194
      %v4196 = vpop.f32.mrf.mxu0
      %v4197 = vadd.f32 %v2245, %v4196
      %4198 = vmatmul.bf16.gmra.mxu0 %v2348
      %v4199 = vpop.f32.mrf.mxu0
      %v4200 = vadd.f32 %v2250, %v4199
      %v4201 = vpop.f32.mrf.mxu0
      %v4202 = vadd.f32 %v2255, %v4201
      %4203 = vmatmul.bf16.gmra.mxu0 %v2351
      %v4204 = vpop.f32.mrf.mxu0
      %v4205 = vadd.f32 %v2260, %v4204
      %v4206 = vpop.f32.mrf.mxu0
      %v4207 = vadd.f32 %v2265, %v4206
      %4208 = vmatmul.bf16.gmra.mxu0 %v2354
      %v4209 = vpop.f32.mrf.mxu0
      %v4210 = vadd.f32 %v2270, %v4209
      %v4211 = vpop.f32.mrf.mxu0
      %v4212 = vadd.f32 %v2275, %v4211
      %4213 = vmatmul.bf16.gmra.mxu0 %v2357
      %v4214 = vpop.f32.mrf.mxu0
      %v4215 = vadd.f32 %v2280, %v4214
      %v4216 = vpop.f32.mrf.mxu0
      %v4217 = vadd.f32 %v2285, %v4216
      %4218 = vmatmul.bf16.gmra.mxu0 %v2360
      %v4219 = vpop.f32.mrf.mxu0
      %v4220 = vadd.f32 %v2290, %v4219
      %v4221 = vpop.f32.mrf.mxu0
      %v4222 = vadd.f32 %v2295, %v4221
      %4223 = vdwg.mxu0
      %v4224 = vmax.f32 %v4185, 0.0
      %v4225 = vmax.f32 %v4187, 0.0
      %v4226 = vmax.f32 %v4190, 0.0
      %v4227 = vmax.f32 %v4192, 0.0
      %v4228 = vmax.f32 %v4195, 0.0
      %v4229 = vmax.f32 %v4197, 0.0
      %v4230 = vmax.f32 %v4200, 0.0
      %v4231 = vmax.f32 %v4202, 0.0
      %v4232 = vmax.f32 %v4205, 0.0
      %v4233 = vmax.f32 %v4207, 0.0
      %v4234 = vmax.f32 %v4210, 0.0
      %v4235 = vmax.f32 %v4212, 0.0
      %v4236 = vmax.f32 %v4215, 0.0
      %v4237 = vmax.f32 %v4217, 0.0
      %v4238 = vmax.f32 %v4220, 0.0
      %v4239 = vmax.f32 %v4222, 0.0
      %v4240 = vpack.c.bf16 %v4225, %v4224
      %v4241 = vpack.c.bf16 %v4227, %v4226
      %v4242 = vpack.c.bf16 %v4229, %v4228
      %v4243 = vpack.c.bf16 %v4231, %v4230
      %v4244 = vpack.c.bf16 %v4233, %v4232
      %v4245 = vpack.c.bf16 %v4235, %v4234
      %v4246 = vpack.c.bf16 %v4237, %v4236
      %v4247 = vpack.c.bf16 %v4239, %v4238
      %4248 = vmatpush.bf16.msra.mxu0 %v4247
      %4249 = vmatpush.bf16.msra.mxu0 %v4246
      %4250 = vmatpush.bf16.msra.mxu0 %v4245
      %4251 = vmatpush.bf16.msra.mxu0 %v4244
      %4252 = vmatpush.bf16.msra.mxu0 %v4243
      %4253 = vmatpush.bf16.msra.mxu0 %v4242
      %4254 = vmatpush.bf16.msra.mxu0 %v4241
      %4255 = vmatpush.bf16.msra.mxu0 %v4240
      %4256 = vmatmul.bf16.gmra.mxu0 %v2547
      %v4257 = vpop.f32.mrf.mxu0
      %v4258 = vadd.f32 %v2438, %v4257
      %v4259 = vpop.f32.mrf.mxu0
      %v4260 = vadd.f32 %v2443, %v4259
      %4261 = vmatmul.bf16.gmra.mxu0 %v2548
      %v4262 = vpop.f32.mrf.mxu0
      %v4263 = vadd.f32 %v2448, %v4262
      %v4264 = vpop.f32.mrf.mxu0
      %v4265 = vadd.f32 %v2453, %v4264
      %4266 = vmatmul.bf16.gmra.mxu0 %v2549
      %v4267 = vpop.f32.mrf.mxu0
      %v4268 = vadd.f32 %v2458, %v4267
      %v4269 = vpop.f32.mrf.mxu0
      %v4270 = vadd.f32 %v2463, %v4269
      %4271 = vmatmul.bf16.gmra.mxu0 %v2550
      %v4272 = vpop.f32.mrf.mxu0
      %v4273 = vadd.f32 %v2468, %v4272
      %v4274 = vpop.f32.mrf.mxu0
      %v4275 = vadd.f32 %v2473, %v4274
      %4276 = vmatmul.bf16.gmra.mxu0 %v2551
      %v4277 = vpop.f32.mrf.mxu0
      %v4278 = vadd.f32 %v2478, %v4277
      %v4279 = vpop.f32.mrf.mxu0
      %v4280 = vadd.f32 %v2483, %v4279
      %4281 = vmatmul.bf16.gmra.mxu0 %v2552
      %v4282 = vpop.f32.mrf.mxu0
      %v4283 = vadd.f32 %v2488, %v4282
      %v4284 = vpop.f32.mrf.mxu0
      %v4285 = vadd.f32 %v2493, %v4284
      %4286 = vmatmul.bf16.gmra.mxu0 %v2553
      %v4287 = vpop.f32.mrf.mxu0
      %v4288 = vadd.f32 %v2498, %v4287
      %v4289 = vpop.f32.mrf.mxu0
      %v4290 = vadd.f32 %v2503, %v4289
      %4291 = vmatmul.bf16.gmra.mxu0 %v2554
      %v4292 = vpop.f32.mrf.mxu0
      %v4293 = vadd.f32 %v2508, %v4292
      %v4294 = vpop.f32.mrf.mxu0
      %v4295 = vadd.f32 %v2513, %v4294
      %4296 = vdwg.mxu0
      %v4297 = vmax.f32 %v4258, 0.0
      %v4298 = vmax.f32 %v4260, 0.0
      %v4299 = vmax.f32 %v4263, 0.0
      %v4300 = vmax.f32 %v4265, 0.0
      %v4301 = vmax.f32 %v4268, 0.0
      %v4302 = vmax.f32 %v4270, 0.0
      %v4303 = vmax.f32 %v4273, 0.0
      %v4304 = vmax.f32 %v4275, 0.0
      %v4305 = vmax.f32 %v4278, 0.0
      %v4306 = vmax.f32 %v4280, 0.0
      %v4307 = vmax.f32 %v4283, 0.0
      %v4308 = vmax.f32 %v4285, 0.0
      %v4309 = vmax.f32 %v4288, 0.0
      %v4310 = vmax.f32 %v4290, 0.0
      %v4311 = vmax.f32 %v4293, 0.0
      %v4312 = vmax.f32 %v4295, 0.0
      %v4313 = vpack.c.bf16 %v4298, %v4297
      %v4314 = vpack.c.bf16 %v4300, %v4299
      %v4315 = vpack.c.bf16 %v4302, %v4301
      %v4316 = vpack.c.bf16 %v4304, %v4303
      %v4317 = vpack.c.bf16 %v4306, %v4305
      %v4318 = vpack.c.bf16 %v4308, %v4307
      %v4319 = vpack.c.bf16 %v4310, %v4309
      %v4320 = vpack.c.bf16 %v4312, %v4311
      %4321 = vmatpush.bf16.msra.mxu0 %v4320
      %4322 = vmatpush.bf16.msra.mxu0 %v4319
      %4323 = vmatpush.bf16.msra.mxu0 %v4318
      %4324 = vmatpush.bf16.msra.mxu0 %v4317
      %4325 = vmatpush.bf16.msra.mxu0 %v4316
      %4326 = vmatpush.bf16.msra.mxu0 %v4315
      %4327 = vmatpush.bf16.msra.mxu0 %v4314
      %4328 = vmatpush.bf16.msra.mxu0 %v4313
      %4329 = vmatmul.bf16.gmra.mxu0 %v2860
      %v4330 = vpop.f32.mrf.mxu0
      %v4331 = vadd.f32 %v2639, %v4330
      %v4332 = vpop.f32.mrf.mxu0
      %v4333 = vadd.f32 %v2644, %v4332
      %4334 = vmatmul.bf16.gmra.mxu0 %v2861
      %v4335 = vpop.f32.mrf.mxu0
      %v4336 = vadd.f32 %v2649, %v4335
      %v4337 = vpop.f32.mrf.mxu0
      %v4338 = vadd.f32 %v2654, %v4337
      %4339 = vmatmul.bf16.gmra.mxu0 %v2862
      %v4340 = vpop.f32.mrf.mxu0
      %v4341 = vadd.f32 %v2659, %v4340
      %v4342 = vpop.f32.mrf.mxu0
      %v4343 = vadd.f32 %v2664, %v4342
      %4344 = vmatmul.bf16.gmra.mxu0 %v2863
      %v4345 = vpop.f32.mrf.mxu0
      %v4346 = vadd.f32 %v2669, %v4345
      %v4347 = vpop.f32.mrf.mxu0
      %v4348 = vadd.f32 %v2674, %v4347
      %4349 = vmatmul.bf16.gmra.mxu0 %v2864
      %v4350 = vpop.f32.mrf.mxu0
      %v4351 = vadd.f32 %v2679, %v4350
      %v4352 = vpop.f32.mrf.mxu0
      %v4353 = vadd.f32 %v2684, %v4352
      %4354 = vmatmul.bf16.gmra.mxu0 %v2865
      %v4355 = vpop.f32.mrf.mxu0
      %v4356 = vadd.f32 %v2689, %v4355
      %v4357 = vpop.f32.mrf.mxu0
      %v4358 = vadd.f32 %v2694, %v4357
      %4359 = vmatmul.bf16.gmra.mxu0 %v2866
      %v4360 = vpop.f32.mrf.mxu0
      %v4361 = vadd.f32 %v2699, %v4360
      %v4362 = vpop.f32.mrf.mxu0
      %v4363 = vadd.f32 %v2704, %v4362
      %4364 = vmatmul.bf16.gmra.mxu0 %v2867
      %v4365 = vpop.f32.mrf.mxu0
      %v4366 = vadd.f32 %v2709, %v4365
      %v4367 = vpop.f32.mrf.mxu0
      %v4368 = vadd.f32 %v2714, %v4367
      %4369 = vmatmul.bf16.gmra.mxu0 %v2868
      %v4370 = vpop.f32.mrf.mxu0
      %v4371 = vadd.f32 %v2719, %v4370
      %v4372 = vpop.f32.mrf.mxu0
      %v4373 = vadd.f32 %v2724, %v4372
      %4374 = vmatmul.bf16.gmra.mxu0 %v2869
      %v4375 = vpop.f32.mrf.mxu0
      %v4376 = vadd.f32 %v2729, %v4375
      %v4377 = vpop.f32.mrf.mxu0
      %v4378 = vadd.f32 %v2734, %v4377
      %4379 = vmatmul.bf16.gmra.mxu0 %v2870
      %v4380 = vpop.f32.mrf.mxu0
      %v4381 = vadd.f32 %v2739, %v4380
      %v4382 = vpop.f32.mrf.mxu0
      %v4383 = vadd.f32 %v2744, %v4382
      %4384 = vmatmul.bf16.gmra.mxu0 %v2871
      %v4385 = vpop.f32.mrf.mxu0
      %v4386 = vadd.f32 %v2749, %v4385
      %v4387 = vpop.f32.mrf.mxu0
      %v4388 = vadd.f32 %v2754, %v4387
      %4389 = vmatmul.bf16.gmra.mxu0 %v2872
      %v4390 = vpop.f32.mrf.mxu0
      %v4391 = vadd.f32 %v2759, %v4390
      %v4392 = vpop.f32.mrf.mxu0
      %v4393 = vadd.f32 %v2764, %v4392
      %4394 = vmatmul.bf16.gmra.mxu0 %v2873
      %v4395 = vpop.f32.mrf.mxu0
      %v4396 = vadd.f32 %v2769, %v4395
      %v4397 = vpop.f32.mrf.mxu0
      %v4398 = vadd.f32 %v2774, %v4397
      %4399 = vmatmul.bf16.gmra.mxu0 %v2874
      %v4400 = vpop.f32.mrf.mxu0
      %v4401 = vadd.f32 %v2779, %v4400
      %v4402 = vpop.f32.mrf.mxu0
      %v4403 = vadd.f32 %v2784, %v4402
      %4404 = vmatmul.bf16.gmra.mxu0 %v2875
      %v4405 = vpop.f32.mrf.mxu0
      %v4406 = vadd.f32 %v2789, %v4405
      %v4407 = vpop.f32.mrf.mxu0
      %v4408 = vadd.f32 %v2794, %v4407
      %4409 = vdwg.mxu0
      %v4410 = vmax.f32 %v4331, 0.0
      %v4411 = vmax.f32 %v4333, 0.0
      %v4412 = vmax.f32 %v4336, 0.0
      %v4413 = vmax.f32 %v4338, 0.0
      %v4414 = vmax.f32 %v4341, 0.0
      %v4415 = vmax.f32 %v4343, 0.0
      %v4416 = vmax.f32 %v4346, 0.0
      %v4417 = vmax.f32 %v4348, 0.0
      %v4418 = vmax.f32 %v4351, 0.0
      %v4419 = vmax.f32 %v4353, 0.0
      %v4420 = vmax.f32 %v4356, 0.0
      %v4421 = vmax.f32 %v4358, 0.0
      %v4422 = vmax.f32 %v4361, 0.0
      %v4423 = vmax.f32 %v4363, 0.0
      %v4424 = vmax.f32 %v4366, 0.0
      %v4425 = vmax.f32 %v4368, 0.0
      %v4426 = vmax.f32 %v4371, 0.0
      %v4427 = vmax.f32 %v4373, 0.0
      %v4428 = vmax.f32 %v4376, 0.0
      %v4429 = vmax.f32 %v4378, 0.0
      %v4430 = vmax.f32 %v4381, 0.0
      %v4431 = vmax.f32 %v4383, 0.0
      %v4432 = vmax.f32 %v4386, 0.0
      %v4433 = vmax.f32 %v4388, 0.0
      %v4434 = vmax.f32 %v4391, 0.0
      %v4435 = vmax.f32 %v4393, 0.0
      %v4436 = vmax.f32 %v4396, 0.0
      %v4437 = vmax.f32 %v4398, 0.0
      %v4438 = vmax.f32 %v4401, 0.0
      %v4439 = vmax.f32 %v4403, 0.0
      %v4440 = vmax.f32 %v4406, 0.0
      %v4441 = vmax.f32 %v4408, 0.0
      %v4442 = vmax.f32 %v4077, %v4410
      %v4443 = vmax.f32 %v4078, %v4411
      %v4444 = vmax.f32 %v4079, %v4412
      %v4445 = vmax.f32 %v4080, %v4413
      %v4446 = vmax.f32 %v4081, %v4414
      %v4447 = vmax.f32 %v4082, %v4415
      %v4448 = vmax.f32 %v4083, %v4416
      %v4449 = vmax.f32 %v4084, %v4417
      %v4450 = vmax.f32 %v4085, %v4418
      %v4451 = vmax.f32 %v4086, %v4419
      %v4452 = vmax.f32 %v4087, %v4420
      %v4453 = vmax.f32 %v4088, %v4421
      %v4454 = vmax.f32 %v4089, %v4422
      %v4455 = vmax.f32 %v4090, %v4423
      %v4456 = vmax.f32 %v4091, %v4424
      %v4457 = vmax.f32 %v4092, %v4425
      %v4458 = vmax.f32 %v4093, %v4426
      %v4459 = vmax.f32 %v4094, %v4427
      %v4460 = vmax.f32 %v4095, %v4428
      %v4461 = vmax.f32 %v4096, %v4429
      %v4462 = vmax.f32 %v4097, %v4430
      %v4463 = vmax.f32 %v4098, %v4431
      %v4464 = vmax.f32 %v4099, %v4432
      %v4465 = vmax.f32 %v4100, %v4433
      %v4466 = vmax.f32 %v4101, %v4434
      %v4467 = vmax.f32 %v4102, %v4435
      %v4468 = vmax.f32 %v4103, %v4436
      %v4469 = vmax.f32 %v4104, %v4437
      %v4470 = vmax.f32 %v4105, %v4438
      %v4471 = vmax.f32 %v4106, %v4439
      %v4472 = vmax.f32 %v4107, %v4440
      %v4473 = vmax.f32 %v4108, %v4441
      %v4474 = vrot.slane %v1624, 5
      %v4476 = vrot.slane %v1641, 4
      %v4478 = vrot.slane %v1651, 3
      %v4480 = vrot.slane %v1661, 2
      %v4482 = vrot.slane %v1755, 1
      %v4484 = vrot.slane %v1825, 7
      %v4486 = vrot.slane %v1919, 6
      %v4488 = vsel %vm2086, %v4474, %v4476
      %v4489 = vsel %vm2088, %v4488, %v4478
      %v4490 = vsel %vm2090, %v4489, %v4480
      %v4491 = vsel %vm2092, %v4490, %v4482
      %v4492 = vsel %vm2094, %v4491, %v1815
      %v4493 = vsel %vm2096, %v4492, %v4484
      %v4494 = vsel %vm2098, %v4493, %v4486
      %v4495 = vpack.c.bf16 %v4494, %v4494
      %v4497 = vsel %vm2092, %v4495, 0
      %4499 = vmatpush.bf16.msra.mxu0 0
      %4500 = vmatpush.bf16.msra.mxu0 0
      %4501 = vmatpush.bf16.msra.mxu0 0
      %4502 = vmatpush.bf16.msra.mxu0 0
      %4503 = vmatpush.bf16.msra.mxu0 0
      %4504 = vmatpush.bf16.msra.mxu0 0
      %4505 = vmatpush.bf16.msra.mxu0 0
      %4506 = vmatpush.bf16.msra.mxu0 %v4497
      %4507 = vmatmul.bf16.gmra.mxu0 %v2162
      %v4508 = vpop.f32.mrf.mxu0
      %v4509 = vadd.f32 %v2104, %v4508
      %v4510 = vpop.f32.mrf.mxu0
      %v4511 = vadd.f32 %v2109, %v4510
      %4512 = vmatmul.bf16.gmra.mxu0 %v2165
      %v4513 = vpop.f32.mrf.mxu0
      %v4514 = vadd.f32 %v2114, %v4513
      %v4515 = vpop.f32.mrf.mxu0
      %v4516 = vadd.f32 %v2119, %v4515
      %4517 = vmatmul.bf16.gmra.mxu0 %v2168
      %v4518 = vpop.f32.mrf.mxu0
      %v4519 = vadd.f32 %v2124, %v4518
      %v4520 = vpop.f32.mrf.mxu0
      %v4521 = vadd.f32 %v2129, %v4520
      %4522 = vmatmul.bf16.gmra.mxu0 %v2171
      %v4523 = vpop.f32.mrf.mxu0
      %v4524 = vadd.f32 %v2134, %v4523
      %v4525 = vpop.f32.mrf.mxu0
      %v4526 = vadd.f32 %v2139, %v4525
      %4527 = vdwg.mxu0
      %v4528 = vmax.f32 %v4509, 0.0
      %v4529 = vmax.f32 %v4511, 0.0
      %v4530 = vmax.f32 %v4514, 0.0
      %v4531 = vmax.f32 %v4516, 0.0
      %v4532 = vmax.f32 %v4519, 0.0
      %v4533 = vmax.f32 %v4521, 0.0
      %v4534 = vmax.f32 %v4524, 0.0
      %v4535 = vmax.f32 %v4526, 0.0
      %v4536 = vpack.c.bf16 %v4529, %v4528
      %v4537 = vpack.c.bf16 %v4531, %v4530
      %v4538 = vpack.c.bf16 %v4533, %v4532
      %v4539 = vpack.c.bf16 %v4535, %v4534
      %4540 = vmatpush.bf16.msra.mxu0 0
      %4541 = vmatpush.bf16.msra.mxu0 0
      %4542 = vmatpush.bf16.msra.mxu0 0
      %4543 = vmatpush.bf16.msra.mxu0 0
      %4544 = vmatpush.bf16.msra.mxu0 %v4539
      %4545 = vmatpush.bf16.msra.mxu0 %v4538
      %4546 = vmatpush.bf16.msra.mxu0 %v4537
      %4547 = vmatpush.bf16.msra.mxu0 %v4536
      %4548 = vmatmul.bf16.gmra.mxu0 %v2339
      %v4549 = vpop.f32.mrf.mxu0
      %v4550 = vadd.f32 %v2220, %v4549
      %v4551 = vpop.f32.mrf.mxu0
      %v4552 = vadd.f32 %v2225, %v4551
      %4553 = vmatmul.bf16.gmra.mxu0 %v2342
      %v4554 = vpop.f32.mrf.mxu0
      %v4555 = vadd.f32 %v2230, %v4554
      %v4556 = vpop.f32.mrf.mxu0
      %v4557 = vadd.f32 %v2235, %v4556
      %4558 = vmatmul.bf16.gmra.mxu0 %v2345
      %v4559 = vpop.f32.mrf.mxu0
      %v4560 = vadd.f32 %v2240, %v4559
      %v4561 = vpop.f32.mrf.mxu0
      %v4562 = vadd.f32 %v2245, %v4561
      %4563 = vmatmul.bf16.gmra.mxu0 %v2348
      %v4564 = vpop.f32.mrf.mxu0
      %v4565 = vadd.f32 %v2250, %v4564
      %v4566 = vpop.f32.mrf.mxu0
      %v4567 = vadd.f32 %v2255, %v4566
      %4568 = vmatmul.bf16.gmra.mxu0 %v2351
      %v4569 = vpop.f32.mrf.mxu0
      %v4570 = vadd.f32 %v2260, %v4569
      %v4571 = vpop.f32.mrf.mxu0
      %v4572 = vadd.f32 %v2265, %v4571
      %4573 = vmatmul.bf16.gmra.mxu0 %v2354
      %v4574 = vpop.f32.mrf.mxu0
      %v4575 = vadd.f32 %v2270, %v4574
      %v4576 = vpop.f32.mrf.mxu0
      %v4577 = vadd.f32 %v2275, %v4576
      %4578 = vmatmul.bf16.gmra.mxu0 %v2357
      %v4579 = vpop.f32.mrf.mxu0
      %v4580 = vadd.f32 %v2280, %v4579
      %v4581 = vpop.f32.mrf.mxu0
      %v4582 = vadd.f32 %v2285, %v4581
      %4583 = vmatmul.bf16.gmra.mxu0 %v2360
      %v4584 = vpop.f32.mrf.mxu0
      %v4585 = vadd.f32 %v2290, %v4584
      %v4586 = vpop.f32.mrf.mxu0
      %v4587 = vadd.f32 %v2295, %v4586
      %4588 = vdwg.mxu0
      %v4589 = vmax.f32 %v4550, 0.0
      %v4590 = vmax.f32 %v4552, 0.0
      %v4591 = vmax.f32 %v4555, 0.0
      %v4592 = vmax.f32 %v4557, 0.0
      %v4593 = vmax.f32 %v4560, 0.0
      %v4594 = vmax.f32 %v4562, 0.0
      %v4595 = vmax.f32 %v4565, 0.0
      %v4596 = vmax.f32 %v4567, 0.0
      %v4597 = vmax.f32 %v4570, 0.0
      %v4598 = vmax.f32 %v4572, 0.0
      %v4599 = vmax.f32 %v4575, 0.0
      %v4600 = vmax.f32 %v4577, 0.0
      %v4601 = vmax.f32 %v4580, 0.0
      %v4602 = vmax.f32 %v4582, 0.0
      %v4603 = vmax.f32 %v4585, 0.0
      %v4604 = vmax.f32 %v4587, 0.0
      %v4605 = vpack.c.bf16 %v4590, %v4589
      %v4606 = vpack.c.bf16 %v4592, %v4591
      %v4607 = vpack.c.bf16 %v4594, %v4593
      %v4608 = vpack.c.bf16 %v4596, %v4595
      %v4609 = vpack.c.bf16 %v4598, %v4597
      %v4610 = vpack.c.bf16 %v4600, %v4599
      %v4611 = vpack.c.bf16 %v4602, %v4601
      %v4612 = vpack.c.bf16 %v4604, %v4603
      %4613 = vmatpush.bf16.msra.mxu0 %v4612
      %4614 = vmatpush.bf16.msra.mxu0 %v4611
      %4615 = vmatpush.bf16.msra.mxu0 %v4610
      %4616 = vmatpush.bf16.msra.mxu0 %v4609
      %4617 = vmatpush.bf16.msra.mxu0 %v4608
      %4618 = vmatpush.bf16.msra.mxu0 %v4607
      %4619 = vmatpush.bf16.msra.mxu0 %v4606
      %4620 = vmatpush.bf16.msra.mxu0 %v4605
      %4621 = vmatmul.bf16.gmra.mxu0 %v2547
      %v4622 = vpop.f32.mrf.mxu0
      %v4623 = vadd.f32 %v2438, %v4622
      %v4624 = vpop.f32.mrf.mxu0
      %v4625 = vadd.f32 %v2443, %v4624
      %4626 = vmatmul.bf16.gmra.mxu0 %v2548
      %v4627 = vpop.f32.mrf.mxu0
      %v4628 = vadd.f32 %v2448, %v4627
      %v4629 = vpop.f32.mrf.mxu0
      %v4630 = vadd.f32 %v2453, %v4629
      %4631 = vmatmul.bf16.gmra.mxu0 %v2549
      %v4632 = vpop.f32.mrf.mxu0
      %v4633 = vadd.f32 %v2458, %v4632
      %v4634 = vpop.f32.mrf.mxu0
      %v4635 = vadd.f32 %v2463, %v4634
      %4636 = vmatmul.bf16.gmra.mxu0 %v2550
      %v4637 = vpop.f32.mrf.mxu0
      %v4638 = vadd.f32 %v2468, %v4637
      %v4639 = vpop.f32.mrf.mxu0
      %v4640 = vadd.f32 %v2473, %v4639
      %4641 = vmatmul.bf16.gmra.mxu0 %v2551
      %v4642 = vpop.f32.mrf.mxu0
      %v4643 = vadd.f32 %v2478, %v4642
      %v4644 = vpop.f32.mrf.mxu0
      %v4645 = vadd.f32 %v2483, %v4644
      %4646 = vmatmul.bf16.gmra.mxu0 %v2552
      %v4647 = vpop.f32.mrf.mxu0
      %v4648 = vadd.f32 %v2488, %v4647
      %v4649 = vpop.f32.mrf.mxu0
      %v4650 = vadd.f32 %v2493, %v4649
      %4651 = vmatmul.bf16.gmra.mxu0 %v2553
      %v4652 = vpop.f32.mrf.mxu0
      %v4653 = vadd.f32 %v2498, %v4652
      %v4654 = vpop.f32.mrf.mxu0
      %v4655 = vadd.f32 %v2503, %v4654
      %4656 = vmatmul.bf16.gmra.mxu0 %v2554
      %v4657 = vpop.f32.mrf.mxu0
      %v4658 = vadd.f32 %v2508, %v4657
      %v4659 = vpop.f32.mrf.mxu0
      %v4660 = vadd.f32 %v2513, %v4659
      %4661 = vdwg.mxu0
      %v4662 = vmax.f32 %v4623, 0.0
      %v4663 = vmax.f32 %v4625, 0.0
      %v4664 = vmax.f32 %v4628, 0.0
      %v4665 = vmax.f32 %v4630, 0.0
      %v4666 = vmax.f32 %v4633, 0.0
      %v4667 = vmax.f32 %v4635, 0.0
      %v4668 = vmax.f32 %v4638, 0.0
      %v4669 = vmax.f32 %v4640, 0.0
      %v4670 = vmax.f32 %v4643, 0.0
      %v4671 = vmax.f32 %v4645, 0.0
      %v4672 = vmax.f32 %v4648, 0.0
      %v4673 = vmax.f32 %v4650, 0.0
      %v4674 = vmax.f32 %v4653, 0.0
      %v4675 = vmax.f32 %v4655, 0.0
      %v4676 = vmax.f32 %v4658, 0.0
      %v4677 = vmax.f32 %v4660, 0.0
      %v4678 = vpack.c.bf16 %v4663, %v4662
      %v4679 = vpack.c.bf16 %v4665, %v4664
      %v4680 = vpack.c.bf16 %v4667, %v4666
      %v4681 = vpack.c.bf16 %v4669, %v4668
      %v4682 = vpack.c.bf16 %v4671, %v4670
      %v4683 = vpack.c.bf16 %v4673, %v4672
      %v4684 = vpack.c.bf16 %v4675, %v4674
      %v4685 = vpack.c.bf16 %v4677, %v4676
      %4686 = vmatpush.bf16.msra.mxu0 %v4685
      %4687 = vmatpush.bf16.msra.mxu0 %v4684
      %4688 = vmatpush.bf16.msra.mxu0 %v4683
      %4689 = vmatpush.bf16.msra.mxu0 %v4682
      %4690 = vmatpush.bf16.msra.mxu0 %v4681
      %4691 = vmatpush.bf16.msra.mxu0 %v4680
      %4692 = vmatpush.bf16.msra.mxu0 %v4679
      %4693 = vmatpush.bf16.msra.mxu0 %v4678
      %4694 = vmatmul.bf16.gmra.mxu0 %v2860
      %v4695 = vpop.f32.mrf.mxu0
      %v4696 = vadd.f32 %v2639, %v4695
      %v4697 = vpop.f32.mrf.mxu0
      %v4698 = vadd.f32 %v2644, %v4697
      %4699 = vmatmul.bf16.gmra.mxu0 %v2861
      %v4700 = vpop.f32.mrf.mxu0
      %v4701 = vadd.f32 %v2649, %v4700
      %v4702 = vpop.f32.mrf.mxu0
      %v4703 = vadd.f32 %v2654, %v4702
      %4704 = vmatmul.bf16.gmra.mxu0 %v2862
      %v4705 = vpop.f32.mrf.mxu0
      %v4706 = vadd.f32 %v2659, %v4705
      %v4707 = vpop.f32.mrf.mxu0
      %v4708 = vadd.f32 %v2664, %v4707
      %4709 = vmatmul.bf16.gmra.mxu0 %v2863
      %v4710 = vpop.f32.mrf.mxu0
      %v4711 = vadd.f32 %v2669, %v4710
      %v4712 = vpop.f32.mrf.mxu0
      %v4713 = vadd.f32 %v2674, %v4712
      %4714 = vmatmul.bf16.gmra.mxu0 %v2864
      %v4715 = vpop.f32.mrf.mxu0
      %v4716 = vadd.f32 %v2679, %v4715
      %v4717 = vpop.f32.mrf.mxu0
      %v4718 = vadd.f32 %v2684, %v4717
      %4719 = vmatmul.bf16.gmra.mxu0 %v2865
      %v4720 = vpop.f32.mrf.mxu0
      %v4721 = vadd.f32 %v2689, %v4720
      %v4722 = vpop.f32.mrf.mxu0
      %v4723 = vadd.f32 %v2694, %v4722
      %4724 = vmatmul.bf16.gmra.mxu0 %v2866
      %v4725 = vpop.f32.mrf.mxu0
      %v4726 = vadd.f32 %v2699, %v4725
      %v4727 = vpop.f32.mrf.mxu0
      %v4728 = vadd.f32 %v2704, %v4727
      %4729 = vmatmul.bf16.gmra.mxu0 %v2867
      %v4730 = vpop.f32.mrf.mxu0
      %v4731 = vadd.f32 %v2709, %v4730
      %v4732 = vpop.f32.mrf.mxu0
      %v4733 = vadd.f32 %v2714, %v4732
      %4734 = vmatmul.bf16.gmra.mxu0 %v2868
      %v4735 = vpop.f32.mrf.mxu0
      %v4736 = vadd.f32 %v2719, %v4735
      %v4737 = vpop.f32.mrf.mxu0
      %v4738 = vadd.f32 %v2724, %v4737
      %4739 = vmatmul.bf16.gmra.mxu0 %v2869
      %v4740 = vpop.f32.mrf.mxu0
      %v4741 = vadd.f32 %v2729, %v4740
      %v4742 = vpop.f32.mrf.mxu0
      %v4743 = vadd.f32 %v2734, %v4742
      %4744 = vmatmul.bf16.gmra.mxu0 %v2870
      %v4745 = vpop.f32.mrf.mxu0
      %v4746 = vadd.f32 %v2739, %v4745
      %v4747 = vpop.f32.mrf.mxu0
      %v4748 = vadd.f32 %v2744, %v4747
      %4749 = vmatmul.bf16.gmra.mxu0 %v2871
      %v4750 = vpop.f32.mrf.mxu0
      %v4751 = vadd.f32 %v2749, %v4750
      %v4752 = vpop.f32.mrf.mxu0
      %v4753 = vadd.f32 %v2754, %v4752
      %4754 = vmatmul.bf16.gmra.mxu0 %v2872
      %v4755 = vpop.f32.mrf.mxu0
      %v4756 = vadd.f32 %v2759, %v4755
      %v4757 = vpop.f32.mrf.mxu0
      %v4758 = vadd.f32 %v2764, %v4757
      %4759 = vmatmul.bf16.gmra.mxu0 %v2873
      %v4760 = vpop.f32.mrf.mxu0
      %v4761 = vadd.f32 %v2769, %v4760
      %v4762 = vpop.f32.mrf.mxu0
      %v4763 = vadd.f32 %v2774, %v4762
      %4764 = vmatmul.bf16.gmra.mxu0 %v2874
      %v4765 = vpop.f32.mrf.mxu0
      %v4766 = vadd.f32 %v2779, %v4765
      %v4767 = vpop.f32.mrf.mxu0
      %v4768 = vadd.f32 %v2784, %v4767
      %4769 = vmatmul.bf16.gmra.mxu0 %v2875
      %v4770 = vpop.f32.mrf.mxu0
      %v4771 = vadd.f32 %v2789, %v4770
      %v4772 = vpop.f32.mrf.mxu0
      %v4773 = vadd.f32 %v2794, %v4772
      %4774 = vdwg.mxu0
      %v4775 = vmax.f32 %v4696, 0.0
      %v4776 = vmax.f32 %v4698, 0.0
      %v4777 = vmax.f32 %v4701, 0.0
      %v4778 = vmax.f32 %v4703, 0.0
      %v4779 = vmax.f32 %v4706, 0.0
      %v4780 = vmax.f32 %v4708, 0.0
      %v4781 = vmax.f32 %v4711, 0.0
      %v4782 = vmax.f32 %v4713, 0.0
      %v4783 = vmax.f32 %v4716, 0.0
      %v4784 = vmax.f32 %v4718, 0.0
      %v4785 = vmax.f32 %v4721, 0.0
      %v4786 = vmax.f32 %v4723, 0.0
      %v4787 = vmax.f32 %v4726, 0.0
      %v4788 = vmax.f32 %v4728, 0.0
      %v4789 = vmax.f32 %v4731, 0.0
      %v4790 = vmax.f32 %v4733, 0.0
      %v4791 = vmax.f32 %v4736, 0.0
      %v4792 = vmax.f32 %v4738, 0.0
      %v4793 = vmax.f32 %v4741, 0.0
      %v4794 = vmax.f32 %v4743, 0.0
      %v4795 = vmax.f32 %v4746, 0.0
      %v4796 = vmax.f32 %v4748, 0.0
      %v4797 = vmax.f32 %v4751, 0.0
      %v4798 = vmax.f32 %v4753, 0.0
      %v4799 = vmax.f32 %v4756, 0.0
      %v4800 = vmax.f32 %v4758, 0.0
      %v4801 = vmax.f32 %v4761, 0.0
      %v4802 = vmax.f32 %v4763, 0.0
      %v4803 = vmax.f32 %v4766, 0.0
      %v4804 = vmax.f32 %v4768, 0.0
      %v4805 = vmax.f32 %v4771, 0.0
      %v4806 = vmax.f32 %v4773, 0.0
      %v4807 = vmax.f32 %v4442, %v4775
      %v4808 = vmax.f32 %v4443, %v4776
      %v4809 = vmax.f32 %v4444, %v4777
      %v4810 = vmax.f32 %v4445, %v4778
      %v4811 = vmax.f32 %v4446, %v4779
      %v4812 = vmax.f32 %v4447, %v4780
      %v4813 = vmax.f32 %v4448, %v4781
      %v4814 = vmax.f32 %v4449, %v4782
      %v4815 = vmax.f32 %v4450, %v4783
      %v4816 = vmax.f32 %v4451, %v4784
      %v4817 = vmax.f32 %v4452, %v4785
      %v4818 = vmax.f32 %v4453, %v4786
      %v4819 = vmax.f32 %v4454, %v4787
      %v4820 = vmax.f32 %v4455, %v4788
      %v4821 = vmax.f32 %v4456, %v4789
      %v4822 = vmax.f32 %v4457, %v4790
      %v4823 = vmax.f32 %v4458, %v4791
      %v4824 = vmax.f32 %v4459, %v4792
      %v4825 = vmax.f32 %v4460, %v4793
      %v4826 = vmax.f32 %v4461, %v4794
      %v4827 = vmax.f32 %v4462, %v4795
      %v4828 = vmax.f32 %v4463, %v4796
      %v4829 = vmax.f32 %v4464, %v4797
      %v4830 = vmax.f32 %v4465, %v4798
      %v4831 = vmax.f32 %v4466, %v4799
      %v4832 = vmax.f32 %v4467, %v4800
      %v4833 = vmax.f32 %v4468, %v4801
      %v4834 = vmax.f32 %v4469, %v4802
      %v4835 = vmax.f32 %v4470, %v4803
      %v4836 = vmax.f32 %v4471, %v4804
      %v4837 = vmax.f32 %v4472, %v4805
      %v4838 = vmax.f32 %v4473, %v4806
      %v4839 = vrot.slane %v1624, 6
      %v4841 = vrot.slane %v1641, 5
      %v4843 = vrot.slane %v1651, 4
      %v4845 = vrot.slane %v1661, 3
      %v4847 = vrot.slane %v1755, 2
      %v4849 = vrot.slane %v1815, 1
      %v4851 = vrot.slane %v1919, 7
      %v4853 = vsel %vm2086, %v4839, %v4841
      %v4854 = vsel %vm2088, %v4853, %v4843
      %v4855 = vsel %vm2090, %v4854, %v4845
      %v4856 = vsel %vm2092, %v4855, %v4847
      %v4857 = vsel %vm2094, %v4856, %v4849
      %v4858 = vsel %vm2096, %v4857, %v1825
      %v4859 = vsel %vm2098, %v4858, %v4851
      %v4860 = vpack.c.bf16 %v4859, %v4859
      %v4862 = vsel %vm2092, %v4860, 0
      %4864 = vmatpush.bf16.msra.mxu0 0
      %4865 = vmatpush.bf16.msra.mxu0 0
      %4866 = vmatpush.bf16.msra.mxu0 0
      %4867 = vmatpush.bf16.msra.mxu0 0
      %4868 = vmatpush.bf16.msra.mxu0 0
      %4869 = vmatpush.bf16.msra.mxu0 0
      %4870 = vmatpush.bf16.msra.mxu0 0
      %4871 = vmatpush.bf16.msra.mxu0 %v4862
      %4872 = vmatmul.bf16.gmra.mxu0 %v2162
      %v4873 = vpop.f32.mrf.mxu0
      %v4874 = vadd.f32 %v2104, %v4873
      %v4875 = vpop.f32.mrf.mxu0
      %v4876 = vadd.f32 %v2109, %v4875
      %4877 = vmatmul.bf16.gmra.mxu0 %v2165
      %v4878 = vpop.f32.mrf.mxu0
      %v4879 = vadd.f32 %v2114, %v4878
      %v4880 = vpop.f32.mrf.mxu0
      %v4881 = vadd.f32 %v2119, %v4880
      %4882 = vmatmul.bf16.gmra.mxu0 %v2168
      %v4883 = vpop.f32.mrf.mxu0
      %v4884 = vadd.f32 %v2124, %v4883
      %v4885 = vpop.f32.mrf.mxu0
      %v4886 = vadd.f32 %v2129, %v4885
      %4887 = vmatmul.bf16.gmra.mxu0 %v2171
      %v4888 = vpop.f32.mrf.mxu0
      %v4889 = vadd.f32 %v2134, %v4888
      %v4890 = vpop.f32.mrf.mxu0
      %v4891 = vadd.f32 %v2139, %v4890
      %4892 = vdwg.mxu0
      %v4893 = vmax.f32 %v4874, 0.0
      %v4894 = vmax.f32 %v4876, 0.0
      %v4895 = vmax.f32 %v4879, 0.0
      %v4896 = vmax.f32 %v4881, 0.0
      %v4897 = vmax.f32 %v4884, 0.0
      %v4898 = vmax.f32 %v4886, 0.0
      %v4899 = vmax.f32 %v4889, 0.0
      %v4900 = vmax.f32 %v4891, 0.0
      %v4901 = vpack.c.bf16 %v4894, %v4893
      %v4902 = vpack.c.bf16 %v4896, %v4895
      %v4903 = vpack.c.bf16 %v4898, %v4897
      %v4904 = vpack.c.bf16 %v4900, %v4899
      %4905 = vmatpush.bf16.msra.mxu0 0
      %4906 = vmatpush.bf16.msra.mxu0 0
      %4907 = vmatpush.bf16.msra.mxu0 0
      %4908 = vmatpush.bf16.msra.mxu0 0
      %4909 = vmatpush.bf16.msra.mxu0 %v4904
      %4910 = vmatpush.bf16.msra.mxu0 %v4903
      %4911 = vmatpush.bf16.msra.mxu0 %v4902
      %4912 = vmatpush.bf16.msra.mxu0 %v4901
      %4913 = vmatmul.bf16.gmra.mxu0 %v2339
      %v4914 = vpop.f32.mrf.mxu0
      %v4915 = vadd.f32 %v2220, %v4914
      %v4916 = vpop.f32.mrf.mxu0
      %v4917 = vadd.f32 %v2225, %v4916
      %4918 = vmatmul.bf16.gmra.mxu0 %v2342
      %v4919 = vpop.f32.mrf.mxu0
      %v4920 = vadd.f32 %v2230, %v4919
      %v4921 = vpop.f32.mrf.mxu0
      %v4922 = vadd.f32 %v2235, %v4921
      %4923 = vmatmul.bf16.gmra.mxu0 %v2345
      %v4924 = vpop.f32.mrf.mxu0
      %v4925 = vadd.f32 %v2240, %v4924
      %v4926 = vpop.f32.mrf.mxu0
      %v4927 = vadd.f32 %v2245, %v4926
      %4928 = vmatmul.bf16.gmra.mxu0 %v2348
      %v4929 = vpop.f32.mrf.mxu0
      %v4930 = vadd.f32 %v2250, %v4929
      %v4931 = vpop.f32.mrf.mxu0
      %v4932 = vadd.f32 %v2255, %v4931
      %4933 = vmatmul.bf16.gmra.mxu0 %v2351
      %v4934 = vpop.f32.mrf.mxu0
      %v4935 = vadd.f32 %v2260, %v4934
      %v4936 = vpop.f32.mrf.mxu0
      %v4937 = vadd.f32 %v2265, %v4936
      %4938 = vmatmul.bf16.gmra.mxu0 %v2354
      %v4939 = vpop.f32.mrf.mxu0
      %v4940 = vadd.f32 %v2270, %v4939
      %v4941 = vpop.f32.mrf.mxu0
      %v4942 = vadd.f32 %v2275, %v4941
      %4943 = vmatmul.bf16.gmra.mxu0 %v2357
      %v4944 = vpop.f32.mrf.mxu0
      %v4945 = vadd.f32 %v2280, %v4944
      %v4946 = vpop.f32.mrf.mxu0
      %v4947 = vadd.f32 %v2285, %v4946
      %4948 = vmatmul.bf16.gmra.mxu0 %v2360
      %v4949 = vpop.f32.mrf.mxu0
      %v4950 = vadd.f32 %v2290, %v4949
      %v4951 = vpop.f32.mrf.mxu0
      %v4952 = vadd.f32 %v2295, %v4951
      %4953 = vdwg.mxu0
      %v4954 = vmax.f32 %v4915, 0.0
      %v4955 = vmax.f32 %v4917, 0.0
      %v4956 = vmax.f32 %v4920, 0.0
      %v4957 = vmax.f32 %v4922, 0.0
      %v4958 = vmax.f32 %v4925, 0.0
      %v4959 = vmax.f32 %v4927, 0.0
      %v4960 = vmax.f32 %v4930, 0.0
      %v4961 = vmax.f32 %v4932, 0.0
      %v4962 = vmax.f32 %v4935, 0.0
      %v4963 = vmax.f32 %v4937, 0.0
      %v4964 = vmax.f32 %v4940, 0.0
      %v4965 = vmax.f32 %v4942, 0.0
      %v4966 = vmax.f32 %v4945, 0.0
      %v4967 = vmax.f32 %v4947, 0.0
      %v4968 = vmax.f32 %v4950, 0.0
      %v4969 = vmax.f32 %v4952, 0.0
      %v4970 = vpack.c.bf16 %v4955, %v4954
      %v4971 = vpack.c.bf16 %v4957, %v4956
      %v4972 = vpack.c.bf16 %v4959, %v4958
      %v4973 = vpack.c.bf16 %v4961, %v4960
      %v4974 = vpack.c.bf16 %v4963, %v4962
      %v4975 = vpack.c.bf16 %v4965, %v4964
      %v4976 = vpack.c.bf16 %v4967, %v4966
      %v4977 = vpack.c.bf16 %v4969, %v4968
      %4978 = vmatpush.bf16.msra.mxu0 %v4977
      %4979 = vmatpush.bf16.msra.mxu0 %v4976
      %4980 = vmatpush.bf16.msra.mxu0 %v4975
      %4981 = vmatpush.bf16.msra.mxu0 %v4974
      %4982 = vmatpush.bf16.msra.mxu0 %v4973
      %4983 = vmatpush.bf16.msra.mxu0 %v4972
      %4984 = vmatpush.bf16.msra.mxu0 %v4971
      %4985 = vmatpush.bf16.msra.mxu0 %v4970
      %4986 = vmatmul.bf16.gmra.mxu0 %v2547
      %v4987 = vpop.f32.mrf.mxu0
      %v4988 = vadd.f32 %v2438, %v4987
      %v4989 = vpop.f32.mrf.mxu0
      %v4990 = vadd.f32 %v2443, %v4989
      %4991 = vmatmul.bf16.gmra.mxu0 %v2548
      %v4992 = vpop.f32.mrf.mxu0
      %v4993 = vadd.f32 %v2448, %v4992
      %v4994 = vpop.f32.mrf.mxu0
      %v4995 = vadd.f32 %v2453, %v4994
      %4996 = vmatmul.bf16.gmra.mxu0 %v2549
      %v4997 = vpop.f32.mrf.mxu0
      %v4998 = vadd.f32 %v2458, %v4997
      %v4999 = vpop.f32.mrf.mxu0
      %v5000 = vadd.f32 %v2463, %v4999
      %5001 = vmatmul.bf16.gmra.mxu0 %v2550
      %v5002 = vpop.f32.mrf.mxu0
      %v5003 = vadd.f32 %v2468, %v5002
      %v5004 = vpop.f32.mrf.mxu0
      %v5005 = vadd.f32 %v2473, %v5004
      %5006 = vmatmul.bf16.gmra.mxu0 %v2551
      %v5007 = vpop.f32.mrf.mxu0
      %v5008 = vadd.f32 %v2478, %v5007
      %v5009 = vpop.f32.mrf.mxu0
      %v5010 = vadd.f32 %v2483, %v5009
      %5011 = vmatmul.bf16.gmra.mxu0 %v2552
      %v5012 = vpop.f32.mrf.mxu0
      %v5013 = vadd.f32 %v2488, %v5012
      %v5014 = vpop.f32.mrf.mxu0
      %v5015 = vadd.f32 %v2493, %v5014
      %5016 = vmatmul.bf16.gmra.mxu0 %v2553
      %v5017 = vpop.f32.mrf.mxu0
      %v5018 = vadd.f32 %v2498, %v5017
      %v5019 = vpop.f32.mrf.mxu0
      %v5020 = vadd.f32 %v2503, %v5019
      %5021 = vmatmul.bf16.gmra.mxu0 %v2554
      %v5022 = vpop.f32.mrf.mxu0
      %v5023 = vadd.f32 %v2508, %v5022
      %v5024 = vpop.f32.mrf.mxu0
      %v5025 = vadd.f32 %v2513, %v5024
      %5026 = vdwg.mxu0
      %v5027 = vmax.f32 %v4988, 0.0
      %v5028 = vmax.f32 %v4990, 0.0
      %v5029 = vmax.f32 %v4993, 0.0
      %v5030 = vmax.f32 %v4995, 0.0
      %v5031 = vmax.f32 %v4998, 0.0
      %v5032 = vmax.f32 %v5000, 0.0
      %v5033 = vmax.f32 %v5003, 0.0
      %v5034 = vmax.f32 %v5005, 0.0
      %v5035 = vmax.f32 %v5008, 0.0
      %v5036 = vmax.f32 %v5010, 0.0
      %v5037 = vmax.f32 %v5013, 0.0
      %v5038 = vmax.f32 %v5015, 0.0
      %v5039 = vmax.f32 %v5018, 0.0
      %v5040 = vmax.f32 %v5020, 0.0
      %v5041 = vmax.f32 %v5023, 0.0
      %v5042 = vmax.f32 %v5025, 0.0
      %v5043 = vpack.c.bf16 %v5028, %v5027
      %v5044 = vpack.c.bf16 %v5030, %v5029
      %v5045 = vpack.c.bf16 %v5032, %v5031
      %v5046 = vpack.c.bf16 %v5034, %v5033
      %v5047 = vpack.c.bf16 %v5036, %v5035
      %v5048 = vpack.c.bf16 %v5038, %v5037
      %v5049 = vpack.c.bf16 %v5040, %v5039
      %v5050 = vpack.c.bf16 %v5042, %v5041
      %5051 = vmatpush.bf16.msra.mxu0 %v5050
      %5052 = vmatpush.bf16.msra.mxu0 %v5049
      %5053 = vmatpush.bf16.msra.mxu0 %v5048
      %5054 = vmatpush.bf16.msra.mxu0 %v5047
      %5055 = vmatpush.bf16.msra.mxu0 %v5046
      %5056 = vmatpush.bf16.msra.mxu0 %v5045
      %5057 = vmatpush.bf16.msra.mxu0 %v5044
      %5058 = vmatpush.bf16.msra.mxu0 %v5043
      %5059 = vmatmul.bf16.gmra.mxu0 %v2860
      %v5060 = vpop.f32.mrf.mxu0
      %v5061 = vadd.f32 %v2639, %v5060
      %v5062 = vpop.f32.mrf.mxu0
      %v5063 = vadd.f32 %v2644, %v5062
      %5064 = vmatmul.bf16.gmra.mxu0 %v2861
      %v5065 = vpop.f32.mrf.mxu0
      %v5066 = vadd.f32 %v2649, %v5065
      %v5067 = vpop.f32.mrf.mxu0
      %v5068 = vadd.f32 %v2654, %v5067
      %5069 = vmatmul.bf16.gmra.mxu0 %v2862
      %v5070 = vpop.f32.mrf.mxu0
      %v5071 = vadd.f32 %v2659, %v5070
      %v5072 = vpop.f32.mrf.mxu0
      %v5073 = vadd.f32 %v2664, %v5072
      %5074 = vmatmul.bf16.gmra.mxu0 %v2863
      %v5075 = vpop.f32.mrf.mxu0
      %v5076 = vadd.f32 %v2669, %v5075
      %v5077 = vpop.f32.mrf.mxu0
      %v5078 = vadd.f32 %v2674, %v5077
      %5079 = vmatmul.bf16.gmra.mxu0 %v2864
      %v5080 = vpop.f32.mrf.mxu0
      %v5081 = vadd.f32 %v2679, %v5080
      %v5082 = vpop.f32.mrf.mxu0
      %v5083 = vadd.f32 %v2684, %v5082
      %5084 = vmatmul.bf16.gmra.mxu0 %v2865
      %v5085 = vpop.f32.mrf.mxu0
      %v5086 = vadd.f32 %v2689, %v5085
      %v5087 = vpop.f32.mrf.mxu0
      %v5088 = vadd.f32 %v2694, %v5087
      %5089 = vmatmul.bf16.gmra.mxu0 %v2866
      %v5090 = vpop.f32.mrf.mxu0
      %v5091 = vadd.f32 %v2699, %v5090
      %v5092 = vpop.f32.mrf.mxu0
      %v5093 = vadd.f32 %v2704, %v5092
      %5094 = vmatmul.bf16.gmra.mxu0 %v2867
      %v5095 = vpop.f32.mrf.mxu0
      %v5096 = vadd.f32 %v2709, %v5095
      %v5097 = vpop.f32.mrf.mxu0
      %v5098 = vadd.f32 %v2714, %v5097
      %5099 = vmatmul.bf16.gmra.mxu0 %v2868
      %v5100 = vpop.f32.mrf.mxu0
      %v5101 = vadd.f32 %v2719, %v5100
      %v5102 = vpop.f32.mrf.mxu0
      %v5103 = vadd.f32 %v2724, %v5102
      %5104 = vmatmul.bf16.gmra.mxu0 %v2869
      %v5105 = vpop.f32.mrf.mxu0
      %v5106 = vadd.f32 %v2729, %v5105
      %v5107 = vpop.f32.mrf.mxu0
      %v5108 = vadd.f32 %v2734, %v5107
      %5109 = vmatmul.bf16.gmra.mxu0 %v2870
      %v5110 = vpop.f32.mrf.mxu0
      %v5111 = vadd.f32 %v2739, %v5110
      %v5112 = vpop.f32.mrf.mxu0
      %v5113 = vadd.f32 %v2744, %v5112
      %5114 = vmatmul.bf16.gmra.mxu0 %v2871
      %v5115 = vpop.f32.mrf.mxu0
      %v5116 = vadd.f32 %v2749, %v5115
      %v5117 = vpop.f32.mrf.mxu0
      %v5118 = vadd.f32 %v2754, %v5117
      %5119 = vmatmul.bf16.gmra.mxu0 %v2872
      %v5120 = vpop.f32.mrf.mxu0
      %v5121 = vadd.f32 %v2759, %v5120
      %v5122 = vpop.f32.mrf.mxu0
      %v5123 = vadd.f32 %v2764, %v5122
      %5124 = vmatmul.bf16.gmra.mxu0 %v2873
      %v5125 = vpop.f32.mrf.mxu0
      %v5126 = vadd.f32 %v2769, %v5125
      %v5127 = vpop.f32.mrf.mxu0
      %v5128 = vadd.f32 %v2774, %v5127
      %5129 = vmatmul.bf16.gmra.mxu0 %v2874
      %v5130 = vpop.f32.mrf.mxu0
      %v5131 = vadd.f32 %v2779, %v5130
      %v5132 = vpop.f32.mrf.mxu0
      %v5133 = vadd.f32 %v2784, %v5132
      %5134 = vmatmul.bf16.gmra.mxu0 %v2875
      %v5135 = vpop.f32.mrf.mxu0
      %v5136 = vadd.f32 %v2789, %v5135
      %v5137 = vpop.f32.mrf.mxu0
      %v5138 = vadd.f32 %v2794, %v5137
      %5139 = vdwg.mxu0
      %v5140 = vmax.f32 %v5061, 0.0
      %v5141 = vmax.f32 %v5063, 0.0
      %v5142 = vmax.f32 %v5066, 0.0
      %v5143 = vmax.f32 %v5068, 0.0
      %v5144 = vmax.f32 %v5071, 0.0
      %v5145 = vmax.f32 %v5073, 0.0
      %v5146 = vmax.f32 %v5076, 0.0
      %v5147 = vmax.f32 %v5078, 0.0
      %v5148 = vmax.f32 %v5081, 0.0
      %v5149 = vmax.f32 %v5083, 0.0
      %v5150 = vmax.f32 %v5086, 0.0
      %v5151 = vmax.f32 %v5088, 0.0
      %v5152 = vmax.f32 %v5091, 0.0
      %v5153 = vmax.f32 %v5093, 0.0
      %v5154 = vmax.f32 %v5096, 0.0
      %v5155 = vmax.f32 %v5098, 0.0
      %v5156 = vmax.f32 %v5101, 0.0
      %v5157 = vmax.f32 %v5103, 0.0
      %v5158 = vmax.f32 %v5106, 0.0
      %v5159 = vmax.f32 %v5108, 0.0
      %v5160 = vmax.f32 %v5111, 0.0
      %v5161 = vmax.f32 %v5113, 0.0
      %v5162 = vmax.f32 %v5116, 0.0
      %v5163 = vmax.f32 %v5118, 0.0
      %v5164 = vmax.f32 %v5121, 0.0
      %v5165 = vmax.f32 %v5123, 0.0
      %v5166 = vmax.f32 %v5126, 0.0
      %v5167 = vmax.f32 %v5128, 0.0
      %v5168 = vmax.f32 %v5131, 0.0
      %v5169 = vmax.f32 %v5133, 0.0
      %v5170 = vmax.f32 %v5136, 0.0
      %v5171 = vmax.f32 %v5138, 0.0
      %v5172 = vmax.f32 %v4807, %v5140
      %v5173 = vmax.f32 %v4808, %v5141
      %v5174 = vmax.f32 %v4809, %v5142
      %v5175 = vmax.f32 %v4810, %v5143
      %v5176 = vmax.f32 %v4811, %v5144
      %v5177 = vmax.f32 %v4812, %v5145
      %v5178 = vmax.f32 %v4813, %v5146
      %v5179 = vmax.f32 %v4814, %v5147
      %v5180 = vmax.f32 %v4815, %v5148
      %v5181 = vmax.f32 %v4816, %v5149
      %v5182 = vmax.f32 %v4817, %v5150
      %v5183 = vmax.f32 %v4818, %v5151
      %v5184 = vmax.f32 %v4819, %v5152
      %v5185 = vmax.f32 %v4820, %v5153
      %v5186 = vmax.f32 %v4821, %v5154
      %v5187 = vmax.f32 %v4822, %v5155
      %v5188 = vmax.f32 %v4823, %v5156
      %v5189 = vmax.f32 %v4824, %v5157
      %v5190 = vmax.f32 %v4825, %v5158
      %v5191 = vmax.f32 %v4826, %v5159
      %v5192 = vmax.f32 %v4827, %v5160
      %v5193 = vmax.f32 %v4828, %v5161
      %v5194 = vmax.f32 %v4829, %v5162
      %v5195 = vmax.f32 %v4830, %v5163
      %v5196 = vmax.f32 %v4831, %v5164
      %v5197 = vmax.f32 %v4832, %v5165
      %v5198 = vmax.f32 %v4833, %v5166
      %v5199 = vmax.f32 %v4834, %v5167
      %v5200 = vmax.f32 %v4835, %v5168
      %v5201 = vmax.f32 %v4836, %v5169
      %v5202 = vmax.f32 %v4837, %v5170
      %v5203 = vmax.f32 %v4838, %v5171
      %v5204 = vrot.slane %v1624, 7
      %v5206 = vrot.slane %v1641, 6
      %v5208 = vrot.slane %v1651, 5
      %v5210 = vrot.slane %v1661, 4
      %v5212 = vrot.slane %v1755, 3
      %v5214 = vrot.slane %v1815, 2
      %v5216 = vrot.slane %v1825, 1
      %v5218 = vsel %vm2086, %v5204, %v5206
      %v5219 = vsel %vm2088, %v5218, %v5208
      %v5220 = vsel %vm2090, %v5219, %v5210
      %v5221 = vsel %vm2092, %v5220, %v5212
      %v5222 = vsel %vm2094, %v5221, %v5214
      %v5223 = vsel %vm2096, %v5222, %v5216
      %v5224 = vsel %vm2098, %v5223, %v1919
      %v5225 = vpack.c.bf16 %v5224, %v5224
      %v5227 = vsel %vm2092, %v5225, 0
      %5229 = vmatpush.bf16.msra.mxu0 0
      %5230 = vmatpush.bf16.msra.mxu0 0
      %5231 = vmatpush.bf16.msra.mxu0 0
      %5232 = vmatpush.bf16.msra.mxu0 0
      %5233 = vmatpush.bf16.msra.mxu0 0
      %5234 = vmatpush.bf16.msra.mxu0 0
      %5235 = vmatpush.bf16.msra.mxu0 0
      %5236 = vmatpush.bf16.msra.mxu0 %v5227
      %5237 = vmatmul.bf16.gmra.mxu0 %v2162
      %v5238 = vpop.f32.mrf.mxu0
      %v5239 = vadd.f32 %v2104, %v5238
      %v5240 = vpop.f32.mrf.mxu0
      %v5241 = vadd.f32 %v2109, %v5240
      %5242 = vmatmul.bf16.gmra.mxu0 %v2165
      %v5243 = vpop.f32.mrf.mxu0
      %v5244 = vadd.f32 %v2114, %v5243
      %v5245 = vpop.f32.mrf.mxu0
      %v5246 = vadd.f32 %v2119, %v5245
      %5247 = vmatmul.bf16.gmra.mxu0 %v2168
      %v5248 = vpop.f32.mrf.mxu0
      %v5249 = vadd.f32 %v2124, %v5248
      %v5250 = vpop.f32.mrf.mxu0
      %v5251 = vadd.f32 %v2129, %v5250
      %5252 = vmatmul.bf16.gmra.mxu0 %v2171
      %v5253 = vpop.f32.mrf.mxu0
      %v5254 = vadd.f32 %v2134, %v5253
      %v5255 = vpop.f32.mrf.mxu0
      %v5256 = vadd.f32 %v2139, %v5255
      %5257 = vdwg.mxu0
      %v5258 = vmax.f32 %v5239, 0.0
      %v5259 = vmax.f32 %v5241, 0.0
      %v5260 = vmax.f32 %v5244, 0.0
      %v5261 = vmax.f32 %v5246, 0.0
      %v5262 = vmax.f32 %v5249, 0.0
      %v5263 = vmax.f32 %v5251, 0.0
      %v5264 = vmax.f32 %v5254, 0.0
      %v5265 = vmax.f32 %v5256, 0.0
      %v5266 = vpack.c.bf16 %v5259, %v5258
      %v5267 = vpack.c.bf16 %v5261, %v5260
      %v5268 = vpack.c.bf16 %v5263, %v5262
      %v5269 = vpack.c.bf16 %v5265, %v5264
      %5270 = vmatpush.bf16.msra.mxu0 0
      %5271 = vmatpush.bf16.msra.mxu0 0
      %5272 = vmatpush.bf16.msra.mxu0 0
      %5273 = vmatpush.bf16.msra.mxu0 0
      %5274 = vmatpush.bf16.msra.mxu0 %v5269
      %5275 = vmatpush.bf16.msra.mxu0 %v5268
      %5276 = vmatpush.bf16.msra.mxu0 %v5267
      %5277 = vmatpush.bf16.msra.mxu0 %v5266
      %5278 = vmatmul.bf16.gmra.mxu0 %v2339
      %v5279 = vpop.f32.mrf.mxu0
      %v5280 = vadd.f32 %v2220, %v5279
      %v5281 = vpop.f32.mrf.mxu0
      %v5282 = vadd.f32 %v2225, %v5281
      %5283 = vmatmul.bf16.gmra.mxu0 %v2342
      %v5284 = vpop.f32.mrf.mxu0
      %v5285 = vadd.f32 %v2230, %v5284
      %v5286 = vpop.f32.mrf.mxu0
      %v5287 = vadd.f32 %v2235, %v5286
      %5288 = vmatmul.bf16.gmra.mxu0 %v2345
      %v5289 = vpop.f32.mrf.mxu0
      %v5290 = vadd.f32 %v2240, %v5289
      %v5291 = vpop.f32.mrf.mxu0
      %v5292 = vadd.f32 %v2245, %v5291
      %5293 = vmatmul.bf16.gmra.mxu0 %v2348
      %v5294 = vpop.f32.mrf.mxu0
      %v5295 = vadd.f32 %v2250, %v5294
      %v5296 = vpop.f32.mrf.mxu0
      %v5297 = vadd.f32 %v2255, %v5296
      %5298 = vmatmul.bf16.gmra.mxu0 %v2351
      %v5299 = vpop.f32.mrf.mxu0
      %v5300 = vadd.f32 %v2260, %v5299
      %v5301 = vpop.f32.mrf.mxu0
      %v5302 = vadd.f32 %v2265, %v5301
      %5303 = vmatmul.bf16.gmra.mxu0 %v2354
      %v5304 = vpop.f32.mrf.mxu0
      %v5305 = vadd.f32 %v2270, %v5304
      %v5306 = vpop.f32.mrf.mxu0
      %v5307 = vadd.f32 %v2275, %v5306
      %5308 = vmatmul.bf16.gmra.mxu0 %v2357
      %v5309 = vpop.f32.mrf.mxu0
      %v5310 = vadd.f32 %v2280, %v5309
      %v5311 = vpop.f32.mrf.mxu0
      %v5312 = vadd.f32 %v2285, %v5311
      %5313 = vmatmul.bf16.gmra.mxu0 %v2360
      %v5314 = vpop.f32.mrf.mxu0
      %v5315 = vadd.f32 %v2290, %v5314
      %v5316 = vpop.f32.mrf.mxu0
      %v5317 = vadd.f32 %v2295, %v5316
      %5318 = vdwg.mxu0
      %v5319 = vmax.f32 %v5280, 0.0
      %v5320 = vmax.f32 %v5282, 0.0
      %v5321 = vmax.f32 %v5285, 0.0
      %v5322 = vmax.f32 %v5287, 0.0
      %v5323 = vmax.f32 %v5290, 0.0
      %v5324 = vmax.f32 %v5292, 0.0
      %v5325 = vmax.f32 %v5295, 0.0
      %v5326 = vmax.f32 %v5297, 0.0
      %v5327 = vmax.f32 %v5300, 0.0
      %v5328 = vmax.f32 %v5302, 0.0
      %v5329 = vmax.f32 %v5305, 0.0
      %v5330 = vmax.f32 %v5307, 0.0
      %v5331 = vmax.f32 %v5310, 0.0
      %v5332 = vmax.f32 %v5312, 0.0
      %v5333 = vmax.f32 %v5315, 0.0
      %v5334 = vmax.f32 %v5317, 0.0
      %v5335 = vpack.c.bf16 %v5320, %v5319
      %v5336 = vpack.c.bf16 %v5322, %v5321
      %v5337 = vpack.c.bf16 %v5324, %v5323
      %v5338 = vpack.c.bf16 %v5326, %v5325
      %v5339 = vpack.c.bf16 %v5328, %v5327
      %v5340 = vpack.c.bf16 %v5330, %v5329
      %v5341 = vpack.c.bf16 %v5332, %v5331
      %v5342 = vpack.c.bf16 %v5334, %v5333
      %5343 = vmatpush.bf16.msra.mxu0 %v5342
      %5344 = vmatpush.bf16.msra.mxu0 %v5341
      %5345 = vmatpush.bf16.msra.mxu0 %v5340
      %5346 = vmatpush.bf16.msra.mxu0 %v5339
      %5347 = vmatpush.bf16.msra.mxu0 %v5338
      %5348 = vmatpush.bf16.msra.mxu0 %v5337
      %5349 = vmatpush.bf16.msra.mxu0 %v5336
      %5350 = vmatpush.bf16.msra.mxu0 %v5335
      %5351 = vmatmul.bf16.gmra.mxu0 %v2547
      %v5352 = vpop.f32.mrf.mxu0
      %v5353 = vadd.f32 %v2438, %v5352
      %v5354 = vpop.f32.mrf.mxu0
      %v5355 = vadd.f32 %v2443, %v5354
      %5356 = vmatmul.bf16.gmra.mxu0 %v2548
      %v5357 = vpop.f32.mrf.mxu0
      %v5358 = vadd.f32 %v2448, %v5357
      %v5359 = vpop.f32.mrf.mxu0
      %v5360 = vadd.f32 %v2453, %v5359
      %5361 = vmatmul.bf16.gmra.mxu0 %v2549
      %v5362 = vpop.f32.mrf.mxu0
      %v5363 = vadd.f32 %v2458, %v5362
      %v5364 = vpop.f32.mrf.mxu0
      %v5365 = vadd.f32 %v2463, %v5364
      %5366 = vmatmul.bf16.gmra.mxu0 %v2550
      %v5367 = vpop.f32.mrf.mxu0
      %v5368 = vadd.f32 %v2468, %v5367
      %v5369 = vpop.f32.mrf.mxu0
      %v5370 = vadd.f32 %v2473, %v5369
      %5371 = vmatmul.bf16.gmra.mxu0 %v2551
      %v5372 = vpop.f32.mrf.mxu0
      %v5373 = vadd.f32 %v2478, %v5372
      %v5374 = vpop.f32.mrf.mxu0
      %v5375 = vadd.f32 %v2483, %v5374
      %5376 = vmatmul.bf16.gmra.mxu0 %v2552
      %v5377 = vpop.f32.mrf.mxu0
      %v5378 = vadd.f32 %v2488, %v5377
      %v5379 = vpop.f32.mrf.mxu0
      %v5380 = vadd.f32 %v2493, %v5379
      %5381 = vmatmul.bf16.gmra.mxu0 %v2553
      %v5382 = vpop.f32.mrf.mxu0
      %v5383 = vadd.f32 %v2498, %v5382
      %v5384 = vpop.f32.mrf.mxu0
      %v5385 = vadd.f32 %v2503, %v5384
      %5386 = vmatmul.bf16.gmra.mxu0 %v2554
      %v5387 = vpop.f32.mrf.mxu0
      %v5388 = vadd.f32 %v2508, %v5387
      %v5389 = vpop.f32.mrf.mxu0
      %v5390 = vadd.f32 %v2513, %v5389
      %5391 = vdwg.mxu0
      %v5392 = vmax.f32 %v5353, 0.0
      %v5393 = vmax.f32 %v5355, 0.0
      %v5394 = vmax.f32 %v5358, 0.0
      %v5395 = vmax.f32 %v5360, 0.0
      %v5396 = vmax.f32 %v5363, 0.0
      %v5397 = vmax.f32 %v5365, 0.0
      %v5398 = vmax.f32 %v5368, 0.0
      %v5399 = vmax.f32 %v5370, 0.0
      %v5400 = vmax.f32 %v5373, 0.0
      %v5401 = vmax.f32 %v5375, 0.0
      %v5402 = vmax.f32 %v5378, 0.0
      %v5403 = vmax.f32 %v5380, 0.0
      %v5404 = vmax.f32 %v5383, 0.0
      %v5405 = vmax.f32 %v5385, 0.0
      %v5406 = vmax.f32 %v5388, 0.0
      %v5407 = vmax.f32 %v5390, 0.0
      %v5408 = vpack.c.bf16 %v5393, %v5392
      %v5409 = vpack.c.bf16 %v5395, %v5394
      %v5410 = vpack.c.bf16 %v5397, %v5396
      %v5411 = vpack.c.bf16 %v5399, %v5398
      %v5412 = vpack.c.bf16 %v5401, %v5400
      %v5413 = vpack.c.bf16 %v5403, %v5402
      %v5414 = vpack.c.bf16 %v5405, %v5404
      %v5415 = vpack.c.bf16 %v5407, %v5406
      %5416 = vmatpush.bf16.msra.mxu0 %v5415
      %5417 = vmatpush.bf16.msra.mxu0 %v5414
      %5418 = vmatpush.bf16.msra.mxu0 %v5413
      %5419 = vmatpush.bf16.msra.mxu0 %v5412
      %5420 = vmatpush.bf16.msra.mxu0 %v5411
      %5421 = vmatpush.bf16.msra.mxu0 %v5410
      %5422 = vmatpush.bf16.msra.mxu0 %v5409
      %5423 = vmatpush.bf16.msra.mxu0 %v5408
      %5424 = vmatmul.bf16.gmra.mxu0 %v2860
      %v5425 = vpop.f32.mrf.mxu0
      %v5426 = vadd.f32 %v2639, %v5425
      %v5427 = vpop.f32.mrf.mxu0
      %v5428 = vadd.f32 %v2644, %v5427
      %5429 = vmatmul.bf16.gmra.mxu0 %v2861
      %v5430 = vpop.f32.mrf.mxu0
      %v5431 = vadd.f32 %v2649, %v5430
      %v5432 = vpop.f32.mrf.mxu0
      %v5433 = vadd.f32 %v2654, %v5432
      %5434 = vmatmul.bf16.gmra.mxu0 %v2862
      %v5435 = vpop.f32.mrf.mxu0
      %v5436 = vadd.f32 %v2659, %v5435
      %v5437 = vpop.f32.mrf.mxu0
      %v5438 = vadd.f32 %v2664, %v5437
      %5439 = vmatmul.bf16.gmra.mxu0 %v2863
      %v5440 = vpop.f32.mrf.mxu0
      %v5441 = vadd.f32 %v2669, %v5440
      %v5442 = vpop.f32.mrf.mxu0
      %v5443 = vadd.f32 %v2674, %v5442
      %5444 = vmatmul.bf16.gmra.mxu0 %v2864
      %v5445 = vpop.f32.mrf.mxu0
      %v5446 = vadd.f32 %v2679, %v5445
      %v5447 = vpop.f32.mrf.mxu0
      %v5448 = vadd.f32 %v2684, %v5447
      %5449 = vmatmul.bf16.gmra.mxu0 %v2865
      %v5450 = vpop.f32.mrf.mxu0
      %v5451 = vadd.f32 %v2689, %v5450
      %v5452 = vpop.f32.mrf.mxu0
      %v5453 = vadd.f32 %v2694, %v5452
      %5454 = vmatmul.bf16.gmra.mxu0 %v2866
      %v5455 = vpop.f32.mrf.mxu0
      %v5456 = vadd.f32 %v2699, %v5455
      %v5457 = vpop.f32.mrf.mxu0
      %v5458 = vadd.f32 %v2704, %v5457
      %5459 = vmatmul.bf16.gmra.mxu0 %v2867
      %v5460 = vpop.f32.mrf.mxu0
      %v5461 = vadd.f32 %v2709, %v5460
      %v5462 = vpop.f32.mrf.mxu0
      %v5463 = vadd.f32 %v2714, %v5462
      %5464 = vmatmul.bf16.gmra.mxu0 %v2868
      %v5465 = vpop.f32.mrf.mxu0
      %v5466 = vadd.f32 %v2719, %v5465
      %v5467 = vpop.f32.mrf.mxu0
      %v5468 = vadd.f32 %v2724, %v5467
      %5469 = vmatmul.bf16.gmra.mxu0 %v2869
      %v5470 = vpop.f32.mrf.mxu0
      %v5471 = vadd.f32 %v2729, %v5470
      %v5472 = vpop.f32.mrf.mxu0
      %v5473 = vadd.f32 %v2734, %v5472
      %5474 = vmatmul.bf16.gmra.mxu0 %v2870
      %v5475 = vpop.f32.mrf.mxu0
      %v5476 = vadd.f32 %v2739, %v5475
      %v5477 = vpop.f32.mrf.mxu0
      %v5478 = vadd.f32 %v2744, %v5477
      %5479 = vmatmul.bf16.gmra.mxu0 %v2871
      %v5480 = vpop.f32.mrf.mxu0
      %v5481 = vadd.f32 %v2749, %v5480
      %v5482 = vpop.f32.mrf.mxu0
      %v5483 = vadd.f32 %v2754, %v5482
      %5484 = vmatmul.bf16.gmra.mxu0 %v2872
      %v5485 = vpop.f32.mrf.mxu0
      %v5486 = vadd.f32 %v2759, %v5485
      %v5487 = vpop.f32.mrf.mxu0
      %v5488 = vadd.f32 %v2764, %v5487
      %5489 = vmatmul.bf16.gmra.mxu0 %v2873
      %v5490 = vpop.f32.mrf.mxu0
      %v5491 = vadd.f32 %v2769, %v5490
      %v5492 = vpop.f32.mrf.mxu0
      %v5493 = vadd.f32 %v2774, %v5492
      %5494 = vmatmul.bf16.gmra.mxu0 %v2874
      %v5495 = vpop.f32.mrf.mxu0
      %v5496 = vadd.f32 %v2779, %v5495
      %v5497 = vpop.f32.mrf.mxu0
      %v5498 = vadd.f32 %v2784, %v5497
      %5499 = vmatmul.bf16.gmra.mxu0 %v2875
      %v5500 = vpop.f32.mrf.mxu0
      %v5501 = vadd.f32 %v2789, %v5500
      %v5502 = vpop.f32.mrf.mxu0
      %v5503 = vadd.f32 %v2794, %v5502
      %5504 = vdwg.mxu0
      %v5505 = vmax.f32 %v5426, 0.0
      %v5506 = vmax.f32 %v5428, 0.0
      %v5507 = vmax.f32 %v5431, 0.0
      %v5508 = vmax.f32 %v5433, 0.0
      %v5509 = vmax.f32 %v5436, 0.0
      %v5510 = vmax.f32 %v5438, 0.0
      %v5511 = vmax.f32 %v5441, 0.0
      %v5512 = vmax.f32 %v5443, 0.0
      %v5513 = vmax.f32 %v5446, 0.0
      %v5514 = vmax.f32 %v5448, 0.0
      %v5515 = vmax.f32 %v5451, 0.0
      %v5516 = vmax.f32 %v5453, 0.0
      %v5517 = vmax.f32 %v5456, 0.0
      %v5518 = vmax.f32 %v5458, 0.0
      %v5519 = vmax.f32 %v5461, 0.0
      %v5520 = vmax.f32 %v5463, 0.0
      %v5521 = vmax.f32 %v5466, 0.0
      %v5522 = vmax.f32 %v5468, 0.0
      %v5523 = vmax.f32 %v5471, 0.0
      %v5524 = vmax.f32 %v5473, 0.0
      %v5525 = vmax.f32 %v5476, 0.0
      %v5526 = vmax.f32 %v5478, 0.0
      %v5527 = vmax.f32 %v5481, 0.0
      %v5528 = vmax.f32 %v5483, 0.0
      %v5529 = vmax.f32 %v5486, 0.0
      %v5530 = vmax.f32 %v5488, 0.0
      %v5531 = vmax.f32 %v5491, 0.0
      %v5532 = vmax.f32 %v5493, 0.0
      %v5533 = vmax.f32 %v5496, 0.0
      %v5534 = vmax.f32 %v5498, 0.0
      %v5535 = vmax.f32 %v5501, 0.0
      %v5536 = vmax.f32 %v5503, 0.0
      %v5537 = vmax.f32 %v5172, %v5505
      %v5538 = vmax.f32 %v5173, %v5506
      %v5539 = vmax.f32 %v5174, %v5507
      %v5540 = vmax.f32 %v5175, %v5508
      %v5541 = vmax.f32 %v5176, %v5509
      %v5542 = vmax.f32 %v5177, %v5510
      %v5543 = vmax.f32 %v5178, %v5511
      %v5544 = vmax.f32 %v5179, %v5512
      %v5545 = vmax.f32 %v5180, %v5513
      %v5546 = vmax.f32 %v5181, %v5514
      %v5547 = vmax.f32 %v5182, %v5515
      %v5548 = vmax.f32 %v5183, %v5516
      %v5549 = vmax.f32 %v5184, %v5517
      %v5550 = vmax.f32 %v5185, %v5518
      %v5551 = vmax.f32 %v5186, %v5519
      %v5552 = vmax.f32 %v5187, %v5520
      %v5553 = vmax.f32 %v5188, %v5521
      %v5554 = vmax.f32 %v5189, %v5522
      %v5555 = vmax.f32 %v5190, %v5523
      %v5556 = vmax.f32 %v5191, %v5524
      %v5557 = vmax.f32 %v5192, %v5525
      %v5558 = vmax.f32 %v5193, %v5526
      %v5559 = vmax.f32 %v5194, %v5527
      %v5560 = vmax.f32 %v5195, %v5528
      %v5561 = vmax.f32 %v5196, %v5529
      %v5562 = vmax.f32 %v5197, %v5530
      %v5563 = vmax.f32 %v5198, %v5531
      %v5564 = vmax.f32 %v5199, %v5532
      %v5565 = vmax.f32 %v5200, %v5533
      %v5566 = vmax.f32 %v5201, %v5534
      %v5567 = vmax.f32 %v5202, %v5535
      %v5568 = vmax.f32 %v5203, %v5536
      %v5570 = vrot.slane %v1642, 7
      %v5573 = vrot.slane %v1652, 6
      %v5576 = vrot.slane %v1662, 5
      %v5579 = vrot.slane %v1756, 4
      %v5582 = vrot.slane %v1816, 3
      %v5585 = vrot.slane %v1826, 2
      %v5588 = vrot.slane %v1920, 1
      %v5590 = vsel %vm2086, %v1636, %v5570
      %v5591 = vsel %vm2088, %v5590, %v5573
      %v5592 = vsel %vm2090, %v5591, %v5576
      %v5593 = vsel %vm2092, %v5592, %v5579
      %v5594 = vsel %vm2094, %v5593, %v5582
      %v5595 = vsel %vm2096, %v5594, %v5585
      %v5596 = vsel %vm2098, %v5595, %v5588
      %v5597 = vpack.c.bf16 %v5596, %v5596
      %v5599 = vsel %vm2092, %v5597, 0
      %5601 = vmatpush.bf16.msra.mxu0 0
      %5602 = vmatpush.bf16.msra.mxu0 0
      %5603 = vmatpush.bf16.msra.mxu0 0
      %5604 = vmatpush.bf16.msra.mxu0 0
      %5605 = vmatpush.bf16.msra.mxu0 0
      %5606 = vmatpush.bf16.msra.mxu0 0
      %5607 = vmatpush.bf16.msra.mxu0 0
      %5608 = vmatpush.bf16.msra.mxu0 %v5599
      %5609 = vmatmul.bf16.gmra.mxu0 %v2162
      %v5610 = vpop.f32.mrf.mxu0
      %v5611 = vadd.f32 %v2104, %v5610
      %v5612 = vpop.f32.mrf.mxu0
      %v5613 = vadd.f32 %v2109, %v5612
      %5614 = vmatmul.bf16.gmra.mxu0 %v2165
      %v5615 = vpop.f32.mrf.mxu0
      %v5616 = vadd.f32 %v2114, %v5615
      %v5617 = vpop.f32.mrf.mxu0
      %v5618 = vadd.f32 %v2119, %v5617
      %5619 = vmatmul.bf16.gmra.mxu0 %v2168
      %v5620 = vpop.f32.mrf.mxu0
      %v5621 = vadd.f32 %v2124, %v5620
      %v5622 = vpop.f32.mrf.mxu0
      %v5623 = vadd.f32 %v2129, %v5622
      %5624 = vmatmul.bf16.gmra.mxu0 %v2171
      %v5625 = vpop.f32.mrf.mxu0
      %v5626 = vadd.f32 %v2134, %v5625
      %v5627 = vpop.f32.mrf.mxu0
      %v5628 = vadd.f32 %v2139, %v5627
      %5629 = vdwg.mxu0
      %v5630 = vmax.f32 %v5611, 0.0
      %v5631 = vmax.f32 %v5613, 0.0
      %v5632 = vmax.f32 %v5616, 0.0
      %v5633 = vmax.f32 %v5618, 0.0
      %v5634 = vmax.f32 %v5621, 0.0
      %v5635 = vmax.f32 %v5623, 0.0
      %v5636 = vmax.f32 %v5626, 0.0
      %v5637 = vmax.f32 %v5628, 0.0
      %v5638 = vpack.c.bf16 %v5631, %v5630
      %v5639 = vpack.c.bf16 %v5633, %v5632
      %v5640 = vpack.c.bf16 %v5635, %v5634
      %v5641 = vpack.c.bf16 %v5637, %v5636
      %5642 = vmatpush.bf16.msra.mxu0 0
      %5643 = vmatpush.bf16.msra.mxu0 0
      %5644 = vmatpush.bf16.msra.mxu0 0
      %5645 = vmatpush.bf16.msra.mxu0 0
      %5646 = vmatpush.bf16.msra.mxu0 %v5641
      %5647 = vmatpush.bf16.msra.mxu0 %v5640
      %5648 = vmatpush.bf16.msra.mxu0 %v5639
      %5649 = vmatpush.bf16.msra.mxu0 %v5638
      %5650 = vmatmul.bf16.gmra.mxu0 %v2339
      %v5651 = vpop.f32.mrf.mxu0
      %v5652 = vadd.f32 %v2220, %v5651
      %v5653 = vpop.f32.mrf.mxu0
      %v5654 = vadd.f32 %v2225, %v5653
      %5655 = vmatmul.bf16.gmra.mxu0 %v2342
      %v5656 = vpop.f32.mrf.mxu0
      %v5657 = vadd.f32 %v2230, %v5656
      %v5658 = vpop.f32.mrf.mxu0
      %v5659 = vadd.f32 %v2235, %v5658
      %5660 = vmatmul.bf16.gmra.mxu0 %v2345
      %v5661 = vpop.f32.mrf.mxu0
      %v5662 = vadd.f32 %v2240, %v5661
      %v5663 = vpop.f32.mrf.mxu0
      %v5664 = vadd.f32 %v2245, %v5663
      %5665 = vmatmul.bf16.gmra.mxu0 %v2348
      %v5666 = vpop.f32.mrf.mxu0
      %v5667 = vadd.f32 %v2250, %v5666
      %v5668 = vpop.f32.mrf.mxu0
      %v5669 = vadd.f32 %v2255, %v5668
      %5670 = vmatmul.bf16.gmra.mxu0 %v2351
      %v5671 = vpop.f32.mrf.mxu0
      %v5672 = vadd.f32 %v2260, %v5671
      %v5673 = vpop.f32.mrf.mxu0
      %v5674 = vadd.f32 %v2265, %v5673
      %5675 = vmatmul.bf16.gmra.mxu0 %v2354
      %v5676 = vpop.f32.mrf.mxu0
      %v5677 = vadd.f32 %v2270, %v5676
      %v5678 = vpop.f32.mrf.mxu0
      %v5679 = vadd.f32 %v2275, %v5678
      %5680 = vmatmul.bf16.gmra.mxu0 %v2357
      %v5681 = vpop.f32.mrf.mxu0
      %v5682 = vadd.f32 %v2280, %v5681
      %v5683 = vpop.f32.mrf.mxu0
      %v5684 = vadd.f32 %v2285, %v5683
      %5685 = vmatmul.bf16.gmra.mxu0 %v2360
      %v5686 = vpop.f32.mrf.mxu0
      %v5687 = vadd.f32 %v2290, %v5686
      %v5688 = vpop.f32.mrf.mxu0
      %v5689 = vadd.f32 %v2295, %v5688
      %5690 = vdwg.mxu0
      %v5691 = vmax.f32 %v5652, 0.0
      %v5692 = vmax.f32 %v5654, 0.0
      %v5693 = vmax.f32 %v5657, 0.0
      %v5694 = vmax.f32 %v5659, 0.0
      %v5695 = vmax.f32 %v5662, 0.0
      %v5696 = vmax.f32 %v5664, 0.0
      %v5697 = vmax.f32 %v5667, 0.0
      %v5698 = vmax.f32 %v5669, 0.0
      %v5699 = vmax.f32 %v5672, 0.0
      %v5700 = vmax.f32 %v5674, 0.0
      %v5701 = vmax.f32 %v5677, 0.0
      %v5702 = vmax.f32 %v5679, 0.0
      %v5703 = vmax.f32 %v5682, 0.0
      %v5704 = vmax.f32 %v5684, 0.0
      %v5705 = vmax.f32 %v5687, 0.0
      %v5706 = vmax.f32 %v5689, 0.0
      %v5707 = vpack.c.bf16 %v5692, %v5691
      %v5708 = vpack.c.bf16 %v5694, %v5693
      %v5709 = vpack.c.bf16 %v5696, %v5695
      %v5710 = vpack.c.bf16 %v5698, %v5697
      %v5711 = vpack.c.bf16 %v5700, %v5699
      %v5712 = vpack.c.bf16 %v5702, %v5701
      %v5713 = vpack.c.bf16 %v5704, %v5703
      %v5714 = vpack.c.bf16 %v5706, %v5705
      %5715 = vmatpush.bf16.msra.mxu0 %v5714
      %5716 = vmatpush.bf16.msra.mxu0 %v5713
      %5717 = vmatpush.bf16.msra.mxu0 %v5712
      %5718 = vmatpush.bf16.msra.mxu0 %v5711
      %5719 = vmatpush.bf16.msra.mxu0 %v5710
      %5720 = vmatpush.bf16.msra.mxu0 %v5709
      %5721 = vmatpush.bf16.msra.mxu0 %v5708
      %5722 = vmatpush.bf16.msra.mxu0 %v5707
      %5723 = vmatmul.bf16.gmra.mxu0 %v2547
      %v5724 = vpop.f32.mrf.mxu0
      %v5725 = vadd.f32 %v2438, %v5724
      %v5726 = vpop.f32.mrf.mxu0
      %v5727 = vadd.f32 %v2443, %v5726
      %5728 = vmatmul.bf16.gmra.mxu0 %v2548
      %v5729 = vpop.f32.mrf.mxu0
      %v5730 = vadd.f32 %v2448, %v5729
      %v5731 = vpop.f32.mrf.mxu0
      %v5732 = vadd.f32 %v2453, %v5731
      %5733 = vmatmul.bf16.gmra.mxu0 %v2549
      %v5734 = vpop.f32.mrf.mxu0
      %v5735 = vadd.f32 %v2458, %v5734
      %v5736 = vpop.f32.mrf.mxu0
      %v5737 = vadd.f32 %v2463, %v5736
      %5738 = vmatmul.bf16.gmra.mxu0 %v2550
      %v5739 = vpop.f32.mrf.mxu0
      %v5740 = vadd.f32 %v2468, %v5739
      %v5741 = vpop.f32.mrf.mxu0
      %v5742 = vadd.f32 %v2473, %v5741
      %5743 = vmatmul.bf16.gmra.mxu0 %v2551
      %v5744 = vpop.f32.mrf.mxu0
      %v5745 = vadd.f32 %v2478, %v5744
      %v5746 = vpop.f32.mrf.mxu0
      %v5747 = vadd.f32 %v2483, %v5746
      %5748 = vmatmul.bf16.gmra.mxu0 %v2552
      %v5749 = vpop.f32.mrf.mxu0
      %v5750 = vadd.f32 %v2488, %v5749
      %v5751 = vpop.f32.mrf.mxu0
      %v5752 = vadd.f32 %v2493, %v5751
      %5753 = vmatmul.bf16.gmra.mxu0 %v2553
      %v5754 = vpop.f32.mrf.mxu0
      %v5755 = vadd.f32 %v2498, %v5754
      %v5756 = vpop.f32.mrf.mxu0
      %v5757 = vadd.f32 %v2503, %v5756
      %5758 = vmatmul.bf16.gmra.mxu0 %v2554
      %v5759 = vpop.f32.mrf.mxu0
      %v5760 = vadd.f32 %v2508, %v5759
      %v5761 = vpop.f32.mrf.mxu0
      %v5762 = vadd.f32 %v2513, %v5761
      %5763 = vdwg.mxu0
      %v5764 = vmax.f32 %v5725, 0.0
      %v5765 = vmax.f32 %v5727, 0.0
      %v5766 = vmax.f32 %v5730, 0.0
      %v5767 = vmax.f32 %v5732, 0.0
      %v5768 = vmax.f32 %v5735, 0.0
      %v5769 = vmax.f32 %v5737, 0.0
      %v5770 = vmax.f32 %v5740, 0.0
      %v5771 = vmax.f32 %v5742, 0.0
      %v5772 = vmax.f32 %v5745, 0.0
      %v5773 = vmax.f32 %v5747, 0.0
      %v5774 = vmax.f32 %v5750, 0.0
      %v5775 = vmax.f32 %v5752, 0.0
      %v5776 = vmax.f32 %v5755, 0.0
      %v5777 = vmax.f32 %v5757, 0.0
      %v5778 = vmax.f32 %v5760, 0.0
      %v5779 = vmax.f32 %v5762, 0.0
      %v5780 = vpack.c.bf16 %v5765, %v5764
      %v5781 = vpack.c.bf16 %v5767, %v5766
      %v5782 = vpack.c.bf16 %v5769, %v5768
      %v5783 = vpack.c.bf16 %v5771, %v5770
      %v5784 = vpack.c.bf16 %v5773, %v5772
      %v5785 = vpack.c.bf16 %v5775, %v5774
      %v5786 = vpack.c.bf16 %v5777, %v5776
      %v5787 = vpack.c.bf16 %v5779, %v5778
      %5788 = vmatpush.bf16.msra.mxu0 %v5787
      %5789 = vmatpush.bf16.msra.mxu0 %v5786
      %5790 = vmatpush.bf16.msra.mxu0 %v5785
      %5791 = vmatpush.bf16.msra.mxu0 %v5784
      %5792 = vmatpush.bf16.msra.mxu0 %v5783
      %5793 = vmatpush.bf16.msra.mxu0 %v5782
      %5794 = vmatpush.bf16.msra.mxu0 %v5781
      %5795 = vmatpush.bf16.msra.mxu0 %v5780
      %5796 = vmatmul.bf16.gmra.mxu0 %v2860
      %v5797 = vpop.f32.mrf.mxu0
      %v5798 = vadd.f32 %v2639, %v5797
      %v5799 = vpop.f32.mrf.mxu0
      %v5800 = vadd.f32 %v2644, %v5799
      %5801 = vmatmul.bf16.gmra.mxu0 %v2861
      %v5802 = vpop.f32.mrf.mxu0
      %v5803 = vadd.f32 %v2649, %v5802
      %v5804 = vpop.f32.mrf.mxu0
      %v5805 = vadd.f32 %v2654, %v5804
      %5806 = vmatmul.bf16.gmra.mxu0 %v2862
      %v5807 = vpop.f32.mrf.mxu0
      %v5808 = vadd.f32 %v2659, %v5807
      %v5809 = vpop.f32.mrf.mxu0
      %v5810 = vadd.f32 %v2664, %v5809
      %5811 = vmatmul.bf16.gmra.mxu0 %v2863
      %v5812 = vpop.f32.mrf.mxu0
      %v5813 = vadd.f32 %v2669, %v5812
      %v5814 = vpop.f32.mrf.mxu0
      %v5815 = vadd.f32 %v2674, %v5814
      %5816 = vmatmul.bf16.gmra.mxu0 %v2864
      %v5817 = vpop.f32.mrf.mxu0
      %v5818 = vadd.f32 %v2679, %v5817
      %v5819 = vpop.f32.mrf.mxu0
      %v5820 = vadd.f32 %v2684, %v5819
      %5821 = vmatmul.bf16.gmra.mxu0 %v2865
      %v5822 = vpop.f32.mrf.mxu0
      %v5823 = vadd.f32 %v2689, %v5822
      %v5824 = vpop.f32.mrf.mxu0
      %v5825 = vadd.f32 %v2694, %v5824
      %5826 = vmatmul.bf16.gmra.mxu0 %v2866
      %v5827 = vpop.f32.mrf.mxu0
      %v5828 = vadd.f32 %v2699, %v5827
      %v5829 = vpop.f32.mrf.mxu0
      %v5830 = vadd.f32 %v2704, %v5829
      %5831 = vmatmul.bf16.gmra.mxu0 %v2867
      %v5832 = vpop.f32.mrf.mxu0
      %v5833 = vadd.f32 %v2709, %v5832
      %v5834 = vpop.f32.mrf.mxu0
      %v5835 = vadd.f32 %v2714, %v5834
      %5836 = vmatmul.bf16.gmra.mxu0 %v2868
      %v5837 = vpop.f32.mrf.mxu0
      %v5838 = vadd.f32 %v2719, %v5837
      %v5839 = vpop.f32.mrf.mxu0
      %v5840 = vadd.f32 %v2724, %v5839
      %5841 = vmatmul.bf16.gmra.mxu0 %v2869
      %v5842 = vpop.f32.mrf.mxu0
      %v5843 = vadd.f32 %v2729, %v5842
      %v5844 = vpop.f32.mrf.mxu0
      %v5845 = vadd.f32 %v2734, %v5844
      %5846 = vmatmul.bf16.gmra.mxu0 %v2870
      %v5847 = vpop.f32.mrf.mxu0
      %v5848 = vadd.f32 %v2739, %v5847
      %v5849 = vpop.f32.mrf.mxu0
      %v5850 = vadd.f32 %v2744, %v5849
      %5851 = vmatmul.bf16.gmra.mxu0 %v2871
      %v5852 = vpop.f32.mrf.mxu0
      %v5853 = vadd.f32 %v2749, %v5852
      %v5854 = vpop.f32.mrf.mxu0
      %v5855 = vadd.f32 %v2754, %v5854
      %5856 = vmatmul.bf16.gmra.mxu0 %v2872
      %v5857 = vpop.f32.mrf.mxu0
      %v5858 = vadd.f32 %v2759, %v5857
      %v5859 = vpop.f32.mrf.mxu0
      %v5860 = vadd.f32 %v2764, %v5859
      %5861 = vmatmul.bf16.gmra.mxu0 %v2873
      %v5862 = vpop.f32.mrf.mxu0
      %v5863 = vadd.f32 %v2769, %v5862
      %v5864 = vpop.f32.mrf.mxu0
      %v5865 = vadd.f32 %v2774, %v5864
      %5866 = vmatmul.bf16.gmra.mxu0 %v2874
      %v5867 = vpop.f32.mrf.mxu0
      %v5868 = vadd.f32 %v2779, %v5867
      %v5869 = vpop.f32.mrf.mxu0
      %v5870 = vadd.f32 %v2784, %v5869
      %5871 = vmatmul.bf16.gmra.mxu0 %v2875
      %v5872 = vpop.f32.mrf.mxu0
      %v5873 = vadd.f32 %v2789, %v5872
      %v5874 = vpop.f32.mrf.mxu0
      %v5875 = vadd.f32 %v2794, %v5874
      %5876 = vdwg.mxu0
      %v5877 = vmax.f32 %v5798, 0.0
      %v5878 = vmax.f32 %v5800, 0.0
      %v5879 = vmax.f32 %v5803, 0.0
      %v5880 = vmax.f32 %v5805, 0.0
      %v5881 = vmax.f32 %v5808, 0.0
      %v5882 = vmax.f32 %v5810, 0.0
      %v5883 = vmax.f32 %v5813, 0.0
      %v5884 = vmax.f32 %v5815, 0.0
      %v5885 = vmax.f32 %v5818, 0.0
      %v5886 = vmax.f32 %v5820, 0.0
      %v5887 = vmax.f32 %v5823, 0.0
      %v5888 = vmax.f32 %v5825, 0.0
      %v5889 = vmax.f32 %v5828, 0.0
      %v5890 = vmax.f32 %v5830, 0.0
      %v5891 = vmax.f32 %v5833, 0.0
      %v5892 = vmax.f32 %v5835, 0.0
      %v5893 = vmax.f32 %v5838, 0.0
      %v5894 = vmax.f32 %v5840, 0.0
      %v5895 = vmax.f32 %v5843, 0.0
      %v5896 = vmax.f32 %v5845, 0.0
      %v5897 = vmax.f32 %v5848, 0.0
      %v5898 = vmax.f32 %v5850, 0.0
      %v5899 = vmax.f32 %v5853, 0.0
      %v5900 = vmax.f32 %v5855, 0.0
      %v5901 = vmax.f32 %v5858, 0.0
      %v5902 = vmax.f32 %v5860, 0.0
      %v5903 = vmax.f32 %v5863, 0.0
      %v5904 = vmax.f32 %v5865, 0.0
      %v5905 = vmax.f32 %v5868, 0.0
      %v5906 = vmax.f32 %v5870, 0.0
      %v5907 = vmax.f32 %v5873, 0.0
      %v5908 = vmax.f32 %v5875, 0.0
      %v5909 = vmax.f32 %v5537, %v5877
      %v5910 = vmax.f32 %v5538, %v5878
      %v5911 = vmax.f32 %v5539, %v5879
      %v5912 = vmax.f32 %v5540, %v5880
      %v5913 = vmax.f32 %v5541, %v5881
      %v5914 = vmax.f32 %v5542, %v5882
      %v5915 = vmax.f32 %v5543, %v5883
      %v5916 = vmax.f32 %v5544, %v5884
      %v5917 = vmax.f32 %v5545, %v5885
      %v5918 = vmax.f32 %v5546, %v5886
      %v5919 = vmax.f32 %v5547, %v5887
      %v5920 = vmax.f32 %v5548, %v5888
      %v5921 = vmax.f32 %v5549, %v5889
      %v5922 = vmax.f32 %v5550, %v5890
      %v5923 = vmax.f32 %v5551, %v5891
      %v5924 = vmax.f32 %v5552, %v5892
      %v5925 = vmax.f32 %v5553, %v5893
      %v5926 = vmax.f32 %v5554, %v5894
      %v5927 = vmax.f32 %v5555, %v5895
      %v5928 = vmax.f32 %v5556, %v5896
      %v5929 = vmax.f32 %v5557, %v5897
      %v5930 = vmax.f32 %v5558, %v5898
      %v5931 = vmax.f32 %v5559, %v5899
      %v5932 = vmax.f32 %v5560, %v5900
      %v5933 = vmax.f32 %v5561, %v5901
      %v5934 = vmax.f32 %v5562, %v5902
      %v5935 = vmax.f32 %v5563, %v5903
      %v5936 = vmax.f32 %v5564, %v5904
      %v5937 = vmax.f32 %v5565, %v5905
      %v5938 = vmax.f32 %v5566, %v5906
      %v5939 = vmax.f32 %v5567, %v5907
      %v5940 = vmax.f32 %v5568, %v5908
      %v5942 = vrot.slane %v1636, 1
      %v5944 = vrot.slane %v1652, 7
      %v5946 = vrot.slane %v1662, 6
      %v5948 = vrot.slane %v1756, 5
      %v5950 = vrot.slane %v1816, 4
      %v5952 = vrot.slane %v1826, 3
      %v5954 = vrot.slane %v1920, 2
      %v5956 = vsel %vm2086, %v5942, %v1642
      %v5957 = vsel %vm2088, %v5956, %v5944
      %v5958 = vsel %vm2090, %v5957, %v5946
      %v5959 = vsel %vm2092, %v5958, %v5948
      %v5960 = vsel %vm2094, %v5959, %v5950
      %v5961 = vsel %vm2096, %v5960, %v5952
      %v5962 = vsel %vm2098, %v5961, %v5954
      %v5963 = vpack.c.bf16 %v5962, %v5962
      %v5965 = vsel %vm2092, %v5963, 0
      %5967 = vmatpush.bf16.msra.mxu0 0
      %5968 = vmatpush.bf16.msra.mxu0 0
      %5969 = vmatpush.bf16.msra.mxu0 0
      %5970 = vmatpush.bf16.msra.mxu0 0
      %5971 = vmatpush.bf16.msra.mxu0 0
      %5972 = vmatpush.bf16.msra.mxu0 0
      %5973 = vmatpush.bf16.msra.mxu0 0
      %5974 = vmatpush.bf16.msra.mxu0 %v5965
      %5975 = vmatmul.bf16.gmra.mxu0 %v2162
      %v5976 = vpop.f32.mrf.mxu0
      %v5977 = vadd.f32 %v2104, %v5976
      %v5978 = vpop.f32.mrf.mxu0
      %v5979 = vadd.f32 %v2109, %v5978
      %5980 = vmatmul.bf16.gmra.mxu0 %v2165
      %v5981 = vpop.f32.mrf.mxu0
      %v5982 = vadd.f32 %v2114, %v5981
      %v5983 = vpop.f32.mrf.mxu0
      %v5984 = vadd.f32 %v2119, %v5983
      %5985 = vmatmul.bf16.gmra.mxu0 %v2168
      %v5986 = vpop.f32.mrf.mxu0
      %v5987 = vadd.f32 %v2124, %v5986
      %v5988 = vpop.f32.mrf.mxu0
      %v5989 = vadd.f32 %v2129, %v5988
      %5990 = vmatmul.bf16.gmra.mxu0 %v2171
      %v5991 = vpop.f32.mrf.mxu0
      %v5992 = vadd.f32 %v2134, %v5991
      %v5993 = vpop.f32.mrf.mxu0
      %v5994 = vadd.f32 %v2139, %v5993
      %5995 = vdwg.mxu0
      %v5996 = vmax.f32 %v5977, 0.0
      %v5997 = vmax.f32 %v5979, 0.0
      %v5998 = vmax.f32 %v5982, 0.0
      %v5999 = vmax.f32 %v5984, 0.0
      %v6000 = vmax.f32 %v5987, 0.0
      %v6001 = vmax.f32 %v5989, 0.0
      %v6002 = vmax.f32 %v5992, 0.0
      %v6003 = vmax.f32 %v5994, 0.0
      %v6004 = vpack.c.bf16 %v5997, %v5996
      %v6005 = vpack.c.bf16 %v5999, %v5998
      %v6006 = vpack.c.bf16 %v6001, %v6000
      %v6007 = vpack.c.bf16 %v6003, %v6002
      %6008 = vmatpush.bf16.msra.mxu0 0
      %6009 = vmatpush.bf16.msra.mxu0 0
      %6010 = vmatpush.bf16.msra.mxu0 0
      %6011 = vmatpush.bf16.msra.mxu0 0
      %6012 = vmatpush.bf16.msra.mxu0 %v6007
      %6013 = vmatpush.bf16.msra.mxu0 %v6006
      %6014 = vmatpush.bf16.msra.mxu0 %v6005
      %6015 = vmatpush.bf16.msra.mxu0 %v6004
      %6016 = vmatmul.bf16.gmra.mxu0 %v2339
      %v6017 = vpop.f32.mrf.mxu0
      %v6018 = vadd.f32 %v2220, %v6017
      %v6019 = vpop.f32.mrf.mxu0
      %v6020 = vadd.f32 %v2225, %v6019
      %6021 = vmatmul.bf16.gmra.mxu0 %v2342
      %v6022 = vpop.f32.mrf.mxu0
      %v6023 = vadd.f32 %v2230, %v6022
      %v6024 = vpop.f32.mrf.mxu0
      %v6025 = vadd.f32 %v2235, %v6024
      %6026 = vmatmul.bf16.gmra.mxu0 %v2345
      %v6027 = vpop.f32.mrf.mxu0
      %v6028 = vadd.f32 %v2240, %v6027
      %v6029 = vpop.f32.mrf.mxu0
      %v6030 = vadd.f32 %v2245, %v6029
      %6031 = vmatmul.bf16.gmra.mxu0 %v2348
      %v6032 = vpop.f32.mrf.mxu0
      %v6033 = vadd.f32 %v2250, %v6032
      %v6034 = vpop.f32.mrf.mxu0
      %v6035 = vadd.f32 %v2255, %v6034
      %6036 = vmatmul.bf16.gmra.mxu0 %v2351
      %v6037 = vpop.f32.mrf.mxu0
      %v6038 = vadd.f32 %v2260, %v6037
      %v6039 = vpop.f32.mrf.mxu0
      %v6040 = vadd.f32 %v2265, %v6039
      %6041 = vmatmul.bf16.gmra.mxu0 %v2354
      %v6042 = vpop.f32.mrf.mxu0
      %v6043 = vadd.f32 %v2270, %v6042
      %v6044 = vpop.f32.mrf.mxu0
      %v6045 = vadd.f32 %v2275, %v6044
      %6046 = vmatmul.bf16.gmra.mxu0 %v2357
      %v6047 = vpop.f32.mrf.mxu0
      %v6048 = vadd.f32 %v2280, %v6047
      %v6049 = vpop.f32.mrf.mxu0
      %v6050 = vadd.f32 %v2285, %v6049
      %6051 = vmatmul.bf16.gmra.mxu0 %v2360
      %v6052 = vpop.f32.mrf.mxu0
      %v6053 = vadd.f32 %v2290, %v6052
      %v6054 = vpop.f32.mrf.mxu0
      %v6055 = vadd.f32 %v2295, %v6054
      %6056 = vdwg.mxu0
      %v6057 = vmax.f32 %v6018, 0.0
      %v6058 = vmax.f32 %v6020, 0.0
      %v6059 = vmax.f32 %v6023, 0.0
      %v6060 = vmax.f32 %v6025, 0.0
      %v6061 = vmax.f32 %v6028, 0.0
      %v6062 = vmax.f32 %v6030, 0.0
      %v6063 = vmax.f32 %v6033, 0.0
      %v6064 = vmax.f32 %v6035, 0.0
      %v6065 = vmax.f32 %v6038, 0.0
      %v6066 = vmax.f32 %v6040, 0.0
      %v6067 = vmax.f32 %v6043, 0.0
      %v6068 = vmax.f32 %v6045, 0.0
      %v6069 = vmax.f32 %v6048, 0.0
      %v6070 = vmax.f32 %v6050, 0.0
      %v6071 = vmax.f32 %v6053, 0.0
      %v6072 = vmax.f32 %v6055, 0.0
      %v6073 = vpack.c.bf16 %v6058, %v6057
      %v6074 = vpack.c.bf16 %v6060, %v6059
      %v6075 = vpack.c.bf16 %v6062, %v6061
      %v6076 = vpack.c.bf16 %v6064, %v6063
      %v6077 = vpack.c.bf16 %v6066, %v6065
      %v6078 = vpack.c.bf16 %v6068, %v6067
      %v6079 = vpack.c.bf16 %v6070, %v6069
      %v6080 = vpack.c.bf16 %v6072, %v6071
      %6081 = vmatpush.bf16.msra.mxu0 %v6080
      %6082 = vmatpush.bf16.msra.mxu0 %v6079
      %6083 = vmatpush.bf16.msra.mxu0 %v6078
      %6084 = vmatpush.bf16.msra.mxu0 %v6077
      %6085 = vmatpush.bf16.msra.mxu0 %v6076
      %6086 = vmatpush.bf16.msra.mxu0 %v6075
      %6087 = vmatpush.bf16.msra.mxu0 %v6074
      %6088 = vmatpush.bf16.msra.mxu0 %v6073
      %6089 = vmatmul.bf16.gmra.mxu0 %v2547
      %v6090 = vpop.f32.mrf.mxu0
      %v6091 = vadd.f32 %v2438, %v6090
      %v6092 = vpop.f32.mrf.mxu0
      %v6093 = vadd.f32 %v2443, %v6092
      %6094 = vmatmul.bf16.gmra.mxu0 %v2548
      %v6095 = vpop.f32.mrf.mxu0
      %v6096 = vadd.f32 %v2448, %v6095
      %v6097 = vpop.f32.mrf.mxu0
      %v6098 = vadd.f32 %v2453, %v6097
      %6099 = vmatmul.bf16.gmra.mxu0 %v2549
      %v6100 = vpop.f32.mrf.mxu0
      %v6101 = vadd.f32 %v2458, %v6100
      %v6102 = vpop.f32.mrf.mxu0
      %v6103 = vadd.f32 %v2463, %v6102
      %6104 = vmatmul.bf16.gmra.mxu0 %v2550
      %v6105 = vpop.f32.mrf.mxu0
      %v6106 = vadd.f32 %v2468, %v6105
      %v6107 = vpop.f32.mrf.mxu0
      %v6108 = vadd.f32 %v2473, %v6107
      %6109 = vmatmul.bf16.gmra.mxu0 %v2551
      %v6110 = vpop.f32.mrf.mxu0
      %v6111 = vadd.f32 %v2478, %v6110
      %v6112 = vpop.f32.mrf.mxu0
      %v6113 = vadd.f32 %v2483, %v6112
      %6114 = vmatmul.bf16.gmra.mxu0 %v2552
      %v6115 = vpop.f32.mrf.mxu0
      %v6116 = vadd.f32 %v2488, %v6115
      %v6117 = vpop.f32.mrf.mxu0
      %v6118 = vadd.f32 %v2493, %v6117
      %6119 = vmatmul.bf16.gmra.mxu0 %v2553
      %v6120 = vpop.f32.mrf.mxu0
      %v6121 = vadd.f32 %v2498, %v6120
      %v6122 = vpop.f32.mrf.mxu0
      %v6123 = vadd.f32 %v2503, %v6122
      %6124 = vmatmul.bf16.gmra.mxu0 %v2554
      %v6125 = vpop.f32.mrf.mxu0
      %v6126 = vadd.f32 %v2508, %v6125
      %v6127 = vpop.f32.mrf.mxu0
      %v6128 = vadd.f32 %v2513, %v6127
      %6129 = vdwg.mxu0
      %v6130 = vmax.f32 %v6091, 0.0
      %v6131 = vmax.f32 %v6093, 0.0
      %v6132 = vmax.f32 %v6096, 0.0
      %v6133 = vmax.f32 %v6098, 0.0
      %v6134 = vmax.f32 %v6101, 0.0
      %v6135 = vmax.f32 %v6103, 0.0
      %v6136 = vmax.f32 %v6106, 0.0
      %v6137 = vmax.f32 %v6108, 0.0
      %v6138 = vmax.f32 %v6111, 0.0
      %v6139 = vmax.f32 %v6113, 0.0
      %v6140 = vmax.f32 %v6116, 0.0
      %v6141 = vmax.f32 %v6118, 0.0
      %v6142 = vmax.f32 %v6121, 0.0
      %v6143 = vmax.f32 %v6123, 0.0
      %v6144 = vmax.f32 %v6126, 0.0
      %v6145 = vmax.f32 %v6128, 0.0
      %v6146 = vpack.c.bf16 %v6131, %v6130
      %v6147 = vpack.c.bf16 %v6133, %v6132
      %v6148 = vpack.c.bf16 %v6135, %v6134
      %v6149 = vpack.c.bf16 %v6137, %v6136
      %v6150 = vpack.c.bf16 %v6139, %v6138
      %v6151 = vpack.c.bf16 %v6141, %v6140
      %v6152 = vpack.c.bf16 %v6143, %v6142
      %v6153 = vpack.c.bf16 %v6145, %v6144
      %6154 = vmatpush.bf16.msra.mxu0 %v6153
      %6155 = vmatpush.bf16.msra.mxu0 %v6152
      %6156 = vmatpush.bf16.msra.mxu0 %v6151
      %6157 = vmatpush.bf16.msra.mxu0 %v6150
      %6158 = vmatpush.bf16.msra.mxu0 %v6149
      %6159 = vmatpush.bf16.msra.mxu0 %v6148
      %6160 = vmatpush.bf16.msra.mxu0 %v6147
      %6161 = vmatpush.bf16.msra.mxu0 %v6146
      %6162 = vmatmul.bf16.gmra.mxu0 %v2860
      %v6163 = vpop.f32.mrf.mxu0
      %v6164 = vadd.f32 %v2639, %v6163
      %v6165 = vpop.f32.mrf.mxu0
      %v6166 = vadd.f32 %v2644, %v6165
      %6167 = vmatmul.bf16.gmra.mxu0 %v2861
      %v6168 = vpop.f32.mrf.mxu0
      %v6169 = vadd.f32 %v2649, %v6168
      %v6170 = vpop.f32.mrf.mxu0
      %v6171 = vadd.f32 %v2654, %v6170
      %6172 = vmatmul.bf16.gmra.mxu0 %v2862
      %v6173 = vpop.f32.mrf.mxu0
      %v6174 = vadd.f32 %v2659, %v6173
      %v6175 = vpop.f32.mrf.mxu0
      %v6176 = vadd.f32 %v2664, %v6175
      %6177 = vmatmul.bf16.gmra.mxu0 %v2863
      %v6178 = vpop.f32.mrf.mxu0
      %v6179 = vadd.f32 %v2669, %v6178
      %v6180 = vpop.f32.mrf.mxu0
      %v6181 = vadd.f32 %v2674, %v6180
      %6182 = vmatmul.bf16.gmra.mxu0 %v2864
      %v6183 = vpop.f32.mrf.mxu0
      %v6184 = vadd.f32 %v2679, %v6183
      %v6185 = vpop.f32.mrf.mxu0
      %v6186 = vadd.f32 %v2684, %v6185
      %6187 = vmatmul.bf16.gmra.mxu0 %v2865
      %v6188 = vpop.f32.mrf.mxu0
      %v6189 = vadd.f32 %v2689, %v6188
      %v6190 = vpop.f32.mrf.mxu0
      %v6191 = vadd.f32 %v2694, %v6190
      %6192 = vmatmul.bf16.gmra.mxu0 %v2866
      %v6193 = vpop.f32.mrf.mxu0
      %v6194 = vadd.f32 %v2699, %v6193
      %v6195 = vpop.f32.mrf.mxu0
      %v6196 = vadd.f32 %v2704, %v6195
      %6197 = vmatmul.bf16.gmra.mxu0 %v2867
      %v6198 = vpop.f32.mrf.mxu0
      %v6199 = vadd.f32 %v2709, %v6198
      %v6200 = vpop.f32.mrf.mxu0
      %v6201 = vadd.f32 %v2714, %v6200
      %6202 = vmatmul.bf16.gmra.mxu0 %v2868
      %v6203 = vpop.f32.mrf.mxu0
      %v6204 = vadd.f32 %v2719, %v6203
      %v6205 = vpop.f32.mrf.mxu0
      %v6206 = vadd.f32 %v2724, %v6205
      %6207 = vmatmul.bf16.gmra.mxu0 %v2869
      %v6208 = vpop.f32.mrf.mxu0
      %v6209 = vadd.f32 %v2729, %v6208
      %v6210 = vpop.f32.mrf.mxu0
      %v6211 = vadd.f32 %v2734, %v6210
      %6212 = vmatmul.bf16.gmra.mxu0 %v2870
      %v6213 = vpop.f32.mrf.mxu0
      %v6214 = vadd.f32 %v2739, %v6213
      %v6215 = vpop.f32.mrf.mxu0
      %v6216 = vadd.f32 %v2744, %v6215
      %6217 = vmatmul.bf16.gmra.mxu0 %v2871
      %v6218 = vpop.f32.mrf.mxu0
      %v6219 = vadd.f32 %v2749, %v6218
      %v6220 = vpop.f32.mrf.mxu0
      %v6221 = vadd.f32 %v2754, %v6220
      %6222 = vmatmul.bf16.gmra.mxu0 %v2872
      %v6223 = vpop.f32.mrf.mxu0
      %v6224 = vadd.f32 %v2759, %v6223
      %v6225 = vpop.f32.mrf.mxu0
      %v6226 = vadd.f32 %v2764, %v6225
      %6227 = vmatmul.bf16.gmra.mxu0 %v2873
      %v6228 = vpop.f32.mrf.mxu0
      %v6229 = vadd.f32 %v2769, %v6228
      %v6230 = vpop.f32.mrf.mxu0
      %v6231 = vadd.f32 %v2774, %v6230
      %6232 = vmatmul.bf16.gmra.mxu0 %v2874
      %v6233 = vpop.f32.mrf.mxu0
      %v6234 = vadd.f32 %v2779, %v6233
      %v6235 = vpop.f32.mrf.mxu0
      %v6236 = vadd.f32 %v2784, %v6235
      %6237 = vmatmul.bf16.gmra.mxu0 %v2875
      %v6238 = vpop.f32.mrf.mxu0
      %v6239 = vadd.f32 %v2789, %v6238
      %v6240 = vpop.f32.mrf.mxu0
      %v6241 = vadd.f32 %v2794, %v6240
      %6242 = vdwg.mxu0
      %v6243 = vmax.f32 %v6164, 0.0
      %v6244 = vmax.f32 %v6166, 0.0
      %v6245 = vmax.f32 %v6169, 0.0
      %v6246 = vmax.f32 %v6171, 0.0
      %v6247 = vmax.f32 %v6174, 0.0
      %v6248 = vmax.f32 %v6176, 0.0
      %v6249 = vmax.f32 %v6179, 0.0
      %v6250 = vmax.f32 %v6181, 0.0
      %v6251 = vmax.f32 %v6184, 0.0
      %v6252 = vmax.f32 %v6186, 0.0
      %v6253 = vmax.f32 %v6189, 0.0
      %v6254 = vmax.f32 %v6191, 0.0
      %v6255 = vmax.f32 %v6194, 0.0
      %v6256 = vmax.f32 %v6196, 0.0
      %v6257 = vmax.f32 %v6199, 0.0
      %v6258 = vmax.f32 %v6201, 0.0
      %v6259 = vmax.f32 %v6204, 0.0
      %v6260 = vmax.f32 %v6206, 0.0
      %v6261 = vmax.f32 %v6209, 0.0
      %v6262 = vmax.f32 %v6211, 0.0
      %v6263 = vmax.f32 %v6214, 0.0
      %v6264 = vmax.f32 %v6216, 0.0
      %v6265 = vmax.f32 %v6219, 0.0
      %v6266 = vmax.f32 %v6221, 0.0
      %v6267 = vmax.f32 %v6224, 0.0
      %v6268 = vmax.f32 %v6226, 0.0
      %v6269 = vmax.f32 %v6229, 0.0
      %v6270 = vmax.f32 %v6231, 0.0
      %v6271 = vmax.f32 %v6234, 0.0
      %v6272 = vmax.f32 %v6236, 0.0
      %v6273 = vmax.f32 %v6239, 0.0
      %v6274 = vmax.f32 %v6241, 0.0
      %v6275 = vmax.f32 %v5909, %v6243
      %v6276 = vmax.f32 %v5910, %v6244
      %v6277 = vmax.f32 %v5911, %v6245
      %v6278 = vmax.f32 %v5912, %v6246
      %v6279 = vmax.f32 %v5913, %v6247
      %v6280 = vmax.f32 %v5914, %v6248
      %v6281 = vmax.f32 %v5915, %v6249
      %v6282 = vmax.f32 %v5916, %v6250
      %v6283 = vmax.f32 %v5917, %v6251
      %v6284 = vmax.f32 %v5918, %v6252
      %v6285 = vmax.f32 %v5919, %v6253
      %v6286 = vmax.f32 %v5920, %v6254
      %v6287 = vmax.f32 %v5921, %v6255
      %v6288 = vmax.f32 %v5922, %v6256
      %v6289 = vmax.f32 %v5923, %v6257
      %v6290 = vmax.f32 %v5924, %v6258
      %v6291 = vmax.f32 %v5925, %v6259
      %v6292 = vmax.f32 %v5926, %v6260
      %v6293 = vmax.f32 %v5927, %v6261
      %v6294 = vmax.f32 %v5928, %v6262
      %v6295 = vmax.f32 %v5929, %v6263
      %v6296 = vmax.f32 %v5930, %v6264
      %v6297 = vmax.f32 %v5931, %v6265
      %v6298 = vmax.f32 %v5932, %v6266
      %v6299 = vmax.f32 %v5933, %v6267
      %v6300 = vmax.f32 %v5934, %v6268
      %v6301 = vmax.f32 %v5935, %v6269
      %v6302 = vmax.f32 %v5936, %v6270
      %v6303 = vmax.f32 %v5937, %v6271
      %v6304 = vmax.f32 %v5938, %v6272
      %v6305 = vmax.f32 %v5939, %v6273
      %v6306 = vmax.f32 %v5940, %v6274
      %v6307 = vrot.slane %v1636, 2
      %v6309 = vrot.slane %v1642, 1
      %v6311 = vrot.slane %v1662, 7
      %v6313 = vrot.slane %v1756, 6
      %v6315 = vrot.slane %v1816, 5
      %v6317 = vrot.slane %v1826, 4
      %v6319 = vrot.slane %v1920, 3
      %v6321 = vsel %vm2086, %v6307, %v6309
      %v6322 = vsel %vm2088, %v6321, %v1652
      %v6323 = vsel %vm2090, %v6322, %v6311
      %v6324 = vsel %vm2092, %v6323, %v6313
      %v6325 = vsel %vm2094, %v6324, %v6315
      %v6326 = vsel %vm2096, %v6325, %v6317
      %v6327 = vsel %vm2098, %v6326, %v6319
      %v6328 = vpack.c.bf16 %v6327, %v6327
      %v6330 = vsel %vm2092, %v6328, 0
      %6332 = vmatpush.bf16.msra.mxu0 0
      %6333 = vmatpush.bf16.msra.mxu0 0
      %6334 = vmatpush.bf16.msra.mxu0 0
      %6335 = vmatpush.bf16.msra.mxu0 0
      %6336 = vmatpush.bf16.msra.mxu0 0
      %6337 = vmatpush.bf16.msra.mxu0 0
      %6338 = vmatpush.bf16.msra.mxu0 0
      %6339 = vmatpush.bf16.msra.mxu0 %v6330
      %6340 = vmatmul.bf16.gmra.mxu0 %v2162
      %v6341 = vpop.f32.mrf.mxu0
      %v6342 = vadd.f32 %v2104, %v6341
      %v6343 = vpop.f32.mrf.mxu0
      %v6344 = vadd.f32 %v2109, %v6343
      %6345 = vmatmul.bf16.gmra.mxu0 %v2165
      %v6346 = vpop.f32.mrf.mxu0
      %v6347 = vadd.f32 %v2114, %v6346
      %v6348 = vpop.f32.mrf.mxu0
      %v6349 = vadd.f32 %v2119, %v6348
      %6350 = vmatmul.bf16.gmra.mxu0 %v2168
      %v6351 = vpop.f32.mrf.mxu0
      %v6352 = vadd.f32 %v2124, %v6351
      %v6353 = vpop.f32.mrf.mxu0
      %v6354 = vadd.f32 %v2129, %v6353
      %6355 = vmatmul.bf16.gmra.mxu0 %v2171
      %v6356 = vpop.f32.mrf.mxu0
      %v6357 = vadd.f32 %v2134, %v6356
      %v6358 = vpop.f32.mrf.mxu0
      %v6359 = vadd.f32 %v2139, %v6358
      %6360 = vdwg.mxu0
      %v6361 = vmax.f32 %v6342, 0.0
      %v6362 = vmax.f32 %v6344, 0.0
      %v6363 = vmax.f32 %v6347, 0.0
      %v6364 = vmax.f32 %v6349, 0.0
      %v6365 = vmax.f32 %v6352, 0.0
      %v6366 = vmax.f32 %v6354, 0.0
      %v6367 = vmax.f32 %v6357, 0.0
      %v6368 = vmax.f32 %v6359, 0.0
      %v6369 = vpack.c.bf16 %v6362, %v6361
      %v6370 = vpack.c.bf16 %v6364, %v6363
      %v6371 = vpack.c.bf16 %v6366, %v6365
      %v6372 = vpack.c.bf16 %v6368, %v6367
      %6373 = vmatpush.bf16.msra.mxu0 0
      %6374 = vmatpush.bf16.msra.mxu0 0
      %6375 = vmatpush.bf16.msra.mxu0 0
      %6376 = vmatpush.bf16.msra.mxu0 0
      %6377 = vmatpush.bf16.msra.mxu0 %v6372
      %6378 = vmatpush.bf16.msra.mxu0 %v6371
      %6379 = vmatpush.bf16.msra.mxu0 %v6370
      %6380 = vmatpush.bf16.msra.mxu0 %v6369
      %6381 = vmatmul.bf16.gmra.mxu0 %v2339
      %v6382 = vpop.f32.mrf.mxu0
      %v6383 = vadd.f32 %v2220, %v6382
      %v6384 = vpop.f32.mrf.mxu0
      %v6385 = vadd.f32 %v2225, %v6384
      %6386 = vmatmul.bf16.gmra.mxu0 %v2342
      %v6387 = vpop.f32.mrf.mxu0
      %v6388 = vadd.f32 %v2230, %v6387
      %v6389 = vpop.f32.mrf.mxu0
      %v6390 = vadd.f32 %v2235, %v6389
      %6391 = vmatmul.bf16.gmra.mxu0 %v2345
      %v6392 = vpop.f32.mrf.mxu0
      %v6393 = vadd.f32 %v2240, %v6392
      %v6394 = vpop.f32.mrf.mxu0
      %v6395 = vadd.f32 %v2245, %v6394
      %6396 = vmatmul.bf16.gmra.mxu0 %v2348
      %v6397 = vpop.f32.mrf.mxu0
      %v6398 = vadd.f32 %v2250, %v6397
      %v6399 = vpop.f32.mrf.mxu0
      %v6400 = vadd.f32 %v2255, %v6399
      %6401 = vmatmul.bf16.gmra.mxu0 %v2351
      %v6402 = vpop.f32.mrf.mxu0
      %v6403 = vadd.f32 %v2260, %v6402
      %v6404 = vpop.f32.mrf.mxu0
      %v6405 = vadd.f32 %v2265, %v6404
      %6406 = vmatmul.bf16.gmra.mxu0 %v2354
      %v6407 = vpop.f32.mrf.mxu0
      %v6408 = vadd.f32 %v2270, %v6407
      %v6409 = vpop.f32.mrf.mxu0
      %v6410 = vadd.f32 %v2275, %v6409
      %6411 = vmatmul.bf16.gmra.mxu0 %v2357
      %v6412 = vpop.f32.mrf.mxu0
      %v6413 = vadd.f32 %v2280, %v6412
      %v6414 = vpop.f32.mrf.mxu0
      %v6415 = vadd.f32 %v2285, %v6414
      %6416 = vmatmul.bf16.gmra.mxu0 %v2360
      %v6417 = vpop.f32.mrf.mxu0
      %v6418 = vadd.f32 %v2290, %v6417
      %v6419 = vpop.f32.mrf.mxu0
      %v6420 = vadd.f32 %v2295, %v6419
      %6421 = vdwg.mxu0
      %v6422 = vmax.f32 %v6383, 0.0
      %v6423 = vmax.f32 %v6385, 0.0
      %v6424 = vmax.f32 %v6388, 0.0
      %v6425 = vmax.f32 %v6390, 0.0
      %v6426 = vmax.f32 %v6393, 0.0
      %v6427 = vmax.f32 %v6395, 0.0
      %v6428 = vmax.f32 %v6398, 0.0
      %v6429 = vmax.f32 %v6400, 0.0
      %v6430 = vmax.f32 %v6403, 0.0
      %v6431 = vmax.f32 %v6405, 0.0
      %v6432 = vmax.f32 %v6408, 0.0
      %v6433 = vmax.f32 %v6410, 0.0
      %v6434 = vmax.f32 %v6413, 0.0
      %v6435 = vmax.f32 %v6415, 0.0
      %v6436 = vmax.f32 %v6418, 0.0
      %v6437 = vmax.f32 %v6420, 0.0
      %v6438 = vpack.c.bf16 %v6423, %v6422
      %v6439 = vpack.c.bf16 %v6425, %v6424
      %v6440 = vpack.c.bf16 %v6427, %v6426
      %v6441 = vpack.c.bf16 %v6429, %v6428
      %v6442 = vpack.c.bf16 %v6431, %v6430
      %v6443 = vpack.c.bf16 %v6433, %v6432
      %v6444 = vpack.c.bf16 %v6435, %v6434
      %v6445 = vpack.c.bf16 %v6437, %v6436
      %6446 = vmatpush.bf16.msra.mxu0 %v6445
      %6447 = vmatpush.bf16.msra.mxu0 %v6444
      %6448 = vmatpush.bf16.msra.mxu0 %v6443
      %6449 = vmatpush.bf16.msra.mxu0 %v6442
      %6450 = vmatpush.bf16.msra.mxu0 %v6441
      %6451 = vmatpush.bf16.msra.mxu0 %v6440
      %6452 = vmatpush.bf16.msra.mxu0 %v6439
      %6453 = vmatpush.bf16.msra.mxu0 %v6438
      %6454 = vmatmul.bf16.gmra.mxu0 %v2547
      %v6455 = vpop.f32.mrf.mxu0
      %v6456 = vadd.f32 %v2438, %v6455
      %v6457 = vpop.f32.mrf.mxu0
      %v6458 = vadd.f32 %v2443, %v6457
      %6459 = vmatmul.bf16.gmra.mxu0 %v2548
      %v6460 = vpop.f32.mrf.mxu0
      %v6461 = vadd.f32 %v2448, %v6460
      %v6462 = vpop.f32.mrf.mxu0
      %v6463 = vadd.f32 %v2453, %v6462
      %6464 = vmatmul.bf16.gmra.mxu0 %v2549
      %v6465 = vpop.f32.mrf.mxu0
      %v6466 = vadd.f32 %v2458, %v6465
      %v6467 = vpop.f32.mrf.mxu0
      %v6468 = vadd.f32 %v2463, %v6467
      %6469 = vmatmul.bf16.gmra.mxu0 %v2550
      %v6470 = vpop.f32.mrf.mxu0
      %v6471 = vadd.f32 %v2468, %v6470
      %v6472 = vpop.f32.mrf.mxu0
      %v6473 = vadd.f32 %v2473, %v6472
      %6474 = vmatmul.bf16.gmra.mxu0 %v2551
      %v6475 = vpop.f32.mrf.mxu0
      %v6476 = vadd.f32 %v2478, %v6475
      %v6477 = vpop.f32.mrf.mxu0
      %v6478 = vadd.f32 %v2483, %v6477
      %6479 = vmatmul.bf16.gmra.mxu0 %v2552
      %v6480 = vpop.f32.mrf.mxu0
      %v6481 = vadd.f32 %v2488, %v6480
      %v6482 = vpop.f32.mrf.mxu0
      %v6483 = vadd.f32 %v2493, %v6482
      %6484 = vmatmul.bf16.gmra.mxu0 %v2553
      %v6485 = vpop.f32.mrf.mxu0
      %v6486 = vadd.f32 %v2498, %v6485
      %v6487 = vpop.f32.mrf.mxu0
      %v6488 = vadd.f32 %v2503, %v6487
      %6489 = vmatmul.bf16.gmra.mxu0 %v2554
      %v6490 = vpop.f32.mrf.mxu0
      %v6491 = vadd.f32 %v2508, %v6490
      %v6492 = vpop.f32.mrf.mxu0
      %v6493 = vadd.f32 %v2513, %v6492
      %6494 = vdwg.mxu0
      %v6495 = vmax.f32 %v6456, 0.0
      %v6496 = vmax.f32 %v6458, 0.0
      %v6497 = vmax.f32 %v6461, 0.0
      %v6498 = vmax.f32 %v6463, 0.0
      %v6499 = vmax.f32 %v6466, 0.0
      %v6500 = vmax.f32 %v6468, 0.0
      %v6501 = vmax.f32 %v6471, 0.0
      %v6502 = vmax.f32 %v6473, 0.0
      %v6503 = vmax.f32 %v6476, 0.0
      %v6504 = vmax.f32 %v6478, 0.0
      %v6505 = vmax.f32 %v6481, 0.0
      %v6506 = vmax.f32 %v6483, 0.0
      %v6507 = vmax.f32 %v6486, 0.0
      %v6508 = vmax.f32 %v6488, 0.0
      %v6509 = vmax.f32 %v6491, 0.0
      %v6510 = vmax.f32 %v6493, 0.0
      %v6511 = vpack.c.bf16 %v6496, %v6495
      %v6512 = vpack.c.bf16 %v6498, %v6497
      %v6513 = vpack.c.bf16 %v6500, %v6499
      %v6514 = vpack.c.bf16 %v6502, %v6501
      %v6515 = vpack.c.bf16 %v6504, %v6503
      %v6516 = vpack.c.bf16 %v6506, %v6505
      %v6517 = vpack.c.bf16 %v6508, %v6507
      %v6518 = vpack.c.bf16 %v6510, %v6509
      %6519 = vmatpush.bf16.msra.mxu0 %v6518
      %6520 = vmatpush.bf16.msra.mxu0 %v6517
      %6521 = vmatpush.bf16.msra.mxu0 %v6516
      %6522 = vmatpush.bf16.msra.mxu0 %v6515
      %6523 = vmatpush.bf16.msra.mxu0 %v6514
      %6524 = vmatpush.bf16.msra.mxu0 %v6513
      %6525 = vmatpush.bf16.msra.mxu0 %v6512
      %6526 = vmatpush.bf16.msra.mxu0 %v6511
      %6527 = vmatmul.bf16.gmra.mxu0 %v2860
      %v6528 = vpop.f32.mrf.mxu0
      %v6529 = vadd.f32 %v2639, %v6528
      %v6530 = vpop.f32.mrf.mxu0
      %v6531 = vadd.f32 %v2644, %v6530
      %6532 = vmatmul.bf16.gmra.mxu0 %v2861
      %v6533 = vpop.f32.mrf.mxu0
      %v6534 = vadd.f32 %v2649, %v6533
      %v6535 = vpop.f32.mrf.mxu0
      %v6536 = vadd.f32 %v2654, %v6535
      %6537 = vmatmul.bf16.gmra.mxu0 %v2862
      %v6538 = vpop.f32.mrf.mxu0
      %v6539 = vadd.f32 %v2659, %v6538
      %v6540 = vpop.f32.mrf.mxu0
      %v6541 = vadd.f32 %v2664, %v6540
      %6542 = vmatmul.bf16.gmra.mxu0 %v2863
      %v6543 = vpop.f32.mrf.mxu0
      %v6544 = vadd.f32 %v2669, %v6543
      %v6545 = vpop.f32.mrf.mxu0
      %v6546 = vadd.f32 %v2674, %v6545
      %6547 = vmatmul.bf16.gmra.mxu0 %v2864
      %v6548 = vpop.f32.mrf.mxu0
      %v6549 = vadd.f32 %v2679, %v6548
      %v6550 = vpop.f32.mrf.mxu0
      %v6551 = vadd.f32 %v2684, %v6550
      %6552 = vmatmul.bf16.gmra.mxu0 %v2865
      %v6553 = vpop.f32.mrf.mxu0
      %v6554 = vadd.f32 %v2689, %v6553
      %v6555 = vpop.f32.mrf.mxu0
      %v6556 = vadd.f32 %v2694, %v6555
      %6557 = vmatmul.bf16.gmra.mxu0 %v2866
      %v6558 = vpop.f32.mrf.mxu0
      %v6559 = vadd.f32 %v2699, %v6558
      %v6560 = vpop.f32.mrf.mxu0
      %v6561 = vadd.f32 %v2704, %v6560
      %6562 = vmatmul.bf16.gmra.mxu0 %v2867
      %v6563 = vpop.f32.mrf.mxu0
      %v6564 = vadd.f32 %v2709, %v6563
      %v6565 = vpop.f32.mrf.mxu0
      %v6566 = vadd.f32 %v2714, %v6565
      %6567 = vmatmul.bf16.gmra.mxu0 %v2868
      %v6568 = vpop.f32.mrf.mxu0
      %v6569 = vadd.f32 %v2719, %v6568
      %v6570 = vpop.f32.mrf.mxu0
      %v6571 = vadd.f32 %v2724, %v6570
      %6572 = vmatmul.bf16.gmra.mxu0 %v2869
      %v6573 = vpop.f32.mrf.mxu0
      %v6574 = vadd.f32 %v2729, %v6573
      %v6575 = vpop.f32.mrf.mxu0
      %v6576 = vadd.f32 %v2734, %v6575
      %6577 = vmatmul.bf16.gmra.mxu0 %v2870
      %v6578 = vpop.f32.mrf.mxu0
      %v6579 = vadd.f32 %v2739, %v6578
      %v6580 = vpop.f32.mrf.mxu0
      %v6581 = vadd.f32 %v2744, %v6580
      %6582 = vmatmul.bf16.gmra.mxu0 %v2871
      %v6583 = vpop.f32.mrf.mxu0
      %v6584 = vadd.f32 %v2749, %v6583
      %v6585 = vpop.f32.mrf.mxu0
      %v6586 = vadd.f32 %v2754, %v6585
      %6587 = vmatmul.bf16.gmra.mxu0 %v2872
      %v6588 = vpop.f32.mrf.mxu0
      %v6589 = vadd.f32 %v2759, %v6588
      %v6590 = vpop.f32.mrf.mxu0
      %v6591 = vadd.f32 %v2764, %v6590
      %6592 = vmatmul.bf16.gmra.mxu0 %v2873
      %v6593 = vpop.f32.mrf.mxu0
      %v6594 = vadd.f32 %v2769, %v6593
      %v6595 = vpop.f32.mrf.mxu0
      %v6596 = vadd.f32 %v2774, %v6595
      %6597 = vmatmul.bf16.gmra.mxu0 %v2874
      %v6598 = vpop.f32.mrf.mxu0
      %v6599 = vadd.f32 %v2779, %v6598
      %v6600 = vpop.f32.mrf.mxu0
      %v6601 = vadd.f32 %v2784, %v6600
      %6602 = vmatmul.bf16.gmra.mxu0 %v2875
      %v6603 = vpop.f32.mrf.mxu0
      %v6604 = vadd.f32 %v2789, %v6603
      %v6605 = vpop.f32.mrf.mxu0
      %v6606 = vadd.f32 %v2794, %v6605
      %6607 = vdwg.mxu0
      %v6608 = vmax.f32 %v6529, 0.0
      %v6609 = vmax.f32 %v6531, 0.0
      %v6610 = vmax.f32 %v6534, 0.0
      %v6611 = vmax.f32 %v6536, 0.0
      %v6612 = vmax.f32 %v6539, 0.0
      %v6613 = vmax.f32 %v6541, 0.0
      %v6614 = vmax.f32 %v6544, 0.0
      %v6615 = vmax.f32 %v6546, 0.0
      %v6616 = vmax.f32 %v6549, 0.0
      %v6617 = vmax.f32 %v6551, 0.0
      %v6618 = vmax.f32 %v6554, 0.0
      %v6619 = vmax.f32 %v6556, 0.0
      %v6620 = vmax.f32 %v6559, 0.0
      %v6621 = vmax.f32 %v6561, 0.0
      %v6622 = vmax.f32 %v6564, 0.0
      %v6623 = vmax.f32 %v6566, 0.0
      %v6624 = vmax.f32 %v6569, 0.0
      %v6625 = vmax.f32 %v6571, 0.0
      %v6626 = vmax.f32 %v6574, 0.0
      %v6627 = vmax.f32 %v6576, 0.0
      %v6628 = vmax.f32 %v6579, 0.0
      %v6629 = vmax.f32 %v6581, 0.0
      %v6630 = vmax.f32 %v6584, 0.0
      %v6631 = vmax.f32 %v6586, 0.0
      %v6632 = vmax.f32 %v6589, 0.0
      %v6633 = vmax.f32 %v6591, 0.0
      %v6634 = vmax.f32 %v6594, 0.0
      %v6635 = vmax.f32 %v6596, 0.0
      %v6636 = vmax.f32 %v6599, 0.0
      %v6637 = vmax.f32 %v6601, 0.0
      %v6638 = vmax.f32 %v6604, 0.0
      %v6639 = vmax.f32 %v6606, 0.0
      %v6640 = vmax.f32 %v6275, %v6608
      %v6641 = vmax.f32 %v6276, %v6609
      %v6642 = vmax.f32 %v6277, %v6610
      %v6643 = vmax.f32 %v6278, %v6611
      %v6644 = vmax.f32 %v6279, %v6612
      %v6645 = vmax.f32 %v6280, %v6613
      %v6646 = vmax.f32 %v6281, %v6614
      %v6647 = vmax.f32 %v6282, %v6615
      %v6648 = vmax.f32 %v6283, %v6616
      %v6649 = vmax.f32 %v6284, %v6617
      %v6650 = vmax.f32 %v6285, %v6618
      %v6651 = vmax.f32 %v6286, %v6619
      %v6652 = vmax.f32 %v6287, %v6620
      %v6653 = vmax.f32 %v6288, %v6621
      %v6654 = vmax.f32 %v6289, %v6622
      %v6655 = vmax.f32 %v6290, %v6623
      %v6656 = vmax.f32 %v6291, %v6624
      %v6657 = vmax.f32 %v6292, %v6625
      %v6658 = vmax.f32 %v6293, %v6626
      %v6659 = vmax.f32 %v6294, %v6627
      %v6660 = vmax.f32 %v6295, %v6628
      %v6661 = vmax.f32 %v6296, %v6629
      %v6662 = vmax.f32 %v6297, %v6630
      %v6663 = vmax.f32 %v6298, %v6631
      %v6664 = vmax.f32 %v6299, %v6632
      %v6665 = vmax.f32 %v6300, %v6633
      %v6666 = vmax.f32 %v6301, %v6634
      %v6667 = vmax.f32 %v6302, %v6635
      %v6668 = vmax.f32 %v6303, %v6636
      %v6669 = vmax.f32 %v6304, %v6637
      %v6670 = vmax.f32 %v6305, %v6638
      %v6671 = vmax.f32 %v6306, %v6639
      %v6672 = vrot.slane %v1636, 3
      %v6674 = vrot.slane %v1642, 2
      %v6676 = vrot.slane %v1652, 1
      %v6678 = vrot.slane %v1756, 7
      %v6680 = vrot.slane %v1816, 6
      %v6682 = vrot.slane %v1826, 5
      %v6684 = vrot.slane %v1920, 4
      %v6686 = vsel %vm2086, %v6672, %v6674
      %v6687 = vsel %vm2088, %v6686, %v6676
      %v6688 = vsel %vm2090, %v6687, %v1662
      %v6689 = vsel %vm2092, %v6688, %v6678
      %v6690 = vsel %vm2094, %v6689, %v6680
      %v6691 = vsel %vm2096, %v6690, %v6682
      %v6692 = vsel %vm2098, %v6691, %v6684
      %v6693 = vpack.c.bf16 %v6692, %v6692
      %v6695 = vsel %vm2092, %v6693, 0
      %6697 = vmatpush.bf16.msra.mxu0 0
      %6698 = vmatpush.bf16.msra.mxu0 0
      %6699 = vmatpush.bf16.msra.mxu0 0
      %6700 = vmatpush.bf16.msra.mxu0 0
      %6701 = vmatpush.bf16.msra.mxu0 0
      %6702 = vmatpush.bf16.msra.mxu0 0
      %6703 = vmatpush.bf16.msra.mxu0 0
      %6704 = vmatpush.bf16.msra.mxu0 %v6695
      %6705 = vmatmul.bf16.gmra.mxu0 %v2162
      %v6706 = vpop.f32.mrf.mxu0
      %v6707 = vadd.f32 %v2104, %v6706
      %v6708 = vpop.f32.mrf.mxu0
      %v6709 = vadd.f32 %v2109, %v6708
      %6710 = vmatmul.bf16.gmra.mxu0 %v2165
      %v6711 = vpop.f32.mrf.mxu0
      %v6712 = vadd.f32 %v2114, %v6711
      %v6713 = vpop.f32.mrf.mxu0
      %v6714 = vadd.f32 %v2119, %v6713
      %6715 = vmatmul.bf16.gmra.mxu0 %v2168
      %v6716 = vpop.f32.mrf.mxu0
      %v6717 = vadd.f32 %v2124, %v6716
      %v6718 = vpop.f32.mrf.mxu0
      %v6719 = vadd.f32 %v2129, %v6718
      %6720 = vmatmul.bf16.gmra.mxu0 %v2171
      %v6721 = vpop.f32.mrf.mxu0
      %v6722 = vadd.f32 %v2134, %v6721
      %v6723 = vpop.f32.mrf.mxu0
      %v6724 = vadd.f32 %v2139, %v6723
      %6725 = vdwg.mxu0
      %v6726 = vmax.f32 %v6707, 0.0
      %v6727 = vmax.f32 %v6709, 0.0
      %v6728 = vmax.f32 %v6712, 0.0
      %v6729 = vmax.f32 %v6714, 0.0
      %v6730 = vmax.f32 %v6717, 0.0
      %v6731 = vmax.f32 %v6719, 0.0
      %v6732 = vmax.f32 %v6722, 0.0
      %v6733 = vmax.f32 %v6724, 0.0
      %v6734 = vpack.c.bf16 %v6727, %v6726
      %v6735 = vpack.c.bf16 %v6729, %v6728
      %v6736 = vpack.c.bf16 %v6731, %v6730
      %v6737 = vpack.c.bf16 %v6733, %v6732
      %6738 = vmatpush.bf16.msra.mxu0 0
      %6739 = vmatpush.bf16.msra.mxu0 0
      %6740 = vmatpush.bf16.msra.mxu0 0
      %6741 = vmatpush.bf16.msra.mxu0 0
      %6742 = vmatpush.bf16.msra.mxu0 %v6737
      %6743 = vmatpush.bf16.msra.mxu0 %v6736
      %6744 = vmatpush.bf16.msra.mxu0 %v6735
      %6745 = vmatpush.bf16.msra.mxu0 %v6734
      %6746 = vmatmul.bf16.gmra.mxu0 %v2339
      %v6747 = vpop.f32.mrf.mxu0
      %v6748 = vadd.f32 %v2220, %v6747
      %v6749 = vpop.f32.mrf.mxu0
      %v6750 = vadd.f32 %v2225, %v6749
      %6751 = vmatmul.bf16.gmra.mxu0 %v2342
      %v6752 = vpop.f32.mrf.mxu0
      %v6753 = vadd.f32 %v2230, %v6752
      %v6754 = vpop.f32.mrf.mxu0
      %v6755 = vadd.f32 %v2235, %v6754
      %6756 = vmatmul.bf16.gmra.mxu0 %v2345
      %v6757 = vpop.f32.mrf.mxu0
      %v6758 = vadd.f32 %v2240, %v6757
      %v6759 = vpop.f32.mrf.mxu0
      %v6760 = vadd.f32 %v2245, %v6759
      %6761 = vmatmul.bf16.gmra.mxu0 %v2348
      %v6762 = vpop.f32.mrf.mxu0
      %v6763 = vadd.f32 %v2250, %v6762
      %v6764 = vpop.f32.mrf.mxu0
      %v6765 = vadd.f32 %v2255, %v6764
      %6766 = vmatmul.bf16.gmra.mxu0 %v2351
      %v6767 = vpop.f32.mrf.mxu0
      %v6768 = vadd.f32 %v2260, %v6767
      %v6769 = vpop.f32.mrf.mxu0
      %v6770 = vadd.f32 %v2265, %v6769
      %6771 = vmatmul.bf16.gmra.mxu0 %v2354
      %v6772 = vpop.f32.mrf.mxu0
      %v6773 = vadd.f32 %v2270, %v6772
      %v6774 = vpop.f32.mrf.mxu0
      %v6775 = vadd.f32 %v2275, %v6774
      %6776 = vmatmul.bf16.gmra.mxu0 %v2357
      %v6777 = vpop.f32.mrf.mxu0
      %v6778 = vadd.f32 %v2280, %v6777
      %v6779 = vpop.f32.mrf.mxu0
      %v6780 = vadd.f32 %v2285, %v6779
      %6781 = vmatmul.bf16.gmra.mxu0 %v2360
      %v6782 = vpop.f32.mrf.mxu0
      %v6783 = vadd.f32 %v2290, %v6782
      %v6784 = vpop.f32.mrf.mxu0
      %v6785 = vadd.f32 %v2295, %v6784
      %6786 = vdwg.mxu0
      %v6787 = vmax.f32 %v6748, 0.0
      %v6788 = vmax.f32 %v6750, 0.0
      %v6789 = vmax.f32 %v6753, 0.0
      %v6790 = vmax.f32 %v6755, 0.0
      %v6791 = vmax.f32 %v6758, 0.0
      %v6792 = vmax.f32 %v6760, 0.0
      %v6793 = vmax.f32 %v6763, 0.0
      %v6794 = vmax.f32 %v6765, 0.0
      %v6795 = vmax.f32 %v6768, 0.0
      %v6796 = vmax.f32 %v6770, 0.0
      %v6797 = vmax.f32 %v6773, 0.0
      %v6798 = vmax.f32 %v6775, 0.0
      %v6799 = vmax.f32 %v6778, 0.0
      %v6800 = vmax.f32 %v6780, 0.0
      %v6801 = vmax.f32 %v6783, 0.0
      %v6802 = vmax.f32 %v6785, 0.0
      %v6803 = vpack.c.bf16 %v6788, %v6787
      %v6804 = vpack.c.bf16 %v6790, %v6789
      %v6805 = vpack.c.bf16 %v6792, %v6791
      %v6806 = vpack.c.bf16 %v6794, %v6793
      %v6807 = vpack.c.bf16 %v6796, %v6795
      %v6808 = vpack.c.bf16 %v6798, %v6797
      %v6809 = vpack.c.bf16 %v6800, %v6799
      %v6810 = vpack.c.bf16 %v6802, %v6801
      %6811 = vmatpush.bf16.msra.mxu0 %v6810
      %6812 = vmatpush.bf16.msra.mxu0 %v6809
      %6813 = vmatpush.bf16.msra.mxu0 %v6808
      %6814 = vmatpush.bf16.msra.mxu0 %v6807
      %6815 = vmatpush.bf16.msra.mxu0 %v6806
      %6816 = vmatpush.bf16.msra.mxu0 %v6805
      %6817 = vmatpush.bf16.msra.mxu0 %v6804
      %6818 = vmatpush.bf16.msra.mxu0 %v6803
      %6819 = vmatmul.bf16.gmra.mxu0 %v2547
      %v6820 = vpop.f32.mrf.mxu0
      %v6821 = vadd.f32 %v2438, %v6820
      %v6822 = vpop.f32.mrf.mxu0
      %v6823 = vadd.f32 %v2443, %v6822
      %6824 = vmatmul.bf16.gmra.mxu0 %v2548
      %v6825 = vpop.f32.mrf.mxu0
      %v6826 = vadd.f32 %v2448, %v6825
      %v6827 = vpop.f32.mrf.mxu0
      %v6828 = vadd.f32 %v2453, %v6827
      %6829 = vmatmul.bf16.gmra.mxu0 %v2549
      %v6830 = vpop.f32.mrf.mxu0
      %v6831 = vadd.f32 %v2458, %v6830
      %v6832 = vpop.f32.mrf.mxu0
      %v6833 = vadd.f32 %v2463, %v6832
      %6834 = vmatmul.bf16.gmra.mxu0 %v2550
      %v6835 = vpop.f32.mrf.mxu0
      %v6836 = vadd.f32 %v2468, %v6835
      %v6837 = vpop.f32.mrf.mxu0
      %v6838 = vadd.f32 %v2473, %v6837
      %6839 = vmatmul.bf16.gmra.mxu0 %v2551
      %v6840 = vpop.f32.mrf.mxu0
      %v6841 = vadd.f32 %v2478, %v6840
      %v6842 = vpop.f32.mrf.mxu0
      %v6843 = vadd.f32 %v2483, %v6842
      %6844 = vmatmul.bf16.gmra.mxu0 %v2552
      %v6845 = vpop.f32.mrf.mxu0
      %v6846 = vadd.f32 %v2488, %v6845
      %v6847 = vpop.f32.mrf.mxu0
      %v6848 = vadd.f32 %v2493, %v6847
      %6849 = vmatmul.bf16.gmra.mxu0 %v2553
      %v6850 = vpop.f32.mrf.mxu0
      %v6851 = vadd.f32 %v2498, %v6850
      %v6852 = vpop.f32.mrf.mxu0
      %v6853 = vadd.f32 %v2503, %v6852
      %6854 = vmatmul.bf16.gmra.mxu0 %v2554
      %v6855 = vpop.f32.mrf.mxu0
      %v6856 = vadd.f32 %v2508, %v6855
      %v6857 = vpop.f32.mrf.mxu0
      %v6858 = vadd.f32 %v2513, %v6857
      %6859 = vdwg.mxu0
      %v6860 = vmax.f32 %v6821, 0.0
      %v6861 = vmax.f32 %v6823, 0.0
      %v6862 = vmax.f32 %v6826, 0.0
      %v6863 = vmax.f32 %v6828, 0.0
      %v6864 = vmax.f32 %v6831, 0.0
      %v6865 = vmax.f32 %v6833, 0.0
      %v6866 = vmax.f32 %v6836, 0.0
      %v6867 = vmax.f32 %v6838, 0.0
      %v6868 = vmax.f32 %v6841, 0.0
      %v6869 = vmax.f32 %v6843, 0.0
      %v6870 = vmax.f32 %v6846, 0.0
      %v6871 = vmax.f32 %v6848, 0.0
      %v6872 = vmax.f32 %v6851, 0.0
      %v6873 = vmax.f32 %v6853, 0.0
      %v6874 = vmax.f32 %v6856, 0.0
      %v6875 = vmax.f32 %v6858, 0.0
      %v6876 = vpack.c.bf16 %v6861, %v6860
      %v6877 = vpack.c.bf16 %v6863, %v6862
      %v6878 = vpack.c.bf16 %v6865, %v6864
      %v6879 = vpack.c.bf16 %v6867, %v6866
      %v6880 = vpack.c.bf16 %v6869, %v6868
      %v6881 = vpack.c.bf16 %v6871, %v6870
      %v6882 = vpack.c.bf16 %v6873, %v6872
      %v6883 = vpack.c.bf16 %v6875, %v6874
      %6884 = vmatpush.bf16.msra.mxu0 %v6883
      %6885 = vmatpush.bf16.msra.mxu0 %v6882
      %6886 = vmatpush.bf16.msra.mxu0 %v6881
      %6887 = vmatpush.bf16.msra.mxu0 %v6880
      %6888 = vmatpush.bf16.msra.mxu0 %v6879
      %6889 = vmatpush.bf16.msra.mxu0 %v6878
      %6890 = vmatpush.bf16.msra.mxu0 %v6877
      %6891 = vmatpush.bf16.msra.mxu0 %v6876
      %6892 = vmatmul.bf16.gmra.mxu0 %v2860
      %v6893 = vpop.f32.mrf.mxu0
      %v6894 = vadd.f32 %v2639, %v6893
      %v6895 = vpop.f32.mrf.mxu0
      %v6896 = vadd.f32 %v2644, %v6895
      %6897 = vmatmul.bf16.gmra.mxu0 %v2861
      %v6898 = vpop.f32.mrf.mxu0
      %v6899 = vadd.f32 %v2649, %v6898
      %v6900 = vpop.f32.mrf.mxu0
      %v6901 = vadd.f32 %v2654, %v6900
      %6902 = vmatmul.bf16.gmra.mxu0 %v2862
      %v6903 = vpop.f32.mrf.mxu0
      %v6904 = vadd.f32 %v2659, %v6903
      %v6905 = vpop.f32.mrf.mxu0
      %v6906 = vadd.f32 %v2664, %v6905
      %6907 = vmatmul.bf16.gmra.mxu0 %v2863
      %v6908 = vpop.f32.mrf.mxu0
      %v6909 = vadd.f32 %v2669, %v6908
      %v6910 = vpop.f32.mrf.mxu0
      %v6911 = vadd.f32 %v2674, %v6910
      %6912 = vmatmul.bf16.gmra.mxu0 %v2864
      %v6913 = vpop.f32.mrf.mxu0
      %v6914 = vadd.f32 %v2679, %v6913
      %v6915 = vpop.f32.mrf.mxu0
      %v6916 = vadd.f32 %v2684, %v6915
      %6917 = vmatmul.bf16.gmra.mxu0 %v2865
      %v6918 = vpop.f32.mrf.mxu0
      %v6919 = vadd.f32 %v2689, %v6918
      %v6920 = vpop.f32.mrf.mxu0
      %v6921 = vadd.f32 %v2694, %v6920
      %6922 = vmatmul.bf16.gmra.mxu0 %v2866
      %v6923 = vpop.f32.mrf.mxu0
      %v6924 = vadd.f32 %v2699, %v6923
      %v6925 = vpop.f32.mrf.mxu0
      %v6926 = vadd.f32 %v2704, %v6925
      %6927 = vmatmul.bf16.gmra.mxu0 %v2867
      %v6928 = vpop.f32.mrf.mxu0
      %v6929 = vadd.f32 %v2709, %v6928
      %v6930 = vpop.f32.mrf.mxu0
      %v6931 = vadd.f32 %v2714, %v6930
      %6932 = vmatmul.bf16.gmra.mxu0 %v2868
      %v6933 = vpop.f32.mrf.mxu0
      %v6934 = vadd.f32 %v2719, %v6933
      %v6935 = vpop.f32.mrf.mxu0
      %v6936 = vadd.f32 %v2724, %v6935
      %6937 = vmatmul.bf16.gmra.mxu0 %v2869
      %v6938 = vpop.f32.mrf.mxu0
      %v6939 = vadd.f32 %v2729, %v6938
      %v6940 = vpop.f32.mrf.mxu0
      %v6941 = vadd.f32 %v2734, %v6940
      %6942 = vmatmul.bf16.gmra.mxu0 %v2870
      %v6943 = vpop.f32.mrf.mxu0
      %v6944 = vadd.f32 %v2739, %v6943
      %v6945 = vpop.f32.mrf.mxu0
      %v6946 = vadd.f32 %v2744, %v6945
      %6947 = vmatmul.bf16.gmra.mxu0 %v2871
      %v6948 = vpop.f32.mrf.mxu0
      %v6949 = vadd.f32 %v2749, %v6948
      %v6950 = vpop.f32.mrf.mxu0
      %v6951 = vadd.f32 %v2754, %v6950
      %6952 = vmatmul.bf16.gmra.mxu0 %v2872
      %v6953 = vpop.f32.mrf.mxu0
      %v6954 = vadd.f32 %v2759, %v6953
      %v6955 = vpop.f32.mrf.mxu0
      %v6956 = vadd.f32 %v2764, %v6955
      %6957 = vmatmul.bf16.gmra.mxu0 %v2873
      %v6958 = vpop.f32.mrf.mxu0
      %v6959 = vadd.f32 %v2769, %v6958
      %v6960 = vpop.f32.mrf.mxu0
      %v6961 = vadd.f32 %v2774, %v6960
      %6962 = vmatmul.bf16.gmra.mxu0 %v2874
      %v6963 = vpop.f32.mrf.mxu0
      %v6964 = vadd.f32 %v2779, %v6963
      %v6965 = vpop.f32.mrf.mxu0
      %v6966 = vadd.f32 %v2784, %v6965
      %6967 = vmatmul.bf16.gmra.mxu0 %v2875
      %v6968 = vpop.f32.mrf.mxu0
      %v6969 = vadd.f32 %v2789, %v6968
      %v6970 = vpop.f32.mrf.mxu0
      %v6971 = vadd.f32 %v2794, %v6970
      %6972 = vdwg.mxu0
      %v6973 = vmax.f32 %v6894, 0.0
      %v6974 = vmax.f32 %v6896, 0.0
      %v6975 = vmax.f32 %v6899, 0.0
      %v6976 = vmax.f32 %v6901, 0.0
      %v6977 = vmax.f32 %v6904, 0.0
      %v6978 = vmax.f32 %v6906, 0.0
      %v6979 = vmax.f32 %v6909, 0.0
      %v6980 = vmax.f32 %v6911, 0.0
      %v6981 = vmax.f32 %v6914, 0.0
      %v6982 = vmax.f32 %v6916, 0.0
      %v6983 = vmax.f32 %v6919, 0.0
      %v6984 = vmax.f32 %v6921, 0.0
      %v6985 = vmax.f32 %v6924, 0.0
      %v6986 = vmax.f32 %v6926, 0.0
      %v6987 = vmax.f32 %v6929, 0.0
      %v6988 = vmax.f32 %v6931, 0.0
      %v6989 = vmax.f32 %v6934, 0.0
      %v6990 = vmax.f32 %v6936, 0.0
      %v6991 = vmax.f32 %v6939, 0.0
      %v6992 = vmax.f32 %v6941, 0.0
      %v6993 = vmax.f32 %v6944, 0.0
      %v6994 = vmax.f32 %v6946, 0.0
      %v6995 = vmax.f32 %v6949, 0.0
      %v6996 = vmax.f32 %v6951, 0.0
      %v6997 = vmax.f32 %v6954, 0.0
      %v6998 = vmax.f32 %v6956, 0.0
      %v6999 = vmax.f32 %v6959, 0.0
      %v7000 = vmax.f32 %v6961, 0.0
      %v7001 = vmax.f32 %v6964, 0.0
      %v7002 = vmax.f32 %v6966, 0.0
      %v7003 = vmax.f32 %v6969, 0.0
      %v7004 = vmax.f32 %v6971, 0.0
      %v7005 = vmax.f32 %v6640, %v6973
      %v7006 = vmax.f32 %v6641, %v6974
      %v7007 = vmax.f32 %v6642, %v6975
      %v7008 = vmax.f32 %v6643, %v6976
      %v7009 = vmax.f32 %v6644, %v6977
      %v7010 = vmax.f32 %v6645, %v6978
      %v7011 = vmax.f32 %v6646, %v6979
      %v7012 = vmax.f32 %v6647, %v6980
      %v7013 = vmax.f32 %v6648, %v6981
      %v7014 = vmax.f32 %v6649, %v6982
      %v7015 = vmax.f32 %v6650, %v6983
      %v7016 = vmax.f32 %v6651, %v6984
      %v7017 = vmax.f32 %v6652, %v6985
      %v7018 = vmax.f32 %v6653, %v6986
      %v7019 = vmax.f32 %v6654, %v6987
      %v7020 = vmax.f32 %v6655, %v6988
      %v7021 = vmax.f32 %v6656, %v6989
      %v7022 = vmax.f32 %v6657, %v6990
      %v7023 = vmax.f32 %v6658, %v6991
      %v7024 = vmax.f32 %v6659, %v6992
      %v7025 = vmax.f32 %v6660, %v6993
      %v7026 = vmax.f32 %v6661, %v6994
      %v7027 = vmax.f32 %v6662, %v6995
      %v7028 = vmax.f32 %v6663, %v6996
      %v7029 = vmax.f32 %v6664, %v6997
      %v7030 = vmax.f32 %v6665, %v6998
      %v7031 = vmax.f32 %v6666, %v6999
      %v7032 = vmax.f32 %v6667, %v7000
      %v7033 = vmax.f32 %v6668, %v7001
      %v7034 = vmax.f32 %v6669, %v7002
      %v7035 = vmax.f32 %v6670, %v7003
      %v7036 = vmax.f32 %v6671, %v7004
      %v7037 = vrot.slane %v1636, 4
      %v7039 = vrot.slane %v1642, 3
      %v7041 = vrot.slane %v1652, 2
      %v7043 = vrot.slane %v1662, 1
      %v7045 = vrot.slane %v1816, 7
      %v7047 = vrot.slane %v1826, 6
      %v7049 = vrot.slane %v1920, 5
      %v7051 = vsel %vm2086, %v7037, %v7039
      %v7052 = vsel %vm2088, %v7051, %v7041
      %v7053 = vsel %vm2090, %v7052, %v7043
      %v7054 = vsel %vm2092, %v7053, %v1756
      %v7055 = vsel %vm2094, %v7054, %v7045
      %v7056 = vsel %vm2096, %v7055, %v7047
      %v7057 = vsel %vm2098, %v7056, %v7049
      %v7058 = vpack.c.bf16 %v7057, %v7057
      %v7060 = vsel %vm2092, %v7058, 0
      %7062 = vmatpush.bf16.msra.mxu0 0
      %7063 = vmatpush.bf16.msra.mxu0 0
      %7064 = vmatpush.bf16.msra.mxu0 0
      %7065 = vmatpush.bf16.msra.mxu0 0
      %7066 = vmatpush.bf16.msra.mxu0 0
      %7067 = vmatpush.bf16.msra.mxu0 0
      %7068 = vmatpush.bf16.msra.mxu0 0
      %7069 = vmatpush.bf16.msra.mxu0 %v7060
      %7070 = vmatmul.bf16.gmra.mxu0 %v2162
      %v7071 = vpop.f32.mrf.mxu0
      %v7072 = vadd.f32 %v2104, %v7071
      %v7073 = vpop.f32.mrf.mxu0
      %v7074 = vadd.f32 %v2109, %v7073
      %7075 = vmatmul.bf16.gmra.mxu0 %v2165
      %v7076 = vpop.f32.mrf.mxu0
      %v7077 = vadd.f32 %v2114, %v7076
      %v7078 = vpop.f32.mrf.mxu0
      %v7079 = vadd.f32 %v2119, %v7078
      %7080 = vmatmul.bf16.gmra.mxu0 %v2168
      %v7081 = vpop.f32.mrf.mxu0
      %v7082 = vadd.f32 %v2124, %v7081
      %v7083 = vpop.f32.mrf.mxu0
      %v7084 = vadd.f32 %v2129, %v7083
      %7085 = vmatmul.bf16.gmra.mxu0 %v2171
      %v7086 = vpop.f32.mrf.mxu0
      %v7087 = vadd.f32 %v2134, %v7086
      %v7088 = vpop.f32.mrf.mxu0
      %v7089 = vadd.f32 %v2139, %v7088
      %7090 = vdwg.mxu0
      %v7091 = vmax.f32 %v7072, 0.0
      %v7092 = vmax.f32 %v7074, 0.0
      %v7093 = vmax.f32 %v7077, 0.0
      %v7094 = vmax.f32 %v7079, 0.0
      %v7095 = vmax.f32 %v7082, 0.0
      %v7096 = vmax.f32 %v7084, 0.0
      %v7097 = vmax.f32 %v7087, 0.0
      %v7098 = vmax.f32 %v7089, 0.0
      %v7099 = vpack.c.bf16 %v7092, %v7091
      %v7100 = vpack.c.bf16 %v7094, %v7093
      %v7101 = vpack.c.bf16 %v7096, %v7095
      %v7102 = vpack.c.bf16 %v7098, %v7097
      %7103 = vmatpush.bf16.msra.mxu0 0
      %7104 = vmatpush.bf16.msra.mxu0 0
      %7105 = vmatpush.bf16.msra.mxu0 0
      %7106 = vmatpush.bf16.msra.mxu0 0
      %7107 = vmatpush.bf16.msra.mxu0 %v7102
      %7108 = vmatpush.bf16.msra.mxu0 %v7101
      %7109 = vmatpush.bf16.msra.mxu0 %v7100
      %7110 = vmatpush.bf16.msra.mxu0 %v7099
      %7111 = vmatmul.bf16.gmra.mxu0 %v2339
      %v7112 = vpop.f32.mrf.mxu0
      %v7113 = vadd.f32 %v2220, %v7112
      %v7114 = vpop.f32.mrf.mxu0
      %v7115 = vadd.f32 %v2225, %v7114
      %7116 = vmatmul.bf16.gmra.mxu0 %v2342
      %v7117 = vpop.f32.mrf.mxu0
      %v7118 = vadd.f32 %v2230, %v7117
      %v7119 = vpop.f32.mrf.mxu0
      %v7120 = vadd.f32 %v2235, %v7119
      %7121 = vmatmul.bf16.gmra.mxu0 %v2345
      %v7122 = vpop.f32.mrf.mxu0
      %v7123 = vadd.f32 %v2240, %v7122
      %v7124 = vpop.f32.mrf.mxu0
      %v7125 = vadd.f32 %v2245, %v7124
      %7126 = vmatmul.bf16.gmra.mxu0 %v2348
      %v7127 = vpop.f32.mrf.mxu0
      %v7128 = vadd.f32 %v2250, %v7127
      %v7129 = vpop.f32.mrf.mxu0
      %v7130 = vadd.f32 %v2255, %v7129
      %7131 = vmatmul.bf16.gmra.mxu0 %v2351
      %v7132 = vpop.f32.mrf.mxu0
      %v7133 = vadd.f32 %v2260, %v7132
      %v7134 = vpop.f32.mrf.mxu0
      %v7135 = vadd.f32 %v2265, %v7134
      %7136 = vmatmul.bf16.gmra.mxu0 %v2354
      %v7137 = vpop.f32.mrf.mxu0
      %v7138 = vadd.f32 %v2270, %v7137
      %v7139 = vpop.f32.mrf.mxu0
      %v7140 = vadd.f32 %v2275, %v7139
      %7141 = vmatmul.bf16.gmra.mxu0 %v2357
      %v7142 = vpop.f32.mrf.mxu0
      %v7143 = vadd.f32 %v2280, %v7142
      %v7144 = vpop.f32.mrf.mxu0
      %v7145 = vadd.f32 %v2285, %v7144
      %7146 = vmatmul.bf16.gmra.mxu0 %v2360
      %v7147 = vpop.f32.mrf.mxu0
      %v7148 = vadd.f32 %v2290, %v7147
      %v7149 = vpop.f32.mrf.mxu0
      %v7150 = vadd.f32 %v2295, %v7149
      %7151 = vdwg.mxu0
      %v7152 = vmax.f32 %v7113, 0.0
      %v7153 = vmax.f32 %v7115, 0.0
      %v7154 = vmax.f32 %v7118, 0.0
      %v7155 = vmax.f32 %v7120, 0.0
      %v7156 = vmax.f32 %v7123, 0.0
      %v7157 = vmax.f32 %v7125, 0.0
      %v7158 = vmax.f32 %v7128, 0.0
      %v7159 = vmax.f32 %v7130, 0.0
      %v7160 = vmax.f32 %v7133, 0.0
      %v7161 = vmax.f32 %v7135, 0.0
      %v7162 = vmax.f32 %v7138, 0.0
      %v7163 = vmax.f32 %v7140, 0.0
      %v7164 = vmax.f32 %v7143, 0.0
      %v7165 = vmax.f32 %v7145, 0.0
      %v7166 = vmax.f32 %v7148, 0.0
      %v7167 = vmax.f32 %v7150, 0.0
      %v7168 = vpack.c.bf16 %v7153, %v7152
      %v7169 = vpack.c.bf16 %v7155, %v7154
      %v7170 = vpack.c.bf16 %v7157, %v7156
      %v7171 = vpack.c.bf16 %v7159, %v7158
      %v7172 = vpack.c.bf16 %v7161, %v7160
      %v7173 = vpack.c.bf16 %v7163, %v7162
      %v7174 = vpack.c.bf16 %v7165, %v7164
      %v7175 = vpack.c.bf16 %v7167, %v7166
      %7176 = vmatpush.bf16.msra.mxu0 %v7175
      %7177 = vmatpush.bf16.msra.mxu0 %v7174
      %7178 = vmatpush.bf16.msra.mxu0 %v7173
      %7179 = vmatpush.bf16.msra.mxu0 %v7172
      %7180 = vmatpush.bf16.msra.mxu0 %v7171
      %7181 = vmatpush.bf16.msra.mxu0 %v7170
      %7182 = vmatpush.bf16.msra.mxu0 %v7169
      %7183 = vmatpush.bf16.msra.mxu0 %v7168
      %7184 = vmatmul.bf16.gmra.mxu0 %v2547
      %v7185 = vpop.f32.mrf.mxu0
      %v7186 = vadd.f32 %v2438, %v7185
      %v7187 = vpop.f32.mrf.mxu0
      %v7188 = vadd.f32 %v2443, %v7187
      %7189 = vmatmul.bf16.gmra.mxu0 %v2548
      %v7190 = vpop.f32.mrf.mxu0
      %v7191 = vadd.f32 %v2448, %v7190
      %v7192 = vpop.f32.mrf.mxu0
      %v7193 = vadd.f32 %v2453, %v7192
      %7194 = vmatmul.bf16.gmra.mxu0 %v2549
      %v7195 = vpop.f32.mrf.mxu0
      %v7196 = vadd.f32 %v2458, %v7195
      %v7197 = vpop.f32.mrf.mxu0
      %v7198 = vadd.f32 %v2463, %v7197
      %7199 = vmatmul.bf16.gmra.mxu0 %v2550
      %v7200 = vpop.f32.mrf.mxu0
      %v7201 = vadd.f32 %v2468, %v7200
      %v7202 = vpop.f32.mrf.mxu0
      %v7203 = vadd.f32 %v2473, %v7202
      %7204 = vmatmul.bf16.gmra.mxu0 %v2551
      %v7205 = vpop.f32.mrf.mxu0
      %v7206 = vadd.f32 %v2478, %v7205
      %v7207 = vpop.f32.mrf.mxu0
      %v7208 = vadd.f32 %v2483, %v7207
      %7209 = vmatmul.bf16.gmra.mxu0 %v2552
      %v7210 = vpop.f32.mrf.mxu0
      %v7211 = vadd.f32 %v2488, %v7210
      %v7212 = vpop.f32.mrf.mxu0
      %v7213 = vadd.f32 %v2493, %v7212
      %7214 = vmatmul.bf16.gmra.mxu0 %v2553
      %v7215 = vpop.f32.mrf.mxu0
      %v7216 = vadd.f32 %v2498, %v7215
      %v7217 = vpop.f32.mrf.mxu0
      %v7218 = vadd.f32 %v2503, %v7217
      %7219 = vmatmul.bf16.gmra.mxu0 %v2554
      %v7220 = vpop.f32.mrf.mxu0
      %v7221 = vadd.f32 %v2508, %v7220
      %v7222 = vpop.f32.mrf.mxu0
      %v7223 = vadd.f32 %v2513, %v7222
      %7224 = vdwg.mxu0
      %v7225 = vmax.f32 %v7186, 0.0
      %v7226 = vmax.f32 %v7188, 0.0
      %v7227 = vmax.f32 %v7191, 0.0
      %v7228 = vmax.f32 %v7193, 0.0
      %v7229 = vmax.f32 %v7196, 0.0
      %v7230 = vmax.f32 %v7198, 0.0
      %v7231 = vmax.f32 %v7201, 0.0
      %v7232 = vmax.f32 %v7203, 0.0
      %v7233 = vmax.f32 %v7206, 0.0
      %v7234 = vmax.f32 %v7208, 0.0
      %v7235 = vmax.f32 %v7211, 0.0
      %v7236 = vmax.f32 %v7213, 0.0
      %v7237 = vmax.f32 %v7216, 0.0
      %v7238 = vmax.f32 %v7218, 0.0
      %v7239 = vmax.f32 %v7221, 0.0
      %v7240 = vmax.f32 %v7223, 0.0
      %v7241 = vpack.c.bf16 %v7226, %v7225
      %v7242 = vpack.c.bf16 %v7228, %v7227
      %v7243 = vpack.c.bf16 %v7230, %v7229
      %v7244 = vpack.c.bf16 %v7232, %v7231
      %v7245 = vpack.c.bf16 %v7234, %v7233
      %v7246 = vpack.c.bf16 %v7236, %v7235
      %v7247 = vpack.c.bf16 %v7238, %v7237
      %v7248 = vpack.c.bf16 %v7240, %v7239
      %7249 = vmatpush.bf16.msra.mxu0 %v7248
      %7250 = vmatpush.bf16.msra.mxu0 %v7247
      %7251 = vmatpush.bf16.msra.mxu0 %v7246
      %7252 = vmatpush.bf16.msra.mxu0 %v7245
      %7253 = vmatpush.bf16.msra.mxu0 %v7244
      %7254 = vmatpush.bf16.msra.mxu0 %v7243
      %7255 = vmatpush.bf16.msra.mxu0 %v7242
      %7256 = vmatpush.bf16.msra.mxu0 %v7241
      %7257 = vmatmul.bf16.gmra.mxu0 %v2860
      %v7258 = vpop.f32.mrf.mxu0
      %v7259 = vadd.f32 %v2639, %v7258
      %v7260 = vpop.f32.mrf.mxu0
      %v7261 = vadd.f32 %v2644, %v7260
      %7262 = vmatmul.bf16.gmra.mxu0 %v2861
      %v7263 = vpop.f32.mrf.mxu0
      %v7264 = vadd.f32 %v2649, %v7263
      %v7265 = vpop.f32.mrf.mxu0
      %v7266 = vadd.f32 %v2654, %v7265
      %7267 = vmatmul.bf16.gmra.mxu0 %v2862
      %v7268 = vpop.f32.mrf.mxu0
      %v7269 = vadd.f32 %v2659, %v7268
      %v7270 = vpop.f32.mrf.mxu0
      %v7271 = vadd.f32 %v2664, %v7270
      %7272 = vmatmul.bf16.gmra.mxu0 %v2863
      %v7273 = vpop.f32.mrf.mxu0
      %v7274 = vadd.f32 %v2669, %v7273
      %v7275 = vpop.f32.mrf.mxu0
      %v7276 = vadd.f32 %v2674, %v7275
      %7277 = vmatmul.bf16.gmra.mxu0 %v2864
      %v7278 = vpop.f32.mrf.mxu0
      %v7279 = vadd.f32 %v2679, %v7278
      %v7280 = vpop.f32.mrf.mxu0
      %v7281 = vadd.f32 %v2684, %v7280
      %7282 = vmatmul.bf16.gmra.mxu0 %v2865
      %v7283 = vpop.f32.mrf.mxu0
      %v7284 = vadd.f32 %v2689, %v7283
      %v7285 = vpop.f32.mrf.mxu0
      %v7286 = vadd.f32 %v2694, %v7285
      %7287 = vmatmul.bf16.gmra.mxu0 %v2866
      %v7288 = vpop.f32.mrf.mxu0
      %v7289 = vadd.f32 %v2699, %v7288
      %v7290 = vpop.f32.mrf.mxu0
      %v7291 = vadd.f32 %v2704, %v7290
      %7292 = vmatmul.bf16.gmra.mxu0 %v2867
      %v7293 = vpop.f32.mrf.mxu0
      %v7294 = vadd.f32 %v2709, %v7293
      %v7295 = vpop.f32.mrf.mxu0
      %v7296 = vadd.f32 %v2714, %v7295
      %7297 = vmatmul.bf16.gmra.mxu0 %v2868
      %v7298 = vpop.f32.mrf.mxu0
      %v7299 = vadd.f32 %v2719, %v7298
      %v7300 = vpop.f32.mrf.mxu0
      %v7301 = vadd.f32 %v2724, %v7300
      %7302 = vmatmul.bf16.gmra.mxu0 %v2869
      %v7303 = vpop.f32.mrf.mxu0
      %v7304 = vadd.f32 %v2729, %v7303
      %v7305 = vpop.f32.mrf.mxu0
      %v7306 = vadd.f32 %v2734, %v7305
      %7307 = vmatmul.bf16.gmra.mxu0 %v2870
      %v7308 = vpop.f32.mrf.mxu0
      %v7309 = vadd.f32 %v2739, %v7308
      %v7310 = vpop.f32.mrf.mxu0
      %v7311 = vadd.f32 %v2744, %v7310
      %7312 = vmatmul.bf16.gmra.mxu0 %v2871
      %v7313 = vpop.f32.mrf.mxu0
      %v7314 = vadd.f32 %v2749, %v7313
      %v7315 = vpop.f32.mrf.mxu0
      %v7316 = vadd.f32 %v2754, %v7315
      %7317 = vmatmul.bf16.gmra.mxu0 %v2872
      %v7318 = vpop.f32.mrf.mxu0
      %v7319 = vadd.f32 %v2759, %v7318
      %v7320 = vpop.f32.mrf.mxu0
      %v7321 = vadd.f32 %v2764, %v7320
      %7322 = vmatmul.bf16.gmra.mxu0 %v2873
      %v7323 = vpop.f32.mrf.mxu0
      %v7324 = vadd.f32 %v2769, %v7323
      %v7325 = vpop.f32.mrf.mxu0
      %v7326 = vadd.f32 %v2774, %v7325
      %7327 = vmatmul.bf16.gmra.mxu0 %v2874
      %v7328 = vpop.f32.mrf.mxu0
      %v7329 = vadd.f32 %v2779, %v7328
      %v7330 = vpop.f32.mrf.mxu0
      %v7331 = vadd.f32 %v2784, %v7330
      %7332 = vmatmul.bf16.gmra.mxu0 %v2875
      %v7333 = vpop.f32.mrf.mxu0
      %v7334 = vadd.f32 %v2789, %v7333
      %v7335 = vpop.f32.mrf.mxu0
      %v7336 = vadd.f32 %v2794, %v7335
      %7337 = vdwg.mxu0
      %v7338 = vmax.f32 %v7259, 0.0
      %v7339 = vmax.f32 %v7261, 0.0
      %v7340 = vmax.f32 %v7264, 0.0
      %v7341 = vmax.f32 %v7266, 0.0
      %v7342 = vmax.f32 %v7269, 0.0
      %v7343 = vmax.f32 %v7271, 0.0
      %v7344 = vmax.f32 %v7274, 0.0
      %v7345 = vmax.f32 %v7276, 0.0
      %v7346 = vmax.f32 %v7279, 0.0
      %v7347 = vmax.f32 %v7281, 0.0
      %v7348 = vmax.f32 %v7284, 0.0
      %v7349 = vmax.f32 %v7286, 0.0
      %v7350 = vmax.f32 %v7289, 0.0
      %v7351 = vmax.f32 %v7291, 0.0
      %v7352 = vmax.f32 %v7294, 0.0
      %v7353 = vmax.f32 %v7296, 0.0
      %v7354 = vmax.f32 %v7299, 0.0
      %v7355 = vmax.f32 %v7301, 0.0
      %v7356 = vmax.f32 %v7304, 0.0
      %v7357 = vmax.f32 %v7306, 0.0
      %v7358 = vmax.f32 %v7309, 0.0
      %v7359 = vmax.f32 %v7311, 0.0
      %v7360 = vmax.f32 %v7314, 0.0
      %v7361 = vmax.f32 %v7316, 0.0
      %v7362 = vmax.f32 %v7319, 0.0
      %v7363 = vmax.f32 %v7321, 0.0
      %v7364 = vmax.f32 %v7324, 0.0
      %v7365 = vmax.f32 %v7326, 0.0
      %v7366 = vmax.f32 %v7329, 0.0
      %v7367 = vmax.f32 %v7331, 0.0
      %v7368 = vmax.f32 %v7334, 0.0
      %v7369 = vmax.f32 %v7336, 0.0
      %v7370 = vmax.f32 %v7005, %v7338
      %v7371 = vmax.f32 %v7006, %v7339
      %v7372 = vmax.f32 %v7007, %v7340
      %v7373 = vmax.f32 %v7008, %v7341
      %v7374 = vmax.f32 %v7009, %v7342
      %v7375 = vmax.f32 %v7010, %v7343
      %v7376 = vmax.f32 %v7011, %v7344
      %v7377 = vmax.f32 %v7012, %v7345
      %v7378 = vmax.f32 %v7013, %v7346
      %v7379 = vmax.f32 %v7014, %v7347
      %v7380 = vmax.f32 %v7015, %v7348
      %v7381 = vmax.f32 %v7016, %v7349
      %v7382 = vmax.f32 %v7017, %v7350
      %v7383 = vmax.f32 %v7018, %v7351
      %v7384 = vmax.f32 %v7019, %v7352
      %v7385 = vmax.f32 %v7020, %v7353
      %v7386 = vmax.f32 %v7021, %v7354
      %v7387 = vmax.f32 %v7022, %v7355
      %v7388 = vmax.f32 %v7023, %v7356
      %v7389 = vmax.f32 %v7024, %v7357
      %v7390 = vmax.f32 %v7025, %v7358
      %v7391 = vmax.f32 %v7026, %v7359
      %v7392 = vmax.f32 %v7027, %v7360
      %v7393 = vmax.f32 %v7028, %v7361
      %v7394 = vmax.f32 %v7029, %v7362
      %v7395 = vmax.f32 %v7030, %v7363
      %v7396 = vmax.f32 %v7031, %v7364
      %v7397 = vmax.f32 %v7032, %v7365
      %v7398 = vmax.f32 %v7033, %v7366
      %v7399 = vmax.f32 %v7034, %v7367
      %v7400 = vmax.f32 %v7035, %v7368
      %v7401 = vmax.f32 %v7036, %v7369
      %v7402 = vrot.slane %v1636, 5
      %v7404 = vrot.slane %v1642, 4
      %v7406 = vrot.slane %v1652, 3
      %v7408 = vrot.slane %v1662, 2
      %v7410 = vrot.slane %v1756, 1
      %v7412 = vrot.slane %v1826, 7
      %v7414 = vrot.slane %v1920, 6
      %v7416 = vsel %vm2086, %v7402, %v7404
      %v7417 = vsel %vm2088, %v7416, %v7406
      %v7418 = vsel %vm2090, %v7417, %v7408
      %v7419 = vsel %vm2092, %v7418, %v7410
      %v7420 = vsel %vm2094, %v7419, %v1816
      %v7421 = vsel %vm2096, %v7420, %v7412
      %v7422 = vsel %vm2098, %v7421, %v7414
      %v7423 = vpack.c.bf16 %v7422, %v7422
      %v7425 = vsel %vm2092, %v7423, 0
      %7427 = vmatpush.bf16.msra.mxu0 0
      %7428 = vmatpush.bf16.msra.mxu0 0
      %7429 = vmatpush.bf16.msra.mxu0 0
      %7430 = vmatpush.bf16.msra.mxu0 0
      %7431 = vmatpush.bf16.msra.mxu0 0
      %7432 = vmatpush.bf16.msra.mxu0 0
      %7433 = vmatpush.bf16.msra.mxu0 0
      %7434 = vmatpush.bf16.msra.mxu0 %v7425
      %7435 = vmatmul.bf16.gmra.mxu0 %v2162
      %v7436 = vpop.f32.mrf.mxu0
      %v7437 = vadd.f32 %v2104, %v7436
      %v7438 = vpop.f32.mrf.mxu0
      %v7439 = vadd.f32 %v2109, %v7438
      %7440 = vmatmul.bf16.gmra.mxu0 %v2165
      %v7441 = vpop.f32.mrf.mxu0
      %v7442 = vadd.f32 %v2114, %v7441
      %v7443 = vpop.f32.mrf.mxu0
      %v7444 = vadd.f32 %v2119, %v7443
      %7445 = vmatmul.bf16.gmra.mxu0 %v2168
      %v7446 = vpop.f32.mrf.mxu0
      %v7447 = vadd.f32 %v2124, %v7446
      %v7448 = vpop.f32.mrf.mxu0
      %v7449 = vadd.f32 %v2129, %v7448
      %7450 = vmatmul.bf16.gmra.mxu0 %v2171
      %v7451 = vpop.f32.mrf.mxu0
      %v7452 = vadd.f32 %v2134, %v7451
      %v7453 = vpop.f32.mrf.mxu0
      %v7454 = vadd.f32 %v2139, %v7453
      %7455 = vdwg.mxu0
      %v7456 = vmax.f32 %v7437, 0.0
      %v7457 = vmax.f32 %v7439, 0.0
      %v7458 = vmax.f32 %v7442, 0.0
      %v7459 = vmax.f32 %v7444, 0.0
      %v7460 = vmax.f32 %v7447, 0.0
      %v7461 = vmax.f32 %v7449, 0.0
      %v7462 = vmax.f32 %v7452, 0.0
      %v7463 = vmax.f32 %v7454, 0.0
      %v7464 = vpack.c.bf16 %v7457, %v7456
      %v7465 = vpack.c.bf16 %v7459, %v7458
      %v7466 = vpack.c.bf16 %v7461, %v7460
      %v7467 = vpack.c.bf16 %v7463, %v7462
      %7468 = vmatpush.bf16.msra.mxu0 0
      %7469 = vmatpush.bf16.msra.mxu0 0
      %7470 = vmatpush.bf16.msra.mxu0 0
      %7471 = vmatpush.bf16.msra.mxu0 0
      %7472 = vmatpush.bf16.msra.mxu0 %v7467
      %7473 = vmatpush.bf16.msra.mxu0 %v7466
      %7474 = vmatpush.bf16.msra.mxu0 %v7465
      %7475 = vmatpush.bf16.msra.mxu0 %v7464
      %7476 = vmatmul.bf16.gmra.mxu0 %v2339
      %v7477 = vpop.f32.mrf.mxu0
      %v7478 = vadd.f32 %v2220, %v7477
      %v7479 = vpop.f32.mrf.mxu0
      %v7480 = vadd.f32 %v2225, %v7479
      %7481 = vmatmul.bf16.gmra.mxu0 %v2342
      %v7482 = vpop.f32.mrf.mxu0
      %v7483 = vadd.f32 %v2230, %v7482
      %v7484 = vpop.f32.mrf.mxu0
      %v7485 = vadd.f32 %v2235, %v7484
      %7486 = vmatmul.bf16.gmra.mxu0 %v2345
      %v7487 = vpop.f32.mrf.mxu0
      %v7488 = vadd.f32 %v2240, %v7487
      %v7489 = vpop.f32.mrf.mxu0
      %v7490 = vadd.f32 %v2245, %v7489
      %7491 = vmatmul.bf16.gmra.mxu0 %v2348
      %v7492 = vpop.f32.mrf.mxu0
      %v7493 = vadd.f32 %v2250, %v7492
      %v7494 = vpop.f32.mrf.mxu0
      %v7495 = vadd.f32 %v2255, %v7494
      %7496 = vmatmul.bf16.gmra.mxu0 %v2351
      %v7497 = vpop.f32.mrf.mxu0
      %v7498 = vadd.f32 %v2260, %v7497
      %v7499 = vpop.f32.mrf.mxu0
      %v7500 = vadd.f32 %v2265, %v7499
      %7501 = vmatmul.bf16.gmra.mxu0 %v2354
      %v7502 = vpop.f32.mrf.mxu0
      %v7503 = vadd.f32 %v2270, %v7502
      %v7504 = vpop.f32.mrf.mxu0
      %v7505 = vadd.f32 %v2275, %v7504
      %7506 = vmatmul.bf16.gmra.mxu0 %v2357
      %v7507 = vpop.f32.mrf.mxu0
      %v7508 = vadd.f32 %v2280, %v7507
      %v7509 = vpop.f32.mrf.mxu0
      %v7510 = vadd.f32 %v2285, %v7509
      %7511 = vmatmul.bf16.gmra.mxu0 %v2360
      %v7512 = vpop.f32.mrf.mxu0
      %v7513 = vadd.f32 %v2290, %v7512
      %v7514 = vpop.f32.mrf.mxu0
      %v7515 = vadd.f32 %v2295, %v7514
      %7516 = vdwg.mxu0
      %v7517 = vmax.f32 %v7478, 0.0
      %v7518 = vmax.f32 %v7480, 0.0
      %v7519 = vmax.f32 %v7483, 0.0
      %v7520 = vmax.f32 %v7485, 0.0
      %v7521 = vmax.f32 %v7488, 0.0
      %v7522 = vmax.f32 %v7490, 0.0
      %v7523 = vmax.f32 %v7493, 0.0
      %v7524 = vmax.f32 %v7495, 0.0
      %v7525 = vmax.f32 %v7498, 0.0
      %v7526 = vmax.f32 %v7500, 0.0
      %v7527 = vmax.f32 %v7503, 0.0
      %v7528 = vmax.f32 %v7505, 0.0
      %v7529 = vmax.f32 %v7508, 0.0
      %v7530 = vmax.f32 %v7510, 0.0
      %v7531 = vmax.f32 %v7513, 0.0
      %v7532 = vmax.f32 %v7515, 0.0
      %v7533 = vpack.c.bf16 %v7518, %v7517
      %v7534 = vpack.c.bf16 %v7520, %v7519
      %v7535 = vpack.c.bf16 %v7522, %v7521
      %v7536 = vpack.c.bf16 %v7524, %v7523
      %v7537 = vpack.c.bf16 %v7526, %v7525
      %v7538 = vpack.c.bf16 %v7528, %v7527
      %v7539 = vpack.c.bf16 %v7530, %v7529
      %v7540 = vpack.c.bf16 %v7532, %v7531
      %7541 = vmatpush.bf16.msra.mxu0 %v7540
      %7542 = vmatpush.bf16.msra.mxu0 %v7539
      %7543 = vmatpush.bf16.msra.mxu0 %v7538
      %7544 = vmatpush.bf16.msra.mxu0 %v7537
      %7545 = vmatpush.bf16.msra.mxu0 %v7536
      %7546 = vmatpush.bf16.msra.mxu0 %v7535
      %7547 = vmatpush.bf16.msra.mxu0 %v7534
      %7548 = vmatpush.bf16.msra.mxu0 %v7533
      %7549 = vmatmul.bf16.gmra.mxu0 %v2547
      %v7550 = vpop.f32.mrf.mxu0
      %v7551 = vadd.f32 %v2438, %v7550
      %v7552 = vpop.f32.mrf.mxu0
      %v7553 = vadd.f32 %v2443, %v7552
      %7554 = vmatmul.bf16.gmra.mxu0 %v2548
      %v7555 = vpop.f32.mrf.mxu0
      %v7556 = vadd.f32 %v2448, %v7555
      %v7557 = vpop.f32.mrf.mxu0
      %v7558 = vadd.f32 %v2453, %v7557
      %7559 = vmatmul.bf16.gmra.mxu0 %v2549
      %v7560 = vpop.f32.mrf.mxu0
      %v7561 = vadd.f32 %v2458, %v7560
      %v7562 = vpop.f32.mrf.mxu0
      %v7563 = vadd.f32 %v2463, %v7562
      %7564 = vmatmul.bf16.gmra.mxu0 %v2550
      %v7565 = vpop.f32.mrf.mxu0
      %v7566 = vadd.f32 %v2468, %v7565
      %v7567 = vpop.f32.mrf.mxu0
      %v7568 = vadd.f32 %v2473, %v7567
      %7569 = vmatmul.bf16.gmra.mxu0 %v2551
      %v7570 = vpop.f32.mrf.mxu0
      %v7571 = vadd.f32 %v2478, %v7570
      %v7572 = vpop.f32.mrf.mxu0
      %v7573 = vadd.f32 %v2483, %v7572
      %7574 = vmatmul.bf16.gmra.mxu0 %v2552
      %v7575 = vpop.f32.mrf.mxu0
      %v7576 = vadd.f32 %v2488, %v7575
      %v7577 = vpop.f32.mrf.mxu0
      %v7578 = vadd.f32 %v2493, %v7577
      %7579 = vmatmul.bf16.gmra.mxu0 %v2553
      %v7580 = vpop.f32.mrf.mxu0
      %v7581 = vadd.f32 %v2498, %v7580
      %v7582 = vpop.f32.mrf.mxu0
      %v7583 = vadd.f32 %v2503, %v7582
      %7584 = vmatmul.bf16.gmra.mxu0 %v2554
      %v7585 = vpop.f32.mrf.mxu0
      %v7586 = vadd.f32 %v2508, %v7585
      %v7587 = vpop.f32.mrf.mxu0
      %v7588 = vadd.f32 %v2513, %v7587
      %7589 = vdwg.mxu0
      %v7590 = vmax.f32 %v7551, 0.0
      %v7591 = vmax.f32 %v7553, 0.0
      %v7592 = vmax.f32 %v7556, 0.0
      %v7593 = vmax.f32 %v7558, 0.0
      %v7594 = vmax.f32 %v7561, 0.0
      %v7595 = vmax.f32 %v7563, 0.0
      %v7596 = vmax.f32 %v7566, 0.0
      %v7597 = vmax.f32 %v7568, 0.0
      %v7598 = vmax.f32 %v7571, 0.0
      %v7599 = vmax.f32 %v7573, 0.0
      %v7600 = vmax.f32 %v7576, 0.0
      %v7601 = vmax.f32 %v7578, 0.0
      %v7602 = vmax.f32 %v7581, 0.0
      %v7603 = vmax.f32 %v7583, 0.0
      %v7604 = vmax.f32 %v7586, 0.0
      %v7605 = vmax.f32 %v7588, 0.0
      %v7606 = vpack.c.bf16 %v7591, %v7590
      %v7607 = vpack.c.bf16 %v7593, %v7592
      %v7608 = vpack.c.bf16 %v7595, %v7594
      %v7609 = vpack.c.bf16 %v7597, %v7596
      %v7610 = vpack.c.bf16 %v7599, %v7598
      %v7611 = vpack.c.bf16 %v7601, %v7600
      %v7612 = vpack.c.bf16 %v7603, %v7602
      %v7613 = vpack.c.bf16 %v7605, %v7604
      %7614 = vmatpush.bf16.msra.mxu0 %v7613
      %7615 = vmatpush.bf16.msra.mxu0 %v7612
      %7616 = vmatpush.bf16.msra.mxu0 %v7611
      %7617 = vmatpush.bf16.msra.mxu0 %v7610
      %7618 = vmatpush.bf16.msra.mxu0 %v7609
      %7619 = vmatpush.bf16.msra.mxu0 %v7608
      %7620 = vmatpush.bf16.msra.mxu0 %v7607
      %7621 = vmatpush.bf16.msra.mxu0 %v7606
      %7622 = vmatmul.bf16.gmra.mxu0 %v2860
      %v7623 = vpop.f32.mrf.mxu0
      %v7624 = vadd.f32 %v2639, %v7623
      %v7625 = vpop.f32.mrf.mxu0
      %v7626 = vadd.f32 %v2644, %v7625
      %7627 = vmatmul.bf16.gmra.mxu0 %v2861
      %v7628 = vpop.f32.mrf.mxu0
      %v7629 = vadd.f32 %v2649, %v7628
      %v7630 = vpop.f32.mrf.mxu0
      %v7631 = vadd.f32 %v2654, %v7630
      %7632 = vmatmul.bf16.gmra.mxu0 %v2862
      %v7633 = vpop.f32.mrf.mxu0
      %v7634 = vadd.f32 %v2659, %v7633
      %v7635 = vpop.f32.mrf.mxu0
      %v7636 = vadd.f32 %v2664, %v7635
      %7637 = vmatmul.bf16.gmra.mxu0 %v2863
      %v7638 = vpop.f32.mrf.mxu0
      %v7639 = vadd.f32 %v2669, %v7638
      %v7640 = vpop.f32.mrf.mxu0
      %v7641 = vadd.f32 %v2674, %v7640
      %7642 = vmatmul.bf16.gmra.mxu0 %v2864
      %v7643 = vpop.f32.mrf.mxu0
      %v7644 = vadd.f32 %v2679, %v7643
      %v7645 = vpop.f32.mrf.mxu0
      %v7646 = vadd.f32 %v2684, %v7645
      %7647 = vmatmul.bf16.gmra.mxu0 %v2865
      %v7648 = vpop.f32.mrf.mxu0
      %v7649 = vadd.f32 %v2689, %v7648
      %v7650 = vpop.f32.mrf.mxu0
      %v7651 = vadd.f32 %v2694, %v7650
      %7652 = vmatmul.bf16.gmra.mxu0 %v2866
      %v7653 = vpop.f32.mrf.mxu0
      %v7654 = vadd.f32 %v2699, %v7653
      %v7655 = vpop.f32.mrf.mxu0
      %v7656 = vadd.f32 %v2704, %v7655
      %7657 = vmatmul.bf16.gmra.mxu0 %v2867
      %v7658 = vpop.f32.mrf.mxu0
      %v7659 = vadd.f32 %v2709, %v7658
      %v7660 = vpop.f32.mrf.mxu0
      %v7661 = vadd.f32 %v2714, %v7660
      %7662 = vmatmul.bf16.gmra.mxu0 %v2868
      %v7663 = vpop.f32.mrf.mxu0
      %v7664 = vadd.f32 %v2719, %v7663
      %v7665 = vpop.f32.mrf.mxu0
      %v7666 = vadd.f32 %v2724, %v7665
      %7667 = vmatmul.bf16.gmra.mxu0 %v2869
      %v7668 = vpop.f32.mrf.mxu0
      %v7669 = vadd.f32 %v2729, %v7668
      %v7670 = vpop.f32.mrf.mxu0
      %v7671 = vadd.f32 %v2734, %v7670
      %7672 = vmatmul.bf16.gmra.mxu0 %v2870
      %v7673 = vpop.f32.mrf.mxu0
      %v7674 = vadd.f32 %v2739, %v7673
      %v7675 = vpop.f32.mrf.mxu0
      %v7676 = vadd.f32 %v2744, %v7675
      %7677 = vmatmul.bf16.gmra.mxu0 %v2871
      %v7678 = vpop.f32.mrf.mxu0
      %v7679 = vadd.f32 %v2749, %v7678
      %v7680 = vpop.f32.mrf.mxu0
      %v7681 = vadd.f32 %v2754, %v7680
      %7682 = vmatmul.bf16.gmra.mxu0 %v2872
      %v7683 = vpop.f32.mrf.mxu0
      %v7684 = vadd.f32 %v2759, %v7683
      %v7685 = vpop.f32.mrf.mxu0
      %v7686 = vadd.f32 %v2764, %v7685
      %7687 = vmatmul.bf16.gmra.mxu0 %v2873
      %v7688 = vpop.f32.mrf.mxu0
      %v7689 = vadd.f32 %v2769, %v7688
      %v7690 = vpop.f32.mrf.mxu0
      %v7691 = vadd.f32 %v2774, %v7690
      %7692 = vmatmul.bf16.gmra.mxu0 %v2874
      %v7693 = vpop.f32.mrf.mxu0
      %v7694 = vadd.f32 %v2779, %v7693
      %v7695 = vpop.f32.mrf.mxu0
      %v7696 = vadd.f32 %v2784, %v7695
      %7697 = vmatmul.bf16.gmra.mxu0 %v2875
      %v7698 = vpop.f32.mrf.mxu0
      %v7699 = vadd.f32 %v2789, %v7698
      %v7700 = vpop.f32.mrf.mxu0
      %v7701 = vadd.f32 %v2794, %v7700
      %7702 = vdwg.mxu0
      %v7703 = vmax.f32 %v7624, 0.0
      %v7704 = vmax.f32 %v7626, 0.0
      %v7705 = vmax.f32 %v7629, 0.0
      %v7706 = vmax.f32 %v7631, 0.0
      %v7707 = vmax.f32 %v7634, 0.0
      %v7708 = vmax.f32 %v7636, 0.0
      %v7709 = vmax.f32 %v7639, 0.0
      %v7710 = vmax.f32 %v7641, 0.0
      %v7711 = vmax.f32 %v7644, 0.0
      %v7712 = vmax.f32 %v7646, 0.0
      %v7713 = vmax.f32 %v7649, 0.0
      %v7714 = vmax.f32 %v7651, 0.0
      %v7715 = vmax.f32 %v7654, 0.0
      %v7716 = vmax.f32 %v7656, 0.0
      %v7717 = vmax.f32 %v7659, 0.0
      %v7718 = vmax.f32 %v7661, 0.0
      %v7719 = vmax.f32 %v7664, 0.0
      %v7720 = vmax.f32 %v7666, 0.0
      %v7721 = vmax.f32 %v7669, 0.0
      %v7722 = vmax.f32 %v7671, 0.0
      %v7723 = vmax.f32 %v7674, 0.0
      %v7724 = vmax.f32 %v7676, 0.0
      %v7725 = vmax.f32 %v7679, 0.0
      %v7726 = vmax.f32 %v7681, 0.0
      %v7727 = vmax.f32 %v7684, 0.0
      %v7728 = vmax.f32 %v7686, 0.0
      %v7729 = vmax.f32 %v7689, 0.0
      %v7730 = vmax.f32 %v7691, 0.0
      %v7731 = vmax.f32 %v7694, 0.0
      %v7732 = vmax.f32 %v7696, 0.0
      %v7733 = vmax.f32 %v7699, 0.0
      %v7734 = vmax.f32 %v7701, 0.0
      %v7735 = vmax.f32 %v7370, %v7703
      %v7736 = vmax.f32 %v7371, %v7704
      %v7737 = vmax.f32 %v7372, %v7705
      %v7738 = vmax.f32 %v7373, %v7706
      %v7739 = vmax.f32 %v7374, %v7707
      %v7740 = vmax.f32 %v7375, %v7708
      %v7741 = vmax.f32 %v7376, %v7709
      %v7742 = vmax.f32 %v7377, %v7710
      %v7743 = vmax.f32 %v7378, %v7711
      %v7744 = vmax.f32 %v7379, %v7712
      %v7745 = vmax.f32 %v7380, %v7713
      %v7746 = vmax.f32 %v7381, %v7714
      %v7747 = vmax.f32 %v7382, %v7715
      %v7748 = vmax.f32 %v7383, %v7716
      %v7749 = vmax.f32 %v7384, %v7717
      %v7750 = vmax.f32 %v7385, %v7718
      %v7751 = vmax.f32 %v7386, %v7719
      %v7752 = vmax.f32 %v7387, %v7720
      %v7753 = vmax.f32 %v7388, %v7721
      %v7754 = vmax.f32 %v7389, %v7722
      %v7755 = vmax.f32 %v7390, %v7723
      %v7756 = vmax.f32 %v7391, %v7724
      %v7757 = vmax.f32 %v7392, %v7725
      %v7758 = vmax.f32 %v7393, %v7726
      %v7759 = vmax.f32 %v7394, %v7727
      %v7760 = vmax.f32 %v7395, %v7728
      %v7761 = vmax.f32 %v7396, %v7729
      %v7762 = vmax.f32 %v7397, %v7730
      %v7763 = vmax.f32 %v7398, %v7731
      %v7764 = vmax.f32 %v7399, %v7732
      %v7765 = vmax.f32 %v7400, %v7733
      %v7766 = vmax.f32 %v7401, %v7734
      %v7767 = vrot.slane %v1636, 6
      %v7769 = vrot.slane %v1642, 5
      %v7771 = vrot.slane %v1652, 4
      %v7773 = vrot.slane %v1662, 3
      %v7775 = vrot.slane %v1756, 2
      %v7777 = vrot.slane %v1816, 1
      %v7779 = vrot.slane %v1920, 7
      %v7781 = vsel %vm2086, %v7767, %v7769
      %v7782 = vsel %vm2088, %v7781, %v7771
      %v7783 = vsel %vm2090, %v7782, %v7773
      %v7784 = vsel %vm2092, %v7783, %v7775
      %v7785 = vsel %vm2094, %v7784, %v7777
      %v7786 = vsel %vm2096, %v7785, %v1826
      %v7787 = vsel %vm2098, %v7786, %v7779
      %v7788 = vpack.c.bf16 %v7787, %v7787
      %v7790 = vsel %vm2092, %v7788, 0
      %7792 = vmatpush.bf16.msra.mxu0 0
      %7793 = vmatpush.bf16.msra.mxu0 0
      %7794 = vmatpush.bf16.msra.mxu0 0
      %7795 = vmatpush.bf16.msra.mxu0 0
      %7796 = vmatpush.bf16.msra.mxu0 0
      %7797 = vmatpush.bf16.msra.mxu0 0
      %7798 = vmatpush.bf16.msra.mxu0 0
      %7799 = vmatpush.bf16.msra.mxu0 %v7790
      %7800 = vmatmul.bf16.gmra.mxu0 %v2162
      %v7801 = vpop.f32.mrf.mxu0
      %v7802 = vadd.f32 %v2104, %v7801
      %v7803 = vpop.f32.mrf.mxu0
      %v7804 = vadd.f32 %v2109, %v7803
      %7805 = vmatmul.bf16.gmra.mxu0 %v2165
      %v7806 = vpop.f32.mrf.mxu0
      %v7807 = vadd.f32 %v2114, %v7806
      %v7808 = vpop.f32.mrf.mxu0
      %v7809 = vadd.f32 %v2119, %v7808
      %7810 = vmatmul.bf16.gmra.mxu0 %v2168
      %v7811 = vpop.f32.mrf.mxu0
      %v7812 = vadd.f32 %v2124, %v7811
      %v7813 = vpop.f32.mrf.mxu0
      %v7814 = vadd.f32 %v2129, %v7813
      %7815 = vmatmul.bf16.gmra.mxu0 %v2171
      %v7816 = vpop.f32.mrf.mxu0
      %v7817 = vadd.f32 %v2134, %v7816
      %v7818 = vpop.f32.mrf.mxu0
      %v7819 = vadd.f32 %v2139, %v7818
      %7820 = vdwg.mxu0
      %v7821 = vmax.f32 %v7802, 0.0
      %v7822 = vmax.f32 %v7804, 0.0
      %v7823 = vmax.f32 %v7807, 0.0
      %v7824 = vmax.f32 %v7809, 0.0
      %v7825 = vmax.f32 %v7812, 0.0
      %v7826 = vmax.f32 %v7814, 0.0
      %v7827 = vmax.f32 %v7817, 0.0
      %v7828 = vmax.f32 %v7819, 0.0
      %v7829 = vpack.c.bf16 %v7822, %v7821
      %v7830 = vpack.c.bf16 %v7824, %v7823
      %v7831 = vpack.c.bf16 %v7826, %v7825
      %v7832 = vpack.c.bf16 %v7828, %v7827
      %7833 = vmatpush.bf16.msra.mxu0 0
      %7834 = vmatpush.bf16.msra.mxu0 0
      %7835 = vmatpush.bf16.msra.mxu0 0
      %7836 = vmatpush.bf16.msra.mxu0 0
      %7837 = vmatpush.bf16.msra.mxu0 %v7832
      %7838 = vmatpush.bf16.msra.mxu0 %v7831
      %7839 = vmatpush.bf16.msra.mxu0 %v7830
      %7840 = vmatpush.bf16.msra.mxu0 %v7829
      %7841 = vmatmul.bf16.gmra.mxu0 %v2339
      %v7842 = vpop.f32.mrf.mxu0
      %v7843 = vadd.f32 %v2220, %v7842
      %v7844 = vpop.f32.mrf.mxu0
      %v7845 = vadd.f32 %v2225, %v7844
      %7846 = vmatmul.bf16.gmra.mxu0 %v2342
      %v7847 = vpop.f32.mrf.mxu0
      %v7848 = vadd.f32 %v2230, %v7847
      %v7849 = vpop.f32.mrf.mxu0
      %v7850 = vadd.f32 %v2235, %v7849
      %7851 = vmatmul.bf16.gmra.mxu0 %v2345
      %v7852 = vpop.f32.mrf.mxu0
      %v7853 = vadd.f32 %v2240, %v7852
      %v7854 = vpop.f32.mrf.mxu0
      %v7855 = vadd.f32 %v2245, %v7854
      %7856 = vmatmul.bf16.gmra.mxu0 %v2348
      %v7857 = vpop.f32.mrf.mxu0
      %v7858 = vadd.f32 %v2250, %v7857
      %v7859 = vpop.f32.mrf.mxu0
      %v7860 = vadd.f32 %v2255, %v7859
      %7861 = vmatmul.bf16.gmra.mxu0 %v2351
      %v7862 = vpop.f32.mrf.mxu0
      %v7863 = vadd.f32 %v2260, %v7862
      %v7864 = vpop.f32.mrf.mxu0
      %v7865 = vadd.f32 %v2265, %v7864
      %7866 = vmatmul.bf16.gmra.mxu0 %v2354
      %v7867 = vpop.f32.mrf.mxu0
      %v7868 = vadd.f32 %v2270, %v7867
      %v7869 = vpop.f32.mrf.mxu0
      %v7870 = vadd.f32 %v2275, %v7869
      %7871 = vmatmul.bf16.gmra.mxu0 %v2357
      %v7872 = vpop.f32.mrf.mxu0
      %v7873 = vadd.f32 %v2280, %v7872
      %v7874 = vpop.f32.mrf.mxu0
      %v7875 = vadd.f32 %v2285, %v7874
      %7876 = vmatmul.bf16.gmra.mxu0 %v2360
      %v7877 = vpop.f32.mrf.mxu0
      %v7878 = vadd.f32 %v2290, %v7877
      %v7879 = vpop.f32.mrf.mxu0
      %v7880 = vadd.f32 %v2295, %v7879
      %7881 = vdwg.mxu0
      %v7882 = vmax.f32 %v7843, 0.0
      %v7883 = vmax.f32 %v7845, 0.0
      %v7884 = vmax.f32 %v7848, 0.0
      %v7885 = vmax.f32 %v7850, 0.0
      %v7886 = vmax.f32 %v7853, 0.0
      %v7887 = vmax.f32 %v7855, 0.0
      %v7888 = vmax.f32 %v7858, 0.0
      %v7889 = vmax.f32 %v7860, 0.0
      %v7890 = vmax.f32 %v7863, 0.0
      %v7891 = vmax.f32 %v7865, 0.0
      %v7892 = vmax.f32 %v7868, 0.0
      %v7893 = vmax.f32 %v7870, 0.0
      %v7894 = vmax.f32 %v7873, 0.0
      %v7895 = vmax.f32 %v7875, 0.0
      %v7896 = vmax.f32 %v7878, 0.0
      %v7897 = vmax.f32 %v7880, 0.0
      %v7898 = vpack.c.bf16 %v7883, %v7882
      %v7899 = vpack.c.bf16 %v7885, %v7884
      %v7900 = vpack.c.bf16 %v7887, %v7886
      %v7901 = vpack.c.bf16 %v7889, %v7888
      %v7902 = vpack.c.bf16 %v7891, %v7890
      %v7903 = vpack.c.bf16 %v7893, %v7892
      %v7904 = vpack.c.bf16 %v7895, %v7894
      %v7905 = vpack.c.bf16 %v7897, %v7896
      %7906 = vmatpush.bf16.msra.mxu0 %v7905
      %7907 = vmatpush.bf16.msra.mxu0 %v7904
      %7908 = vmatpush.bf16.msra.mxu0 %v7903
      %7909 = vmatpush.bf16.msra.mxu0 %v7902
      %7910 = vmatpush.bf16.msra.mxu0 %v7901
      %7911 = vmatpush.bf16.msra.mxu0 %v7900
      %7912 = vmatpush.bf16.msra.mxu0 %v7899
      %7913 = vmatpush.bf16.msra.mxu0 %v7898
      %7914 = vmatmul.bf16.gmra.mxu0 %v2547
      %v7915 = vpop.f32.mrf.mxu0
      %v7916 = vadd.f32 %v2438, %v7915
      %v7917 = vpop.f32.mrf.mxu0
      %v7918 = vadd.f32 %v2443, %v7917
      %7919 = vmatmul.bf16.gmra.mxu0 %v2548
      %v7920 = vpop.f32.mrf.mxu0
      %v7921 = vadd.f32 %v2448, %v7920
      %v7922 = vpop.f32.mrf.mxu0
      %v7923 = vadd.f32 %v2453, %v7922
      %7924 = vmatmul.bf16.gmra.mxu0 %v2549
      %v7925 = vpop.f32.mrf.mxu0
      %v7926 = vadd.f32 %v2458, %v7925
      %v7927 = vpop.f32.mrf.mxu0
      %v7928 = vadd.f32 %v2463, %v7927
      %7929 = vmatmul.bf16.gmra.mxu0 %v2550
      %v7930 = vpop.f32.mrf.mxu0
      %v7931 = vadd.f32 %v2468, %v7930
      %v7932 = vpop.f32.mrf.mxu0
      %v7933 = vadd.f32 %v2473, %v7932
      %7934 = vmatmul.bf16.gmra.mxu0 %v2551
      %v7935 = vpop.f32.mrf.mxu0
      %v7936 = vadd.f32 %v2478, %v7935
      %v7937 = vpop.f32.mrf.mxu0
      %v7938 = vadd.f32 %v2483, %v7937
      %7939 = vmatmul.bf16.gmra.mxu0 %v2552
      %v7940 = vpop.f32.mrf.mxu0
      %v7941 = vadd.f32 %v2488, %v7940
      %v7942 = vpop.f32.mrf.mxu0
      %v7943 = vadd.f32 %v2493, %v7942
      %7944 = vmatmul.bf16.gmra.mxu0 %v2553
      %v7945 = vpop.f32.mrf.mxu0
      %v7946 = vadd.f32 %v2498, %v7945
      %v7947 = vpop.f32.mrf.mxu0
      %v7948 = vadd.f32 %v2503, %v7947
      %7949 = vmatmul.bf16.gmra.mxu0 %v2554
      %v7950 = vpop.f32.mrf.mxu0
      %v7951 = vadd.f32 %v2508, %v7950
      %v7952 = vpop.f32.mrf.mxu0
      %v7953 = vadd.f32 %v2513, %v7952
      %7954 = vdwg.mxu0
      %v7955 = vmax.f32 %v7916, 0.0
      %v7956 = vmax.f32 %v7918, 0.0
      %v7957 = vmax.f32 %v7921, 0.0
      %v7958 = vmax.f32 %v7923, 0.0
      %v7959 = vmax.f32 %v7926, 0.0
      %v7960 = vmax.f32 %v7928, 0.0
      %v7961 = vmax.f32 %v7931, 0.0
      %v7962 = vmax.f32 %v7933, 0.0
      %v7963 = vmax.f32 %v7936, 0.0
      %v7964 = vmax.f32 %v7938, 0.0
      %v7965 = vmax.f32 %v7941, 0.0
      %v7966 = vmax.f32 %v7943, 0.0
      %v7967 = vmax.f32 %v7946, 0.0
      %v7968 = vmax.f32 %v7948, 0.0
      %v7969 = vmax.f32 %v7951, 0.0
      %v7970 = vmax.f32 %v7953, 0.0
      %v7971 = vpack.c.bf16 %v7956, %v7955
      %v7972 = vpack.c.bf16 %v7958, %v7957
      %v7973 = vpack.c.bf16 %v7960, %v7959
      %v7974 = vpack.c.bf16 %v7962, %v7961
      %v7975 = vpack.c.bf16 %v7964, %v7963
      %v7976 = vpack.c.bf16 %v7966, %v7965
      %v7977 = vpack.c.bf16 %v7968, %v7967
      %v7978 = vpack.c.bf16 %v7970, %v7969
      %7979 = vmatpush.bf16.msra.mxu0 %v7978
      %7980 = vmatpush.bf16.msra.mxu0 %v7977
      %7981 = vmatpush.bf16.msra.mxu0 %v7976
      %7982 = vmatpush.bf16.msra.mxu0 %v7975
      %7983 = vmatpush.bf16.msra.mxu0 %v7974
      %7984 = vmatpush.bf16.msra.mxu0 %v7973
      %7985 = vmatpush.bf16.msra.mxu0 %v7972
      %7986 = vmatpush.bf16.msra.mxu0 %v7971
      %7987 = vmatmul.bf16.gmra.mxu0 %v2860
      %v7988 = vpop.f32.mrf.mxu0
      %v7989 = vadd.f32 %v2639, %v7988
      %v7990 = vpop.f32.mrf.mxu0
      %v7991 = vadd.f32 %v2644, %v7990
      %7992 = vmatmul.bf16.gmra.mxu0 %v2861
      %v7993 = vpop.f32.mrf.mxu0
      %v7994 = vadd.f32 %v2649, %v7993
      %v7995 = vpop.f32.mrf.mxu0
      %v7996 = vadd.f32 %v2654, %v7995
      %7997 = vmatmul.bf16.gmra.mxu0 %v2862
      %v7998 = vpop.f32.mrf.mxu0
      %v7999 = vadd.f32 %v2659, %v7998
      %v8000 = vpop.f32.mrf.mxu0
      %v8001 = vadd.f32 %v2664, %v8000
      %8002 = vmatmul.bf16.gmra.mxu0 %v2863
      %v8003 = vpop.f32.mrf.mxu0
      %v8004 = vadd.f32 %v2669, %v8003
      %v8005 = vpop.f32.mrf.mxu0
      %v8006 = vadd.f32 %v2674, %v8005
      %8007 = vmatmul.bf16.gmra.mxu0 %v2864
      %v8008 = vpop.f32.mrf.mxu0
      %v8009 = vadd.f32 %v2679, %v8008
      %v8010 = vpop.f32.mrf.mxu0
      %v8011 = vadd.f32 %v2684, %v8010
      %8012 = vmatmul.bf16.gmra.mxu0 %v2865
      %v8013 = vpop.f32.mrf.mxu0
      %v8014 = vadd.f32 %v2689, %v8013
      %v8015 = vpop.f32.mrf.mxu0
      %v8016 = vadd.f32 %v2694, %v8015
      %8017 = vmatmul.bf16.gmra.mxu0 %v2866
      %v8018 = vpop.f32.mrf.mxu0
      %v8019 = vadd.f32 %v2699, %v8018
      %v8020 = vpop.f32.mrf.mxu0
      %v8021 = vadd.f32 %v2704, %v8020
      %8022 = vmatmul.bf16.gmra.mxu0 %v2867
      %v8023 = vpop.f32.mrf.mxu0
      %v8024 = vadd.f32 %v2709, %v8023
      %v8025 = vpop.f32.mrf.mxu0
      %v8026 = vadd.f32 %v2714, %v8025
      %8027 = vmatmul.bf16.gmra.mxu0 %v2868
      %v8028 = vpop.f32.mrf.mxu0
      %v8029 = vadd.f32 %v2719, %v8028
      %v8030 = vpop.f32.mrf.mxu0
      %v8031 = vadd.f32 %v2724, %v8030
      %8032 = vmatmul.bf16.gmra.mxu0 %v2869
      %v8033 = vpop.f32.mrf.mxu0
      %v8034 = vadd.f32 %v2729, %v8033
      %v8035 = vpop.f32.mrf.mxu0
      %v8036 = vadd.f32 %v2734, %v8035
      %8037 = vmatmul.bf16.gmra.mxu0 %v2870
      %v8038 = vpop.f32.mrf.mxu0
      %v8039 = vadd.f32 %v2739, %v8038
      %v8040 = vpop.f32.mrf.mxu0
      %v8041 = vadd.f32 %v2744, %v8040
      %8042 = vmatmul.bf16.gmra.mxu0 %v2871
      %v8043 = vpop.f32.mrf.mxu0
      %v8044 = vadd.f32 %v2749, %v8043
      %v8045 = vpop.f32.mrf.mxu0
      %v8046 = vadd.f32 %v2754, %v8045
      %8047 = vmatmul.bf16.gmra.mxu0 %v2872
      %v8048 = vpop.f32.mrf.mxu0
      %v8049 = vadd.f32 %v2759, %v8048
      %v8050 = vpop.f32.mrf.mxu0
      %v8051 = vadd.f32 %v2764, %v8050
      %8052 = vmatmul.bf16.gmra.mxu0 %v2873
      %v8053 = vpop.f32.mrf.mxu0
      %v8054 = vadd.f32 %v2769, %v8053
      %v8055 = vpop.f32.mrf.mxu0
      %v8056 = vadd.f32 %v2774, %v8055
      %8057 = vmatmul.bf16.gmra.mxu0 %v2874
      %v8058 = vpop.f32.mrf.mxu0
      %v8059 = vadd.f32 %v2779, %v8058
      %v8060 = vpop.f32.mrf.mxu0
      %v8061 = vadd.f32 %v2784, %v8060
      %8062 = vmatmul.bf16.gmra.mxu0 %v2875
      %v8063 = vpop.f32.mrf.mxu0
      %v8064 = vadd.f32 %v2789, %v8063
      %v8065 = vpop.f32.mrf.mxu0
      %v8066 = vadd.f32 %v2794, %v8065
      %8067 = vdwg.mxu0
      %v8068 = vmax.f32 %v7989, 0.0
      %v8069 = vmax.f32 %v7991, 0.0
      %v8070 = vmax.f32 %v7994, 0.0
      %v8071 = vmax.f32 %v7996, 0.0
      %v8072 = vmax.f32 %v7999, 0.0
      %v8073 = vmax.f32 %v8001, 0.0
      %v8074 = vmax.f32 %v8004, 0.0
      %v8075 = vmax.f32 %v8006, 0.0
      %v8076 = vmax.f32 %v8009, 0.0
      %v8077 = vmax.f32 %v8011, 0.0
      %v8078 = vmax.f32 %v8014, 0.0
      %v8079 = vmax.f32 %v8016, 0.0
      %v8080 = vmax.f32 %v8019, 0.0
      %v8081 = vmax.f32 %v8021, 0.0
      %v8082 = vmax.f32 %v8024, 0.0
      %v8083 = vmax.f32 %v8026, 0.0
      %v8084 = vmax.f32 %v8029, 0.0
      %v8085 = vmax.f32 %v8031, 0.0
      %v8086 = vmax.f32 %v8034, 0.0
      %v8087 = vmax.f32 %v8036, 0.0
      %v8088 = vmax.f32 %v8039, 0.0
      %v8089 = vmax.f32 %v8041, 0.0
      %v8090 = vmax.f32 %v8044, 0.0
      %v8091 = vmax.f32 %v8046, 0.0
      %v8092 = vmax.f32 %v8049, 0.0
      %v8093 = vmax.f32 %v8051, 0.0
      %v8094 = vmax.f32 %v8054, 0.0
      %v8095 = vmax.f32 %v8056, 0.0
      %v8096 = vmax.f32 %v8059, 0.0
      %v8097 = vmax.f32 %v8061, 0.0
      %v8098 = vmax.f32 %v8064, 0.0
      %v8099 = vmax.f32 %v8066, 0.0
      %v8100 = vmax.f32 %v7735, %v8068
      %v8101 = vmax.f32 %v7736, %v8069
      %v8102 = vmax.f32 %v7737, %v8070
      %v8103 = vmax.f32 %v7738, %v8071
      %v8104 = vmax.f32 %v7739, %v8072
      %v8105 = vmax.f32 %v7740, %v8073
      %v8106 = vmax.f32 %v7741, %v8074
      %v8107 = vmax.f32 %v7742, %v8075
      %v8108 = vmax.f32 %v7743, %v8076
      %v8109 = vmax.f32 %v7744, %v8077
      %v8110 = vmax.f32 %v7745, %v8078
      %v8111 = vmax.f32 %v7746, %v8079
      %v8112 = vmax.f32 %v7747, %v8080
      %v8113 = vmax.f32 %v7748, %v8081
      %v8114 = vmax.f32 %v7749, %v8082
      %v8115 = vmax.f32 %v7750, %v8083
      %v8116 = vmax.f32 %v7751, %v8084
      %v8117 = vmax.f32 %v7752, %v8085
      %v8118 = vmax.f32 %v7753, %v8086
      %v8119 = vmax.f32 %v7754, %v8087
      %v8120 = vmax.f32 %v7755, %v8088
      %v8121 = vmax.f32 %v7756, %v8089
      %v8122 = vmax.f32 %v7757, %v8090
      %v8123 = vmax.f32 %v7758, %v8091
      %v8124 = vmax.f32 %v7759, %v8092
      %v8125 = vmax.f32 %v7760, %v8093
      %v8126 = vmax.f32 %v7761, %v8094
      %v8127 = vmax.f32 %v7762, %v8095
      %v8128 = vmax.f32 %v7763, %v8096
      %v8129 = vmax.f32 %v7764, %v8097
      %v8130 = vmax.f32 %v7765, %v8098
      %v8131 = vmax.f32 %v7766, %v8099
      %v8132 = vrot.slane %v1636, 7
      %v8134 = vrot.slane %v1642, 6
      %v8136 = vrot.slane %v1652, 5
      %v8138 = vrot.slane %v1662, 4
      %v8140 = vrot.slane %v1756, 3
      %v8142 = vrot.slane %v1816, 2
      %v8144 = vrot.slane %v1826, 1
      %v8146 = vsel %vm2086, %v8132, %v8134
      %v8147 = vsel %vm2088, %v8146, %v8136
      %v8148 = vsel %vm2090, %v8147, %v8138
      %v8149 = vsel %vm2092, %v8148, %v8140
      %v8150 = vsel %vm2094, %v8149, %v8142
      %v8151 = vsel %vm2096, %v8150, %v8144
      %v8152 = vsel %vm2098, %v8151, %v1920
      %v8153 = vpack.c.bf16 %v8152, %v8152
      %v8155 = vsel %vm2092, %v8153, 0
      %8157 = vmatpush.bf16.msra.mxu0 0
      %8158 = vmatpush.bf16.msra.mxu0 0
      %8159 = vmatpush.bf16.msra.mxu0 0
      %8160 = vmatpush.bf16.msra.mxu0 0
      %8161 = vmatpush.bf16.msra.mxu0 0
      %8162 = vmatpush.bf16.msra.mxu0 0
      %8163 = vmatpush.bf16.msra.mxu0 0
      %8164 = vmatpush.bf16.msra.mxu0 %v8155
      %8165 = vmatmul.bf16.gmra.mxu0 %v2162
      %v8166 = vpop.f32.mrf.mxu0
      %v8167 = vadd.f32 %v2104, %v8166
      %v8168 = vpop.f32.mrf.mxu0
      %v8169 = vadd.f32 %v2109, %v8168
      %8170 = vmatmul.bf16.gmra.mxu0 %v2165
      %v8171 = vpop.f32.mrf.mxu0
      %v8172 = vadd.f32 %v2114, %v8171
      %v8173 = vpop.f32.mrf.mxu0
      %v8174 = vadd.f32 %v2119, %v8173
      %8175 = vmatmul.bf16.gmra.mxu0 %v2168
      %v8176 = vpop.f32.mrf.mxu0
      %v8177 = vadd.f32 %v2124, %v8176
      %v8178 = vpop.f32.mrf.mxu0
      %v8179 = vadd.f32 %v2129, %v8178
      %8180 = vmatmul.bf16.gmra.mxu0 %v2171
      %v8181 = vpop.f32.mrf.mxu0
      %v8182 = vadd.f32 %v2134, %v8181
      %v8183 = vpop.f32.mrf.mxu0
      %v8184 = vadd.f32 %v2139, %v8183
      %8185 = vdwg.mxu0
      %v8186 = vmax.f32 %v8167, 0.0
      %v8187 = vmax.f32 %v8169, 0.0
      %v8188 = vmax.f32 %v8172, 0.0
      %v8189 = vmax.f32 %v8174, 0.0
      %v8190 = vmax.f32 %v8177, 0.0
      %v8191 = vmax.f32 %v8179, 0.0
      %v8192 = vmax.f32 %v8182, 0.0
      %v8193 = vmax.f32 %v8184, 0.0
      %v8194 = vpack.c.bf16 %v8187, %v8186
      %v8195 = vpack.c.bf16 %v8189, %v8188
      %v8196 = vpack.c.bf16 %v8191, %v8190
      %v8197 = vpack.c.bf16 %v8193, %v8192
      %8198 = vmatpush.bf16.msra.mxu0 0
      %8199 = vmatpush.bf16.msra.mxu0 0
      %8200 = vmatpush.bf16.msra.mxu0 0
      %8201 = vmatpush.bf16.msra.mxu0 0
      %8202 = vmatpush.bf16.msra.mxu0 %v8197
      %8203 = vmatpush.bf16.msra.mxu0 %v8196
      %8204 = vmatpush.bf16.msra.mxu0 %v8195
      %8205 = vmatpush.bf16.msra.mxu0 %v8194
      %8206 = vmatmul.bf16.gmra.mxu0 %v2339
      %v8207 = vpop.f32.mrf.mxu0
      %v8208 = vadd.f32 %v2220, %v8207
      %v8209 = vpop.f32.mrf.mxu0
      %v8210 = vadd.f32 %v2225, %v8209
      %8211 = vmatmul.bf16.gmra.mxu0 %v2342
      %v8212 = vpop.f32.mrf.mxu0
      %v8213 = vadd.f32 %v2230, %v8212
      %v8214 = vpop.f32.mrf.mxu0
      %v8215 = vadd.f32 %v2235, %v8214
      %8216 = vmatmul.bf16.gmra.mxu0 %v2345
      %v8217 = vpop.f32.mrf.mxu0
      %v8218 = vadd.f32 %v2240, %v8217
      %v8219 = vpop.f32.mrf.mxu0
      %v8220 = vadd.f32 %v2245, %v8219
      %8221 = vmatmul.bf16.gmra.mxu0 %v2348
      %v8222 = vpop.f32.mrf.mxu0
      %v8223 = vadd.f32 %v2250, %v8222
      %v8224 = vpop.f32.mrf.mxu0
      %v8225 = vadd.f32 %v2255, %v8224
      %8226 = vmatmul.bf16.gmra.mxu0 %v2351
      %v8227 = vpop.f32.mrf.mxu0
      %v8228 = vadd.f32 %v2260, %v8227
      %v8229 = vpop.f32.mrf.mxu0
      %v8230 = vadd.f32 %v2265, %v8229
      %8231 = vmatmul.bf16.gmra.mxu0 %v2354
      %v8232 = vpop.f32.mrf.mxu0
      %v8233 = vadd.f32 %v2270, %v8232
      %v8234 = vpop.f32.mrf.mxu0
      %v8235 = vadd.f32 %v2275, %v8234
      %8236 = vmatmul.bf16.gmra.mxu0 %v2357
      %v8237 = vpop.f32.mrf.mxu0
      %v8238 = vadd.f32 %v2280, %v8237
      %v8239 = vpop.f32.mrf.mxu0
      %v8240 = vadd.f32 %v2285, %v8239
      %8241 = vmatmul.bf16.gmra.mxu0 %v2360
      %v8242 = vpop.f32.mrf.mxu0
      %v8243 = vadd.f32 %v2290, %v8242
      %v8244 = vpop.f32.mrf.mxu0
      %v8245 = vadd.f32 %v2295, %v8244
      %8246 = vdwg.mxu0
      %v8247 = vmax.f32 %v8208, 0.0
      %v8248 = vmax.f32 %v8210, 0.0
      %v8249 = vmax.f32 %v8213, 0.0
      %v8250 = vmax.f32 %v8215, 0.0
      %v8251 = vmax.f32 %v8218, 0.0
      %v8252 = vmax.f32 %v8220, 0.0
      %v8253 = vmax.f32 %v8223, 0.0
      %v8254 = vmax.f32 %v8225, 0.0
      %v8255 = vmax.f32 %v8228, 0.0
      %v8256 = vmax.f32 %v8230, 0.0
      %v8257 = vmax.f32 %v8233, 0.0
      %v8258 = vmax.f32 %v8235, 0.0
      %v8259 = vmax.f32 %v8238, 0.0
      %v8260 = vmax.f32 %v8240, 0.0
      %v8261 = vmax.f32 %v8243, 0.0
      %v8262 = vmax.f32 %v8245, 0.0
      %v8263 = vpack.c.bf16 %v8248, %v8247
      %v8264 = vpack.c.bf16 %v8250, %v8249
      %v8265 = vpack.c.bf16 %v8252, %v8251
      %v8266 = vpack.c.bf16 %v8254, %v8253
      %v8267 = vpack.c.bf16 %v8256, %v8255
      %v8268 = vpack.c.bf16 %v8258, %v8257
      %v8269 = vpack.c.bf16 %v8260, %v8259
      %v8270 = vpack.c.bf16 %v8262, %v8261
      %8271 = vmatpush.bf16.msra.mxu0 %v8270
      %8272 = vmatpush.bf16.msra.mxu0 %v8269
      %8273 = vmatpush.bf16.msra.mxu0 %v8268
      %8274 = vmatpush.bf16.msra.mxu0 %v8267
      %8275 = vmatpush.bf16.msra.mxu0 %v8266
      %8276 = vmatpush.bf16.msra.mxu0 %v8265
      %8277 = vmatpush.bf16.msra.mxu0 %v8264
      %8278 = vmatpush.bf16.msra.mxu0 %v8263
      %8279 = vmatmul.bf16.gmra.mxu0 %v2547
      %v8280 = vpop.f32.mrf.mxu0
      %v8281 = vadd.f32 %v2438, %v8280
      %v8282 = vpop.f32.mrf.mxu0
      %v8283 = vadd.f32 %v2443, %v8282
      %8284 = vmatmul.bf16.gmra.mxu0 %v2548
      %v8285 = vpop.f32.mrf.mxu0
      %v8286 = vadd.f32 %v2448, %v8285
      %v8287 = vpop.f32.mrf.mxu0
      %v8288 = vadd.f32 %v2453, %v8287
      %8289 = vmatmul.bf16.gmra.mxu0 %v2549
      %v8290 = vpop.f32.mrf.mxu0
      %v8291 = vadd.f32 %v2458, %v8290
      %v8292 = vpop.f32.mrf.mxu0
      %v8293 = vadd.f32 %v2463, %v8292
      %8294 = vmatmul.bf16.gmra.mxu0 %v2550
      %v8295 = vpop.f32.mrf.mxu0
      %v8296 = vadd.f32 %v2468, %v8295
      %v8297 = vpop.f32.mrf.mxu0
      %v8298 = vadd.f32 %v2473, %v8297
      %8299 = vmatmul.bf16.gmra.mxu0 %v2551
      %v8300 = vpop.f32.mrf.mxu0
      %v8301 = vadd.f32 %v2478, %v8300
      %v8302 = vpop.f32.mrf.mxu0
      %v8303 = vadd.f32 %v2483, %v8302
      %8304 = vmatmul.bf16.gmra.mxu0 %v2552
      %v8305 = vpop.f32.mrf.mxu0
      %v8306 = vadd.f32 %v2488, %v8305
      %v8307 = vpop.f32.mrf.mxu0
      %v8308 = vadd.f32 %v2493, %v8307
      %8309 = vmatmul.bf16.gmra.mxu0 %v2553
      %v8310 = vpop.f32.mrf.mxu0
      %v8311 = vadd.f32 %v2498, %v8310
      %v8312 = vpop.f32.mrf.mxu0
      %v8313 = vadd.f32 %v2503, %v8312
      %8314 = vmatmul.bf16.gmra.mxu0 %v2554
      %v8315 = vpop.f32.mrf.mxu0
      %v8316 = vadd.f32 %v2508, %v8315
      %v8317 = vpop.f32.mrf.mxu0
      %v8318 = vadd.f32 %v2513, %v8317
      %8319 = vdwg.mxu0
      %v8320 = vmax.f32 %v8281, 0.0
      %v8321 = vmax.f32 %v8283, 0.0
      %v8322 = vmax.f32 %v8286, 0.0
      %v8323 = vmax.f32 %v8288, 0.0
      %v8324 = vmax.f32 %v8291, 0.0
      %v8325 = vmax.f32 %v8293, 0.0
      %v8326 = vmax.f32 %v8296, 0.0
      %v8327 = vmax.f32 %v8298, 0.0
      %v8328 = vmax.f32 %v8301, 0.0
      %v8329 = vmax.f32 %v8303, 0.0
      %v8330 = vmax.f32 %v8306, 0.0
      %v8331 = vmax.f32 %v8308, 0.0
      %v8332 = vmax.f32 %v8311, 0.0
      %v8333 = vmax.f32 %v8313, 0.0
      %v8334 = vmax.f32 %v8316, 0.0
      %v8335 = vmax.f32 %v8318, 0.0
      %v8336 = vpack.c.bf16 %v8321, %v8320
      %v8337 = vpack.c.bf16 %v8323, %v8322
      %v8338 = vpack.c.bf16 %v8325, %v8324
      %v8339 = vpack.c.bf16 %v8327, %v8326
      %v8340 = vpack.c.bf16 %v8329, %v8328
      %v8341 = vpack.c.bf16 %v8331, %v8330
      %v8342 = vpack.c.bf16 %v8333, %v8332
      %v8343 = vpack.c.bf16 %v8335, %v8334
      %8344 = vmatpush.bf16.msra.mxu0 %v8343
      %8345 = vmatpush.bf16.msra.mxu0 %v8342
      %8346 = vmatpush.bf16.msra.mxu0 %v8341
      %8347 = vmatpush.bf16.msra.mxu0 %v8340
      %8348 = vmatpush.bf16.msra.mxu0 %v8339
      %8349 = vmatpush.bf16.msra.mxu0 %v8338
      %8350 = vmatpush.bf16.msra.mxu0 %v8337
      %8351 = vmatpush.bf16.msra.mxu0 %v8336
      %8352 = vmatmul.bf16.gmra.mxu0 %v2860
      %v8353 = vpop.f32.mrf.mxu0
      %v8354 = vadd.f32 %v2639, %v8353
      %v8355 = vpop.f32.mrf.mxu0
      %v8356 = vadd.f32 %v2644, %v8355
      %8357 = vmatmul.bf16.gmra.mxu0 %v2861
      %v8358 = vpop.f32.mrf.mxu0
      %v8359 = vadd.f32 %v2649, %v8358
      %v8360 = vpop.f32.mrf.mxu0
      %v8361 = vadd.f32 %v2654, %v8360
      %8362 = vmatmul.bf16.gmra.mxu0 %v2862
      %v8363 = vpop.f32.mrf.mxu0
      %v8364 = vadd.f32 %v2659, %v8363
      %v8365 = vpop.f32.mrf.mxu0
      %v8366 = vadd.f32 %v2664, %v8365
      %8367 = vmatmul.bf16.gmra.mxu0 %v2863
      %v8368 = vpop.f32.mrf.mxu0
      %v8369 = vadd.f32 %v2669, %v8368
      %v8370 = vpop.f32.mrf.mxu0
      %v8371 = vadd.f32 %v2674, %v8370
      %8372 = vmatmul.bf16.gmra.mxu0 %v2864
      %v8373 = vpop.f32.mrf.mxu0
      %v8374 = vadd.f32 %v2679, %v8373
      %v8375 = vpop.f32.mrf.mxu0
      %v8376 = vadd.f32 %v2684, %v8375
      %8377 = vmatmul.bf16.gmra.mxu0 %v2865
      %v8378 = vpop.f32.mrf.mxu0
      %v8379 = vadd.f32 %v2689, %v8378
      %v8380 = vpop.f32.mrf.mxu0
      %v8381 = vadd.f32 %v2694, %v8380
      %8382 = vmatmul.bf16.gmra.mxu0 %v2866
      %v8383 = vpop.f32.mrf.mxu0
      %v8384 = vadd.f32 %v2699, %v8383
      %v8385 = vpop.f32.mrf.mxu0
      %v8386 = vadd.f32 %v2704, %v8385
      %8387 = vmatmul.bf16.gmra.mxu0 %v2867
      %v8388 = vpop.f32.mrf.mxu0
      %v8389 = vadd.f32 %v2709, %v8388
      %v8390 = vpop.f32.mrf.mxu0
      %v8391 = vadd.f32 %v2714, %v8390
      %8392 = vmatmul.bf16.gmra.mxu0 %v2868
      %v8393 = vpop.f32.mrf.mxu0
      %v8394 = vadd.f32 %v2719, %v8393
      %v8395 = vpop.f32.mrf.mxu0
      %v8396 = vadd.f32 %v2724, %v8395
      %8397 = vmatmul.bf16.gmra.mxu0 %v2869
      %v8398 = vpop.f32.mrf.mxu0
      %v8399 = vadd.f32 %v2729, %v8398
      %v8400 = vpop.f32.mrf.mxu0
      %v8401 = vadd.f32 %v2734, %v8400
      %8402 = vmatmul.bf16.gmra.mxu0 %v2870
      %v8403 = vpop.f32.mrf.mxu0
      %v8404 = vadd.f32 %v2739, %v8403
      %v8405 = vpop.f32.mrf.mxu0
      %v8406 = vadd.f32 %v2744, %v8405
      %8407 = vmatmul.bf16.gmra.mxu0 %v2871
      %v8408 = vpop.f32.mrf.mxu0
      %v8409 = vadd.f32 %v2749, %v8408
      %v8410 = vpop.f32.mrf.mxu0
      %v8411 = vadd.f32 %v2754, %v8410
      %8412 = vmatmul.bf16.gmra.mxu0 %v2872
      %v8413 = vpop.f32.mrf.mxu0
      %v8414 = vadd.f32 %v2759, %v8413
      %v8415 = vpop.f32.mrf.mxu0
      %v8416 = vadd.f32 %v2764, %v8415
      %8417 = vmatmul.bf16.gmra.mxu0 %v2873
      %v8418 = vpop.f32.mrf.mxu0
      %v8419 = vadd.f32 %v2769, %v8418
      %v8420 = vpop.f32.mrf.mxu0
      %v8421 = vadd.f32 %v2774, %v8420
      %8422 = vmatmul.bf16.gmra.mxu0 %v2874
      %v8423 = vpop.f32.mrf.mxu0
      %v8424 = vadd.f32 %v2779, %v8423
      %v8425 = vpop.f32.mrf.mxu0
      %v8426 = vadd.f32 %v2784, %v8425
      %8427 = vmatmul.bf16.gmra.mxu0 %v2875
      %v8428 = vpop.f32.mrf.mxu0
      %v8429 = vadd.f32 %v2789, %v8428
      %v8430 = vpop.f32.mrf.mxu0
      %v8431 = vadd.f32 %v2794, %v8430
      %8432 = vdwg.mxu0
      %v8433 = vmax.f32 %v8354, 0.0
      %v8434 = vmax.f32 %v8356, 0.0
      %v8435 = vmax.f32 %v8359, 0.0
      %v8436 = vmax.f32 %v8361, 0.0
      %v8437 = vmax.f32 %v8364, 0.0
      %v8438 = vmax.f32 %v8366, 0.0
      %v8439 = vmax.f32 %v8369, 0.0
      %v8440 = vmax.f32 %v8371, 0.0
      %v8441 = vmax.f32 %v8374, 0.0
      %v8442 = vmax.f32 %v8376, 0.0
      %v8443 = vmax.f32 %v8379, 0.0
      %v8444 = vmax.f32 %v8381, 0.0
      %v8445 = vmax.f32 %v8384, 0.0
      %v8446 = vmax.f32 %v8386, 0.0
      %v8447 = vmax.f32 %v8389, 0.0
      %v8448 = vmax.f32 %v8391, 0.0
      %v8449 = vmax.f32 %v8394, 0.0
      %v8450 = vmax.f32 %v8396, 0.0
      %v8451 = vmax.f32 %v8399, 0.0
      %v8452 = vmax.f32 %v8401, 0.0
      %v8453 = vmax.f32 %v8404, 0.0
      %v8454 = vmax.f32 %v8406, 0.0
      %v8455 = vmax.f32 %v8409, 0.0
      %v8456 = vmax.f32 %v8411, 0.0
      %v8457 = vmax.f32 %v8414, 0.0
      %v8458 = vmax.f32 %v8416, 0.0
      %v8459 = vmax.f32 %v8419, 0.0
      %v8460 = vmax.f32 %v8421, 0.0
      %v8461 = vmax.f32 %v8424, 0.0
      %v8462 = vmax.f32 %v8426, 0.0
      %v8463 = vmax.f32 %v8429, 0.0
      %v8464 = vmax.f32 %v8431, 0.0
      %v8465 = vmax.f32 %v8100, %v8433
      %v8466 = vmax.f32 %v8101, %v8434
      %v8467 = vmax.f32 %v8102, %v8435
      %v8468 = vmax.f32 %v8103, %v8436
      %v8469 = vmax.f32 %v8104, %v8437
      %v8470 = vmax.f32 %v8105, %v8438
      %v8471 = vmax.f32 %v8106, %v8439
      %v8472 = vmax.f32 %v8107, %v8440
      %v8473 = vmax.f32 %v8108, %v8441
      %v8474 = vmax.f32 %v8109, %v8442
      %v8475 = vmax.f32 %v8110, %v8443
      %v8476 = vmax.f32 %v8111, %v8444
      %v8477 = vmax.f32 %v8112, %v8445
      %v8478 = vmax.f32 %v8113, %v8446
      %v8479 = vmax.f32 %v8114, %v8447
      %v8480 = vmax.f32 %v8115, %v8448
      %v8481 = vmax.f32 %v8116, %v8449
      %v8482 = vmax.f32 %v8117, %v8450
      %v8483 = vmax.f32 %v8118, %v8451
      %v8484 = vmax.f32 %v8119, %v8452
      %v8485 = vmax.f32 %v8120, %v8453
      %v8486 = vmax.f32 %v8121, %v8454
      %v8487 = vmax.f32 %v8122, %v8455
      %v8488 = vmax.f32 %v8123, %v8456
      %v8489 = vmax.f32 %v8124, %v8457
      %v8490 = vmax.f32 %v8125, %v8458
      %v8491 = vmax.f32 %v8126, %v8459
      %v8492 = vmax.f32 %v8127, %v8460
      %v8493 = vmax.f32 %v8128, %v8461
      %v8494 = vmax.f32 %v8129, %v8462
      %v8495 = vmax.f32 %v8130, %v8463
      %v8496 = vmax.f32 %v8131, %v8464
      %8497 = vst.msk [vmem:[%s476] sm:$0xff] %vm565, %v8465
      %8498 = vst.msk [vmem:[%s476 + $0x8] sm:$0xff] %vm565, %v8466
      %8499 = vst.msk [vmem:[%s476 + $0x10] sm:$0xff] %vm565, %v8467
      %8500 = vst.msk [vmem:[%s476 + $0x18] sm:$0xff] %vm565, %v8468
      %8501 = vst.msk [vmem:[%s476 + $0x20] sm:$0xff] %vm565, %v8469
      %8502 = vst.msk [vmem:[%s476 + $0x28] sm:$0xff] %vm565, %v8470
      %8503 = vst.msk [vmem:[%s476 + $0x30] sm:$0xff] %vm565, %v8471
      %8504 = vst.msk [vmem:[%s476 + $0x38] sm:$0xff] %vm565, %v8472
      %8505 = vst.msk [vmem:[%s476 + $0x40] sm:$0xff] %vm565, %v8473
      %8506 = vst.msk [vmem:[%s476 + $0x48] sm:$0xff] %vm565, %v8474
      %8507 = vst.msk [vmem:[%s476 + $0x50] sm:$0xff] %vm565, %v8475
      %8508 = vst.msk [vmem:[%s476 + $0x58] sm:$0xff] %vm565, %v8476
      %8509 = vst.msk [vmem:[%s476 + $0x60] sm:$0xff] %vm565, %v8477
      %8510 = vst.msk [vmem:[%s476 + $0x68] sm:$0xff] %vm565, %v8478
      %8511 = vst.msk [vmem:[%s476 + $0x70] sm:$0xff] %vm565, %v8479
      %8512 = vst.msk [vmem:[%s476 + $0x78] sm:$0xff] %vm565, %v8480
      %8513 = vst.msk [vmem:[%s476 + $0x80] sm:$0xff] %vm565, %v8481
      %8514 = vst.msk [vmem:[%s476 + $0x88] sm:$0xff] %vm565, %v8482
      %8515 = vst.msk [vmem:[%s476 + $0x90] sm:$0xff] %vm565, %v8483
      %8516 = vst.msk [vmem:[%s476 + $0x98] sm:$0xff] %vm565, %v8484
      %8517 = vst.msk [vmem:[%s476 + $0xa0] sm:$0xff] %vm565, %v8485
      %8518 = vst.msk [vmem:[%s476 + $0xa8] sm:$0xff] %vm565, %v8486
      %8519 = vst.msk [vmem:[%s476 + $0xb0] sm:$0xff] %vm565, %v8487
      %8520 = vst.msk [vmem:[%s476 + $0xb8] sm:$0xff] %vm565, %v8488
      %8521 = vst.msk [vmem:[%s476 + $0xc0] sm:$0xff] %vm565, %v8489
      %8522 = vst.msk [vmem:[%s476 + $0xc8] sm:$0xff] %vm565, %v8490
      %8523 = vst.msk [vmem:[%s476 + $0xd0] sm:$0xff] %vm565, %v8491
      %8524 = vst.msk [vmem:[%s476 + $0xd8] sm:$0xff] %vm565, %v8492
      %8525 = vst.msk [vmem:[%s476 + $0xe0] sm:$0xff] %vm565, %v8493
      %8526 = vst.msk [vmem:[%s476 + $0xe8] sm:$0xff] %vm565, %v8494
      %8527 = vst.msk [vmem:[%s476 + $0xf0] sm:$0xff] %vm565, %v8495
      %8528 = vst.msk [vmem:[%s476 + $0xf8] sm:$0xff] %vm565, %v8496
      %p8529 = scmp.lt.s32.totalorder %s26, 1
      %s8530 = scalar_select %p8529, %s26, 1
      %p8531 = scmp.lt.s32.totalorder %s27, 0
      %s8532 = scalar_select %p8531, %s27, 0
      %s8533 = smul.addr %s8530, 32
      %s8534 = sadd.s32 %s8532, %s8533
      %s8535 = smul.addr %s8534, 8
      %s8536 = scalar_lea.vmem %s11, %s8535
      // Predicated region
      $region65: #{ri_encoder_forward.1} parent=63 // pred_check
        %p8537 = pneg %p306
      $region66: #{ri_encoder_forward.1} parent=63 // pred_check_branch
        %8539 = sbr.rel (%p8537) target = $region68
      $region67: #{ri_encoder_forward.1} parent=63 // pred_region
        _
      $region68: #{ri_encoder_forward.1} parent=63 // pred_fallthru
        _
    $region64: #{ri_encoder_forward.1} parent=5 // pred_fallthru
      _
    %p8540 = scmp.le.s32.totalorder 2, %s17
    // Predicated region
    $region69: #{ri_encoder_forward.1} parent=5 // pred_check
      %p8541 = pneg %p8540
    $region70: #{ri_encoder_forward.1} parent=5 // pred_check_branch
      %8543 = sbr.rel (%p8541) target = $region72
    $region71: #{ri_encoder_forward.1} parent=5 // pred_region
      %s8544 = ssub.s32 %s17, 2
      // Predicated region
      $region73: #{ri_encoder_forward.1} parent=71 // pred_check
        %p8545 = pneg %p312
      $region74: #{ri_encoder_forward.1} parent=71 // pred_check_branch
        %8547 = sbr.rel (%p8545) target = $region76
      $region75: #{ri_encoder_forward.1} parent=71 // pred_region
        %p8548 = scmp.lt.s32.totalorder %s28, 1
        %s8549 = scalar_select %p8548, %s28, 1
        %p8550 = scmp.lt.s32.totalorder %s29, 0
        %s8551 = scalar_select %p8550, %s29, 0
        %s8552 = smul.addr %s8549, 32
        %s8553 = sadd.s32 %s8551, %s8552
        %s8554 = smul.addr %s8553, 8
        %s8555 = scalar_lea.vmem %s11, %s8554
      $region76: #{ri_encoder_forward.1} parent=71 // pred_fallthru
        _
    $region72: #{ri_encoder_forward.1} parent=5 // pred_fallthru
      _
  $region6: #{ri_encoder_forward.1} parent=0 // loop_footer
    %s21 = sadd.s32 1, %s17
  $region7: #{ri_encoder_forward.1} parent=0 // loop_footer_branch
    %16 = sbr.rel target = $region3
  $region8: #{ri_encoder_forward.1} parent=0 // loop_exit
    _

</llo_original>
